<compile_context>
chip_gen: v6e
topology: v6e:2x2x1
jax: 0.10.0
libtpu: 0.0.40
codegen_flags: <defaults>
</compile_context>

<pallas_src>
import numpy as np
import jax
import jax.numpy as jnp
from jax import lax
from jax.experimental import pallas as pl
from jax.experimental.pallas import tpu as pltpu

# ----- problem sizes (small, consistent with 704 = 512 + 192 fused dim) -----
B = 2        # batch
T = 8        # number of time steps
DA = 512     # audio feature dim
DV = 192     # visual feature dim          (DA + DV = 704, as in asp(704))
DH = 64      # hidden dim of the ASP attention MLP
DOUT = 512   # output embedding dim (linear 1408 -> 512)
EPS = 1e-6

F32 = jnp.float32
BF16 = jnp.bfloat16
_DN_NT = (((1,), (1,)), ((), ()))   # contract last dims of both operands (A @ B^T)


def fusion_kernel(a_ref, v_ref,
                  wav_ref, wva_ref,
                  w1a_ref, w1v_ref, b1_ref, w2_ref, b2_ref,
                  wmua_ref, wmuv_ref, wsga_ref, wsgv_ref, blin_ref,
                  out_ref):
    # Single grid step; B is tiny, so unroll the batch loop statically.
    for b in range(B):
        a_bf = a_ref[b]                      # (T, DA) bf16
        v_bf = v_ref[b]                      # (T, DV) bf16
        a = a_bf.astype(F32)
        v = v_bf.astype(F32)

        # ---------------- CAM: joint cross attention ----------------
        # (1/sqrt(D) softmax scales are pre-folded into wav / wva in the wrapper)
        qa = jnp.dot(a_bf, wav_ref[...], preferred_element_type=F32)     # (T, DV)
        s_av = lax.dot_general(qa.astype(BF16), v_bf, _DN_NT,
                               preferred_element_type=F32)               # (T, T)
        s_av = s_av - jnp.max(s_av, axis=-1, keepdims=True)
        p_av = jnp.exp(s_av)
        p_av = p_av * pl.reciprocal(jnp.sum(p_av, axis=-1, keepdims=True),
                                    approx=True)
        h_v = v + jnp.dot(p_av.astype(BF16), v_bf,
                          preferred_element_type=F32)                    # (T, DV)

        qv = jnp.dot(v_bf, wva_ref[...], preferred_element_type=F32)     # (T, DA)
        s_va = lax.dot_general(qv.astype(BF16), a_bf, _DN_NT,
                               preferred_element_type=F32)               # (T, T)
        s_va = s_va - jnp.max(s_va, axis=-1, keepdims=True)
        p_va = jnp.exp(s_va)
        p_va = p_va * pl.reciprocal(jnp.sum(p_va, axis=-1, keepdims=True),
                                    approx=True)
        h_a = a + jnp.dot(p_va.astype(BF16), a_bf,
                          preferred_element_type=F32)                    # (T, DA)

        h_a_bf = h_a.astype(BF16)
        h_v_bf = h_v.astype(BF16)

        # ---------------- Attentive statistics pooling ----------------
        # e_t = w2 . tanh(W1 h_t + b1) + b2 ; alpha = softmax_t(e)
        t_act = jnp.tanh(jnp.dot(h_a_bf, w1a_ref[...], preferred_element_type=F32)
                         + jnp.dot(h_v_bf, w1v_ref[...], preferred_element_type=F32)
                         + b1_ref[...])                                  # (T, DH)
        # (DH,1) matmul replaced by VPU broadcast-multiply + lane reduce
        e = jnp.sum(t_act * w2_ref[...], axis=-1, keepdims=True) + b2_ref[...]  # (T,1)
        e = e - jnp.max(e, axis=0, keepdims=True)
        alpha = jnp.exp(e)
        alpha = alpha * pl.reciprocal(jnp.sum(alpha, axis=0, keepdims=True),
                                      approx=True)                       # (T, 1)

        # mu path of the final linear at M=T, then alpha-weighted reduce over T:
        #   sum_t alpha_t * (h_t @ W)  ==  (sum_t alpha_t h_t) @ W
        ya = jnp.dot(h_a_bf, wmua_ref[...], preferred_element_type=F32)  # (T, DOUT)
        yv = jnp.dot(h_v_bf, wmuv_ref[...], preferred_element_type=F32)  # (T, DOUT)
        y_mu = jnp.sum(alpha * (ya + yv), axis=0, keepdims=True)         # (1, DOUT)

        # sigma path (sqrt is nonlinear -> pool first, then matmul)
        mu_a = jnp.sum(alpha * h_a, axis=0, keepdims=True)               # (1, DA)
        mu_v = jnp.sum(alpha * h_v, axis=0, keepdims=True)               # (1, DV)
        var_a = jnp.sum(alpha * h_a * h_a, axis=0, keepdims=True) - mu_a * mu_a
        var_v = jnp.sum(alpha * h_v * h_v, axis=0, keepdims=True) - mu_v * mu_v
        sg_a = jnp.sqrt(jnp.clip(var_a, EPS, None))                      # (1, DA)
        sg_v = jnp.sqrt(jnp.clip(var_v, EPS, None))                      # (1, DV)

        y = (y_mu
             + jnp.dot(sg_a.astype(BF16), wsga_ref[...], preferred_element_type=F32)
             + jnp.dot(sg_v.astype(BF16), wsgv_ref[...], preferred_element_type=F32)
             + blin_ref[...])                                            # (1, DOUT)
        out_ref[pl.ds(b, 1), :] = y.astype(out_ref.dtype)


def fusion_forward(a_bf, v_bf, kparams):
    """kparams = prepared (bf16, scale-folded) params."""
    (wav, wva, w1a, w1v, b1, w2, b2, wmua, wmuv, wsga, wsgv, blin) = kparams

    def full(x):
        return pl.BlockSpec(x.shape, lambda i, _s=x.shape: tuple(0 for _ in _s))

    grid_spec = pltpu.PrefetchScalarGridSpec(
        num_scalar_prefetch=0,
        grid=(1,),                               # single step: each weight DMA'd once
        in_specs=[
            full(a_bf), full(v_bf),
            full(wav), full(wva),
            full(w1a), full(w1v), full(b1), full(w2), full(b2),
            full(wmua), full(wmuv), full(wsga), full(wsgv), full(blin),
        ],
        out_specs=pl.BlockSpec((B, DOUT), lambda i: (0, 0)),
    )
    return pl.pallas_call(
        fusion_kernel,
        out_shape=jax.ShapeDtypeStruct((B, DOUT), jnp.float32),
        grid_spec=grid_spec,
        compiler_params=pltpu.CompilerParams(
            dimension_semantics=("arbitrary",)),   # tiny problem: keep on one core
    )(a_bf, v_bf, wav, wva, w1a, w1v, b1, w2, b2,
      wmua, wmuv, wsga, wsgv, blin)


def prepare_params(params):
    """Fold softmax scales into wav/wva and cast weight matrices to bf16."""
    (wav, wva, w1a, w1v, b1, w2, b2, wmua, wmuv, wsga, wsgv, blin) = params
    bf = lambda x: x.astype(BF16)
    return (bf(wav / np.sqrt(DV)), bf(wva / np.sqrt(DA)),
            bf(w1a), bf(w1v), b1, w2, b2,
            bf(wmua), bf(wmuv), bf(wsga), bf(wsgv), blin)


def fusion_reference(a_bf, v_bf, kparams):
    """Pure-JAX f32 reference on the same (bf16, scale-folded) operands."""
    (wav, wva, w1a, w1v, b1, w2, b2, wmua, wmuv, wsga, wsgv, blin) = [
        p.astype(F32) for p in kparams]
    a = a_bf.astype(F32)
    v = v_bf.astype(F32)

    s_av = jnp.einsum("btd,de,bse->bts", a, wav, v)        # scale folded in wav
    h_v = v + jnp.einsum("bts,bse->bte", jax.nn.softmax(s_av, axis=-1), v)
    s_va = jnp.einsum("bte,ed,bsd->bts", v, wva, a)        # scale folded in wva
    h_a = a + jnp.einsum("bts,bsd->btd", jax.nn.softmax(s_va, axis=-1), a)

    t_act = jnp.tanh(h_a @ w1a + h_v @ w1v + b1)                          # (B,T,DH)
    e = jnp.sum(t_act * w2, axis=-1, keepdims=True) + b2                  # (B,T,1)
    alpha = jax.nn.softmax(e, axis=1)
    mu_a = jnp.sum(alpha * h_a, axis=1)
    mu_v = jnp.sum(alpha * h_v, axis=1)
    sg_a = jnp.sqrt(jnp.clip(jnp.sum(alpha * h_a * h_a, axis=1) - mu_a**2, EPS, None))
    sg_v = jnp.sqrt(jnp.clip(jnp.sum(alpha * h_v * h_v, axis=1) - mu_v**2, EPS, None))
    return mu_a @ wmua + mu_v @ wmuv + sg_a @ wsga + sg_v @ wsgv + blin


def init_params(key):
    ks = jax.random.split(key, 12)
    norm = lambda k, shape, fan_in: (jax.random.normal(k, shape, F32)
                                     / np.sqrt(fan_in))
    wav = norm(ks[0], (DA, DV), DA)
    wva = norm(ks[1], (DV, DA), DV)
    w1a = norm(ks[2], (DA, DH), DA + DV)
    w1v = norm(ks[3], (DV, DH), DA + DV)
    b1 = jnp.zeros((1, DH), F32)
    w2 = norm(ks[4], (1, DH), DH)          # stored as a row -> VPU reduce in-kernel
    b2 = jnp.zeros((1, 1), F32)
    wmua = norm(ks[5], (DA, DOUT), 2 * (DA + DV))
    wmuv = norm(ks[6], (DV, DOUT), 2 * (DA + DV))
    wsga = norm(ks[7], (DA, DOUT), 2 * (DA + DV))
    wsgv = norm(ks[8], (DV, DOUT), 2 * (DA + DV))
    blin = jnp.zeros((1, DOUT), F32)
    return (wav, wva, w1a, w1v, b1, w2, b2, wmua, wmuv, wsga, wsgv, blin)


if __name__ == "__main__":
    key = jax.random.PRNGKey(0)
    k_a, k_v, k_p = jax.random.split(key, 3)
    a_feat = jax.random.normal(k_a, (B, T, DA), F32)
    v_feat = jax.random.normal(k_v, (B, T, DV), F32)
    params = init_params(k_p)

    # bf16 streaming of activations + weights (f32 accumulation inside the kernel)
    a_bf = a_feat.astype(BF16)
    v_bf = v_feat.astype(BF16)
    kparams = prepare_params(params)

    out = fusion_forward(a_bf, v_bf, kparams)
    out = jax.block_until_ready(out)
    assert out.shape == (B, DOUT), out.shape

    ref = jax.block_until_ready(fusion_reference(a_bf, v_bf, kparams))
    np.testing.assert_allclose(np.asarray(out), np.asarray(ref),
                               rtol=2e-2, atol=2e-2)
    print("KERNEL_OK")
</pallas_src>

<mosaic_0001>
module attributes {stable_mosaic.version = 11 : i64} {
  func.func @fusion_kernel(%arg0: i32, %arg1: memref<2x8x512xbf16, #tpu.memory_space<vmem>>, %arg2: memref<2x8x192xbf16, #tpu.memory_space<vmem>>, %arg3: memref<512x192xbf16, #tpu.memory_space<vmem>>, %arg4: memref<192x512xbf16, #tpu.memory_space<vmem>>, %arg5: memref<512x64xbf16, #tpu.memory_space<vmem>>, %arg6: memref<192x64xbf16, #tpu.memory_space<vmem>>, %arg7: memref<1x64xf32, #tpu.memory_space<vmem>>, %arg8: memref<1x64xf32, #tpu.memory_space<vmem>>, %arg9: memref<1x1xf32, #tpu.memory_space<vmem>>, %arg10: memref<512x512xbf16, #tpu.memory_space<vmem>>, %arg11: memref<192x512xbf16, #tpu.memory_space<vmem>>, %arg12: memref<512x512xbf16, #tpu.memory_space<vmem>>, %arg13: memref<192x512xbf16, #tpu.memory_space<vmem>>, %arg14: memref<1x512xf32, #tpu.memory_space<vmem>>, %arg15: memref<2x512xf32, #tpu.memory_space<vmem>>) attributes {dimension_semantics = [#tpu.dimension_semantics<arbitrary>], iteration_bounds = array<i64: 1>, scalar_prefetch = 0 : i64, scratch_operands = 0 : i64, tpu.core_type = #tpu.core_type<tc>, window_params = [{pipeline_mode = #tpu.pipeline_mode<synchronous>, transform_indices = @transform_0, window_bounds = array<i64: 2, 8, 512>}, {pipeline_mode = #tpu.pipeline_mode<synchronous>, transform_indices = @transform_1, window_bounds = array<i64: 2, 8, 192>}, {pipeline_mode = #tpu.pipeline_mode<synchronous>, transform_indices = @transform_2, window_bounds = array<i64: 512, 192>}, {pipeline_mode = #tpu.pipeline_mode<synchronous>, transform_indices = @transform_3, window_bounds = array<i64: 192, 512>}, {pipeline_mode = #tpu.pipeline_mode<synchronous>, transform_indices = @transform_4, window_bounds = array<i64: 512, 64>}, {pipeline_mode = #tpu.pipeline_mode<synchronous>, transform_indices = @transform_5, window_bounds = array<i64: 192, 64>}, {pipeline_mode = #tpu.pipeline_mode<synchronous>, transform_indices = @transform_6, window_bounds = array<i64: 1, 64>}, {pipeline_mode = #tpu.pipeline_mode<synchronous>, transform_indices = @transform_7, window_bounds = array<i64: 1, 64>}, {pipeline_mode = #tpu.pipeline_mode<synchronous>, transform_indices = @transform_8, window_bounds = array<i64: 1, 1>}, {pipeline_mode = #tpu.pipeline_mode<synchronous>, transform_indices = @transform_9, window_bounds = array<i64: 512, 512>}, {pipeline_mode = #tpu.pipeline_mode<synchronous>, transform_indices = @transform_10, window_bounds = array<i64: 192, 512>}, {pipeline_mode = #tpu.pipeline_mode<synchronous>, transform_indices = @transform_11, window_bounds = array<i64: 512, 512>}, {pipeline_mode = #tpu.pipeline_mode<synchronous>, transform_indices = @transform_12, window_bounds = array<i64: 192, 512>}, {pipeline_mode = #tpu.pipeline_mode<synchronous>, transform_indices = @transform_13, window_bounds = array<i64: 1, 512>}, {pipeline_mode = #tpu.pipeline_mode<synchronous>, transform_indices = @transform_14, window_bounds = array<i64: 2, 512>}]} {
    %c0 = arith.constant 0 : index
    %c0_0 = arith.constant 0 : index
    %c0_1 = arith.constant 0 : index
    %0 = vector.load %arg1[%c0, %c0_0, %c0_1] : memref<2x8x512xbf16, #tpu.memory_space<vmem>>, vector<1x8x512xbf16>
    %1 = vector.shape_cast %0 : vector<1x8x512xbf16> to vector<8x512xbf16>
    %c0_2 = arith.constant 0 : index
    %c0_3 = arith.constant 0 : index
    %c0_4 = arith.constant 0 : index
    %2 = vector.load %arg2[%c0_2, %c0_3, %c0_4] : memref<2x8x192xbf16, #tpu.memory_space<vmem>>, vector<1x8x192xbf16>
    %3 = vector.shape_cast %2 : vector<1x8x192xbf16> to vector<8x192xbf16>
    %4 = arith.extf %1 : vector<8x512xbf16> to vector<8x512xf32>
    %5 = arith.extf %3 : vector<8x192xbf16> to vector<8x192xf32>
    %c0_5 = arith.constant 0 : index
    %c0_6 = arith.constant 0 : index
    %6 = vector.load %arg3[%c0_5, %c0_6] : memref<512x192xbf16, #tpu.memory_space<vmem>>, vector<512x192xbf16>
    %cst = arith.constant dense<0.000000e+00> : vector<8x192xf32>
    %7 = tpu.matmul %1, %6, %cst {dimension_numbers = #tpu.dot_dimension_numbers<[1], [0], [0], [1], [0, 0, 1, 1], [], []>} : vector<8x512xbf16>, vector<512x192xbf16>, vector<8x192xf32> -> vector<8x192xf32>
    %8 = arith.truncf %7 : vector<8x192xf32> to vector<8x192xbf16>
    %cst_7 = arith.constant dense<0.000000e+00> : vector<8x8xf32>
    %9 = tpu.matmul %8, %3, %cst_7 {dimension_numbers = #tpu.dot_dimension_numbers<[1], [1], [0], [0], [0, 0, 1, 0], [], []>} : vector<8x192xbf16>, vector<8x192xbf16>, vector<8x8xf32> -> vector<8x8xf32>
    %cst_8 = arith.constant dense<0xFF800000> : vector<8xf32>
    %10 = vector.multi_reduction <maximumf>, %9, %cst_8 [1] : vector<8x8xf32> to vector<8xf32>
    %11 = vector.shape_cast %10 : vector<8xf32> to vector<8x1xf32>
    %12 = vector.broadcast %11 : vector<8x1xf32> to vector<8x8xf32>
    %13 = arith.subf %9, %12 : vector<8x8xf32>
    %14 = math.exp %13 : vector<8x8xf32>
    %cst_9 = arith.constant dense<0.000000e+00> : vector<8xf32>
    %15 = vector.multi_reduction <add>, %14, %cst_9 [1] : vector<8x8xf32> to vector<8xf32>
    %16 = vector.shape_cast %15 : vector<8xf32> to vector<8x1xf32>
    %17 = tpu.reciprocal %16 {approx = true} : vector<8x1xf32> -> vector<8x1xf32>
    %18 = vector.broadcast %17 : vector<8x1xf32> to vector<8x8xf32>
    %19 = arith.mulf %14, %18 : vector<8x8xf32>
    %20 = arith.truncf %19 : vector<8x8xf32> to vector<8x8xbf16>
    %cst_10 = arith.constant dense<0.000000e+00> : vector<8x192xf32>
    %21 = tpu.matmul %20, %3, %cst_10 {dimension_numbers = #tpu.dot_dimension_numbers<[1], [0], [0], [1], [0, 0, 1, 1], [], []>} : vector<8x8xbf16>, vector<8x192xbf16>, vector<8x192xf32> -> vector<8x192xf32>
    %22 = arith.addf %5, %21 : vector<8x192xf32>
    %c0_11 = arith.constant 0 : index
    %c0_12 = arith.constant 0 : index
    %23 = vector.load %arg4[%c0_11, %c0_12] : memref<192x512xbf16, #tpu.memory_space<vmem>>, vector<192x512xbf16>
    %cst_13 = arith.constant dense<0.000000e+00> : vector<8x512xf32>
    %24 = tpu.matmul %3, %23, %cst_13 {dimension_numbers = #tpu.dot_dimension_numbers<[1], [0], [0], [1], [0, 0, 1, 1], [], []>} : vector<8x192xbf16>, vector<192x512xbf16>, vector<8x512xf32> -> vector<8x512xf32>
    %25 = arith.truncf %24 : vector<8x512xf32> to vector<8x512xbf16>
    %cst_14 = arith.constant dense<0.000000e+00> : vector<8x8xf32>
    %26 = tpu.matmul %25, %1, %cst_14 {dimension_numbers = #tpu.dot_dimension_numbers<[1], [1], [0], [0], [0, 0, 1, 0], [], []>} : vector<8x512xbf16>, vector<8x512xbf16>, vector<8x8xf32> -> vector<8x8xf32>
    %cst_15 = arith.constant dense<0xFF800000> : vector<8xf32>
    %27 = vector.multi_reduction <maximumf>, %26, %cst_15 [1] : vector<8x8xf32> to vector<8xf32>
    %28 = vector.shape_cast %27 : vector<8xf32> to vector<8x1xf32>
    %29 = vector.broadcast %28 : vector<8x1xf32> to vector<8x8xf32>
    %30 = arith.subf %26, %29 : vector<8x8xf32>
    %31 = math.exp %30 : vector<8x8xf32>
    %cst_16 = arith.constant dense<0.000000e+00> : vector<8xf32>
    %32 = vector.multi_reduction <add>, %31, %cst_16 [1] : vector<8x8xf32> to vector<8xf32>
    %33 = vector.shape_cast %32 : vector<8xf32> to vector<8x1xf32>
    %34 = tpu.reciprocal %33 {approx = true} : vector<8x1xf32> -> vector<8x1xf32>
    %35 = vector.broadcast %34 : vector<8x1xf32> to vector<8x8xf32>
    %36 = arith.mulf %31, %35 : vector<8x8xf32>
    %37 = arith.truncf %36 : vector<8x8xf32> to vector<8x8xbf16>
    %cst_17 = arith.constant dense<0.000000e+00> : vector<8x512xf32>
    %38 = tpu.matmul %37, %1, %cst_17 {dimension_numbers = #tpu.dot_dimension_numbers<[1], [0], [0], [1], [0, 0, 1, 1], [], []>} : vector<8x8xbf16>, vector<8x512xbf16>, vector<8x512xf32> -> vector<8x512xf32>
    %39 = arith.addf %4, %38 : vector<8x512xf32>
    %40 = arith.truncf %39 : vector<8x512xf32> to vector<8x512xbf16>
    %41 = arith.truncf %22 : vector<8x192xf32> to vector<8x192xbf16>
    %c0_18 = arith.constant 0 : index
    %c0_19 = arith.constant 0 : index
    %42 = vector.load %arg5[%c0_18, %c0_19] : memref<512x64xbf16, #tpu.memory_space<vmem>>, vector<512x64xbf16>
    %cst_20 = arith.constant dense<0.000000e+00> : vector<8x64xf32>
    %43 = tpu.matmul %40, %42, %cst_20 {dimension_numbers = #tpu.dot_dimension_numbers<[1], [0], [0], [1], [0, 0, 1, 1], [], []>} : vector<8x512xbf16>, vector<512x64xbf16>, vector<8x64xf32> -> vector<8x64xf32>
    %c0_21 = arith.constant 0 : index
    %c0_22 = arith.constant 0 : index
    %44 = vector.load %arg6[%c0_21, %c0_22] : memref<192x64xbf16, #tpu.memory_space<vmem>>, vector<192x64xbf16>
    %cst_23 = arith.constant dense<0.000000e+00> : vector<8x64xf32>
    %45 = tpu.matmul %41, %44, %cst_23 {dimension_numbers = #tpu.dot_dimension_numbers<[1], [0], [0], [1], [0, 0, 1, 1], [], []>} : vector<8x192xbf16>, vector<192x64xbf16>, vector<8x64xf32> -> vector<8x64xf32>
    %46 = arith.addf %43, %45 : vector<8x64xf32>
    %c0_24 = arith.constant 0 : index
    %c0_25 = arith.constant 0 : index
    %47 = vector.load %arg7[%c0_24, %c0_25] : memref<1x64xf32, #tpu.memory_space<vmem>>, vector<1x64xf32>
    %48 = vector.broadcast %47 : vector<1x64xf32> to vector<8x64xf32>
    %49 = arith.addf %46, %48 : vector<8x64xf32>
    %50 = math.tanh %49 : vector<8x64xf32>
    %c0_26 = arith.constant 0 : index
    %c0_27 = arith.constant 0 : index
    %51 = vector.load %arg8[%c0_26, %c0_27] : memref<1x64xf32, #tpu.memory_space<vmem>>, vector<1x64xf32>
    %52 = vector.broadcast %51 : vector<1x64xf32> to vector<8x64xf32>
    %53 = arith.mulf %50, %52 : vector<8x64xf32>
    %cst_28 = arith.constant dense<0.000000e+00> : vector<8xf32>
    %54 = vector.multi_reduction <add>, %53, %cst_28 [1] : vector<8x64xf32> to vector<8xf32>
    %55 = vector.shape_cast %54 : vector<8xf32> to vector<8x1xf32>
    %c0_29 = arith.constant 0 : index
    %c0_30 = arith.constant 0 : index
    %56 = vector.load %arg9[%c0_29, %c0_30] : memref<1x1xf32, #tpu.memory_space<vmem>>, vector<1x1xf32>
    %57 = vector.broadcast %56 : vector<1x1xf32> to vector<8x1xf32>
    %58 = arith.addf %55, %57 : vector<8x1xf32>
    %cst_31 = arith.constant dense<0xFF800000> : vector<1xf32>
    %59 = vector.multi_reduction <maximumf>, %58, %cst_31 [0] : vector<8x1xf32> to vector<1xf32>
    %60 = vector.shape_cast %59 : vector<1xf32> to vector<1x1xf32>
    %61 = vector.broadcast %60 : vector<1x1xf32> to vector<8x1xf32>
    %62 = arith.subf %58, %61 : vector<8x1xf32>
    %63 = math.exp %62 : vector<8x1xf32>
    %cst_32 = arith.constant dense<0.000000e+00> : vector<1xf32>
    %64 = vector.multi_reduction <add>, %63, %cst_32 [0] : vector<8x1xf32> to vector<1xf32>
    %65 = vector.shape_cast %64 : vector<1xf32> to vector<1x1xf32>
    %66 = tpu.reciprocal %65 {approx = true} : vector<1x1xf32> -> vector<1x1xf32>
    %67 = vector.broadcast %66 : vector<1x1xf32> to vector<8x1xf32>
    %68 = arith.mulf %63, %67 : vector<8x1xf32>
    %c0_33 = arith.constant 0 : index
    %c0_34 = arith.constant 0 : index
    %69 = vector.load %arg10[%c0_33, %c0_34] : memref<512x512xbf16, #tpu.memory_space<vmem>>, vector<512x512xbf16>
    %cst_35 = arith.constant dense<0.000000e+00> : vector<8x512xf32>
    %70 = tpu.matmul %40, %69, %cst_35 {dimension_numbers = #tpu.dot_dimension_numbers<[1], [0], [0], [1], [0, 0, 1, 1], [], []>} : vector<8x512xbf16>, vector<512x512xbf16>, vector<8x512xf32> -> vector<8x512xf32>
    %c0_36 = arith.constant 0 : index
    %c0_37 = arith.constant 0 : index
    %71 = vector.load %arg11[%c0_36, %c0_37] : memref<192x512xbf16, #tpu.memory_space<vmem>>, vector<192x512xbf16>
    %cst_38 = arith.constant dense<0.000000e+00> : vector<8x512xf32>
    %72 = tpu.matmul %41, %71, %cst_38 {dimension_numbers = #tpu.dot_dimension_numbers<[1], [0], [0], [1], [0, 0, 1, 1], [], []>} : vector<8x192xbf16>, vector<192x512xbf16>, vector<8x512xf32> -> vector<8x512xf32>
    %73 = arith.addf %70, %72 : vector<8x512xf32>
    %74 = vector.broadcast %68 : vector<8x1xf32> to vector<8x512xf32>
    %75 = arith.mulf %74, %73 : vector<8x512xf32>
    %cst_39 = arith.constant dense<0.000000e+00> : vector<512xf32>
    %76 = vector.multi_reduction <add>, %75, %cst_39 [0] : vector<8x512xf32> to vector<512xf32>
    %77 = vector.shape_cast %76 : vector<512xf32> to vector<1x512xf32>
    %78 = vector.broadcast %68 : vector<8x1xf32> to vector<8x512xf32>
    %79 = arith.mulf %78, %39 : vector<8x512xf32>
    %cst_40 = arith.constant dense<0.000000e+00> : vector<512xf32>
    %80 = vector.multi_reduction <add>, %79, %cst_40 [0] : vector<8x512xf32> to vector<512xf32>
    %81 = vector.shape_cast %80 : vector<512xf32> to vector<1x512xf32>
    %82 = vector.broadcast %68 : vector<8x1xf32> to vector<8x192xf32>
    %83 = arith.mulf %82, %22 : vector<8x192xf32>
    %cst_41 = arith.constant dense<0.000000e+00> : vector<192xf32>
    %84 = vector.multi_reduction <add>, %83, %cst_41 [0] : vector<8x192xf32> to vector<192xf32>
    %85 = vector.shape_cast %84 : vector<192xf32> to vector<1x192xf32>
    %86 = vector.broadcast %68 : vector<8x1xf32> to vector<8x512xf32>
    %87 = arith.mulf %86, %39 : vector<8x512xf32>
    %88 = arith.mulf %87, %39 : vector<8x512xf32>
    %cst_42 = arith.constant dense<0.000000e+00> : vector<512xf32>
    %89 = vector.multi_reduction <add>, %88, %cst_42 [0] : vector<8x512xf32> to vector<512xf32>
    %90 = vector.shape_cast %89 : vector<512xf32> to vector<1x512xf32>
    %91 = arith.mulf %81, %81 : vector<1x512xf32>
    %92 = arith.subf %90, %91 : vector<1x512xf32>
    %93 = vector.broadcast %68 : vector<8x1xf32> to vector<8x192xf32>
    %94 = arith.mulf %93, %22 : vector<8x192xf32>
    %95 = arith.mulf %94, %22 : vector<8x192xf32>
    %cst_43 = arith.constant dense<0.000000e+00> : vector<192xf32>
    %96 = vector.multi_reduction <add>, %95, %cst_43 [0] : vector<8x192xf32> to vector<192xf32>
    %97 = vector.shape_cast %96 : vector<192xf32> to vector<1x192xf32>
    %98 = arith.mulf %85, %85 : vector<1x192xf32>
    %99 = arith.subf %97, %98 : vector<1x192xf32>
    %cst_44 = arith.constant 9.99999997E-7 : f32
    %100 = vector.broadcast %cst_44 : f32 to vector<1x512xf32>
    %101 = arith.maximumf %100, %92 : vector<1x512xf32>
    %102 = math.sqrt %101 : vector<1x512xf32>
    %cst_45 = arith.constant 9.99999997E-7 : f32
    %103 = vector.broadcast %cst_45 : f32 to vector<1x192xf32>
    %104 = arith.maximumf %103, %99 : vector<1x192xf32>
    %105 = math.sqrt %104 : vector<1x192xf32>
    %106 = arith.truncf %102 : vector<1x512xf32> to vector<1x512xbf16>
    %c0_46 = arith.constant 0 : index
    %c0_47 = arith.constant 0 : index
    %107 = vector.load %arg12[%c0_46, %c0_47] : memref<512x512xbf16, #tpu.memory_space<vmem>>, vector<512x512xbf16>
    %cst_48 = arith.constant dense<0.000000e+00> : vector<1x512xf32>
    %108 = tpu.matmul %106, %107, %cst_48 {dimension_numbers = #tpu.dot_dimension_numbers<[1], [0], [0], [1], [0, 0, 1, 1], [], []>} : vector<1x512xbf16>, vector<512x512xbf16>, vector<1x512xf32> -> vector<1x512xf32>
    %109 = arith.addf %77, %108 : vector<1x512xf32>
    %110 = arith.truncf %105 : vector<1x192xf32> to vector<1x192xbf16>
    %c0_49 = arith.constant 0 : index
    %c0_50 = arith.constant 0 : index
    %111 = vector.load %arg13[%c0_49, %c0_50] : memref<192x512xbf16, #tpu.memory_space<vmem>>, vector<192x512xbf16>
    %cst_51 = arith.constant dense<0.000000e+00> : vector<1x512xf32>
    %112 = tpu.matmul %110, %111, %cst_51 {dimension_numbers = #tpu.dot_dimension_numbers<[1], [0], [0], [1], [0, 0, 1, 1], [], []>} : vector<1x192xbf16>, vector<192x512xbf16>, vector<1x512xf32> -> vector<1x512xf32>
    %113 = arith.addf %109, %112 : vector<1x512xf32>
    %c0_52 = arith.constant 0 : index
    %c0_53 = arith.constant 0 : index
    %114 = vector.load %arg14[%c0_52, %c0_53] : memref<1x512xf32, #tpu.memory_space<vmem>>, vector<1x512xf32>
    %115 = arith.addf %113, %114 : vector<1x512xf32>
    %c0_54 = arith.constant 0 : index
    %c0_55 = arith.constant 0 : index
    %116 = vector.load %arg15[%c0_54, %c0_55] : memref<2x512xf32, #tpu.memory_space<vmem>>, vector<1x512xf32>
    tpu.vector_store %arg15[%c0_54, %c0_55], %115 {strides = array<i32>} : memref<2x512xf32, #tpu.memory_space<vmem>>, vector<1x512xf32>,
    %c1 = arith.constant 1 : index
    %c0_56 = arith.constant 0 : index
    %c0_57 = arith.constant 0 : index
    %117 = vector.load %arg1[%c1, %c0_56, %c0_57] : memref<2x8x512xbf16, #tpu.memory_space<vmem>>, vector<1x8x512xbf16>
    %118 = vector.shape_cast %117 : vector<1x8x512xbf16> to vector<8x512xbf16>
    %c1_58 = arith.constant 1 : index
    %c0_59 = arith.constant 0 : index
    %c0_60 = arith.constant 0 : index
    %119 = vector.load %arg2[%c1_58, %c0_59, %c0_60] : memref<2x8x192xbf16, #tpu.memory_space<vmem>>, vector<1x8x192xbf16>
    %120 = vector.shape_cast %119 : vector<1x8x192xbf16> to vector<8x192xbf16>
    %121 = arith.extf %118 : vector<8x512xbf16> to vector<8x512xf32>
    %122 = arith.extf %120 : vector<8x192xbf16> to vector<8x192xf32>
    %c0_61 = arith.constant 0 : index
    %c0_62 = arith.constant 0 : index
    %123 = vector.load %arg3[%c0_61, %c0_62] : memref<512x192xbf16, #tpu.memory_space<vmem>>, vector<512x192xbf16>
    %cst_63 = arith.constant dense<0.000000e+00> : vector<8x192xf32>
    %124 = tpu.matmul %118, %123, %cst_63 {dimension_numbers = #tpu.dot_dimension_numbers<[1], [0], [0], [1], [0, 0, 1, 1], [], []>} : vector<8x512xbf16>, vector<512x192xbf16>, vector<8x192xf32> -> vector<8x192xf32>
    %125 = arith.truncf %124 : vector<8x192xf32> to vector<8x192xbf16>
    %cst_64 = arith.constant dense<0.000000e+00> : vector<8x8xf32>
    %126 = tpu.matmul %125, %120, %cst_64 {dimension_numbers = #tpu.dot_dimension_numbers<[1], [1], [0], [0], [0, 0, 1, 0], [], []>} : vector<8x192xbf16>, vector<8x192xbf16>, vector<8x8xf32> -> vector<8x8xf32>
    %cst_65 = arith.constant dense<0xFF800000> : vector<8xf32>
    %127 = vector.multi_reduction <maximumf>, %126, %cst_65 [1] : vector<8x8xf32> to vector<8xf32>
    %128 = vector.shape_cast %127 : vector<8xf32> to vector<8x1xf32>
    %129 = vector.broadcast %128 : vector<8x1xf32> to vector<8x8xf32>
    %130 = arith.subf %126, %129 : vector<8x8xf32>
    %131 = math.exp %130 : vector<8x8xf32>
    %cst_66 = arith.constant dense<0.000000e+00> : vector<8xf32>
    %132 = vector.multi_reduction <add>, %131, %cst_66 [1] : vector<8x8xf32> to vector<8xf32>
    %133 = vector.shape_cast %132 : vector<8xf32> to vector<8x1xf32>
    %134 = tpu.reciprocal %133 {approx = true} : vector<8x1xf32> -> vector<8x1xf32>
    %135 = vector.broadcast %134 : vector<8x1xf32> to vector<8x8xf32>
    %136 = arith.mulf %131, %135 : vector<8x8xf32>
    %137 = arith.truncf %136 : vector<8x8xf32> to vector<8x8xbf16>
    %cst_67 = arith.constant dense<0.000000e+00> : vector<8x192xf32>
    %138 = tpu.matmul %137, %120, %cst_67 {dimension_numbers = #tpu.dot_dimension_numbers<[1], [0], [0], [1], [0, 0, 1, 1], [], []>} : vector<8x8xbf16>, vector<8x192xbf16>, vector<8x192xf32> -> vector<8x192xf32>
    %139 = arith.addf %122, %138 : vector<8x192xf32>
    %c0_68 = arith.constant 0 : index
    %c0_69 = arith.constant 0 : index
    %140 = vector.load %arg4[%c0_68, %c0_69] : memref<192x512xbf16, #tpu.memory_space<vmem>>, vector<192x512xbf16>
    %cst_70 = arith.constant dense<0.000000e+00> : vector<8x512xf32>
    %141 = tpu.matmul %120, %140, %cst_70 {dimension_numbers = #tpu.dot_dimension_numbers<[1], [0], [0], [1], [0, 0, 1, 1], [], []>} : vector<8x192xbf16>, vector<192x512xbf16>, vector<8x512xf32> -> vector<8x512xf32>
    %142 = arith.truncf %141 : vector<8x512xf32> to vector<8x512xbf16>
    %cst_71 = arith.constant dense<0.000000e+00> : vector<8x8xf32>
    %143 = tpu.matmul %142, %118, %cst_71 {dimension_numbers = #tpu.dot_dimension_numbers<[1], [1], [0], [0], [0, 0, 1, 0], [], []>} : vector<8x512xbf16>, vector<8x512xbf16>, vector<8x8xf32> -> vector<8x8xf32>
    %cst_72 = arith.constant dense<0xFF800000> : vector<8xf32>
    %144 = vector.multi_reduction <maximumf>, %143, %cst_72 [1] : vector<8x8xf32> to vector<8xf32>
    %145 = vector.shape_cast %144 : vector<8xf32> to vector<8x1xf32>
    %146 = vector.broadcast %145 : vector<8x1xf32> to vector<8x8xf32>
    %147 = arith.subf %143, %146 : vector<8x8xf32>
    %148 = math.exp %147 : vector<8x8xf32>
    %cst_73 = arith.constant dense<0.000000e+00> : vector<8xf32>
    %149 = vector.multi_reduction <add>, %148, %cst_73 [1] : vector<8x8xf32> to vector<8xf32>
    %150 = vector.shape_cast %149 : vector<8xf32> to vector<8x1xf32>
    %151 = tpu.reciprocal %150 {approx = true} : vector<8x1xf32> -> vector<8x1xf32>
    %152 = vector.broadcast %151 : vector<8x1xf32> to vector<8x8xf32>
    %153 = arith.mulf %148, %152 : vector<8x8xf32>
    %154 = arith.truncf %153 : vector<8x8xf32> to vector<8x8xbf16>
    %cst_74 = arith.constant dense<0.000000e+00> : vector<8x512xf32>
    %155 = tpu.matmul %154, %118, %cst_74 {dimension_numbers = #tpu.dot_dimension_numbers<[1], [0], [0], [1], [0, 0, 1, 1], [], []>} : vector<8x8xbf16>, vector<8x512xbf16>, vector<8x512xf32> -> vector<8x512xf32>
    %156 = arith.addf %121, %155 : vector<8x512xf32>
    %157 = arith.truncf %156 : vector<8x512xf32> to vector<8x512xbf16>
    %158 = arith.truncf %139 : vector<8x192xf32> to vector<8x192xbf16>
    %c0_75 = arith.constant 0 : index
    %c0_76 = arith.constant 0 : index
    %159 = vector.load %arg5[%c0_75, %c0_76] : memref<512x64xbf16, #tpu.memory_space<vmem>>, vector<512x64xbf16>
    %cst_77 = arith.constant dense<0.000000e+00> : vector<8x64xf32>
    %160 = tpu.matmul %157, %159, %cst_77 {dimension_numbers = #tpu.dot_dimension_numbers<[1], [0], [0], [1], [0, 0, 1, 1], [], []>} : vector<8x512xbf16>, vector<512x64xbf16>, vector<8x64xf32> -> vector<8x64xf32>
    %c0_78 = arith.constant 0 : index
    %c0_79 = arith.constant 0 : index
    %161 = vector.load %arg6[%c0_78, %c0_79] : memref<192x64xbf16, #tpu.memory_space<vmem>>, vector<192x64xbf16>
    %cst_80 = arith.constant dense<0.000000e+00> : vector<8x64xf32>
    %162 = tpu.matmul %158, %161, %cst_80 {dimension_numbers = #tpu.dot_dimension_numbers<[1], [0], [0], [1], [0, 0, 1, 1], [], []>} : vector<8x192xbf16>, vector<192x64xbf16>, vector<8x64xf32> -> vector<8x64xf32>
    %163 = arith.addf %160, %162 : vector<8x64xf32>
    %c0_81 = arith.constant 0 : index
    %c0_82 = arith.constant 0 : index
    %164 = vector.load %arg7[%c0_81, %c0_82] : memref<1x64xf32, #tpu.memory_space<vmem>>, vector<1x64xf32>
    %165 = vector.broadcast %164 : vector<1x64xf32> to vector<8x64xf32>
    %166 = arith.addf %163, %165 : vector<8x64xf32>
    %167 = math.tanh %166 : vector<8x64xf32>
    %c0_83 = arith.constant 0 : index
    %c0_84 = arith.constant 0 : index
    %168 = vector.load %arg8[%c0_83, %c0_84] : memref<1x64xf32, #tpu.memory_space<vmem>>, vector<1x64xf32>
    %169 = vector.broadcast %168 : vector<1x64xf32> to vector<8x64xf32>
    %170 = arith.mulf %167, %169 : vector<8x64xf32>
    %cst_85 = arith.constant dense<0.000000e+00> : vector<8xf32>
    %171 = vector.multi_reduction <add>, %170, %cst_85 [1] : vector<8x64xf32> to vector<8xf32>
    %172 = vector.shape_cast %171 : vector<8xf32> to vector<8x1xf32>
    %c0_86 = arith.constant 0 : index
    %c0_87 = arith.constant 0 : index
    %173 = vector.load %arg9[%c0_86, %c0_87] : memref<1x1xf32, #tpu.memory_space<vmem>>, vector<1x1xf32>
    %174 = vector.broadcast %173 : vector<1x1xf32> to vector<8x1xf32>
    %175 = arith.addf %172, %174 : vector<8x1xf32>
    %cst_88 = arith.constant dense<0xFF800000> : vector<1xf32>
    %176 = vector.multi_reduction <maximumf>, %175, %cst_88 [0] : vector<8x1xf32> to vector<1xf32>
    %177 = vector.shape_cast %176 : vector<1xf32> to vector<1x1xf32>
    %178 = vector.broadcast %177 : vector<1x1xf32> to vector<8x1xf32>
    %179 = arith.subf %175, %178 : vector<8x1xf32>
    %180 = math.exp %179 : vector<8x1xf32>
    %cst_89 = arith.constant dense<0.000000e+00> : vector<1xf32>
    %181 = vector.multi_reduction <add>, %180, %cst_89 [0] : vector<8x1xf32> to vector<1xf32>
    %182 = vector.shape_cast %181 : vector<1xf32> to vector<1x1xf32>
    %183 = tpu.reciprocal %182 {approx = true} : vector<1x1xf32> -> vector<1x1xf32>
    %184 = vector.broadcast %183 : vector<1x1xf32> to vector<8x1xf32>
    %185 = arith.mulf %180, %184 : vector<8x1xf32>
    %c0_90 = arith.constant 0 : index
    %c0_91 = arith.constant 0 : index
    %186 = vector.load %arg10[%c0_90, %c0_91] : memref<512x512xbf16, #tpu.memory_space<vmem>>, vector<512x512xbf16>
    %cst_92 = arith.constant dense<0.000000e+00> : vector<8x512xf32>
    %187 = tpu.matmul %157, %186, %cst_92 {dimension_numbers = #tpu.dot_dimension_numbers<[1], [0], [0], [1], [0, 0, 1, 1], [], []>} : vector<8x512xbf16>, vector<512x512xbf16>, vector<8x512xf32> -> vector<8x512xf32>
    %c0_93 = arith.constant 0 : index
    %c0_94 = arith.constant 0 : index
    %188 = vector.load %arg11[%c0_93, %c0_94] : memref<192x512xbf16, #tpu.memory_space<vmem>>, vector<192x512xbf16>
    %cst_95 = arith.constant dense<0.000000e+00> : vector<8x512xf32>
    %189 = tpu.matmul %158, %188, %cst_95 {dimension_numbers = #tpu.dot_dimension_numbers<[1], [0], [0], [1], [0, 0, 1, 1], [], []>} : vector<8x192xbf16>, vector<192x512xbf16>, vector<8x512xf32> -> vector<8x512xf32>
    %190 = arith.addf %187, %189 : vector<8x512xf32>
    %191 = vector.broadcast %185 : vector<8x1xf32> to vector<8x512xf32>
    %192 = arith.mulf %191, %190 : vector<8x512xf32>
    %cst_96 = arith.constant dense<0.000000e+00> : vector<512xf32>
    %193 = vector.multi_reduction <add>, %192, %cst_96 [0] : vector<8x512xf32> to vector<512xf32>
    %194 = vector.shape_cast %193 : vector<512xf32> to vector<1x512xf32>
    %195 = vector.broadcast %185 : vector<8x1xf32> to vector<8x512xf32>
    %196 = arith.mulf %195, %156 : vector<8x512xf32>
    %cst_97 = arith.constant dense<0.000000e+00> : vector<512xf32>
    %197 = vector.multi_reduction <add>, %196, %cst_97 [0] : vector<8x512xf32> to vector<512xf32>
    %198 = vector.shape_cast %197 : vector<512xf32> to vector<1x512xf32>
    %199 = vector.broadcast %185 : vector<8x1xf32> to vector<8x192xf32>
    %200 = arith.mulf %199, %139 : vector<8x192xf32>
    %cst_98 = arith.constant dense<0.000000e+00> : vector<192xf32>
    %201 = vector.multi_reduction <add>, %200, %cst_98 [0] : vector<8x192xf32> to vector<192xf32>
    %202 = vector.shape_cast %201 : vector<192xf32> to vector<1x192xf32>
    %203 = vector.broadcast %185 : vector<8x1xf32> to vector<8x512xf32>
    %204 = arith.mulf %203, %156 : vector<8x512xf32>
    %205 = arith.mulf %204, %156 : vector<8x512xf32>
    %cst_99 = arith.constant dense<0.000000e+00> : vector<512xf32>
    %206 = vector.multi_reduction <add>, %205, %cst_99 [0] : vector<8x512xf32> to vector<512xf32>
    %207 = vector.shape_cast %206 : vector<512xf32> to vector<1x512xf32>
    %208 = arith.mulf %198, %198 : vector<1x512xf32>
    %209 = arith.subf %207, %208 : vector<1x512xf32>
    %210 = vector.broadcast %185 : vector<8x1xf32> to vector<8x192xf32>
    %211 = arith.mulf %210, %139 : vector<8x192xf32>
    %212 = arith.mulf %211, %139 : vector<8x192xf32>
    %cst_100 = arith.constant dense<0.000000e+00> : vector<192xf32>
    %213 = vector.multi_reduction <add>, %212, %cst_100 [0] : vector<8x192xf32> to vector<192xf32>
    %214 = vector.shape_cast %213 : vector<192xf32> to vector<1x192xf32>
    %215 = arith.mulf %202, %202 : vector<1x192xf32>
    %216 = arith.subf %214, %215 : vector<1x192xf32>
    %cst_101 = arith.constant 9.99999997E-7 : f32
    %217 = vector.broadcast %cst_101 : f32 to vector<1x512xf32>
    %218 = arith.maximumf %217, %209 : vector<1x512xf32>
    %219 = math.sqrt %218 : vector<1x512xf32>
    %cst_102 = arith.constant 9.99999997E-7 : f32
    %220 = vector.broadcast %cst_102 : f32 to vector<1x192xf32>
    %221 = arith.maximumf %220, %216 : vector<1x192xf32>
    %222 = math.sqrt %221 : vector<1x192xf32>
    %223 = arith.truncf %219 : vector<1x512xf32> to vector<1x512xbf16>
    %c0_103 = arith.constant 0 : index
    %c0_104 = arith.constant 0 : index
    %224 = vector.load %arg12[%c0_103, %c0_104] : memref<512x512xbf16, #tpu.memory_space<vmem>>, vector<512x512xbf16>
    %cst_105 = arith.constant dense<0.000000e+00> : vector<1x512xf32>
    %225 = tpu.matmul %223, %224, %cst_105 {dimension_numbers = #tpu.dot_dimension_numbers<[1], [0], [0], [1], [0, 0, 1, 1], [], []>} : vector<1x512xbf16>, vector<512x512xbf16>, vector<1x512xf32> -> vector<1x512xf32>
    %226 = arith.addf %194, %225 : vector<1x512xf32>
    %227 = arith.truncf %222 : vector<1x192xf32> to vector<1x192xbf16>
    %c0_106 = arith.constant 0 : index
    %c0_107 = arith.constant 0 : index
    %228 = vector.load %arg13[%c0_106, %c0_107] : memref<192x512xbf16, #tpu.memory_space<vmem>>, vector<192x512xbf16>
    %cst_108 = arith.constant dense<0.000000e+00> : vector<1x512xf32>
    %229 = tpu.matmul %227, %228, %cst_108 {dimension_numbers = #tpu.dot_dimension_numbers<[1], [0], [0], [1], [0, 0, 1, 1], [], []>} : vector<1x192xbf16>, vector<192x512xbf16>, vector<1x512xf32> -> vector<1x512xf32>
    %230 = arith.addf %226, %229 : vector<1x512xf32>
    %c0_109 = arith.constant 0 : index
    %c0_110 = arith.constant 0 : index
    %231 = vector.load %arg14[%c0_109, %c0_110] : memref<1x512xf32, #tpu.memory_space<vmem>>, vector<1x512xf32>
    %232 = arith.addf %230, %231 : vector<1x512xf32>
    %c1_111 = arith.constant 1 : index
    %c0_112 = arith.constant 0 : index
    %233 = vector.load %arg15[%c1_111, %c0_112] : memref<2x512xf32, #tpu.memory_space<vmem>>, vector<1x512xf32>
    tpu.vector_store %arg15[%c1_111, %c0_112], %232 {strides = array<i32>} : memref<2x512xf32, #tpu.memory_space<vmem>>, vector<1x512xf32>,
    return
  }
  func.func @transform_0(%arg0: i32) -> (i32, i32, i32) {
    %c0_i32 = arith.constant 0 : i32
    %c0_i32_0 = arith.constant 0 : i32
    %c0_i32_1 = arith.constant 0 : i32
    %c0_i32_2 = arith.constant 0 : i32
    return %c0_i32, %c0_i32_0, %c0_i32_1 : i32, i32, i32
  }
  func.func @transform_1(%arg0: i32) -> (i32, i32, i32) {
    %c0_i32 = arith.constant 0 : i32
    %c0_i32_0 = arith.constant 0 : i32
    %c0_i32_1 = arith.constant 0 : i32
    %c0_i32_2 = arith.constant 0 : i32
    return %c0_i32, %c0_i32_0, %c0_i32_1 : i32, i32, i32
  }
  func.func @transform_2(%arg0: i32) -> (i32, i32) {
    %c0_i32 = arith.constant 0 : i32
    %c0_i32_0 = arith.constant 0 : i32
    %c0_i32_1 = arith.constant 0 : i32
    return %c0_i32, %c0_i32_0 : i32, i32
  }
  func.func @transform_3(%arg0: i32) -> (i32, i32) {
    %c0_i32 = arith.constant 0 : i32
    %c0_i32_0 = arith.constant 0 : i32
    %c0_i32_1 = arith.constant 0 : i32
    return %c0_i32, %c0_i32_0 : i32, i32
  }
  func.func @transform_4(%arg0: i32) -> (i32, i32) {
    %c0_i32 = arith.constant 0 : i32
    %c0_i32_0 = arith.constant 0 : i32
    %c0_i32_1 = arith.constant 0 : i32
    return %c0_i32, %c0_i32_0 : i32, i32
  }
  func.func @transform_5(%arg0: i32) -> (i32, i32) {
    %c0_i32 = arith.constant 0 : i32
    %c0_i32_0 = arith.constant 0 : i32
    %c0_i32_1 = arith.constant 0 : i32
    return %c0_i32, %c0_i32_0 : i32, i32
  }
  func.func @transform_6(%arg0: i32) -> (i32, i32) {
    %c0_i32 = arith.constant 0 : i32
    %c0_i32_0 = arith.constant 0 : i32
    %c0_i32_1 = arith.constant 0 : i32
    return %c0_i32, %c0_i32_0 : i32, i32
  }
  func.func @transform_7(%arg0: i32) -> (i32, i32) {
    %c0_i32 = arith.constant 0 : i32
    %c0_i32_0 = arith.constant 0 : i32
    %c0_i32_1 = arith.constant 0 : i32
    return %c0_i32, %c0_i32_0 : i32, i32
  }
  func.func @transform_8(%arg0: i32) -> (i32, i32) {
    %c0_i32 = arith.constant 0 : i32
    %c0_i32_0 = arith.constant 0 : i32
    %c0_i32_1 = arith.constant 0 : i32
    return %c0_i32, %c0_i32_0 : i32, i32
  }
  func.func @transform_9(%arg0: i32) -> (i32, i32) {
    %c0_i32 = arith.constant 0 : i32
    %c0_i32_0 = arith.constant 0 : i32
    %c0_i32_1 = arith.constant 0 : i32
    return %c0_i32, %c0_i32_0 : i32, i32
  }
  func.func @transform_10(%arg0: i32) -> (i32, i32) {
    %c0_i32 = arith.constant 0 : i32
    %c0_i32_0 = arith.constant 0 : i32
    %c0_i32_1 = arith.constant 0 : i32
    return %c0_i32, %c0_i32_0 : i32, i32
  }
  func.func @transform_11(%arg0: i32) -> (i32, i32) {
    %c0_i32 = arith.constant 0 : i32
    %c0_i32_0 = arith.constant 0 : i32
    %c0_i32_1 = arith.constant 0 : i32
    return %c0_i32, %c0_i32_0 : i32, i32
  }
  func.func @transform_12(%arg0: i32) -> (i32, i32) {
    %c0_i32 = arith.constant 0 : i32
    %c0_i32_0 = arith.constant 0 : i32
    %c0_i32_1 = arith.constant 0 : i32
    return %c0_i32, %c0_i32_0 : i32, i32
  }
  func.func @transform_13(%arg0: i32) -> (i32, i32) {
    %c0_i32 = arith.constant 0 : i32
    %c0_i32_0 = arith.constant 0 : i32
    %c0_i32_1 = arith.constant 0 : i32
    return %c0_i32, %c0_i32_0 : i32, i32
  }
  func.func @transform_14(%arg0: i32) -> (i32, i32) {
    %c0_i32 = arith.constant 0 : i32
    %c0_i32_0 = arith.constant 0 : i32
    %c0_i32_1 = arith.constant 0 : i32
    return %c0_i32, %c0_i32_0 : i32, i32
  }
}

</mosaic_0001>

<llo_original>
// kernel: tpu_custom_call.1
$region0: #{tpu_custom_call.1}
  #allocation0 [shape = 'u32[]', space=smem, size = 0x4, offset = 0x4, fixed_abs, tag = 'smem constant byte address 0x4 - core index']
  #allocation1 [shape = 'u32[144,128]{1,0:T(1,128)}', space=vmem, size = 0x12000, scoped, tag = 'internal scratch']
  #allocation2 [shape = 'f32[1,1]{1,0:T(1,128)S(1)}', space=vmem, size = 0x200, scoped, tag = 'scoped memory for tpu_custom_call.1']
  %s0 = inlined_call_operand.vmem [shape: bf16[2,8,512], index: 0, kind: input, shape index: {}]
  %s1 = inlined_call_operand.vmem [shape: bf16[2,8,192], index: 1, kind: input, shape index: {}]
  %s2 = inlined_call_operand.vmem [shape: bf16[512,192], index: 2, kind: input, shape index: {}]
  %s3 = inlined_call_operand.vmem [shape: bf16[192,512], index: 3, kind: input, shape index: {}]
  %s4 = inlined_call_operand.vmem [shape: bf16[512,64], index: 4, kind: input, shape index: {}]
  %s5 = inlined_call_operand.vmem [shape: bf16[192,64], index: 5, kind: input, shape index: {}]
  %s6 = inlined_call_operand.hbm [shape: f32[1,64], index: 6, kind: input, shape index: {}]
  %s7 = inlined_call_operand.hbm [shape: f32[1,64], index: 7, kind: input, shape index: {}]
  %s8 = inlined_call_operand.<no memory space> [shape: f32[1,1], index: 8, kind: input, shape index: {}]
  %s9 = inlined_call_operand.vmem [shape: bf16[512,512], index: 9, kind: input, shape index: {}]
  %s10 = inlined_call_operand.hbm [shape: bf16[192,512], index: 10, kind: input, shape index: {}]
  %s11 = inlined_call_operand.hbm [shape: bf16[512,512], index: 11, kind: input, shape index: {}]
  %s12 = inlined_call_operand.hbm [shape: bf16[192,512], index: 12, kind: input, shape index: {}]
  %s13 = inlined_call_operand.hbm [shape: f32[1,512], index: 13, kind: input, shape index: {}]
  %s14 = inlined_call_operand.hbm [shape: f32[2,512], index: 14, kind: output, shape index: {}]
  %s15 = sld [smem:[#allocation0]]
  $region90: #{tpu_custom_call.1} parent=0
    _
  %s17 = ssub.s32 1, %s15
  %s18 = scalar_select 0, %s17, %s15
  %v19 = vstv %s8
  %20 = vst [vmem:[#allocation2] sm:$0x1] %v19
  $region1: #{tpu_custom_call.1} parent=0
    #allocation3 [shape = 'u8[512]{0}', space=vmem, size = 0x400, scoped, tag = 'input window, operand 6, single buffered']
    #allocation4 [shape = 's32[1]{0}', space=sflag, size = 0x4, scoped, tag = 'scoped memory for tpu_custom_call.1']
    #allocation5 [shape = 's32[1]{0}', space=sflag, size = 0x4, scoped, tag = 'scoped memory for tpu_custom_call.1']
    #allocation6 [shape = 'u8[512]{0}', space=vmem, size = 0x400, scoped, tag = 'input window, operand 7, single buffered']
    #allocation7 [shape = 's32[1]{0}', space=sflag, size = 0x4, scoped, tag = 'scoped memory for tpu_custom_call.1']
    #allocation8 [shape = 'u8[196608]{0}', space=vmem, size = 0x30000, scoped, tag = 'input window, operand 10, single buffered']
    #allocation9 [shape = 'u8[524288]{0}', space=vmem, size = 0x80000, scoped, tag = 'input window, operand 11, single buffered']
    #allocation10 [shape = 's32[1]{0}', space=sflag, size = 0x4, scoped, tag = 'scoped memory for tpu_custom_call.1']
    #allocation11 [shape = 'u8[196608]{0}', space=vmem, size = 0x30000, scoped, tag = 'input window, operand 12, single buffered']
    #allocation12 [shape = 'u8[2048]{0}', space=vmem, size = 0x800, scoped, tag = 'input window, operand 13, single buffered']
    #allocation13 [shape = 's32[1]{0}', space=sflag, size = 0x4, scoped, tag = 'scoped memory for tpu_custom_call.1']
    #allocation14 [shape = 'u8[4096]{0}', space=vmem, size = 0x1000, scoped, tag = 'output window, operand 0, single buffered']
    %21 = vsyncpa [#allocation4], 0
    %22 = vsyncpa [#allocation7], 0
    %23 = vsyncpa [#allocation10], 0
    %24 = vsyncpa [#allocation13], 0
    %25 = vsyncpa [#allocation5], 0
    // Predicated region
    $region2: #{tpu_custom_call.1} parent=1 // pred_check
      _
    $region3: #{tpu_custom_call.1} parent=1 // pred_check_branch
      %27 = sbr.rel (0) target = $region5
    $region4: #{tpu_custom_call.1} parent=1 // pred_region
      _
    $region5: #{tpu_custom_call.1} parent=1 // pred_fallthru
      _
    // Predicated region
    $region6: #{tpu_custom_call.1} parent=1 // pred_check
      _
    $region7: #{tpu_custom_call.1} parent=1 // pred_check_branch
      %29 = sbr.rel (0) target = $region9
    $region8: #{tpu_custom_call.1} parent=1 // pred_region
      _
    $region9: #{tpu_custom_call.1} parent=1 // pred_fallthru
      _
    // Predicated region
    $region10: #{tpu_custom_call.1} parent=1 // pred_check
      _
    $region11: #{tpu_custom_call.1} parent=1 // pred_check_branch
      %31 = sbr.rel (0) target = $region13
    $region12: #{tpu_custom_call.1} parent=1 // pred_region
      _
    $region13: #{tpu_custom_call.1} parent=1 // pred_fallthru
      _
    // Predicated region
    $region14: #{tpu_custom_call.1} parent=1 // pred_check
      _
    $region15: #{tpu_custom_call.1} parent=1 // pred_check_branch
      %33 = sbr.rel (0) target = $region17
    $region16: #{tpu_custom_call.1} parent=1 // pred_region
      _
    $region17: #{tpu_custom_call.1} parent=1 // pred_fallthru
      _
    // Predicated region
    $region18: #{tpu_custom_call.1} parent=1 // pred_check
      _
    $region19: #{tpu_custom_call.1} parent=1 // pred_check_branch
      %35 = sbr.rel (0) target = $region21
    $region20: #{tpu_custom_call.1} parent=1 // pred_region
      _
    $region21: #{tpu_custom_call.1} parent=1 // pred_fallthru
      _
    // Predicated region
    $region22: #{tpu_custom_call.1} parent=1 // pred_check
      _
    $region23: #{tpu_custom_call.1} parent=1 // pred_check_branch
      %37 = sbr.rel (0) target = $region25
    $region24: #{tpu_custom_call.1} parent=1 // pred_region
      _
    $region25: #{tpu_custom_call.1} parent=1 // pred_fallthru
      _
    // Predicated region
    $region26: #{tpu_custom_call.1} parent=1 // pred_check
      _
    $region27: #{tpu_custom_call.1} parent=1 // pred_check_branch
      %39 = sbr.rel (0) target = $region29
    $region28: #{tpu_custom_call.1} parent=1 // pred_region
      %s41 = ssub.s32 16, 16
      %42 = vsyncadd [#allocation4], %s41
      %s44 = sshll.u32 [#allocation3], 4
      %s45 = int_to_ptr.vmem [resolvable:$true] %s44
      %47 = dma.hbm_to_vmem [thread:$0]  %s6, 16, %s45, [#allocation4]
    $region29: #{tpu_custom_call.1} parent=1 // pred_fallthru
      _
    // Predicated region
    $region30: #{tpu_custom_call.1} parent=1 // pred_check
      _
    $region31: #{tpu_custom_call.1} parent=1 // pred_check_branch
      %49 = sbr.rel (0) target = $region33
    $region32: #{tpu_custom_call.1} parent=1 // pred_region
      %s51 = ssub.s32 16, 16
      %52 = vsyncadd [#allocation7], %s51
      %s54 = sshll.u32 [#allocation6], 4
      %s55 = int_to_ptr.vmem [resolvable:$true] %s54
      %57 = dma.hbm_to_vmem [thread:$0]  %s7, 16, %s55, [#allocation7]
    $region33: #{tpu_custom_call.1} parent=1 // pred_fallthru
      _
    // Predicated region
    $region34: #{tpu_custom_call.1} parent=1 // pred_check
      _
    $region35: #{tpu_custom_call.1} parent=1 // pred_check_branch
      %59 = sbr.rel (0) target = $region37
    $region36: #{tpu_custom_call.1} parent=1 // pred_region
      _
    $region37: #{tpu_custom_call.1} parent=1 // pred_fallthru
      _
    // Predicated region
    $region38: #{tpu_custom_call.1} parent=1 // pred_check
      _
    $region39: #{tpu_custom_call.1} parent=1 // pred_check_branch
      %61 = sbr.rel (0) target = $region41
    $region40: #{tpu_custom_call.1} parent=1 // pred_region
      _
    $region41: #{tpu_custom_call.1} parent=1 // pred_fallthru
      _
    // Predicated region
    $region42: #{tpu_custom_call.1} parent=1 // pred_check
      _
    $region43: #{tpu_custom_call.1} parent=1 // pred_check_branch
      %63 = sbr.rel (0) target = $region45
    $region44: #{tpu_custom_call.1} parent=1 // pred_region
      %s65 = ssub.s32 6144, 6144
      %66 = vsyncadd [#allocation7], %s65
      %s67 = sshll.u32 [#allocation8], 4
      %s68 = int_to_ptr.vmem [resolvable:$true] %s67
      %73 = dma.hbm_to_vmem [thread:$0]  %s10, 6144, %s68, [#allocation7], 256, 256, 16
    $region45: #{tpu_custom_call.1} parent=1 // pred_fallthru
      _
    // Predicated region
    $region46: #{tpu_custom_call.1} parent=1 // pred_check
      _
    $region47: #{tpu_custom_call.1} parent=1 // pred_check_branch
      %75 = sbr.rel (0) target = $region49
    $region48: #{tpu_custom_call.1} parent=1 // pred_region
      %s77 = ssub.s32 16384, 16384
      %78 = vsyncadd [#allocation10], %s77
      %s79 = sshll.u32 [#allocation9], 4
      %s80 = int_to_ptr.vmem [resolvable:$true] %s79
      %85 = dma.hbm_to_vmem [thread:$0]  %s11, 16384, %s80, [#allocation10], 256, 256, 16
    $region49: #{tpu_custom_call.1} parent=1 // pred_fallthru
      _
    // Predicated region
    $region50: #{tpu_custom_call.1} parent=1 // pred_check
      _
    $region51: #{tpu_custom_call.1} parent=1 // pred_check_branch
      %87 = sbr.rel (0) target = $region53
    $region52: #{tpu_custom_call.1} parent=1 // pred_region
      %s89 = ssub.s32 6144, 6144
      %90 = vsyncadd [#allocation10], %s89
      %s91 = sshll.u32 [#allocation11], 4
      %s92 = int_to_ptr.vmem [resolvable:$true] %s91
      %97 = dma.hbm_to_vmem [thread:$0]  %s12, 6144, %s92, [#allocation10], 256, 256, 16
    $region53: #{tpu_custom_call.1} parent=1 // pred_fallthru
      _
    // Predicated region
    $region54: #{tpu_custom_call.1} parent=1 // pred_check
      _
    $region55: #{tpu_custom_call.1} parent=1 // pred_check_branch
      %99 = sbr.rel (0) target = $region57
    $region56: #{tpu_custom_call.1} parent=1 // pred_region
      %s101 = ssub.s32 64, 64
      %102 = vsyncadd [#allocation13], %s101
      %s104 = sshll.u32 [#allocation12], 4
      %s105 = int_to_ptr.vmem [resolvable:$true] %s104
      %107 = dma.hbm_to_vmem [thread:$0]  %s13, 64, %s105, [#allocation13]
    $region57: #{tpu_custom_call.1} parent=1 // pred_fallthru
      _
    // Predicated region
    $region58: #{tpu_custom_call.1} parent=1 // pred_check
      _
    $region59: #{tpu_custom_call.1} parent=1 // pred_check_branch
      %109 = sbr.rel (0) target = $region61
    $region60: #{tpu_custom_call.1} parent=1 // pred_region
      %110 = dma.done [#allocation4], 16
    $region61: #{tpu_custom_call.1} parent=1 // pred_fallthru
      _
    // Predicated region
    $region62: #{tpu_custom_call.1} parent=1 // pred_check
      _
    $region63: #{tpu_custom_call.1} parent=1 // pred_check_branch
      %112 = sbr.rel (0) target = $region65
    $region64: #{tpu_custom_call.1} parent=1 // pred_region
      %113 = dma.done [#allocation7], 16
    $region65: #{tpu_custom_call.1} parent=1 // pred_fallthru
      _
    // Predicated region
    $region66: #{tpu_custom_call.1} parent=1 // pred_check
      _
    $region67: #{tpu_custom_call.1} parent=1 // pred_check_branch
      %115 = sbr.rel (0) target = $region69
    $region68: #{tpu_custom_call.1} parent=1 // pred_region
      %116 = dma.done [#allocation7], 6144
    $region69: #{tpu_custom_call.1} parent=1 // pred_fallthru
      _
    // Predicated region
    $region70: #{tpu_custom_call.1} parent=1 // pred_check
      _
    $region71: #{tpu_custom_call.1} parent=1 // pred_check_branch
      %118 = sbr.rel (0) target = $region73
    $region72: #{tpu_custom_call.1} parent=1 // pred_region
      %119 = dma.done [#allocation10], 16384
    $region73: #{tpu_custom_call.1} parent=1 // pred_fallthru
      _
    // Predicated region
    $region74: #{tpu_custom_call.1} parent=1 // pred_check
      _
    $region75: #{tpu_custom_call.1} parent=1 // pred_check_branch
      %121 = sbr.rel (0) target = $region77
    $region76: #{tpu_custom_call.1} parent=1 // pred_region
      %122 = dma.done [#allocation10], 6144
    $region77: #{tpu_custom_call.1} parent=1 // pred_fallthru
      _
    // Predicated region
    $region78: #{tpu_custom_call.1} parent=1 // pred_check
      _
    $region79: #{tpu_custom_call.1} parent=1 // pred_check_branch
      %124 = sbr.rel (0) target = $region81
    $region80: #{tpu_custom_call.1} parent=1 // pred_region
      %125 = dma.done [#allocation13], 64
    $region81: #{tpu_custom_call.1} parent=1 // pred_fallthru
      _
    %v127 = vld [vmem:[%s0] sm:$0xff]
    %v128 = vld [vmem:[%s0 + $0x8] sm:$0xff]
    %v129 = vld [vmem:[%s1] sm:$0xff]
    %v130 = vunpack.c.l.bf16 %v127
    %v131 = vunpack.c.h.bf16 %v127
    %v132 = vunpack.c.l.bf16 %v128
    %v133 = vunpack.c.h.bf16 %v128
    %v134 = vunpack.c.l.bf16 %v129
    %v135 = vunpack.c.h.bf16 %v129
    %v136 = vld [vmem:[%s2] sm:$0xff]
    %v137 = vld [vmem:[%s2 + $0x8] sm:$0xff]
    %v138 = vld [vmem:[%s2 + $0x10] sm:$0xff]
    %v139 = vld [vmem:[%s2 + $0x18] sm:$0xff]
    %v140 = vld [vmem:[%s2 + $0x20] sm:$0xff]
    %v141 = vld [vmem:[%s2 + $0x28] sm:$0xff]
    %v142 = vld [vmem:[%s2 + $0x30] sm:$0xff]
    %v143 = vld [vmem:[%s2 + $0x38] sm:$0xff]
    %v144 = vld [vmem:[%s2 + $0x40] sm:$0xff]
    %v145 = vld [vmem:[%s2 + $0x48] sm:$0xff]
    %v146 = vld [vmem:[%s2 + $0x50] sm:$0xff]
    %v147 = vld [vmem:[%s2 + $0x58] sm:$0xff]
    %v148 = vld [vmem:[%s2 + $0x60] sm:$0xff]
    %v149 = vld [vmem:[%s2 + $0x68] sm:$0xff]
    %v150 = vld [vmem:[%s2 + $0x70] sm:$0xff]
    %v151 = vld [vmem:[%s2 + $0x78] sm:$0xff]
    %v152 = vld [vmem:[%s2 + $0x80] sm:$0xff]
    %v153 = vld [vmem:[%s2 + $0x88] sm:$0xff]
    %v154 = vld [vmem:[%s2 + $0x90] sm:$0xff]
    %v155 = vld [vmem:[%s2 + $0x98] sm:$0xff]
    %v156 = vld [vmem:[%s2 + $0xa0] sm:$0xff]
    %v157 = vld [vmem:[%s2 + $0xa8] sm:$0xff]
    %v158 = vld [vmem:[%s2 + $0xb0] sm:$0xff]
    %v159 = vld [vmem:[%s2 + $0xb8] sm:$0xff]
    %v160 = vld [vmem:[%s2 + $0xc0] sm:$0xff]
    %v161 = vld [vmem:[%s2 + $0xc8] sm:$0xff]
    %v162 = vld [vmem:[%s2 + $0xd0] sm:$0xff]
    %v163 = vld [vmem:[%s2 + $0xd8] sm:$0xff]
    %v164 = vld [vmem:[%s2 + $0xe0] sm:$0xff]
    %v165 = vld [vmem:[%s2 + $0xe8] sm:$0xff]
    %v166 = vld [vmem:[%s2 + $0xf0] sm:$0xff]
    %v167 = vld [vmem:[%s2 + $0xf8] sm:$0xff]
    %v168 = vld [vmem:[%s2 + $0x100] sm:$0xff]
    %v169 = vld [vmem:[%s2 + $0x108] sm:$0xff]
    %v170 = vld [vmem:[%s2 + $0x110] sm:$0xff]
    %v171 = vld [vmem:[%s2 + $0x118] sm:$0xff]
    %v172 = vld [vmem:[%s2 + $0x120] sm:$0xff]
    %v173 = vld [vmem:[%s2 + $0x128] sm:$0xff]
    %v174 = vld [vmem:[%s2 + $0x130] sm:$0xff]
    %v175 = vld [vmem:[%s2 + $0x138] sm:$0xff]
    %v176 = vld [vmem:[%s2 + $0x140] sm:$0xff]
    %v177 = vld [vmem:[%s2 + $0x148] sm:$0xff]
    %v178 = vld [vmem:[%s2 + $0x150] sm:$0xff]
    %v179 = vld [vmem:[%s2 + $0x158] sm:$0xff]
    %v180 = vld [vmem:[%s2 + $0x160] sm:$0xff]
    %v181 = vld [vmem:[%s2 + $0x168] sm:$0xff]
    %v182 = vld [vmem:[%s2 + $0x170] sm:$0xff]
    %v183 = vld [vmem:[%s2 + $0x178] sm:$0xff]
    %v184 = vld [vmem:[%s2 + $0x180] sm:$0xff]
    %v185 = vld [vmem:[%s2 + $0x188] sm:$0xff]
    %v186 = vld [vmem:[%s2 + $0x190] sm:$0xff]
    %v187 = vld [vmem:[%s2 + $0x198] sm:$0xff]
    %v188 = vld [vmem:[%s2 + $0x1a0] sm:$0xff]
    %v189 = vld [vmem:[%s2 + $0x1a8] sm:$0xff]
    %v190 = vld [vmem:[%s2 + $0x1b0] sm:$0xff]
    %v191 = vld [vmem:[%s2 + $0x1b8] sm:$0xff]
    %v192 = vld [vmem:[%s2 + $0x1c0] sm:$0xff]
    %v193 = vld [vmem:[%s2 + $0x1c8] sm:$0xff]
    %v194 = vld [vmem:[%s2 + $0x1d0] sm:$0xff]
    %v195 = vld [vmem:[%s2 + $0x1d8] sm:$0xff]
    %v196 = vld [vmem:[%s2 + $0x1e0] sm:$0xff]
    %v197 = vld [vmem:[%s2 + $0x1e8] sm:$0xff]
    %v198 = vld [vmem:[%s2 + $0x1f0] sm:$0xff]
    %v199 = vld [vmem:[%s2 + $0x1f8] sm:$0xff]
    %v202 = vunpack.c.l.b16 %v127
    %v203 = vunpack.c.h.b16 %v127
    %v204 = vunpack.c.l.b16 %v128
    %v205 = vunpack.c.h.b16 %v128
    %v206 = vpack.c.b16 %v202, %v202
    %v207 = vpack.c.b16 %v203, %v203
    %v208 = vpack.c.b16 %v204, %v204
    %v209 = vpack.c.b16 %v205, %v205
    %v278 = vunpack.c.l.b16 %v136
    %v279 = vunpack.c.h.b16 %v136
    %v280 = vunpack.c.l.b16 %v137
    %v281 = vunpack.c.h.b16 %v137
    %v282 = vunpack.c.l.b16 %v138
    %v283 = vunpack.c.h.b16 %v138
    %v284 = vunpack.c.l.b16 %v139
    %v285 = vunpack.c.h.b16 %v139
    %v286 = vunpack.c.l.b16 %v140
    %v287 = vunpack.c.h.b16 %v140
    %v288 = vunpack.c.l.b16 %v141
    %v289 = vunpack.c.h.b16 %v141
    %v290 = vunpack.c.l.b16 %v142
    %v291 = vunpack.c.h.b16 %v142
    %v292 = vunpack.c.l.b16 %v143
    %v293 = vunpack.c.h.b16 %v143
    %v294 = vunpack.c.l.b16 %v144
    %v295 = vunpack.c.h.b16 %v144
    %v296 = vunpack.c.l.b16 %v145
    %v297 = vunpack.c.h.b16 %v145
    %v298 = vunpack.c.l.b16 %v146
    %v299 = vunpack.c.h.b16 %v146
    %v300 = vunpack.c.l.b16 %v147
    %v301 = vunpack.c.h.b16 %v147
    %v302 = vunpack.c.l.b16 %v148
    %v303 = vunpack.c.h.b16 %v148
    %v304 = vunpack.c.l.b16 %v149
    %v305 = vunpack.c.h.b16 %v149
    %v306 = vunpack.c.l.b16 %v150
    %v307 = vunpack.c.h.b16 %v150
    %v308 = vunpack.c.l.b16 %v151
    %v309 = vunpack.c.h.b16 %v151
    %v310 = vunpack.c.l.b16 %v152
    %v311 = vunpack.c.h.b16 %v152
    %v312 = vunpack.c.l.b16 %v153
    %v313 = vunpack.c.h.b16 %v153
    %v314 = vunpack.c.l.b16 %v154
    %v315 = vunpack.c.h.b16 %v154
    %v316 = vunpack.c.l.b16 %v155
    %v317 = vunpack.c.h.b16 %v155
    %v318 = vunpack.c.l.b16 %v156
    %v319 = vunpack.c.h.b16 %v156
    %v320 = vunpack.c.l.b16 %v157
    %v321 = vunpack.c.h.b16 %v157
    %v322 = vunpack.c.l.b16 %v158
    %v323 = vunpack.c.h.b16 %v158
    %v324 = vunpack.c.l.b16 %v159
    %v325 = vunpack.c.h.b16 %v159
    %v326 = vunpack.c.l.b16 %v160
    %v327 = vunpack.c.h.b16 %v160
    %v328 = vunpack.c.l.b16 %v161
    %v329 = vunpack.c.h.b16 %v161
    %v330 = vunpack.c.l.b16 %v162
    %v331 = vunpack.c.h.b16 %v162
    %v332 = vunpack.c.l.b16 %v163
    %v333 = vunpack.c.h.b16 %v163
    %v334 = vunpack.c.l.b16 %v164
    %v335 = vunpack.c.h.b16 %v164
    %v336 = vunpack.c.l.b16 %v165
    %v337 = vunpack.c.h.b16 %v165
    %v338 = vunpack.c.l.b16 %v166
    %v339 = vunpack.c.h.b16 %v166
    %v340 = vunpack.c.l.b16 %v167
    %v341 = vunpack.c.h.b16 %v167
    %v342 = vunpack.c.l.b16 %v168
    %v343 = vunpack.c.h.b16 %v168
    %v344 = vunpack.c.l.b16 %v169
    %v345 = vunpack.c.h.b16 %v169
    %v346 = vunpack.c.l.b16 %v170
    %v347 = vunpack.c.h.b16 %v170
    %v348 = vunpack.c.l.b16 %v171
    %v349 = vunpack.c.h.b16 %v171
    %v350 = vunpack.c.l.b16 %v172
    %v351 = vunpack.c.h.b16 %v172
    %v352 = vunpack.c.l.b16 %v173
    %v353 = vunpack.c.h.b16 %v173
    %v354 = vunpack.c.l.b16 %v174
    %v355 = vunpack.c.h.b16 %v174
    %v356 = vunpack.c.l.b16 %v175
    %v357 = vunpack.c.h.b16 %v175
    %v358 = vunpack.c.l.b16 %v176
    %v359 = vunpack.c.h.b16 %v176
    %v360 = vunpack.c.l.b16 %v177
    %v361 = vunpack.c.h.b16 %v177
    %v362 = vunpack.c.l.b16 %v178
    %v363 = vunpack.c.h.b16 %v178
    %v364 = vunpack.c.l.b16 %v179
    %v365 = vunpack.c.h.b16 %v179
    %v366 = vunpack.c.l.b16 %v180
    %v367 = vunpack.c.h.b16 %v180
    %v368 = vunpack.c.l.b16 %v181
    %v369 = vunpack.c.h.b16 %v181
    %v370 = vunpack.c.l.b16 %v182
    %v371 = vunpack.c.h.b16 %v182
    %v372 = vunpack.c.l.b16 %v183
    %v373 = vunpack.c.h.b16 %v183
    %v374 = vunpack.c.l.b16 %v184
    %v375 = vunpack.c.h.b16 %v184
    %v376 = vunpack.c.l.b16 %v185
    %v377 = vunpack.c.h.b16 %v185
    %v378 = vunpack.c.l.b16 %v186
    %v379 = vunpack.c.h.b16 %v186
    %v380 = vunpack.c.l.b16 %v187
    %v381 = vunpack.c.h.b16 %v187
    %v382 = vunpack.c.l.b16 %v188
    %v383 = vunpack.c.h.b16 %v188
    %v384 = vunpack.c.l.b16 %v189
    %v385 = vunpack.c.h.b16 %v189
    %v386 = vunpack.c.l.b16 %v190
    %v387 = vunpack.c.h.b16 %v190
    %v388 = vunpack.c.l.b16 %v191
    %v389 = vunpack.c.h.b16 %v191
    %v390 = vunpack.c.l.b16 %v192
    %v391 = vunpack.c.h.b16 %v192
    %v392 = vunpack.c.l.b16 %v193
    %v393 = vunpack.c.h.b16 %v193
    %v394 = vunpack.c.l.b16 %v194
    %v395 = vunpack.c.h.b16 %v194
    %v396 = vunpack.c.l.b16 %v195
    %v397 = vunpack.c.h.b16 %v195
    %v398 = vunpack.c.l.b16 %v196
    %v399 = vunpack.c.h.b16 %v196
    %v400 = vunpack.c.l.b16 %v197
    %v401 = vunpack.c.h.b16 %v197
    %v402 = vunpack.c.l.b16 %v198
    %v403 = vunpack.c.h.b16 %v198
    %v404 = vunpack.c.l.b16 %v199
    %v405 = vunpack.c.h.b16 %v199
    %v406 = vpack.c.b16 %v280, %v278
    %v407 = vpack.c.b16 %v281, %v279
    %v408 = vpack.c.b16 %v284, %v282
    %v409 = vpack.c.b16 %v285, %v283
    %v410 = vpack.c.b16 %v288, %v286
    %v411 = vpack.c.b16 %v289, %v287
    %v412 = vpack.c.b16 %v292, %v290
    %v413 = vpack.c.b16 %v293, %v291
    %v414 = vpack.c.b16 %v296, %v294
    %v415 = vpack.c.b16 %v297, %v295
    %v416 = vpack.c.b16 %v300, %v298
    %v417 = vpack.c.b16 %v301, %v299
    %v418 = vpack.c.b16 %v304, %v302
    %v419 = vpack.c.b16 %v305, %v303
    %v420 = vpack.c.b16 %v308, %v306
    %v421 = vpack.c.b16 %v309, %v307
    %v422 = vpack.c.b16 %v312, %v310
    %v423 = vpack.c.b16 %v313, %v311
    %v424 = vpack.c.b16 %v316, %v314
    %v425 = vpack.c.b16 %v317, %v315
    %v426 = vpack.c.b16 %v320, %v318
    %v427 = vpack.c.b16 %v321, %v319
    %v428 = vpack.c.b16 %v324, %v322
    %v429 = vpack.c.b16 %v325, %v323
    %v430 = vpack.c.b16 %v328, %v326
    %v431 = vpack.c.b16 %v329, %v327
    %v432 = vpack.c.b16 %v332, %v330
    %v433 = vpack.c.b16 %v333, %v331
    %v434 = vpack.c.b16 %v336, %v334
    %v435 = vpack.c.b16 %v337, %v335
    %v436 = vpack.c.b16 %v340, %v338
    %v437 = vpack.c.b16 %v341, %v339
    %v438 = vpack.c.b16 %v344, %v342
    %v439 = vpack.c.b16 %v345, %v343
    %v440 = vpack.c.b16 %v348, %v346
    %v441 = vpack.c.b16 %v349, %v347
    %v442 = vpack.c.b16 %v352, %v350
    %v443 = vpack.c.b16 %v353, %v351
    %v444 = vpack.c.b16 %v356, %v354
    %v445 = vpack.c.b16 %v357, %v355
    %v446 = vpack.c.b16 %v360, %v358
    %v447 = vpack.c.b16 %v361, %v359
    %v448 = vpack.c.b16 %v364, %v362
    %v449 = vpack.c.b16 %v365, %v363
    %v450 = vpack.c.b16 %v368, %v366
    %v451 = vpack.c.b16 %v369, %v367
    %v452 = vpack.c.b16 %v372, %v370
    %v453 = vpack.c.b16 %v373, %v371
    %v454 = vpack.c.b16 %v376, %v374
    %v455 = vpack.c.b16 %v377, %v375
    %v456 = vpack.c.b16 %v380, %v378
    %v457 = vpack.c.b16 %v381, %v379
    %v458 = vpack.c.b16 %v384, %v382
    %v459 = vpack.c.b16 %v385, %v383
    %v460 = vpack.c.b16 %v388, %v386
    %v461 = vpack.c.b16 %v389, %v387
    %v462 = vpack.c.b16 %v392, %v390
    %v463 = vpack.c.b16 %v393, %v391
    %v464 = vpack.c.b16 %v396, %v394
    %v465 = vpack.c.b16 %v397, %v395
    %v466 = vpack.c.b16 %v400, %v398
    %v467 = vpack.c.b16 %v401, %v399
    %v468 = vpack.c.b16 %v404, %v402
    %v469 = vpack.c.b16 %v405, %v403
    %534 = vmatprep.subr.bf16.mxu0 %v421
    %535 = vmatpush1.bf16.msra.mxu0 %v420
    %536 = vmatprep.subr.bf16.mxu0 %v419
    %537 = vmatpush1.bf16.msra.mxu0 %v418
    %538 = vmatprep.subr.bf16.mxu0 %v417
    %539 = vmatpush1.bf16.msra.mxu0 %v416
    %540 = vmatprep.subr.bf16.mxu0 %v415
    %541 = vmatpush1.bf16.msra.mxu0 %v414
    %542 = vmatprep.subr.bf16.mxu0 %v413
    %543 = vmatpush1.bf16.msra.mxu0 %v412
    %544 = vmatprep.subr.bf16.mxu0 %v411
    %545 = vmatpush1.bf16.msra.mxu0 %v410
    %546 = vmatprep.subr.bf16.mxu0 %v409
    %547 = vmatpush1.bf16.msra.mxu0 %v408
    %548 = vmatprep.subr.bf16.mxu0 %v407
    %549 = vmatpush1.bf16.msra.mxu0 %v406
    %550 = vmatprep.subr.bf16.mxu0 %v437
    %551 = vmatpush2.bf16.msra.mxu0 %v436
    %552 = vmatprep.subr.bf16.mxu0 %v435
    %553 = vmatpush2.bf16.msra.mxu0 %v434
    %554 = vmatprep.subr.bf16.mxu0 %v433
    %555 = vmatpush2.bf16.msra.mxu0 %v432
    %556 = vmatprep.subr.bf16.mxu0 %v431
    %557 = vmatpush2.bf16.msra.mxu0 %v430
    %558 = vmatprep.subr.bf16.mxu0 %v429
    %559 = vmatpush2.bf16.msra.mxu0 %v428
    %560 = vmatprep.subr.bf16.mxu0 %v427
    %561 = vmatpush2.bf16.msra.mxu0 %v426
    %562 = vmatprep.subr.bf16.mxu0 %v425
    %563 = vmatpush2.bf16.msra.mxu0 %v424
    %564 = vmatprep.subr.bf16.mxu0 %v423
    %565 = vmatpush2.bf16.msra.mxu0 %v422
    %566 = vmatprep.mubr.bf16.mxu0 %v207
    %567 = vmatmul.mubr.bf16.gmra.mxu0 %v206
    %v568 = vpop.f32.mrf.mxu0
    %v569 = vadd.f32 0.0, %v568
    %v570 = vpop.f32.mrf.mxu0
    %v571 = vadd.f32 0.0, %v570
    %v572 = vpop.f32.mrf.mxu0
    %v573 = vpop.f32.mrf.mxu0
    %574 = vdwg.mxu0
    %575 = vmatprep.subr.bf16.mxu0 %v453
    %576 = vmatpush1.bf16.msra.mxu0 %v452
    %577 = vmatprep.subr.bf16.mxu0 %v451
    %578 = vmatpush1.bf16.msra.mxu0 %v450
    %579 = vmatprep.subr.bf16.mxu0 %v449
    %580 = vmatpush1.bf16.msra.mxu0 %v448
    %581 = vmatprep.subr.bf16.mxu0 %v447
    %582 = vmatpush1.bf16.msra.mxu0 %v446
    %583 = vmatprep.subr.bf16.mxu0 %v445
    %584 = vmatpush1.bf16.msra.mxu0 %v444
    %585 = vmatprep.subr.bf16.mxu0 %v443
    %586 = vmatpush1.bf16.msra.mxu0 %v442
    %587 = vmatprep.subr.bf16.mxu0 %v441
    %588 = vmatpush1.bf16.msra.mxu0 %v440
    %589 = vmatprep.subr.bf16.mxu0 %v439
    %590 = vmatpush1.bf16.msra.mxu0 %v438
    %591 = vmatprep.subr.bf16.mxu0 %v469
    %592 = vmatpush2.bf16.msra.mxu0 %v468
    %593 = vmatprep.subr.bf16.mxu0 %v467
    %594 = vmatpush2.bf16.msra.mxu0 %v466
    %595 = vmatprep.subr.bf16.mxu0 %v465
    %596 = vmatpush2.bf16.msra.mxu0 %v464
    %597 = vmatprep.subr.bf16.mxu0 %v463
    %598 = vmatpush2.bf16.msra.mxu0 %v462
    %599 = vmatprep.subr.bf16.mxu0 %v461
    %600 = vmatpush2.bf16.msra.mxu0 %v460
    %601 = vmatprep.subr.bf16.mxu0 %v459
    %602 = vmatpush2.bf16.msra.mxu0 %v458
    %603 = vmatprep.subr.bf16.mxu0 %v457
    %604 = vmatpush2.bf16.msra.mxu0 %v456
    %605 = vmatprep.subr.bf16.mxu0 %v455
    %606 = vmatpush2.bf16.msra.mxu0 %v454
    %607 = vmatprep.mubr.bf16.mxu0 %v209
    %608 = vmatmul.mubr.bf16.gmra.mxu0 %v208
    %v609 = vpop.f32.mrf.mxu0
    %v610 = vadd.f32 %v569, %v609
    %v611 = vpop.f32.mrf.mxu0
    %v612 = vadd.f32 %v571, %v611
    %v613 = vpop.f32.mrf.mxu0
    %v614 = vpop.f32.mrf.mxu0
    %615 = vdwg.mxu0
    %v616 = vpack.c.bf16 %v610, %v610
    %v617 = vpack.c.bf16 %v612, %v612
    %v619 = vunpack.c.l.b16 %v129
    %v620 = vunpack.c.h.b16 %v129
    %v621 = vpack.c.b16 %v619, %v619
    %v622 = vpack.c.b16 %v620, %v620
    %vm624 = vcmask 523264
    %v626 = vsel %vm624, %v617, 0
    %v629 = vsel %vm624, %v622, 0
    %631 = vmatprep.subr.bf16.mxu0 0
    %632 = vmatpush1.bf16.xpose.msra.mxu0 0
    %633 = vmatprep.subr.bf16.mxu0 0
    %634 = vmatpush1.bf16.xpose.msra.mxu0 0
    %635 = vmatprep.subr.bf16.mxu0 0
    %636 = vmatpush1.bf16.xpose.msra.mxu0 0
    %637 = vmatprep.subr.bf16.mxu0 0
    %638 = vmatpush1.bf16.xpose.msra.mxu0 0
    %639 = vmatprep.subr.bf16.mxu0 0
    %640 = vmatpush1.bf16.xpose.msra.mxu0 0
    %641 = vmatprep.subr.bf16.mxu0 0
    %642 = vmatpush1.bf16.xpose.msra.mxu0 0
    %643 = vmatprep.subr.bf16.mxu0 0
    %644 = vmatpush1.bf16.xpose.msra.mxu0 0
    %645 = vmatprep.subr.bf16.mxu0 %v629
    %646 = vmatpush1.bf16.xpose.msra.mxu0 %v621
    %647 = vmatprep.subr.bf16.mxu0 0
    %648 = vmatpush2.bf16.xpose.msra.mxu0 0
    %649 = vmatprep.subr.bf16.mxu0 0
    %650 = vmatpush2.bf16.xpose.msra.mxu0 0
    %651 = vmatprep.subr.bf16.mxu0 0
    %652 = vmatpush2.bf16.xpose.msra.mxu0 0
    %653 = vmatprep.subr.bf16.mxu0 0
    %654 = vmatpush2.bf16.xpose.msra.mxu0 0
    %655 = vmatprep.subr.bf16.mxu0 0
    %656 = vmatpush2.bf16.xpose.msra.mxu0 0
    %657 = vmatprep.subr.bf16.mxu0 0
    %658 = vmatpush2.bf16.xpose.msra.mxu0 0
    %659 = vmatprep.subr.bf16.mxu0 0
    %660 = vmatpush2.bf16.xpose.msra.mxu0 0
    %661 = vmatprep.subr.bf16.mxu0 0
    %662 = vmatpush2.bf16.xpose.msra.mxu0 0
    %663 = vmatprep.mubr.bf16.mxu0 %v626
    %664 = vmatmul.mubr.bf16.gmra.mxu0 %v616
    %v665 = vpop.f32.mrf.mxu0
    %v666 = vadd.f32 0.0, %v665
    %v667 = vpop.f32.mrf.mxu0
    %v668 = vpop.f32.mrf.mxu0
    %v669 = vpop.f32.mrf.mxu0
    %670 = vdwg.mxu0
    %vm671 = vcmask 64512
    %v672 = vsel %vm671, %v666, -inf
    %673 = vmax.xlane.f32.xlu0 %v672
    %v674 = vpop.xlane.xlu0 %673
    %v675 = vsub.f32 %v666, %v674
    %v676 = vmul.f32 %v675, 1.442695
    %v677 = vpow.pop %v676
    %v678 = vsel %vm671, %v677, 0.0
    %679 = vadd.xlane.f32.xlu0 %v678
    %v680 = vpop.xlane.xlu0 %679
    %v681 = vrcp.pop %v680
    %v682 = vmul.f32 %v677, %v681
    %v683 = vpack.c.bf16 %v682, %v682
    %v685 = vsel %vm671, %v683, 0
    %vm687 = vcmask 1043456
    %v689 = vsel %vm687, %v621, 0
    %v691 = vsel %vm687, %v622, 0
    %693 = vmatprep.subr.bf16.mxu0 0
    %694 = vmatpush1.bf16.msra.mxu0 0
    %695 = vmatprep.subr.bf16.mxu0 0
    %696 = vmatpush1.bf16.msra.mxu0 0
    %697 = vmatprep.subr.bf16.mxu0 0
    %698 = vmatpush1.bf16.msra.mxu0 0
    %699 = vmatprep.subr.bf16.mxu0 0
    %700 = vmatpush1.bf16.msra.mxu0 0
    %701 = vmatprep.subr.bf16.mxu0 0
    %702 = vmatpush1.bf16.msra.mxu0 0
    %703 = vmatprep.subr.bf16.mxu0 0
    %704 = vmatpush1.bf16.msra.mxu0 0
    %705 = vmatprep.subr.bf16.mxu0 0
    %706 = vmatpush1.bf16.msra.mxu0 0
    %707 = vmatprep.subr.bf16.mxu0 %v691
    %708 = vmatpush1.bf16.msra.mxu0 %v689
    %709 = vmatprep.subr.bf16.mxu0 0
    %710 = vmatpush2.bf16.msra.mxu0 0
    %711 = vmatprep.subr.bf16.mxu0 0
    %712 = vmatpush2.bf16.msra.mxu0 0
    %713 = vmatprep.subr.bf16.mxu0 0
    %714 = vmatpush2.bf16.msra.mxu0 0
    %715 = vmatprep.subr.bf16.mxu0 0
    %716 = vmatpush2.bf16.msra.mxu0 0
    %717 = vmatprep.subr.bf16.mxu0 0
    %718 = vmatpush2.bf16.msra.mxu0 0
    %719 = vmatprep.subr.bf16.mxu0 0
    %720 = vmatpush2.bf16.msra.mxu0 0
    %721 = vmatprep.subr.bf16.mxu0 0
    %722 = vmatpush2.bf16.msra.mxu0 0
    %723 = vmatprep.subr.bf16.mxu0 0
    %724 = vmatpush2.bf16.msra.mxu0 0
    %725 = vmatprep.mubr.bf16.mxu0 0
    %726 = vmatmul.mubr.bf16.gmra.mxu0 %v685
    %v727 = vpop.f32.mrf.mxu0
    %v728 = vadd.f32 0.0, %v727
    %v729 = vpop.f32.mrf.mxu0
    %v730 = vadd.f32 0.0, %v729
    %v731 = vpop.f32.mrf.mxu0
    %v732 = vpop.f32.mrf.mxu0
    %733 = vdwg.mxu0
    %v734 = vadd.f32 %v134, %v728
    %v735 = vadd.f32 %v135, %v730
    %v736 = vld [vmem:[%s3] sm:$0xff]
    %v737 = vld [vmem:[%s3 + $0x8] sm:$0xff]
    %v738 = vld [vmem:[%s3 + $0x10] sm:$0xff]
    %v739 = vld [vmem:[%s3 + $0x18] sm:$0xff]
    %v740 = vld [vmem:[%s3 + $0x20] sm:$0xff]
    %v741 = vld [vmem:[%s3 + $0x28] sm:$0xff]
    %v742 = vld [vmem:[%s3 + $0x30] sm:$0xff]
    %v743 = vld [vmem:[%s3 + $0x38] sm:$0xff]
    %v744 = vld [vmem:[%s3 + $0x40] sm:$0xff]
    %v745 = vld [vmem:[%s3 + $0x48] sm:$0xff]
    %v746 = vld [vmem:[%s3 + $0x50] sm:$0xff]
    %v747 = vld [vmem:[%s3 + $0x58] sm:$0xff]
    %v748 = vld [vmem:[%s3 + $0x60] sm:$0xff]
    %v749 = vld [vmem:[%s3 + $0x68] sm:$0xff]
    %v750 = vld [vmem:[%s3 + $0x70] sm:$0xff]
    %v751 = vld [vmem:[%s3 + $0x78] sm:$0xff]
    %v752 = vld [vmem:[%s3 + $0x80] sm:$0xff]
    %v753 = vld [vmem:[%s3 + $0x88] sm:$0xff]
    %v754 = vld [vmem:[%s3 + $0x90] sm:$0xff]
    %v755 = vld [vmem:[%s3 + $0x98] sm:$0xff]
    %v756 = vld [vmem:[%s3 + $0xa0] sm:$0xff]
    %v757 = vld [vmem:[%s3 + $0xa8] sm:$0xff]
    %v758 = vld [vmem:[%s3 + $0xb0] sm:$0xff]
    %v759 = vld [vmem:[%s3 + $0xb8] sm:$0xff]
    %v760 = vld [vmem:[%s3 + $0xc0] sm:$0xff]
    %v761 = vld [vmem:[%s3 + $0xc8] sm:$0xff]
    %v762 = vld [vmem:[%s3 + $0xd0] sm:$0xff]
    %v763 = vld [vmem:[%s3 + $0xd8] sm:$0xff]
    %v764 = vld [vmem:[%s3 + $0xe0] sm:$0xff]
    %v765 = vld [vmem:[%s3 + $0xe8] sm:$0xff]
    %v766 = vld [vmem:[%s3 + $0xf0] sm:$0xff]
    %v767 = vld [vmem:[%s3 + $0xf8] sm:$0xff]
    %v768 = vld [vmem:[%s3 + $0x100] sm:$0xff]
    %v769 = vld [vmem:[%s3 + $0x108] sm:$0xff]
    %v770 = vld [vmem:[%s3 + $0x110] sm:$0xff]
    %v771 = vld [vmem:[%s3 + $0x118] sm:$0xff]
    %v772 = vld [vmem:[%s3 + $0x120] sm:$0xff]
    %v773 = vld [vmem:[%s3 + $0x128] sm:$0xff]
    %v774 = vld [vmem:[%s3 + $0x130] sm:$0xff]
    %v775 = vld [vmem:[%s3 + $0x138] sm:$0xff]
    %v776 = vld [vmem:[%s3 + $0x140] sm:$0xff]
    %v777 = vld [vmem:[%s3 + $0x148] sm:$0xff]
    %v778 = vld [vmem:[%s3 + $0x150] sm:$0xff]
    %v779 = vld [vmem:[%s3 + $0x158] sm:$0xff]
    %v780 = vld [vmem:[%s3 + $0x160] sm:$0xff]
    %v781 = vld [vmem:[%s3 + $0x168] sm:$0xff]
    %v782 = vld [vmem:[%s3 + $0x170] sm:$0xff]
    %v783 = vld [vmem:[%s3 + $0x178] sm:$0xff]
    %v832 = vunpack.c.l.b16 %v736
    %v833 = vunpack.c.h.b16 %v736
    %v834 = vunpack.c.l.b16 %v737
    %v835 = vunpack.c.h.b16 %v737
    %v836 = vunpack.c.l.b16 %v738
    %v837 = vunpack.c.h.b16 %v738
    %v838 = vunpack.c.l.b16 %v739
    %v839 = vunpack.c.h.b16 %v739
    %v840 = vunpack.c.l.b16 %v740
    %v841 = vunpack.c.h.b16 %v740
    %v842 = vunpack.c.l.b16 %v741
    %v843 = vunpack.c.h.b16 %v741
    %v844 = vunpack.c.l.b16 %v742
    %v845 = vunpack.c.h.b16 %v742
    %v846 = vunpack.c.l.b16 %v743
    %v847 = vunpack.c.h.b16 %v743
    %v848 = vunpack.c.l.b16 %v744
    %v849 = vunpack.c.h.b16 %v744
    %v850 = vunpack.c.l.b16 %v745
    %v851 = vunpack.c.h.b16 %v745
    %v852 = vunpack.c.l.b16 %v746
    %v853 = vunpack.c.h.b16 %v746
    %v854 = vunpack.c.l.b16 %v747
    %v855 = vunpack.c.h.b16 %v747
    %v856 = vunpack.c.l.b16 %v748
    %v857 = vunpack.c.h.b16 %v748
    %v858 = vunpack.c.l.b16 %v749
    %v859 = vunpack.c.h.b16 %v749
    %v860 = vunpack.c.l.b16 %v750
    %v861 = vunpack.c.h.b16 %v750
    %v862 = vunpack.c.l.b16 %v751
    %v863 = vunpack.c.h.b16 %v751
    %v864 = vunpack.c.l.b16 %v752
    %v865 = vunpack.c.h.b16 %v752
    %v866 = vunpack.c.l.b16 %v753
    %v867 = vunpack.c.h.b16 %v753
    %v868 = vunpack.c.l.b16 %v754
    %v869 = vunpack.c.h.b16 %v754
    %v870 = vunpack.c.l.b16 %v755
    %v871 = vunpack.c.h.b16 %v755
    %v872 = vunpack.c.l.b16 %v756
    %v873 = vunpack.c.h.b16 %v756
    %v874 = vunpack.c.l.b16 %v757
    %v875 = vunpack.c.h.b16 %v757
    %v876 = vunpack.c.l.b16 %v758
    %v877 = vunpack.c.h.b16 %v758
    %v878 = vunpack.c.l.b16 %v759
    %v879 = vunpack.c.h.b16 %v759
    %v880 = vunpack.c.l.b16 %v760
    %v881 = vunpack.c.h.b16 %v760
    %v882 = vunpack.c.l.b16 %v761
    %v883 = vunpack.c.h.b16 %v761
    %v884 = vunpack.c.l.b16 %v762
    %v885 = vunpack.c.h.b16 %v762
    %v886 = vunpack.c.l.b16 %v763
    %v887 = vunpack.c.h.b16 %v763
    %v888 = vunpack.c.l.b16 %v764
    %v889 = vunpack.c.h.b16 %v764
    %v890 = vunpack.c.l.b16 %v765
    %v891 = vunpack.c.h.b16 %v765
    %v892 = vunpack.c.l.b16 %v766
    %v893 = vunpack.c.h.b16 %v766
    %v894 = vunpack.c.l.b16 %v767
    %v895 = vunpack.c.h.b16 %v767
    %v896 = vunpack.c.l.b16 %v768
    %v897 = vunpack.c.h.b16 %v768
    %v898 = vunpack.c.l.b16 %v769
    %v899 = vunpack.c.h.b16 %v769
    %v900 = vunpack.c.l.b16 %v770
    %v901 = vunpack.c.h.b16 %v770
    %v902 = vunpack.c.l.b16 %v771
    %v903 = vunpack.c.h.b16 %v771
    %v904 = vunpack.c.l.b16 %v772
    %v905 = vunpack.c.h.b16 %v772
    %v906 = vunpack.c.l.b16 %v773
    %v907 = vunpack.c.h.b16 %v773
    %v908 = vunpack.c.l.b16 %v774
    %v909 = vunpack.c.h.b16 %v774
    %v910 = vunpack.c.l.b16 %v775
    %v911 = vunpack.c.h.b16 %v775
    %v912 = vunpack.c.l.b16 %v776
    %v913 = vunpack.c.h.b16 %v776
    %v914 = vunpack.c.l.b16 %v777
    %v915 = vunpack.c.h.b16 %v777
    %v916 = vunpack.c.l.b16 %v778
    %v917 = vunpack.c.h.b16 %v778
    %v918 = vunpack.c.l.b16 %v779
    %v919 = vunpack.c.h.b16 %v779
    %v920 = vunpack.c.l.b16 %v780
    %v921 = vunpack.c.h.b16 %v780
    %v922 = vunpack.c.l.b16 %v781
    %v923 = vunpack.c.h.b16 %v781
    %v924 = vunpack.c.l.b16 %v782
    %v925 = vunpack.c.h.b16 %v782
    %v926 = vunpack.c.l.b16 %v783
    %v927 = vunpack.c.h.b16 %v783
    %v928 = vpack.c.b16 %v836, %v832
    %v929 = vpack.c.b16 %v837, %v833
    %v930 = vpack.c.b16 %v838, %v834
    %v931 = vpack.c.b16 %v839, %v835
    %v932 = vpack.c.b16 %v844, %v840
    %v933 = vpack.c.b16 %v845, %v841
    %v934 = vpack.c.b16 %v846, %v842
    %v935 = vpack.c.b16 %v847, %v843
    %v936 = vpack.c.b16 %v852, %v848
    %v937 = vpack.c.b16 %v853, %v849
    %v938 = vpack.c.b16 %v854, %v850
    %v939 = vpack.c.b16 %v855, %v851
    %v940 = vpack.c.b16 %v860, %v856
    %v941 = vpack.c.b16 %v861, %v857
    %v942 = vpack.c.b16 %v862, %v858
    %v943 = vpack.c.b16 %v863, %v859
    %v944 = vpack.c.b16 %v868, %v864
    %v945 = vpack.c.b16 %v869, %v865
    %v946 = vpack.c.b16 %v870, %v866
    %v947 = vpack.c.b16 %v871, %v867
    %v948 = vpack.c.b16 %v876, %v872
    %v949 = vpack.c.b16 %v877, %v873
    %v950 = vpack.c.b16 %v878, %v874
    %v951 = vpack.c.b16 %v879, %v875
    %v952 = vpack.c.b16 %v884, %v880
    %v953 = vpack.c.b16 %v885, %v881
    %v954 = vpack.c.b16 %v886, %v882
    %v955 = vpack.c.b16 %v887, %v883
    %v956 = vpack.c.b16 %v892, %v888
    %v957 = vpack.c.b16 %v893, %v889
    %v958 = vpack.c.b16 %v894, %v890
    %v959 = vpack.c.b16 %v895, %v891
    %v960 = vpack.c.b16 %v900, %v896
    %v961 = vpack.c.b16 %v901, %v897
    %v962 = vpack.c.b16 %v902, %v898
    %v963 = vpack.c.b16 %v903, %v899
    %v964 = vpack.c.b16 %v908, %v904
    %v965 = vpack.c.b16 %v909, %v905
    %v966 = vpack.c.b16 %v910, %v906
    %v967 = vpack.c.b16 %v911, %v907
    %v968 = vpack.c.b16 %v916, %v912
    %v969 = vpack.c.b16 %v917, %v913
    %v970 = vpack.c.b16 %v918, %v914
    %v971 = vpack.c.b16 %v919, %v915
    %v972 = vpack.c.b16 %v924, %v920
    %v973 = vpack.c.b16 %v925, %v921
    %v974 = vpack.c.b16 %v926, %v922
    %v975 = vpack.c.b16 %v927, %v923
    %1024 = vmatprep.subr.bf16.mxu0 %v957
    %1025 = vmatpush1.bf16.msra.mxu0 %v956
    %1026 = vmatprep.subr.bf16.mxu0 %v953
    %1027 = vmatpush1.bf16.msra.mxu0 %v952
    %1028 = vmatprep.subr.bf16.mxu0 %v949
    %1029 = vmatpush1.bf16.msra.mxu0 %v948
    %1030 = vmatprep.subr.bf16.mxu0 %v945
    %1031 = vmatpush1.bf16.msra.mxu0 %v944
    %1032 = vmatprep.subr.bf16.mxu0 %v941
    %1033 = vmatpush1.bf16.msra.mxu0 %v940
    %1034 = vmatprep.subr.bf16.mxu0 %v937
    %1035 = vmatpush1.bf16.msra.mxu0 %v936
    %1036 = vmatprep.subr.bf16.mxu0 %v933
    %1037 = vmatpush1.bf16.msra.mxu0 %v932
    %1038 = vmatprep.subr.bf16.mxu0 %v929
    %1039 = vmatpush1.bf16.msra.mxu0 %v928
    %1040 = vmatprep.subr.bf16.mxu0 0
    %1041 = vmatpush2.bf16.msra.mxu0 0
    %1042 = vmatprep.subr.bf16.mxu0 0
    %1043 = vmatpush2.bf16.msra.mxu0 0
    %1044 = vmatprep.subr.bf16.mxu0 0
    %1045 = vmatpush2.bf16.msra.mxu0 0
    %1046 = vmatprep.subr.bf16.mxu0 0
    %1047 = vmatpush2.bf16.msra.mxu0 0
    %1048 = vmatprep.subr.bf16.mxu0 %v973
    %1049 = vmatpush2.bf16.msra.mxu0 %v972
    %1050 = vmatprep.subr.bf16.mxu0 %v969
    %1051 = vmatpush2.bf16.msra.mxu0 %v968
    %1052 = vmatprep.subr.bf16.mxu0 %v965
    %1053 = vmatpush2.bf16.msra.mxu0 %v964
    %1054 = vmatprep.subr.bf16.mxu0 %v961
    %1055 = vmatpush2.bf16.msra.mxu0 %v960
    %1056 = vmatprep.mubr.bf16.mxu0 %v629
    %1057 = vmatmul.mubr.bf16.gmra.mxu0 %v621
    %v1058 = vpop.f32.mrf.mxu0
    %v1059 = vadd.f32 0.0, %v1058
    %v1060 = vpop.f32.mrf.mxu0
    %v1061 = vadd.f32 0.0, %v1060
    %v1062 = vpop.f32.mrf.mxu0
    %v1063 = vpop.f32.mrf.mxu0
    %1064 = vdwg.mxu0
    %1065 = vmatprep.subr.bf16.mxu0 %v959
    %1066 = vmatpush1.bf16.msra.mxu0 %v958
    %1067 = vmatprep.subr.bf16.mxu0 %v955
    %1068 = vmatpush1.bf16.msra.mxu0 %v954
    %1069 = vmatprep.subr.bf16.mxu0 %v951
    %1070 = vmatpush1.bf16.msra.mxu0 %v950
    %1071 = vmatprep.subr.bf16.mxu0 %v947
    %1072 = vmatpush1.bf16.msra.mxu0 %v946
    %1073 = vmatprep.subr.bf16.mxu0 %v943
    %1074 = vmatpush1.bf16.msra.mxu0 %v942
    %1075 = vmatprep.subr.bf16.mxu0 %v939
    %1076 = vmatpush1.bf16.msra.mxu0 %v938
    %1077 = vmatprep.subr.bf16.mxu0 %v935
    %1078 = vmatpush1.bf16.msra.mxu0 %v934
    %1079 = vmatprep.subr.bf16.mxu0 %v931
    %1080 = vmatpush1.bf16.msra.mxu0 %v930
    %1081 = vmatprep.subr.bf16.mxu0 0
    %1082 = vmatpush2.bf16.msra.mxu0 0
    %1083 = vmatprep.subr.bf16.mxu0 0
    %1084 = vmatpush2.bf16.msra.mxu0 0
    %1085 = vmatprep.subr.bf16.mxu0 0
    %1086 = vmatpush2.bf16.msra.mxu0 0
    %1087 = vmatprep.subr.bf16.mxu0 0
    %1088 = vmatpush2.bf16.msra.mxu0 0
    %1089 = vmatprep.subr.bf16.mxu0 %v975
    %1090 = vmatpush2.bf16.msra.mxu0 %v974
    %1091 = vmatprep.subr.bf16.mxu0 %v971
    %1092 = vmatpush2.bf16.msra.mxu0 %v970
    %1093 = vmatprep.subr.bf16.mxu0 %v967
    %1094 = vmatpush2.bf16.msra.mxu0 %v966
    %1095 = vmatprep.subr.bf16.mxu0 %v963
    %1096 = vmatpush2.bf16.msra.mxu0 %v962
    %1097 = vmatprep.mubr.bf16.mxu0 %v629
    %1098 = vmatmul.mubr.bf16.gmra.mxu0 %v621
    %v1099 = vpop.f32.mrf.mxu0
    %v1100 = vadd.f32 0.0, %v1099
    %v1101 = vpop.f32.mrf.mxu0
    %v1102 = vadd.f32 0.0, %v1101
    %v1103 = vpop.f32.mrf.mxu0
    %v1104 = vpop.f32.mrf.mxu0
    %1105 = vdwg.mxu0
    %v1106 = vpack.c.bf16 %v1059, %v1059
    %v1107 = vpack.c.bf16 %v1061, %v1061
    %v1108 = vpack.c.bf16 %v1100, %v1100
    %v1109 = vpack.c.bf16 %v1102, %v1102
    %1110 = vmatprep.subr.bf16.mxu0 0
    %1111 = vmatpush1.bf16.xpose.msra.mxu0 0
    %1112 = vmatprep.subr.bf16.mxu0 0
    %1113 = vmatpush1.bf16.xpose.msra.mxu0 0
    %1114 = vmatprep.subr.bf16.mxu0 0
    %1115 = vmatpush1.bf16.xpose.msra.mxu0 0
    %1116 = vmatprep.subr.bf16.mxu0 0
    %1117 = vmatpush1.bf16.xpose.msra.mxu0 0
    %1118 = vmatprep.subr.bf16.mxu0 0
    %1119 = vmatpush1.bf16.xpose.msra.mxu0 0
    %1120 = vmatprep.subr.bf16.mxu0 0
    %1121 = vmatpush1.bf16.xpose.msra.mxu0 0
    %1122 = vmatprep.subr.bf16.mxu0 0
    %1123 = vmatpush1.bf16.xpose.msra.mxu0 0
    %1124 = vmatprep.subr.bf16.mxu0 %v207
    %1125 = vmatpush1.bf16.xpose.msra.mxu0 %v206
    %1126 = vmatprep.subr.bf16.mxu0 0
    %1127 = vmatpush2.bf16.xpose.msra.mxu0 0
    %1128 = vmatprep.subr.bf16.mxu0 0
    %1129 = vmatpush2.bf16.xpose.msra.mxu0 0
    %1130 = vmatprep.subr.bf16.mxu0 0
    %1131 = vmatpush2.bf16.xpose.msra.mxu0 0
    %1132 = vmatprep.subr.bf16.mxu0 0
    %1133 = vmatpush2.bf16.xpose.msra.mxu0 0
    %1134 = vmatprep.subr.bf16.mxu0 0
    %1135 = vmatpush2.bf16.xpose.msra.mxu0 0
    %1136 = vmatprep.subr.bf16.mxu0 0
    %1137 = vmatpush2.bf16.xpose.msra.mxu0 0
    %1138 = vmatprep.subr.bf16.mxu0 0
    %1139 = vmatpush2.bf16.xpose.msra.mxu0 0
    %1140 = vmatprep.subr.bf16.mxu0 0
    %1141 = vmatpush2.bf16.xpose.msra.mxu0 0
    %1142 = vmatprep.mubr.bf16.mxu0 %v1107
    %1143 = vmatmul.mubr.bf16.gmra.mxu0 %v1106
    %v1144 = vpop.f32.mrf.mxu0
    %v1145 = vadd.f32 0.0, %v1144
    %v1146 = vpop.f32.mrf.mxu0
    %v1147 = vpop.f32.mrf.mxu0
    %v1148 = vpop.f32.mrf.mxu0
    %1149 = vdwg.mxu0
    %1150 = vmatprep.subr.bf16.mxu0 0
    %1151 = vmatpush1.bf16.xpose.msra.mxu0 0
    %1152 = vmatprep.subr.bf16.mxu0 0
    %1153 = vmatpush1.bf16.xpose.msra.mxu0 0
    %1154 = vmatprep.subr.bf16.mxu0 0
    %1155 = vmatpush1.bf16.xpose.msra.mxu0 0
    %1156 = vmatprep.subr.bf16.mxu0 0
    %1157 = vmatpush1.bf16.xpose.msra.mxu0 0
    %1158 = vmatprep.subr.bf16.mxu0 0
    %1159 = vmatpush1.bf16.xpose.msra.mxu0 0
    %1160 = vmatprep.subr.bf16.mxu0 0
    %1161 = vmatpush1.bf16.xpose.msra.mxu0 0
    %1162 = vmatprep.subr.bf16.mxu0 0
    %1163 = vmatpush1.bf16.xpose.msra.mxu0 0
    %1164 = vmatprep.subr.bf16.mxu0 %v209
    %1165 = vmatpush1.bf16.xpose.msra.mxu0 %v208
    %1166 = vmatprep.subr.bf16.mxu0 0
    %1167 = vmatpush2.bf16.xpose.msra.mxu0 0
    %1168 = vmatprep.subr.bf16.mxu0 0
    %1169 = vmatpush2.bf16.xpose.msra.mxu0 0
    %1170 = vmatprep.subr.bf16.mxu0 0
    %1171 = vmatpush2.bf16.xpose.msra.mxu0 0
    %1172 = vmatprep.subr.bf16.mxu0 0
    %1173 = vmatpush2.bf16.xpose.msra.mxu0 0
    %1174 = vmatprep.subr.bf16.mxu0 0
    %1175 = vmatpush2.bf16.xpose.msra.mxu0 0
    %1176 = vmatprep.subr.bf16.mxu0 0
    %1177 = vmatpush2.bf16.xpose.msra.mxu0 0
    %1178 = vmatprep.subr.bf16.mxu0 0
    %1179 = vmatpush2.bf16.xpose.msra.mxu0 0
    %1180 = vmatprep.subr.bf16.mxu0 0
    %1181 = vmatpush2.bf16.xpose.msra.mxu0 0
    %1182 = vmatprep.mubr.bf16.mxu0 %v1109
    %1183 = vmatmul.mubr.bf16.gmra.mxu0 %v1108
    %v1184 = vpop.f32.mrf.mxu0
    %v1185 = vadd.f32 %v1145, %v1184
    %v1186 = vpop.f32.mrf.mxu0
    %v1187 = vpop.f32.mrf.mxu0
    %v1188 = vpop.f32.mrf.mxu0
    %1189 = vdwg.mxu0
    %v1190 = vsel %vm671, %v1185, -inf
    %1191 = vmax.xlane.f32.xlu0 %v1190
    %v1192 = vpop.xlane.xlu0 %1191
    %v1193 = vsub.f32 %v1185, %v1192
    %v1194 = vmul.f32 %v1193, 1.442695
    %v1195 = vpow.pop %v1194
    %v1196 = vsel %vm671, %v1195, 0.0
    %1197 = vadd.xlane.f32.xlu0 %v1196
    %v1198 = vpop.xlane.xlu0 %1197
    %v1199 = vrcp.pop %v1198
    %v1200 = vmul.f32 %v1195, %v1199
    %v1201 = vpack.c.bf16 %v1200, %v1200
    %v1203 = vsel %vm671, %v1201, 0
    %v1206 = vsel %vm687, %v206, 0
    %v1209 = vsel %vm687, %v207, 0
    %v1212 = vsel %vm687, %v208, 0
    %v1215 = vsel %vm687, %v209, 0
    %1217 = vmatprep.subr.bf16.mxu0 0
    %1218 = vmatpush1.bf16.msra.mxu0 0
    %1219 = vmatprep.subr.bf16.mxu0 0
    %1220 = vmatpush1.bf16.msra.mxu0 0
    %1221 = vmatprep.subr.bf16.mxu0 0
    %1222 = vmatpush1.bf16.msra.mxu0 0
    %1223 = vmatprep.subr.bf16.mxu0 0
    %1224 = vmatpush1.bf16.msra.mxu0 0
    %1225 = vmatprep.subr.bf16.mxu0 0
    %1226 = vmatpush1.bf16.msra.mxu0 0
    %1227 = vmatprep.subr.bf16.mxu0 0
    %1228 = vmatpush1.bf16.msra.mxu0 0
    %1229 = vmatprep.subr.bf16.mxu0 0
    %1230 = vmatpush1.bf16.msra.mxu0 0
    %1231 = vmatprep.subr.bf16.mxu0 %v1209
    %1232 = vmatpush1.bf16.msra.mxu0 %v1206
    %1233 = vmatprep.subr.bf16.mxu0 0
    %1234 = vmatpush2.bf16.msra.mxu0 0
    %1235 = vmatprep.subr.bf16.mxu0 0
    %1236 = vmatpush2.bf16.msra.mxu0 0
    %1237 = vmatprep.subr.bf16.mxu0 0
    %1238 = vmatpush2.bf16.msra.mxu0 0
    %1239 = vmatprep.subr.bf16.mxu0 0
    %1240 = vmatpush2.bf16.msra.mxu0 0
    %1241 = vmatprep.subr.bf16.mxu0 0
    %1242 = vmatpush2.bf16.msra.mxu0 0
    %1243 = vmatprep.subr.bf16.mxu0 0
    %1244 = vmatpush2.bf16.msra.mxu0 0
    %1245 = vmatprep.subr.bf16.mxu0 0
    %1246 = vmatpush2.bf16.msra.mxu0 0
    %1247 = vmatprep.subr.bf16.mxu0 0
    %1248 = vmatpush2.bf16.msra.mxu0 0
    %1249 = vmatprep.mubr.bf16.mxu0 0
    %1250 = vmatmul.mubr.bf16.gmra.mxu0 %v1203
    %v1251 = vpop.f32.mrf.mxu0
    %v1252 = vadd.f32 0.0, %v1251
    %v1253 = vpop.f32.mrf.mxu0
    %v1254 = vadd.f32 0.0, %v1253
    %v1255 = vpop.f32.mrf.mxu0
    %v1256 = vpop.f32.mrf.mxu0
    %1257 = vdwg.mxu0
    %1258 = vmatprep.subr.bf16.mxu0 0
    %1259 = vmatpush1.bf16.msra.mxu0 0
    %1260 = vmatprep.subr.bf16.mxu0 0
    %1261 = vmatpush1.bf16.msra.mxu0 0
    %1262 = vmatprep.subr.bf16.mxu0 0
    %1263 = vmatpush1.bf16.msra.mxu0 0
    %1264 = vmatprep.subr.bf16.mxu0 0
    %1265 = vmatpush1.bf16.msra.mxu0 0
    %1266 = vmatprep.subr.bf16.mxu0 0
    %1267 = vmatpush1.bf16.msra.mxu0 0
    %1268 = vmatprep.subr.bf16.mxu0 0
    %1269 = vmatpush1.bf16.msra.mxu0 0
    %1270 = vmatprep.subr.bf16.mxu0 0
    %1271 = vmatpush1.bf16.msra.mxu0 0
    %1272 = vmatprep.subr.bf16.mxu0 %v1215
    %1273 = vmatpush1.bf16.msra.mxu0 %v1212
    %1274 = vmatprep.subr.bf16.mxu0 0
    %1275 = vmatpush2.bf16.msra.mxu0 0
    %1276 = vmatprep.subr.bf16.mxu0 0
    %1277 = vmatpush2.bf16.msra.mxu0 0
    %1278 = vmatprep.subr.bf16.mxu0 0
    %1279 = vmatpush2.bf16.msra.mxu0 0
    %1280 = vmatprep.subr.bf16.mxu0 0
    %1281 = vmatpush2.bf16.msra.mxu0 0
    %1282 = vmatprep.subr.bf16.mxu0 0
    %1283 = vmatpush2.bf16.msra.mxu0 0
    %1284 = vmatprep.subr.bf16.mxu0 0
    %1285 = vmatpush2.bf16.msra.mxu0 0
    %1286 = vmatprep.subr.bf16.mxu0 0
    %1287 = vmatpush2.bf16.msra.mxu0 0
    %1288 = vmatprep.subr.bf16.mxu0 0
    %1289 = vmatpush2.bf16.msra.mxu0 0
    %1290 = vmatprep.mubr.bf16.mxu0 0
    %1291 = vmatmul.mubr.bf16.gmra.mxu0 %v1203
    %v1292 = vpop.f32.mrf.mxu0
    %v1293 = vadd.f32 0.0, %v1292
    %v1294 = vpop.f32.mrf.mxu0
    %v1295 = vadd.f32 0.0, %v1294
    %v1296 = vpop.f32.mrf.mxu0
    %v1297 = vpop.f32.mrf.mxu0
    %1298 = vdwg.mxu0
    %v1299 = vadd.f32 %v130, %v1252
    %v1300 = vadd.f32 %v131, %v1254
    %v1301 = vadd.f32 %v132, %v1293
    %v1302 = vadd.f32 %v133, %v1295
    %v1303 = vpack.c.bf16 %v1299, %v1299
    %v1304 = vpack.c.bf16 %v1300, %v1300
    %v1305 = vpack.c.bf16 %v1301, %v1301
    %v1306 = vpack.c.bf16 %v1302, %v1302
    %v1307 = vpack.c.bf16 %v734, %v734
    %v1308 = vpack.c.bf16 %v735, %v735
    %v1309 = vld [vmem:[%s4] sm:$0xf]
    %v1310 = vld [vmem:[%s4 + $0x4] sm:$0xf]
    %v1311 = vld [vmem:[%s4 + $0x8] sm:$0xf]
    %v1312 = vld [vmem:[%s4 + $0xc] sm:$0xf]
    %v1313 = vld [vmem:[%s4 + $0x10] sm:$0xf]
    %v1314 = vld [vmem:[%s4 + $0x14] sm:$0xf]
    %v1315 = vld [vmem:[%s4 + $0x18] sm:$0xf]
    %v1316 = vld [vmem:[%s4 + $0x1c] sm:$0xf]
    %v1317 = vld [vmem:[%s4 + $0x20] sm:$0xf]
    %v1318 = vld [vmem:[%s4 + $0x24] sm:$0xf]
    %v1319 = vld [vmem:[%s4 + $0x28] sm:$0xf]
    %v1320 = vld [vmem:[%s4 + $0x2c] sm:$0xf]
    %v1321 = vld [vmem:[%s4 + $0x30] sm:$0xf]
    %v1322 = vld [vmem:[%s4 + $0x34] sm:$0xf]
    %v1323 = vld [vmem:[%s4 + $0x38] sm:$0xf]
    %v1324 = vld [vmem:[%s4 + $0x3c] sm:$0xf]
    %v1325 = vld [vmem:[%s4 + $0x40] sm:$0xf]
    %v1326 = vld [vmem:[%s4 + $0x44] sm:$0xf]
    %v1327 = vld [vmem:[%s4 + $0x48] sm:$0xf]
    %v1328 = vld [vmem:[%s4 + $0x4c] sm:$0xf]
    %v1329 = vld [vmem:[%s4 + $0x50] sm:$0xf]
    %v1330 = vld [vmem:[%s4 + $0x54] sm:$0xf]
    %v1331 = vld [vmem:[%s4 + $0x58] sm:$0xf]
    %v1332 = vld [vmem:[%s4 + $0x5c] sm:$0xf]
    %v1333 = vld [vmem:[%s4 + $0x60] sm:$0xf]
    %v1334 = vld [vmem:[%s4 + $0x64] sm:$0xf]
    %v1335 = vld [vmem:[%s4 + $0x68] sm:$0xf]
    %v1336 = vld [vmem:[%s4 + $0x6c] sm:$0xf]
    %v1337 = vld [vmem:[%s4 + $0x70] sm:$0xf]
    %v1338 = vld [vmem:[%s4 + $0x74] sm:$0xf]
    %v1339 = vld [vmem:[%s4 + $0x78] sm:$0xf]
    %v1340 = vld [vmem:[%s4 + $0x7c] sm:$0xf]
    %v1341 = vld [vmem:[%s4 + $0x80] sm:$0xf]
    %v1342 = vld [vmem:[%s4 + $0x84] sm:$0xf]
    %v1343 = vld [vmem:[%s4 + $0x88] sm:$0xf]
    %v1344 = vld [vmem:[%s4 + $0x8c] sm:$0xf]
    %v1345 = vld [vmem:[%s4 + $0x90] sm:$0xf]
    %v1346 = vld [vmem:[%s4 + $0x94] sm:$0xf]
    %v1347 = vld [vmem:[%s4 + $0x98] sm:$0xf]
    %v1348 = vld [vmem:[%s4 + $0x9c] sm:$0xf]
    %v1349 = vld [vmem:[%s4 + $0xa0] sm:$0xf]
    %v1350 = vld [vmem:[%s4 + $0xa4] sm:$0xf]
    %v1351 = vld [vmem:[%s4 + $0xa8] sm:$0xf]
    %v1352 = vld [vmem:[%s4 + $0xac] sm:$0xf]
    %v1353 = vld [vmem:[%s4 + $0xb0] sm:$0xf]
    %v1354 = vld [vmem:[%s4 + $0xb4] sm:$0xf]
    %v1355 = vld [vmem:[%s4 + $0xb8] sm:$0xf]
    %v1356 = vld [vmem:[%s4 + $0xbc] sm:$0xf]
    %v1357 = vld [vmem:[%s4 + $0xc0] sm:$0xf]
    %v1358 = vld [vmem:[%s4 + $0xc4] sm:$0xf]
    %v1359 = vld [vmem:[%s4 + $0xc8] sm:$0xf]
    %v1360 = vld [vmem:[%s4 + $0xcc] sm:$0xf]
    %v1361 = vld [vmem:[%s4 + $0xd0] sm:$0xf]
    %v1362 = vld [vmem:[%s4 + $0xd4] sm:$0xf]
    %v1363 = vld [vmem:[%s4 + $0xd8] sm:$0xf]
    %v1364 = vld [vmem:[%s4 + $0xdc] sm:$0xf]
    %v1365 = vld [vmem:[%s4 + $0xe0] sm:$0xf]
    %v1366 = vld [vmem:[%s4 + $0xe4] sm:$0xf]
    %v1367 = vld [vmem:[%s4 + $0xe8] sm:$0xf]
    %v1368 = vld [vmem:[%s4 + $0xec] sm:$0xf]
    %v1369 = vld [vmem:[%s4 + $0xf0] sm:$0xf]
    %v1370 = vld [vmem:[%s4 + $0xf4] sm:$0xf]
    %v1371 = vld [vmem:[%s4 + $0xf8] sm:$0xf]
    %v1372 = vld [vmem:[%s4 + $0xfc] sm:$0xf]
    %v1373 = vld [vmem:[%s5] sm:$0xf]
    %v1374 = vld [vmem:[%s5 + $0x4] sm:$0xf]
    %v1375 = vld [vmem:[%s5 + $0x8] sm:$0xf]
    %v1376 = vld [vmem:[%s5 + $0xc] sm:$0xf]
    %v1377 = vld [vmem:[%s5 + $0x10] sm:$0xf]
    %v1378 = vld [vmem:[%s5 + $0x14] sm:$0xf]
    %v1379 = vld [vmem:[%s5 + $0x18] sm:$0xf]
    %v1380 = vld [vmem:[%s5 + $0x1c] sm:$0xf]
    %v1381 = vld [vmem:[%s5 + $0x20] sm:$0xf]
    %v1382 = vld [vmem:[%s5 + $0x24] sm:$0xf]
    %v1383 = vld [vmem:[%s5 + $0x28] sm:$0xf]
    %v1384 = vld [vmem:[%s5 + $0x2c] sm:$0xf]
    %v1385 = vld [vmem:[%s5 + $0x30] sm:$0xf]
    %v1386 = vld [vmem:[%s5 + $0x34] sm:$0xf]
    %v1387 = vld [vmem:[%s5 + $0x38] sm:$0xf]
    %v1388 = vld [vmem:[%s5 + $0x3c] sm:$0xf]
    %v1389 = vld [vmem:[%s5 + $0x40] sm:$0xf]
    %v1390 = vld [vmem:[%s5 + $0x44] sm:$0xf]
    %v1391 = vld [vmem:[%s5 + $0x48] sm:$0xf]
    %v1392 = vld [vmem:[%s5 + $0x4c] sm:$0xf]
    %v1393 = vld [vmem:[%s5 + $0x50] sm:$0xf]
    %v1394 = vld [vmem:[%s5 + $0x54] sm:$0xf]
    %v1395 = vld [vmem:[%s5 + $0x58] sm:$0xf]
    %v1396 = vld [vmem:[%s5 + $0x5c] sm:$0xf]
    %v1421 = vunpack.c.l.b16 %v1373
    %v1422 = vunpack.c.l.b16 %v1374
    %v1423 = vunpack.c.l.b16 %v1375
    %v1424 = vunpack.c.l.b16 %v1376
    %v1425 = vunpack.c.l.b16 %v1377
    %v1426 = vunpack.c.l.b16 %v1378
    %v1427 = vunpack.c.l.b16 %v1379
    %v1428 = vunpack.c.l.b16 %v1380
    %v1429 = vunpack.c.l.b16 %v1381
    %v1430 = vunpack.c.l.b16 %v1382
    %v1431 = vunpack.c.l.b16 %v1383
    %v1432 = vunpack.c.l.b16 %v1384
    %v1433 = vunpack.c.l.b16 %v1385
    %v1434 = vunpack.c.l.b16 %v1386
    %v1435 = vunpack.c.l.b16 %v1387
    %v1436 = vunpack.c.l.b16 %v1388
    %v1437 = vunpack.c.l.b16 %v1389
    %v1438 = vunpack.c.l.b16 %v1390
    %v1439 = vunpack.c.l.b16 %v1391
    %v1440 = vunpack.c.l.b16 %v1392
    %v1441 = vunpack.c.l.b16 %v1393
    %v1442 = vunpack.c.l.b16 %v1394
    %v1443 = vunpack.c.l.b16 %v1395
    %v1444 = vunpack.c.l.b16 %v1396
    %v1445 = vpack.c.b16 %v1422, %v1421
    %v1446 = vpack.c.b16 %v1424, %v1423
    %v1447 = vpack.c.b16 %v1426, %v1425
    %v1448 = vpack.c.b16 %v1428, %v1427
    %v1449 = vpack.c.b16 %v1430, %v1429
    %v1450 = vpack.c.b16 %v1432, %v1431
    %v1451 = vpack.c.b16 %v1434, %v1433
    %v1452 = vpack.c.b16 %v1436, %v1435
    %v1453 = vpack.c.b16 %v1438, %v1437
    %v1454 = vpack.c.b16 %v1440, %v1439
    %v1455 = vpack.c.b16 %v1442, %v1441
    %v1456 = vpack.c.b16 %v1444, %v1443
    %v1470 = vsel %vm624, %v1308, 0
    %1472 = vmatprep.subr.bf16.mxu0 0
    %1473 = vmatpush1.bf16.msra.mxu0 %v1452
    %1474 = vmatprep.subr.bf16.mxu0 0
    %1475 = vmatpush1.bf16.msra.mxu0 %v1451
    %1476 = vmatprep.subr.bf16.mxu0 0
    %1477 = vmatpush1.bf16.msra.mxu0 %v1450
    %1478 = vmatprep.subr.bf16.mxu0 0
    %1479 = vmatpush1.bf16.msra.mxu0 %v1449
    %1480 = vmatprep.subr.bf16.mxu0 0
    %1481 = vmatpush1.bf16.msra.mxu0 %v1448
    %1482 = vmatprep.subr.bf16.mxu0 0
    %1483 = vmatpush1.bf16.msra.mxu0 %v1447
    %1484 = vmatprep.subr.bf16.mxu0 0
    %1485 = vmatpush1.bf16.msra.mxu0 %v1446
    %1486 = vmatprep.subr.bf16.mxu0 0
    %1487 = vmatpush1.bf16.msra.mxu0 %v1445
    %1488 = vmatprep.subr.bf16.mxu0 0
    %1489 = vmatpush2.bf16.msra.mxu0 0
    %1490 = vmatprep.subr.bf16.mxu0 0
    %1491 = vmatpush2.bf16.msra.mxu0 0
    %1492 = vmatprep.subr.bf16.mxu0 0
    %1493 = vmatpush2.bf16.msra.mxu0 0
    %1494 = vmatprep.subr.bf16.mxu0 0
    %1495 = vmatpush2.bf16.msra.mxu0 0
    %1496 = vmatprep.subr.bf16.mxu0 0
    %1497 = vmatpush2.bf16.msra.mxu0 %v1456
    %1498 = vmatprep.subr.bf16.mxu0 0
    %1499 = vmatpush2.bf16.msra.mxu0 %v1455
    %1500 = vmatprep.subr.bf16.mxu0 0
    %1501 = vmatpush2.bf16.msra.mxu0 %v1454
    %1502 = vmatprep.subr.bf16.mxu0 0
    %1503 = vmatpush2.bf16.msra.mxu0 %v1453
    %1504 = vmatprep.mubr.bf16.mxu0 %v1470
    %1505 = vmatmul.mubr.bf16.gmra.mxu0 %v1307
    %v1506 = vpop.f32.mrf.mxu0
    %v1507 = vadd.f32 0.0, %v1506
    %v1508 = vpop.f32.mrf.mxu0
    %v1509 = vpop.f32.mrf.mxu0
    %v1510 = vpop.f32.mrf.mxu0
    %1511 = vdwg.mxu0
    %v1576 = vunpack.c.l.b16 %v1309
    %v1577 = vunpack.c.l.b16 %v1310
    %v1578 = vunpack.c.l.b16 %v1311
    %v1579 = vunpack.c.l.b16 %v1312
    %v1580 = vunpack.c.l.b16 %v1313
    %v1581 = vunpack.c.l.b16 %v1314
    %v1582 = vunpack.c.l.b16 %v1315
    %v1583 = vunpack.c.l.b16 %v1316
    %v1584 = vunpack.c.l.b16 %v1317
    %v1585 = vunpack.c.l.b16 %v1318
    %v1586 = vunpack.c.l.b16 %v1319
    %v1587 = vunpack.c.l.b16 %v1320
    %v1588 = vunpack.c.l.b16 %v1321
    %v1589 = vunpack.c.l.b16 %v1322
    %v1590 = vunpack.c.l.b16 %v1323
    %v1591 = vunpack.c.l.b16 %v1324
    %v1592 = vunpack.c.l.b16 %v1325
    %v1593 = vunpack.c.l.b16 %v1326
    %v1594 = vunpack.c.l.b16 %v1327
    %v1595 = vunpack.c.l.b16 %v1328
    %v1596 = vunpack.c.l.b16 %v1329
    %v1597 = vunpack.c.l.b16 %v1330
    %v1598 = vunpack.c.l.b16 %v1331
    %v1599 = vunpack.c.l.b16 %v1332
    %v1600 = vunpack.c.l.b16 %v1333
    %v1601 = vunpack.c.l.b16 %v1334
    %v1602 = vunpack.c.l.b16 %v1335
    %v1603 = vunpack.c.l.b16 %v1336
    %v1604 = vunpack.c.l.b16 %v1337
    %v1605 = vunpack.c.l.b16 %v1338
    %v1606 = vunpack.c.l.b16 %v1339
    %v1607 = vunpack.c.l.b16 %v1340
    %v1608 = vunpack.c.l.b16 %v1341
    %v1609 = vunpack.c.l.b16 %v1342
    %v1610 = vunpack.c.l.b16 %v1343
    %v1611 = vunpack.c.l.b16 %v1344
    %v1612 = vunpack.c.l.b16 %v1345
    %v1613 = vunpack.c.l.b16 %v1346
    %v1614 = vunpack.c.l.b16 %v1347
    %v1615 = vunpack.c.l.b16 %v1348
    %v1616 = vunpack.c.l.b16 %v1349
    %v1617 = vunpack.c.l.b16 %v1350
    %v1618 = vunpack.c.l.b16 %v1351
    %v1619 = vunpack.c.l.b16 %v1352
    %v1620 = vunpack.c.l.b16 %v1353
    %v1621 = vunpack.c.l.b16 %v1354
    %v1622 = vunpack.c.l.b16 %v1355
    %v1623 = vunpack.c.l.b16 %v1356
    %v1624 = vunpack.c.l.b16 %v1357
    %v1625 = vunpack.c.l.b16 %v1358
    %v1626 = vunpack.c.l.b16 %v1359
    %v1627 = vunpack.c.l.b16 %v1360
    %v1628 = vunpack.c.l.b16 %v1361
    %v1629 = vunpack.c.l.b16 %v1362
    %v1630 = vunpack.c.l.b16 %v1363
    %v1631 = vunpack.c.l.b16 %v1364
    %v1632 = vunpack.c.l.b16 %v1365
    %v1633 = vunpack.c.l.b16 %v1366
    %v1634 = vunpack.c.l.b16 %v1367
    %v1635 = vunpack.c.l.b16 %v1368
    %v1636 = vunpack.c.l.b16 %v1369
    %v1637 = vunpack.c.l.b16 %v1370
    %v1638 = vunpack.c.l.b16 %v1371
    %v1639 = vunpack.c.l.b16 %v1372
    %v1640 = vpack.c.b16 %v1577, %v1576
    %v1641 = vpack.c.b16 %v1579, %v1578
    %v1642 = vpack.c.b16 %v1581, %v1580
    %v1643 = vpack.c.b16 %v1583, %v1582
    %v1644 = vpack.c.b16 %v1585, %v1584
    %v1645 = vpack.c.b16 %v1587, %v1586
    %v1646 = vpack.c.b16 %v1589, %v1588
    %v1647 = vpack.c.b16 %v1591, %v1590
    %v1648 = vpack.c.b16 %v1593, %v1592
    %v1649 = vpack.c.b16 %v1595, %v1594
    %v1650 = vpack.c.b16 %v1597, %v1596
    %v1651 = vpack.c.b16 %v1599, %v1598
    %v1652 = vpack.c.b16 %v1601, %v1600
    %v1653 = vpack.c.b16 %v1603, %v1602
    %v1654 = vpack.c.b16 %v1605, %v1604
    %v1655 = vpack.c.b16 %v1607, %v1606
    %v1656 = vpack.c.b16 %v1609, %v1608
    %v1657 = vpack.c.b16 %v1611, %v1610
    %v1658 = vpack.c.b16 %v1613, %v1612
    %v1659 = vpack.c.b16 %v1615, %v1614
    %v1660 = vpack.c.b16 %v1617, %v1616
    %v1661 = vpack.c.b16 %v1619, %v1618
    %v1662 = vpack.c.b16 %v1621, %v1620
    %v1663 = vpack.c.b16 %v1623, %v1622
    %v1664 = vpack.c.b16 %v1625, %v1624
    %v1665 = vpack.c.b16 %v1627, %v1626
    %v1666 = vpack.c.b16 %v1629, %v1628
    %v1667 = vpack.c.b16 %v1631, %v1630
    %v1668 = vpack.c.b16 %v1633, %v1632
    %v1669 = vpack.c.b16 %v1635, %v1634
    %v1670 = vpack.c.b16 %v1637, %v1636
    %v1671 = vpack.c.b16 %v1639, %v1638
    %1704 = vmatprep.subr.bf16.mxu0 0
    %1705 = vmatpush1.bf16.msra.mxu0 %v1647
    %1706 = vmatprep.subr.bf16.mxu0 0
    %1707 = vmatpush1.bf16.msra.mxu0 %v1646
    %1708 = vmatprep.subr.bf16.mxu0 0
    %1709 = vmatpush1.bf16.msra.mxu0 %v1645
    %1710 = vmatprep.subr.bf16.mxu0 0
    %1711 = vmatpush1.bf16.msra.mxu0 %v1644
    %1712 = vmatprep.subr.bf16.mxu0 0
    %1713 = vmatpush1.bf16.msra.mxu0 %v1643
    %1714 = vmatprep.subr.bf16.mxu0 0
    %1715 = vmatpush1.bf16.msra.mxu0 %v1642
    %1716 = vmatprep.subr.bf16.mxu0 0
    %1717 = vmatpush1.bf16.msra.mxu0 %v1641
    %1718 = vmatprep.subr.bf16.mxu0 0
    %1719 = vmatpush1.bf16.msra.mxu0 %v1640
    %1720 = vmatprep.subr.bf16.mxu0 0
    %1721 = vmatpush2.bf16.msra.mxu0 %v1655
    %1722 = vmatprep.subr.bf16.mxu0 0
    %1723 = vmatpush2.bf16.msra.mxu0 %v1654
    %1724 = vmatprep.subr.bf16.mxu0 0
    %1725 = vmatpush2.bf16.msra.mxu0 %v1653
    %1726 = vmatprep.subr.bf16.mxu0 0
    %1727 = vmatpush2.bf16.msra.mxu0 %v1652
    %1728 = vmatprep.subr.bf16.mxu0 0
    %1729 = vmatpush2.bf16.msra.mxu0 %v1651
    %1730 = vmatprep.subr.bf16.mxu0 0
    %1731 = vmatpush2.bf16.msra.mxu0 %v1650
    %1732 = vmatprep.subr.bf16.mxu0 0
    %1733 = vmatpush2.bf16.msra.mxu0 %v1649
    %1734 = vmatprep.subr.bf16.mxu0 0
    %1735 = vmatpush2.bf16.msra.mxu0 %v1648
    %1736 = vmatprep.mubr.bf16.mxu0 %v1304
    %1737 = vmatmul.mubr.bf16.gmra.mxu0 %v1303
    %v1738 = vpop.f32.mrf.mxu0
    %v1739 = vadd.f32 %v1507, %v1738
    %v1740 = vpop.f32.mrf.mxu0
    %v1741 = vpop.f32.mrf.mxu0
    %v1742 = vpop.f32.mrf.mxu0
    %1743 = vdwg.mxu0
    %1744 = vmatprep.subr.bf16.mxu0 0
    %1745 = vmatpush1.bf16.msra.mxu0 %v1663
    %1746 = vmatprep.subr.bf16.mxu0 0
    %1747 = vmatpush1.bf16.msra.mxu0 %v1662
    %1748 = vmatprep.subr.bf16.mxu0 0
    %1749 = vmatpush1.bf16.msra.mxu0 %v1661
    %1750 = vmatprep.subr.bf16.mxu0 0
    %1751 = vmatpush1.bf16.msra.mxu0 %v1660
    %1752 = vmatprep.subr.bf16.mxu0 0
    %1753 = vmatpush1.bf16.msra.mxu0 %v1659
    %1754 = vmatprep.subr.bf16.mxu0 0
    %1755 = vmatpush1.bf16.msra.mxu0 %v1658
    %1756 = vmatprep.subr.bf16.mxu0 0
    %1757 = vmatpush1.bf16.msra.mxu0 %v1657
    %1758 = vmatprep.subr.bf16.mxu0 0
    %1759 = vmatpush1.bf16.msra.mxu0 %v1656
    %1760 = vmatprep.subr.bf16.mxu0 0
    %1761 = vmatpush2.bf16.msra.mxu0 %v1671
    %1762 = vmatprep.subr.bf16.mxu0 0
    %1763 = vmatpush2.bf16.msra.mxu0 %v1670
    %1764 = vmatprep.subr.bf16.mxu0 0
    %1765 = vmatpush2.bf16.msra.mxu0 %v1669
    %1766 = vmatprep.subr.bf16.mxu0 0
    %1767 = vmatpush2.bf16.msra.mxu0 %v1668
    %1768 = vmatprep.subr.bf16.mxu0 0
    %1769 = vmatpush2.bf16.msra.mxu0 %v1667
    %1770 = vmatprep.subr.bf16.mxu0 0
    %1771 = vmatpush2.bf16.msra.mxu0 %v1666
    %1772 = vmatprep.subr.bf16.mxu0 0
    %1773 = vmatpush2.bf16.msra.mxu0 %v1665
    %1774 = vmatprep.subr.bf16.mxu0 0
    %1775 = vmatpush2.bf16.msra.mxu0 %v1664
    %1776 = vmatprep.mubr.bf16.mxu0 %v1306
    %1777 = vmatmul.mubr.bf16.gmra.mxu0 %v1305
    %v1778 = vpop.f32.mrf.mxu0
    %v1779 = vadd.f32 %v1739, %v1778
    %v1780 = vpop.f32.mrf.mxu0
    %v1781 = vpop.f32.mrf.mxu0
    %v1782 = vpop.f32.mrf.mxu0
    %1783 = vdwg.mxu0
    %v1784 = vld [vmem:[#allocation3] sm:$0x1]
    %v1786 = vlaneseq
    %v1787 = vshrl.u32 %v1786, 7
    %v1788 = vsub.s32 0, %v1787
    %v1789 = vrot.slane %v1784, %v1788
    %v1791 = vadd.f32 %v1779, %v1789
    %v1792 = vtanh.pop %v1791
    %v1793 = vld [vmem:[#allocation6] sm:$0x1]
    %v1795 = vlaneseq
    %v1796 = vshrl.u32 %v1795, 7
    %v1797 = vsub.s32 0, %v1796
    %v1798 = vrot.slane %v1793, %v1797
    %v1800 = vmul.f32 %v1792, %v1798
    %v1801 = vsel %vm624, %v1800, 0.0
    %1802 = vadd.xlane.f32.xlu0 %v1801
    %v1803 = vpop.xlane.xlu0 %1802
    %v1804 = vld [vmem:[#allocation2] sm:$0x1]
    %v1806 = vlaneseq
    %v1807 = vshrl.u32 %v1806, 7
    %v1808 = vsub.s32 0, %v1807
    %v1809 = vrot.slane %v1804, %v1808
    %v1811 = vadd.f32 %v1803, %v1809
    %vm1812 = vcmask 7168
    %v1813 = vsel %vm1812, %v1811, -inf
    %v1814 = vrot.slane %v1813, 4
    %v1815 = vmax.f32 %v1813, %v1814
    %v1816 = vrot.slane %v1815, 2
    %v1817 = vmax.f32 %v1815, %v1816
    %v1818 = vrot.slane %v1817, 1
    %v1819 = vmax.f32 %v1817, %v1818
    %v1820 = vsub.f32 %v1811, %v1819
    %v1821 = vmul.f32 %v1820, 1.442695
    %v1822 = vpow.pop %v1821
    %v1823 = vsel %vm1812, %v1822, 0.0
    %v1824 = vrot.slane %v1823, 4
    %v1825 = vadd.f32 %v1823, %v1824
    %v1826 = vrot.slane %v1825, 2
    %v1827 = vadd.f32 %v1825, %v1826
    %v1828 = vrot.slane %v1827, 1
    %v1829 = vadd.f32 %v1827, %v1828
    %v1830 = vrcp.pop %v1829
    %v1831 = vmul.f32 %v1822, %v1830
    %v1832 = vld [vmem:[%s9] sm:$0xff]
    %v1833 = vld [vmem:[%s9 + $0x8] sm:$0xff]
    %v1834 = vld [vmem:[%s9 + $0x10] sm:$0xff]
    %v1835 = vld [vmem:[%s9 + $0x18] sm:$0xff]
    %v1836 = vld [vmem:[%s9 + $0x20] sm:$0xff]
    %v1837 = vld [vmem:[%s9 + $0x28] sm:$0xff]
    %v1838 = vld [vmem:[%s9 + $0x30] sm:$0xff]
    %v1839 = vld [vmem:[%s9 + $0x38] sm:$0xff]
    %v1840 = vld [vmem:[%s9 + $0x40] sm:$0xff]
    %v1841 = vld [vmem:[%s9 + $0x48] sm:$0xff]
    %v1842 = vld [vmem:[%s9 + $0x50] sm:$0xff]
    %v1843 = vld [vmem:[%s9 + $0x58] sm:$0xff]
    %v1844 = vld [vmem:[%s9 + $0x60] sm:$0xff]
    %v1845 = vld [vmem:[%s9 + $0x68] sm:$0xff]
    %v1846 = vld [vmem:[%s9 + $0x70] sm:$0xff]
    %v1847 = vld [vmem:[%s9 + $0x78] sm:$0xff]
    %v1848 = vld [vmem:[%s9 + $0x80] sm:$0xff]
    %v1849 = vld [vmem:[%s9 + $0x88] sm:$0xff]
    %v1850 = vld [vmem:[%s9 + $0x90] sm:$0xff]
    %v1851 = vld [vmem:[%s9 + $0x98] sm:$0xff]
    %v1852 = vld [vmem:[%s9 + $0xa0] sm:$0xff]
    %v1853 = vld [vmem:[%s9 + $0xa8] sm:$0xff]
    %v1854 = vld [vmem:[%s9 + $0xb0] sm:$0xff]
    %v1855 = vld [vmem:[%s9 + $0xb8] sm:$0xff]
    %v1856 = vld [vmem:[%s9 + $0xc0] sm:$0xff]
    %v1857 = vld [vmem:[%s9 + $0xc8] sm:$0xff]
    %v1858 = vld [vmem:[%s9 + $0xd0] sm:$0xff]
    %v1859 = vld [vmem:[%s9 + $0xd8] sm:$0xff]
    %v1860 = vld [vmem:[%s9 + $0xe0] sm:$0xff]
    %v1861 = vld [vmem:[%s9 + $0xe8] sm:$0xff]
    %v1862 = vld [vmem:[%s9 + $0xf0] sm:$0xff]
    %v1863 = vld [vmem:[%s9 + $0xf8] sm:$0xff]
    %v1864 = vld [vmem:[%s9 + $0x100] sm:$0xff]
    %v1865 = vld [vmem:[%s9 + $0x108] sm:$0xff]
    %v1866 = vld [vmem:[%s9 + $0x110] sm:$0xff]
    %v1867 = vld [vmem:[%s9 + $0x118] sm:$0xff]
    %v1868 = vld [vmem:[%s9 + $0x120] sm:$0xff]
    %v1869 = vld [vmem:[%s9 + $0x128] sm:$0xff]
    %v1870 = vld [vmem:[%s9 + $0x130] sm:$0xff]
    %v1871 = vld [vmem:[%s9 + $0x138] sm:$0xff]
    %v1872 = vld [vmem:[%s9 + $0x140] sm:$0xff]
    %v1873 = vld [vmem:[%s9 + $0x148] sm:$0xff]
    %v1874 = vld [vmem:[%s9 + $0x150] sm:$0xff]
    %v1875 = vld [vmem:[%s9 + $0x158] sm:$0xff]
    %v1876 = vld [vmem:[%s9 + $0x160] sm:$0xff]
    %v1877 = vld [vmem:[%s9 + $0x168] sm:$0xff]
    %v1878 = vld [vmem:[%s9 + $0x170] sm:$0xff]
    %v1879 = vld [vmem:[%s9 + $0x178] sm:$0xff]
    %v1880 = vld [vmem:[%s9 + $0x180] sm:$0xff]
    %v1881 = vld [vmem:[%s9 + $0x188] sm:$0xff]
    %v1882 = vld [vmem:[%s9 + $0x190] sm:$0xff]
    %v1883 = vld [vmem:[%s9 + $0x198] sm:$0xff]
    %v1884 = vld [vmem:[%s9 + $0x1a0] sm:$0xff]
    %v1885 = vld [vmem:[%s9 + $0x1a8] sm:$0xff]
    %v1886 = vld [vmem:[%s9 + $0x1b0] sm:$0xff]
    %v1887 = vld [vmem:[%s9 + $0x1b8] sm:$0xff]
    %v1888 = vld [vmem:[%s9 + $0x1c0] sm:$0xff]
    %v1889 = vld [vmem:[%s9 + $0x1c8] sm:$0xff]
    %v1890 = vld [vmem:[%s9 + $0x1d0] sm:$0xff]
    %v1891 = vld [vmem:[%s9 + $0x1d8] sm:$0xff]
    %v1892 = vld [vmem:[%s9 + $0x1e0] sm:$0xff]
    %v1893 = vld [vmem:[%s9 + $0x1e8] sm:$0xff]
    %v1894 = vld [vmem:[%s9 + $0x1f0] sm:$0xff]
    %v1895 = vld [vmem:[%s9 + $0x1f8] sm:$0xff]
    %v1896 = vld [vmem:[%s9 + $0x200] sm:$0xff]
    %v1897 = vld [vmem:[%s9 + $0x208] sm:$0xff]
    %v1898 = vld [vmem:[%s9 + $0x210] sm:$0xff]
    %v1899 = vld [vmem:[%s9 + $0x218] sm:$0xff]
    %v1900 = vld [vmem:[%s9 + $0x220] sm:$0xff]
    %v1901 = vld [vmem:[%s9 + $0x228] sm:$0xff]
    %v1902 = vld [vmem:[%s9 + $0x230] sm:$0xff]
    %v1903 = vld [vmem:[%s9 + $0x238] sm:$0xff]
    %v1904 = vld [vmem:[%s9 + $0x240] sm:$0xff]
    %v1905 = vld [vmem:[%s9 + $0x248] sm:$0xff]
    %v1906 = vld [vmem:[%s9 + $0x250] sm:$0xff]
    %v1907 = vld [vmem:[%s9 + $0x258] sm:$0xff]
    %v1908 = vld [vmem:[%s9 + $0x260] sm:$0xff]
    %v1909 = vld [vmem:[%s9 + $0x268] sm:$0xff]
    %v1910 = vld [vmem:[%s9 + $0x270] sm:$0xff]
    %v1911 = vld [vmem:[%s9 + $0x278] sm:$0xff]
    %v1912 = vld [vmem:[%s9 + $0x280] sm:$0xff]
    %v1913 = vld [vmem:[%s9 + $0x288] sm:$0xff]
    %v1914 = vld [vmem:[%s9 + $0x290] sm:$0xff]
    %v1915 = vld [vmem:[%s9 + $0x298] sm:$0xff]
    %v1916 = vld [vmem:[%s9 + $0x2a0] sm:$0xff]
    %v1917 = vld [vmem:[%s9 + $0x2a8] sm:$0xff]
    %v1918 = vld [vmem:[%s9 + $0x2b0] sm:$0xff]
    %v1919 = vld [vmem:[%s9 + $0x2b8] sm:$0xff]
    %v1920 = vld [vmem:[%s9 + $0x2c0] sm:$0xff]
    %v1921 = vld [vmem:[%s9 + $0x2c8] sm:$0xff]
    %v1922 = vld [vmem:[%s9 + $0x2d0] sm:$0xff]
    %v1923 = vld [vmem:[%s9 + $0x2d8] sm:$0xff]
    %v1924 = vld [vmem:[%s9 + $0x2e0] sm:$0xff]
    %v1925 = vld [vmem:[%s9 + $0x2e8] sm:$0xff]
    %v1926 = vld [vmem:[%s9 + $0x2f0] sm:$0xff]
    %v1927 = vld [vmem:[%s9 + $0x2f8] sm:$0xff]
    %v1928 = vld [vmem:[%s9 + $0x300] sm:$0xff]
    %v1929 = vld [vmem:[%s9 + $0x308] sm:$0xff]
    %v1930 = vld [vmem:[%s9 + $0x310] sm:$0xff]
    %v1931 = vld [vmem:[%s9 + $0x318] sm:$0xff]
    %v1932 = vld [vmem:[%s9 + $0x320] sm:$0xff]
    %v1933 = vld [vmem:[%s9 + $0x328] sm:$0xff]
    %v1934 = vld [vmem:[%s9 + $0x330] sm:$0xff]
    %v1935 = vld [vmem:[%s9 + $0x338] sm:$0xff]
    %v1936 = vld [vmem:[%s9 + $0x340] sm:$0xff]
    %v1937 = vld [vmem:[%s9 + $0x348] sm:$0xff]
    %v1938 = vld [vmem:[%s9 + $0x350] sm:$0xff]
    %v1939 = vld [vmem:[%s9 + $0x358] sm:$0xff]
    %v1940 = vld [vmem:[%s9 + $0x360] sm:$0xff]
    %v1941 = vld [vmem:[%s9 + $0x368] sm:$0xff]
    %v1942 = vld [vmem:[%s9 + $0x370] sm:$0xff]
    %v1943 = vld [vmem:[%s9 + $0x378] sm:$0xff]
    %v1944 = vld [vmem:[%s9 + $0x380] sm:$0xff]
    %v1945 = vld [vmem:[%s9 + $0x388] sm:$0xff]
    %v1946 = vld [vmem:[%s9 + $0x390] sm:$0xff]
    %v1947 = vld [vmem:[%s9 + $0x398] sm:$0xff]
    %v1948 = vld [vmem:[%s9 + $0x3a0] sm:$0xff]
    %v1949 = vld [vmem:[%s9 + $0x3a8] sm:$0xff]
    %v1950 = vld [vmem:[%s9 + $0x3b0] sm:$0xff]
    %v1951 = vld [vmem:[%s9 + $0x3b8] sm:$0xff]
    %v1952 = vld [vmem:[%s9 + $0x3c0] sm:$0xff]
    %v1953 = vld [vmem:[%s9 + $0x3c8] sm:$0xff]
    %v1954 = vld [vmem:[%s9 + $0x3d0] sm:$0xff]
    %v1955 = vld [vmem:[%s9 + $0x3d8] sm:$0xff]
    %v1956 = vld [vmem:[%s9 + $0x3e0] sm:$0xff]
    %v1957 = vld [vmem:[%s9 + $0x3e8] sm:$0xff]
    %v1958 = vld [vmem:[%s9 + $0x3f0] sm:$0xff]
    %v1959 = vld [vmem:[%s9 + $0x3f8] sm:$0xff]
    %v1960 = vld [vmem:[#allocation8] sm:$0xff]
    %v1961 = vld [vmem:[#allocation8 + $0x8] sm:$0xff]
    %v1962 = vld [vmem:[#allocation8 + $0x10] sm:$0xff]
    %v1963 = vld [vmem:[#allocation8 + $0x18] sm:$0xff]
    %v1964 = vld [vmem:[#allocation8 + $0x20] sm:$0xff]
    %v1965 = vld [vmem:[#allocation8 + $0x28] sm:$0xff]
    %v1966 = vld [vmem:[#allocation8 + $0x30] sm:$0xff]
    %v1967 = vld [vmem:[#allocation8 + $0x38] sm:$0xff]
    %v1968 = vld [vmem:[#allocation8 + $0x40] sm:$0xff]
    %v1969 = vld [vmem:[#allocation8 + $0x48] sm:$0xff]
    %v1970 = vld [vmem:[#allocation8 + $0x50] sm:$0xff]
    %v1971 = vld [vmem:[#allocation8 + $0x58] sm:$0xff]
    %v1972 = vld [vmem:[#allocation8 + $0x60] sm:$0xff]
    %v1973 = vld [vmem:[#allocation8 + $0x68] sm:$0xff]
    %v1974 = vld [vmem:[#allocation8 + $0x70] sm:$0xff]
    %v1975 = vld [vmem:[#allocation8 + $0x78] sm:$0xff]
    %v1976 = vld [vmem:[#allocation8 + $0x80] sm:$0xff]
    %v1977 = vld [vmem:[#allocation8 + $0x88] sm:$0xff]
    %v1978 = vld [vmem:[#allocation8 + $0x90] sm:$0xff]
    %v1979 = vld [vmem:[#allocation8 + $0x98] sm:$0xff]
    %v1980 = vld [vmem:[#allocation8 + $0xa0] sm:$0xff]
    %v1981 = vld [vmem:[#allocation8 + $0xa8] sm:$0xff]
    %v1982 = vld [vmem:[#allocation8 + $0xb0] sm:$0xff]
    %v1983 = vld [vmem:[#allocation8 + $0xb8] sm:$0xff]
    %v1984 = vld [vmem:[#allocation8 + $0xc0] sm:$0xff]
    %v1985 = vld [vmem:[#allocation8 + $0xc8] sm:$0xff]
    %v1986 = vld [vmem:[#allocation8 + $0xd0] sm:$0xff]
    %v1987 = vld [vmem:[#allocation8 + $0xd8] sm:$0xff]
    %v1988 = vld [vmem:[#allocation8 + $0xe0] sm:$0xff]
    %v1989 = vld [vmem:[#allocation8 + $0xe8] sm:$0xff]
    %v1990 = vld [vmem:[#allocation8 + $0xf0] sm:$0xff]
    %v1991 = vld [vmem:[#allocation8 + $0xf8] sm:$0xff]
    %v1992 = vld [vmem:[#allocation8 + $0x100] sm:$0xff]
    %v1993 = vld [vmem:[#allocation8 + $0x108] sm:$0xff]
    %v1994 = vld [vmem:[#allocation8 + $0x110] sm:$0xff]
    %v1995 = vld [vmem:[#allocation8 + $0x118] sm:$0xff]
    %v1996 = vld [vmem:[#allocation8 + $0x120] sm:$0xff]
    %v1997 = vld [vmem:[#allocation8 + $0x128] sm:$0xff]
    %v1998 = vld [vmem:[#allocation8 + $0x130] sm:$0xff]
    %v1999 = vld [vmem:[#allocation8 + $0x138] sm:$0xff]
    %v2000 = vld [vmem:[#allocation8 + $0x140] sm:$0xff]
    %v2001 = vld [vmem:[#allocation8 + $0x148] sm:$0xff]
    %v2002 = vld [vmem:[#allocation8 + $0x150] sm:$0xff]
    %v2003 = vld [vmem:[#allocation8 + $0x158] sm:$0xff]
    %v2004 = vld [vmem:[#allocation8 + $0x160] sm:$0xff]
    %v2005 = vld [vmem:[#allocation8 + $0x168] sm:$0xff]
    %v2006 = vld [vmem:[#allocation8 + $0x170] sm:$0xff]
    %v2007 = vld [vmem:[#allocation8 + $0x178] sm:$0xff]
    %v2056 = vunpack.c.l.b16 %v1960
    %v2057 = vunpack.c.h.b16 %v1960
    %v2058 = vunpack.c.l.b16 %v1961
    %v2059 = vunpack.c.h.b16 %v1961
    %v2060 = vunpack.c.l.b16 %v1962
    %v2061 = vunpack.c.h.b16 %v1962
    %v2062 = vunpack.c.l.b16 %v1963
    %v2063 = vunpack.c.h.b16 %v1963
    %v2064 = vunpack.c.l.b16 %v1964
    %v2065 = vunpack.c.h.b16 %v1964
    %v2066 = vunpack.c.l.b16 %v1965
    %v2067 = vunpack.c.h.b16 %v1965
    %v2068 = vunpack.c.l.b16 %v1966
    %v2069 = vunpack.c.h.b16 %v1966
    %v2070 = vunpack.c.l.b16 %v1967
    %v2071 = vunpack.c.h.b16 %v1967
    %v2072 = vunpack.c.l.b16 %v1968
    %v2073 = vunpack.c.h.b16 %v1968
    %v2074 = vunpack.c.l.b16 %v1969
    %v2075 = vunpack.c.h.b16 %v1969
    %v2076 = vunpack.c.l.b16 %v1970
    %v2077 = vunpack.c.h.b16 %v1970
    %v2078 = vunpack.c.l.b16 %v1971
    %v2079 = vunpack.c.h.b16 %v1971
    %v2080 = vunpack.c.l.b16 %v1972
    %v2081 = vunpack.c.h.b16 %v1972
    %v2082 = vunpack.c.l.b16 %v1973
    %v2083 = vunpack.c.h.b16 %v1973
    %v2084 = vunpack.c.l.b16 %v1974
    %v2085 = vunpack.c.h.b16 %v1974
    %v2086 = vunpack.c.l.b16 %v1975
    %v2087 = vunpack.c.h.b16 %v1975
    %v2088 = vunpack.c.l.b16 %v1976
    %v2089 = vunpack.c.h.b16 %v1976
    %v2090 = vunpack.c.l.b16 %v1977
    %v2091 = vunpack.c.h.b16 %v1977
    %v2092 = vunpack.c.l.b16 %v1978
    %v2093 = vunpack.c.h.b16 %v1978
    %v2094 = vunpack.c.l.b16 %v1979
    %v2095 = vunpack.c.h.b16 %v1979
    %v2096 = vunpack.c.l.b16 %v1980
    %v2097 = vunpack.c.h.b16 %v1980
    %v2098 = vunpack.c.l.b16 %v1981
    %v2099 = vunpack.c.h.b16 %v1981
    %v2100 = vunpack.c.l.b16 %v1982
    %v2101 = vunpack.c.h.b16 %v1982
    %v2102 = vunpack.c.l.b16 %v1983
    %v2103 = vunpack.c.h.b16 %v1983
    %v2104 = vunpack.c.l.b16 %v1984
    %v2105 = vunpack.c.h.b16 %v1984
    %v2106 = vunpack.c.l.b16 %v1985
    %v2107 = vunpack.c.h.b16 %v1985
    %v2108 = vunpack.c.l.b16 %v1986
    %v2109 = vunpack.c.h.b16 %v1986
    %v2110 = vunpack.c.l.b16 %v1987
    %v2111 = vunpack.c.h.b16 %v1987
    %v2112 = vunpack.c.l.b16 %v1988
    %v2113 = vunpack.c.h.b16 %v1988
    %v2114 = vunpack.c.l.b16 %v1989
    %v2115 = vunpack.c.h.b16 %v1989
    %v2116 = vunpack.c.l.b16 %v1990
    %v2117 = vunpack.c.h.b16 %v1990
    %v2118 = vunpack.c.l.b16 %v1991
    %v2119 = vunpack.c.h.b16 %v1991
    %v2120 = vunpack.c.l.b16 %v1992
    %v2121 = vunpack.c.h.b16 %v1992
    %v2122 = vunpack.c.l.b16 %v1993
    %v2123 = vunpack.c.h.b16 %v1993
    %v2124 = vunpack.c.l.b16 %v1994
    %v2125 = vunpack.c.h.b16 %v1994
    %v2126 = vunpack.c.l.b16 %v1995
    %v2127 = vunpack.c.h.b16 %v1995
    %v2128 = vunpack.c.l.b16 %v1996
    %v2129 = vunpack.c.h.b16 %v1996
    %v2130 = vunpack.c.l.b16 %v1997
    %v2131 = vunpack.c.h.b16 %v1997
    %v2132 = vunpack.c.l.b16 %v1998
    %v2133 = vunpack.c.h.b16 %v1998
    %v2134 = vunpack.c.l.b16 %v1999
    %v2135 = vunpack.c.h.b16 %v1999
    %v2136 = vunpack.c.l.b16 %v2000
    %v2137 = vunpack.c.h.b16 %v2000
    %v2138 = vunpack.c.l.b16 %v2001
    %v2139 = vunpack.c.h.b16 %v2001
    %v2140 = vunpack.c.l.b16 %v2002
    %v2141 = vunpack.c.h.b16 %v2002
    %v2142 = vunpack.c.l.b16 %v2003
    %v2143 = vunpack.c.h.b16 %v2003
    %v2144 = vunpack.c.l.b16 %v2004
    %v2145 = vunpack.c.h.b16 %v2004
    %v2146 = vunpack.c.l.b16 %v2005
    %v2147 = vunpack.c.h.b16 %v2005
    %v2148 = vunpack.c.l.b16 %v2006
    %v2149 = vunpack.c.h.b16 %v2006
    %v2150 = vunpack.c.l.b16 %v2007
    %v2151 = vunpack.c.h.b16 %v2007
    %v2152 = vpack.c.b16 %v2060, %v2056
    %v2153 = vpack.c.b16 %v2061, %v2057
    %v2154 = vpack.c.b16 %v2062, %v2058
    %v2155 = vpack.c.b16 %v2063, %v2059
    %v2156 = vpack.c.b16 %v2068, %v2064
    %v2157 = vpack.c.b16 %v2069, %v2065
    %v2158 = vpack.c.b16 %v2070, %v2066
    %v2159 = vpack.c.b16 %v2071, %v2067
    %v2160 = vpack.c.b16 %v2076, %v2072
    %v2161 = vpack.c.b16 %v2077, %v2073
    %v2162 = vpack.c.b16 %v2078, %v2074
    %v2163 = vpack.c.b16 %v2079, %v2075
    %v2164 = vpack.c.b16 %v2084, %v2080
    %v2165 = vpack.c.b16 %v2085, %v2081
    %v2166 = vpack.c.b16 %v2086, %v2082
    %v2167 = vpack.c.b16 %v2087, %v2083
    %v2168 = vpack.c.b16 %v2092, %v2088
    %v2169 = vpack.c.b16 %v2093, %v2089
    %v2170 = vpack.c.b16 %v2094, %v2090
    %v2171 = vpack.c.b16 %v2095, %v2091
    %v2172 = vpack.c.b16 %v2100, %v2096
    %v2173 = vpack.c.b16 %v2101, %v2097
    %v2174 = vpack.c.b16 %v2102, %v2098
    %v2175 = vpack.c.b16 %v2103, %v2099
    %v2176 = vpack.c.b16 %v2108, %v2104
    %v2177 = vpack.c.b16 %v2109, %v2105
    %v2178 = vpack.c.b16 %v2110, %v2106
    %v2179 = vpack.c.b16 %v2111, %v2107
    %v2180 = vpack.c.b16 %v2116, %v2112
    %v2181 = vpack.c.b16 %v2117, %v2113
    %v2182 = vpack.c.b16 %v2118, %v2114
    %v2183 = vpack.c.b16 %v2119, %v2115
    %v2184 = vpack.c.b16 %v2124, %v2120
    %v2185 = vpack.c.b16 %v2125, %v2121
    %v2186 = vpack.c.b16 %v2126, %v2122
    %v2187 = vpack.c.b16 %v2127, %v2123
    %v2188 = vpack.c.b16 %v2132, %v2128
    %v2189 = vpack.c.b16 %v2133, %v2129
    %v2190 = vpack.c.b16 %v2134, %v2130
    %v2191 = vpack.c.b16 %v2135, %v2131
    %v2192 = vpack.c.b16 %v2140, %v2136
    %v2193 = vpack.c.b16 %v2141, %v2137
    %v2194 = vpack.c.b16 %v2142, %v2138
    %v2195 = vpack.c.b16 %v2143, %v2139
    %v2196 = vpack.c.b16 %v2148, %v2144
    %v2197 = vpack.c.b16 %v2149, %v2145
    %v2198 = vpack.c.b16 %v2150, %v2146
    %v2199 = vpack.c.b16 %v2151, %v2147
    %2248 = vmatprep.subr.bf16.mxu0 %v2181
    %2249 = vmatpush1.bf16.msra.mxu0 %v2180
    %2250 = vmatprep.subr.bf16.mxu0 %v2177
    %2251 = vmatpush1.bf16.msra.mxu0 %v2176
    %2252 = vmatprep.subr.bf16.mxu0 %v2173
    %2253 = vmatpush1.bf16.msra.mxu0 %v2172
    %2254 = vmatprep.subr.bf16.mxu0 %v2169
    %2255 = vmatpush1.bf16.msra.mxu0 %v2168
    %2256 = vmatprep.subr.bf16.mxu0 %v2165
    %2257 = vmatpush1.bf16.msra.mxu0 %v2164
    %2258 = vmatprep.subr.bf16.mxu0 %v2161
    %2259 = vmatpush1.bf16.msra.mxu0 %v2160
    %2260 = vmatprep.subr.bf16.mxu0 %v2157
    %2261 = vmatpush1.bf16.msra.mxu0 %v2156
    %2262 = vmatprep.subr.bf16.mxu0 %v2153
    %2263 = vmatpush1.bf16.msra.mxu0 %v2152
    %2264 = vmatprep.subr.bf16.mxu0 0
    %2265 = vmatpush2.bf16.msra.mxu0 0
    %2266 = vmatprep.subr.bf16.mxu0 0
    %2267 = vmatpush2.bf16.msra.mxu0 0
    %2268 = vmatprep.subr.bf16.mxu0 0
    %2269 = vmatpush2.bf16.msra.mxu0 0
    %2270 = vmatprep.subr.bf16.mxu0 0
    %2271 = vmatpush2.bf16.msra.mxu0 0
    %2272 = vmatprep.subr.bf16.mxu0 %v2197
    %2273 = vmatpush2.bf16.msra.mxu0 %v2196
    %2274 = vmatprep.subr.bf16.mxu0 %v2193
    %2275 = vmatpush2.bf16.msra.mxu0 %v2192
    %2276 = vmatprep.subr.bf16.mxu0 %v2189
    %2277 = vmatpush2.bf16.msra.mxu0 %v2188
    %2278 = vmatprep.subr.bf16.mxu0 %v2185
    %2279 = vmatpush2.bf16.msra.mxu0 %v2184
    %2280 = vmatprep.mubr.bf16.mxu0 %v1470
    %2281 = vmatmul.mubr.bf16.gmra.mxu0 %v1307
    %v2282 = vpop.f32.mrf.mxu0
    %v2283 = vadd.f32 0.0, %v2282
    %v2284 = vpop.f32.mrf.mxu0
    %v2285 = vadd.f32 0.0, %v2284
    %v2286 = vpop.f32.mrf.mxu0
    %v2287 = vpop.f32.mrf.mxu0
    %2288 = vdwg.mxu0
    %2289 = vmatprep.subr.bf16.mxu0 %v2183
    %2290 = vmatpush1.bf16.msra.mxu0 %v2182
    %2291 = vmatprep.subr.bf16.mxu0 %v2179
    %2292 = vmatpush1.bf16.msra.mxu0 %v2178
    %2293 = vmatprep.subr.bf16.mxu0 %v2175
    %2294 = vmatpush1.bf16.msra.mxu0 %v2174
    %2295 = vmatprep.subr.bf16.mxu0 %v2171
    %2296 = vmatpush1.bf16.msra.mxu0 %v2170
    %2297 = vmatprep.subr.bf16.mxu0 %v2167
    %2298 = vmatpush1.bf16.msra.mxu0 %v2166
    %2299 = vmatprep.subr.bf16.mxu0 %v2163
    %2300 = vmatpush1.bf16.msra.mxu0 %v2162
    %2301 = vmatprep.subr.bf16.mxu0 %v2159
    %2302 = vmatpush1.bf16.msra.mxu0 %v2158
    %2303 = vmatprep.subr.bf16.mxu0 %v2155
    %2304 = vmatpush1.bf16.msra.mxu0 %v2154
    %2305 = vmatprep.subr.bf16.mxu0 0
    %2306 = vmatpush2.bf16.msra.mxu0 0
    %2307 = vmatprep.subr.bf16.mxu0 0
    %2308 = vmatpush2.bf16.msra.mxu0 0
    %2309 = vmatprep.subr.bf16.mxu0 0
    %2310 = vmatpush2.bf16.msra.mxu0 0
    %2311 = vmatprep.subr.bf16.mxu0 0
    %2312 = vmatpush2.bf16.msra.mxu0 0
    %2313 = vmatprep.subr.bf16.mxu0 %v2199
    %2314 = vmatpush2.bf16.msra.mxu0 %v2198
    %2315 = vmatprep.subr.bf16.mxu0 %v2195
    %2316 = vmatpush2.bf16.msra.mxu0 %v2194
    %2317 = vmatprep.subr.bf16.mxu0 %v2191
    %2318 = vmatpush2.bf16.msra.mxu0 %v2190
    %2319 = vmatprep.subr.bf16.mxu0 %v2187
    %2320 = vmatpush2.bf16.msra.mxu0 %v2186
    %2321 = vmatprep.mubr.bf16.mxu0 %v1470
    %2322 = vmatmul.mubr.bf16.gmra.mxu0 %v1307
    %v2323 = vpop.f32.mrf.mxu0
    %v2324 = vadd.f32 0.0, %v2323
    %v2325 = vpop.f32.mrf.mxu0
    %v2326 = vadd.f32 0.0, %v2325
    %v2327 = vpop.f32.mrf.mxu0
    %v2328 = vpop.f32.mrf.mxu0
    %2329 = vdwg.mxu0
    %v2458 = vunpack.c.l.b16 %v1832
    %v2459 = vunpack.c.h.b16 %v1832
    %v2460 = vunpack.c.l.b16 %v1833
    %v2461 = vunpack.c.h.b16 %v1833
    %v2462 = vunpack.c.l.b16 %v1834
    %v2463 = vunpack.c.h.b16 %v1834
    %v2464 = vunpack.c.l.b16 %v1835
    %v2465 = vunpack.c.h.b16 %v1835
    %v2466 = vunpack.c.l.b16 %v1836
    %v2467 = vunpack.c.h.b16 %v1836
    %v2468 = vunpack.c.l.b16 %v1837
    %v2469 = vunpack.c.h.b16 %v1837
    %v2470 = vunpack.c.l.b16 %v1838
    %v2471 = vunpack.c.h.b16 %v1838
    %v2472 = vunpack.c.l.b16 %v1839
    %v2473 = vunpack.c.h.b16 %v1839
    %v2474 = vunpack.c.l.b16 %v1840
    %v2475 = vunpack.c.h.b16 %v1840
    %v2476 = vunpack.c.l.b16 %v1841
    %v2477 = vunpack.c.h.b16 %v1841
    %v2478 = vunpack.c.l.b16 %v1842
    %v2479 = vunpack.c.h.b16 %v1842
    %v2480 = vunpack.c.l.b16 %v1843
    %v2481 = vunpack.c.h.b16 %v1843
    %v2482 = vunpack.c.l.b16 %v1844
    %v2483 = vunpack.c.h.b16 %v1844
    %v2484 = vunpack.c.l.b16 %v1845
    %v2485 = vunpack.c.h.b16 %v1845
    %v2486 = vunpack.c.l.b16 %v1846
    %v2487 = vunpack.c.h.b16 %v1846
    %v2488 = vunpack.c.l.b16 %v1847
    %v2489 = vunpack.c.h.b16 %v1847
    %v2490 = vunpack.c.l.b16 %v1848
    %v2491 = vunpack.c.h.b16 %v1848
    %v2492 = vunpack.c.l.b16 %v1849
    %v2493 = vunpack.c.h.b16 %v1849
    %v2494 = vunpack.c.l.b16 %v1850
    %v2495 = vunpack.c.h.b16 %v1850
    %v2496 = vunpack.c.l.b16 %v1851
    %v2497 = vunpack.c.h.b16 %v1851
    %v2498 = vunpack.c.l.b16 %v1852
    %v2499 = vunpack.c.h.b16 %v1852
    %v2500 = vunpack.c.l.b16 %v1853
    %v2501 = vunpack.c.h.b16 %v1853
    %v2502 = vunpack.c.l.b16 %v1854
    %v2503 = vunpack.c.h.b16 %v1854
    %v2504 = vunpack.c.l.b16 %v1855
    %v2505 = vunpack.c.h.b16 %v1855
    %v2506 = vunpack.c.l.b16 %v1856
    %v2507 = vunpack.c.h.b16 %v1856
    %v2508 = vunpack.c.l.b16 %v1857
    %v2509 = vunpack.c.h.b16 %v1857
    %v2510 = vunpack.c.l.b16 %v1858
    %v2511 = vunpack.c.h.b16 %v1858
    %v2512 = vunpack.c.l.b16 %v1859
    %v2513 = vunpack.c.h.b16 %v1859
    %v2514 = vunpack.c.l.b16 %v1860
    %v2515 = vunpack.c.h.b16 %v1860
    %v2516 = vunpack.c.l.b16 %v1861
    %v2517 = vunpack.c.h.b16 %v1861
    %v2518 = vunpack.c.l.b16 %v1862
    %v2519 = vunpack.c.h.b16 %v1862
    %v2520 = vunpack.c.l.b16 %v1863
    %v2521 = vunpack.c.h.b16 %v1863
    %v2522 = vunpack.c.l.b16 %v1864
    %v2523 = vunpack.c.h.b16 %v1864
    %v2524 = vunpack.c.l.b16 %v1865
    %v2525 = vunpack.c.h.b16 %v1865
    %v2526 = vunpack.c.l.b16 %v1866
    %v2527 = vunpack.c.h.b16 %v1866
    %v2528 = vunpack.c.l.b16 %v1867
    %v2529 = vunpack.c.h.b16 %v1867
    %v2530 = vunpack.c.l.b16 %v1868
    %v2531 = vunpack.c.h.b16 %v1868
    %v2532 = vunpack.c.l.b16 %v1869
    %v2533 = vunpack.c.h.b16 %v1869
    %v2534 = vunpack.c.l.b16 %v1870
    %v2535 = vunpack.c.h.b16 %v1870
    %v2536 = vunpack.c.l.b16 %v1871
    %v2537 = vunpack.c.h.b16 %v1871
    %v2538 = vunpack.c.l.b16 %v1872
    %v2539 = vunpack.c.h.b16 %v1872
    %v2540 = vunpack.c.l.b16 %v1873
    %v2541 = vunpack.c.h.b16 %v1873
    %v2542 = vunpack.c.l.b16 %v1874
    %v2543 = vunpack.c.h.b16 %v1874
    %v2544 = vunpack.c.l.b16 %v1875
    %v2545 = vunpack.c.h.b16 %v1875
    %v2546 = vunpack.c.l.b16 %v1876
    %v2547 = vunpack.c.h.b16 %v1876
    %v2548 = vunpack.c.l.b16 %v1877
    %v2549 = vunpack.c.h.b16 %v1877
    %v2550 = vunpack.c.l.b16 %v1878
    %v2551 = vunpack.c.h.b16 %v1878
    %v2552 = vunpack.c.l.b16 %v1879
    %v2553 = vunpack.c.h.b16 %v1879
    %v2554 = vunpack.c.l.b16 %v1880
    %v2555 = vunpack.c.h.b16 %v1880
    %v2556 = vunpack.c.l.b16 %v1881
    %v2557 = vunpack.c.h.b16 %v1881
    %v2558 = vunpack.c.l.b16 %v1882
    %v2559 = vunpack.c.h.b16 %v1882
    %v2560 = vunpack.c.l.b16 %v1883
    %v2561 = vunpack.c.h.b16 %v1883
    %v2562 = vunpack.c.l.b16 %v1884
    %v2563 = vunpack.c.h.b16 %v1884
    %v2564 = vunpack.c.l.b16 %v1885
    %v2565 = vunpack.c.h.b16 %v1885
    %v2566 = vunpack.c.l.b16 %v1886
    %v2567 = vunpack.c.h.b16 %v1886
    %v2568 = vunpack.c.l.b16 %v1887
    %v2569 = vunpack.c.h.b16 %v1887
    %v2570 = vunpack.c.l.b16 %v1888
    %v2571 = vunpack.c.h.b16 %v1888
    %v2572 = vunpack.c.l.b16 %v1889
    %v2573 = vunpack.c.h.b16 %v1889
    %v2574 = vunpack.c.l.b16 %v1890
    %v2575 = vunpack.c.h.b16 %v1890
    %v2576 = vunpack.c.l.b16 %v1891
    %v2577 = vunpack.c.h.b16 %v1891
    %v2578 = vunpack.c.l.b16 %v1892
    %v2579 = vunpack.c.h.b16 %v1892
    %v2580 = vunpack.c.l.b16 %v1893
    %v2581 = vunpack.c.h.b16 %v1893
    %v2582 = vunpack.c.l.b16 %v1894
    %v2583 = vunpack.c.h.b16 %v1894
    %v2584 = vunpack.c.l.b16 %v1895
    %v2585 = vunpack.c.h.b16 %v1895
    %v2586 = vunpack.c.l.b16 %v1896
    %v2587 = vunpack.c.h.b16 %v1896
    %v2588 = vunpack.c.l.b16 %v1897
    %v2589 = vunpack.c.h.b16 %v1897
    %v2590 = vunpack.c.l.b16 %v1898
    %v2591 = vunpack.c.h.b16 %v1898
    %v2592 = vunpack.c.l.b16 %v1899
    %v2593 = vunpack.c.h.b16 %v1899
    %v2594 = vunpack.c.l.b16 %v1900
    %v2595 = vunpack.c.h.b16 %v1900
    %v2596 = vunpack.c.l.b16 %v1901
    %v2597 = vunpack.c.h.b16 %v1901
    %v2598 = vunpack.c.l.b16 %v1902
    %v2599 = vunpack.c.h.b16 %v1902
    %v2600 = vunpack.c.l.b16 %v1903
    %v2601 = vunpack.c.h.b16 %v1903
    %v2602 = vunpack.c.l.b16 %v1904
    %v2603 = vunpack.c.h.b16 %v1904
    %v2604 = vunpack.c.l.b16 %v1905
    %v2605 = vunpack.c.h.b16 %v1905
    %v2606 = vunpack.c.l.b16 %v1906
    %v2607 = vunpack.c.h.b16 %v1906
    %v2608 = vunpack.c.l.b16 %v1907
    %v2609 = vunpack.c.h.b16 %v1907
    %v2610 = vunpack.c.l.b16 %v1908
    %v2611 = vunpack.c.h.b16 %v1908
    %v2612 = vunpack.c.l.b16 %v1909
    %v2613 = vunpack.c.h.b16 %v1909
    %v2614 = vunpack.c.l.b16 %v1910
    %v2615 = vunpack.c.h.b16 %v1910
    %v2616 = vunpack.c.l.b16 %v1911
    %v2617 = vunpack.c.h.b16 %v1911
    %v2618 = vunpack.c.l.b16 %v1912
    %v2619 = vunpack.c.h.b16 %v1912
    %v2620 = vunpack.c.l.b16 %v1913
    %v2621 = vunpack.c.h.b16 %v1913
    %v2622 = vunpack.c.l.b16 %v1914
    %v2623 = vunpack.c.h.b16 %v1914
    %v2624 = vunpack.c.l.b16 %v1915
    %v2625 = vunpack.c.h.b16 %v1915
    %v2626 = vunpack.c.l.b16 %v1916
    %v2627 = vunpack.c.h.b16 %v1916
    %v2628 = vunpack.c.l.b16 %v1917
    %v2629 = vunpack.c.h.b16 %v1917
    %v2630 = vunpack.c.l.b16 %v1918
    %v2631 = vunpack.c.h.b16 %v1918
    %v2632 = vunpack.c.l.b16 %v1919
    %v2633 = vunpack.c.h.b16 %v1919
    %v2634 = vunpack.c.l.b16 %v1920
    %v2635 = vunpack.c.h.b16 %v1920
    %v2636 = vunpack.c.l.b16 %v1921
    %v2637 = vunpack.c.h.b16 %v1921
    %v2638 = vunpack.c.l.b16 %v1922
    %v2639 = vunpack.c.h.b16 %v1922
    %v2640 = vunpack.c.l.b16 %v1923
    %v2641 = vunpack.c.h.b16 %v1923
    %v2642 = vunpack.c.l.b16 %v1924
    %v2643 = vunpack.c.h.b16 %v1924
    %v2644 = vunpack.c.l.b16 %v1925
    %v2645 = vunpack.c.h.b16 %v1925
    %v2646 = vunpack.c.l.b16 %v1926
    %v2647 = vunpack.c.h.b16 %v1926
    %v2648 = vunpack.c.l.b16 %v1927
    %v2649 = vunpack.c.h.b16 %v1927
    %v2650 = vunpack.c.l.b16 %v1928
    %v2651 = vunpack.c.h.b16 %v1928
    %v2652 = vunpack.c.l.b16 %v1929
    %v2653 = vunpack.c.h.b16 %v1929
    %v2654 = vunpack.c.l.b16 %v1930
    %v2655 = vunpack.c.h.b16 %v1930
    %v2656 = vunpack.c.l.b16 %v1931
    %v2657 = vunpack.c.h.b16 %v1931
    %v2658 = vunpack.c.l.b16 %v1932
    %v2659 = vunpack.c.h.b16 %v1932
    %v2660 = vunpack.c.l.b16 %v1933
    %v2661 = vunpack.c.h.b16 %v1933
    %v2662 = vunpack.c.l.b16 %v1934
    %v2663 = vunpack.c.h.b16 %v1934
    %v2664 = vunpack.c.l.b16 %v1935
    %v2665 = vunpack.c.h.b16 %v1935
    %v2666 = vunpack.c.l.b16 %v1936
    %v2667 = vunpack.c.h.b16 %v1936
    %v2668 = vunpack.c.l.b16 %v1937
    %v2669 = vunpack.c.h.b16 %v1937
    %v2670 = vunpack.c.l.b16 %v1938
    %v2671 = vunpack.c.h.b16 %v1938
    %v2672 = vunpack.c.l.b16 %v1939
    %v2673 = vunpack.c.h.b16 %v1939
    %v2674 = vunpack.c.l.b16 %v1940
    %v2675 = vunpack.c.h.b16 %v1940
    %v2676 = vunpack.c.l.b16 %v1941
    %v2677 = vunpack.c.h.b16 %v1941
    %v2678 = vunpack.c.l.b16 %v1942
    %v2679 = vunpack.c.h.b16 %v1942
    %v2680 = vunpack.c.l.b16 %v1943
    %v2681 = vunpack.c.h.b16 %v1943
    %v2682 = vunpack.c.l.b16 %v1944
    %v2683 = vunpack.c.h.b16 %v1944
    %v2684 = vunpack.c.l.b16 %v1945
    %v2685 = vunpack.c.h.b16 %v1945
    %v2686 = vunpack.c.l.b16 %v1946
    %v2687 = vunpack.c.h.b16 %v1946
    %v2688 = vunpack.c.l.b16 %v1947
    %v2689 = vunpack.c.h.b16 %v1947
    %v2690 = vunpack.c.l.b16 %v1948
    %v2691 = vunpack.c.h.b16 %v1948
    %v2692 = vunpack.c.l.b16 %v1949
    %v2693 = vunpack.c.h.b16 %v1949
    %v2694 = vunpack.c.l.b16 %v1950
    %v2695 = vunpack.c.h.b16 %v1950
    %v2696 = vunpack.c.l.b16 %v1951
    %v2697 = vunpack.c.h.b16 %v1951
    %v2698 = vunpack.c.l.b16 %v1952
    %v2699 = vunpack.c.h.b16 %v1952
    %v2700 = vunpack.c.l.b16 %v1953
    %v2701 = vunpack.c.h.b16 %v1953
    %v2702 = vunpack.c.l.b16 %v1954
    %v2703 = vunpack.c.h.b16 %v1954
    %v2704 = vunpack.c.l.b16 %v1955
    %v2705 = vunpack.c.h.b16 %v1955
    %v2706 = vunpack.c.l.b16 %v1956
    %v2707 = vunpack.c.h.b16 %v1956
    %v2708 = vunpack.c.l.b16 %v1957
    %v2709 = vunpack.c.h.b16 %v1957
    %v2710 = vunpack.c.l.b16 %v1958
    %v2711 = vunpack.c.h.b16 %v1958
    %v2712 = vunpack.c.l.b16 %v1959
    %v2713 = vunpack.c.h.b16 %v1959
    %v2714 = vpack.c.b16 %v2462, %v2458
    %v2715 = vpack.c.b16 %v2463, %v2459
    %v2716 = vpack.c.b16 %v2464, %v2460
    %v2717 = vpack.c.b16 %v2465, %v2461
    %v2718 = vpack.c.b16 %v2470, %v2466
    %v2719 = vpack.c.b16 %v2471, %v2467
    %v2720 = vpack.c.b16 %v2472, %v2468
    %v2721 = vpack.c.b16 %v2473, %v2469
    %v2722 = vpack.c.b16 %v2478, %v2474
    %v2723 = vpack.c.b16 %v2479, %v2475
    %v2724 = vpack.c.b16 %v2480, %v2476
    %v2725 = vpack.c.b16 %v2481, %v2477
    %v2726 = vpack.c.b16 %v2486, %v2482
    %v2727 = vpack.c.b16 %v2487, %v2483
    %v2728 = vpack.c.b16 %v2488, %v2484
    %v2729 = vpack.c.b16 %v2489, %v2485
    %v2730 = vpack.c.b16 %v2494, %v2490
    %v2731 = vpack.c.b16 %v2495, %v2491
    %v2732 = vpack.c.b16 %v2496, %v2492
    %v2733 = vpack.c.b16 %v2497, %v2493
    %v2734 = vpack.c.b16 %v2502, %v2498
    %v2735 = vpack.c.b16 %v2503, %v2499
    %v2736 = vpack.c.b16 %v2504, %v2500
    %v2737 = vpack.c.b16 %v2505, %v2501
    %v2738 = vpack.c.b16 %v2510, %v2506
    %v2739 = vpack.c.b16 %v2511, %v2507
    %v2740 = vpack.c.b16 %v2512, %v2508
    %v2741 = vpack.c.b16 %v2513, %v2509
    %v2742 = vpack.c.b16 %v2518, %v2514
    %v2743 = vpack.c.b16 %v2519, %v2515
    %v2744 = vpack.c.b16 %v2520, %v2516
    %v2745 = vpack.c.b16 %v2521, %v2517
    %v2746 = vpack.c.b16 %v2526, %v2522
    %v2747 = vpack.c.b16 %v2527, %v2523
    %v2748 = vpack.c.b16 %v2528, %v2524
    %v2749 = vpack.c.b16 %v2529, %v2525
    %v2750 = vpack.c.b16 %v2534, %v2530
    %v2751 = vpack.c.b16 %v2535, %v2531
    %v2752 = vpack.c.b16 %v2536, %v2532
    %v2753 = vpack.c.b16 %v2537, %v2533
    %v2754 = vpack.c.b16 %v2542, %v2538
    %v2755 = vpack.c.b16 %v2543, %v2539
    %v2756 = vpack.c.b16 %v2544, %v2540
    %v2757 = vpack.c.b16 %v2545, %v2541
    %v2758 = vpack.c.b16 %v2550, %v2546
    %v2759 = vpack.c.b16 %v2551, %v2547
    %v2760 = vpack.c.b16 %v2552, %v2548
    %v2761 = vpack.c.b16 %v2553, %v2549
    %v2762 = vpack.c.b16 %v2558, %v2554
    %v2763 = vpack.c.b16 %v2559, %v2555
    %v2764 = vpack.c.b16 %v2560, %v2556
    %v2765 = vpack.c.b16 %v2561, %v2557
    %v2766 = vpack.c.b16 %v2566, %v2562
    %v2767 = vpack.c.b16 %v2567, %v2563
    %v2768 = vpack.c.b16 %v2568, %v2564
    %v2769 = vpack.c.b16 %v2569, %v2565
    %v2770 = vpack.c.b16 %v2574, %v2570
    %v2771 = vpack.c.b16 %v2575, %v2571
    %v2772 = vpack.c.b16 %v2576, %v2572
    %v2773 = vpack.c.b16 %v2577, %v2573
    %v2774 = vpack.c.b16 %v2582, %v2578
    %v2775 = vpack.c.b16 %v2583, %v2579
    %v2776 = vpack.c.b16 %v2584, %v2580
    %v2777 = vpack.c.b16 %v2585, %v2581
    %v2778 = vpack.c.b16 %v2590, %v2586
    %v2779 = vpack.c.b16 %v2591, %v2587
    %v2780 = vpack.c.b16 %v2592, %v2588
    %v2781 = vpack.c.b16 %v2593, %v2589
    %v2782 = vpack.c.b16 %v2598, %v2594
    %v2783 = vpack.c.b16 %v2599, %v2595
    %v2784 = vpack.c.b16 %v2600, %v2596
    %v2785 = vpack.c.b16 %v2601, %v2597
    %v2786 = vpack.c.b16 %v2606, %v2602
    %v2787 = vpack.c.b16 %v2607, %v2603
    %v2788 = vpack.c.b16 %v2608, %v2604
    %v2789 = vpack.c.b16 %v2609, %v2605
    %v2790 = vpack.c.b16 %v2614, %v2610
    %v2791 = vpack.c.b16 %v2615, %v2611
    %v2792 = vpack.c.b16 %v2616, %v2612
    %v2793 = vpack.c.b16 %v2617, %v2613
    %v2794 = vpack.c.b16 %v2622, %v2618
    %v2795 = vpack.c.b16 %v2623, %v2619
    %v2796 = vpack.c.b16 %v2624, %v2620
    %v2797 = vpack.c.b16 %v2625, %v2621
    %v2798 = vpack.c.b16 %v2630, %v2626
    %v2799 = vpack.c.b16 %v2631, %v2627
    %v2800 = vpack.c.b16 %v2632, %v2628
    %v2801 = vpack.c.b16 %v2633, %v2629
    %v2802 = vpack.c.b16 %v2638, %v2634
    %v2803 = vpack.c.b16 %v2639, %v2635
    %v2804 = vpack.c.b16 %v2640, %v2636
    %v2805 = vpack.c.b16 %v2641, %v2637
    %v2806 = vpack.c.b16 %v2646, %v2642
    %v2807 = vpack.c.b16 %v2647, %v2643
    %v2808 = vpack.c.b16 %v2648, %v2644
    %v2809 = vpack.c.b16 %v2649, %v2645
    %v2810 = vpack.c.b16 %v2654, %v2650
    %v2811 = vpack.c.b16 %v2655, %v2651
    %v2812 = vpack.c.b16 %v2656, %v2652
    %v2813 = vpack.c.b16 %v2657, %v2653
    %v2814 = vpack.c.b16 %v2662, %v2658
    %v2815 = vpack.c.b16 %v2663, %v2659
    %v2816 = vpack.c.b16 %v2664, %v2660
    %v2817 = vpack.c.b16 %v2665, %v2661
    %v2818 = vpack.c.b16 %v2670, %v2666
    %v2819 = vpack.c.b16 %v2671, %v2667
    %v2820 = vpack.c.b16 %v2672, %v2668
    %v2821 = vpack.c.b16 %v2673, %v2669
    %v2822 = vpack.c.b16 %v2678, %v2674
    %v2823 = vpack.c.b16 %v2679, %v2675
    %v2824 = vpack.c.b16 %v2680, %v2676
    %v2825 = vpack.c.b16 %v2681, %v2677
    %v2826 = vpack.c.b16 %v2686, %v2682
    %v2827 = vpack.c.b16 %v2687, %v2683
    %v2828 = vpack.c.b16 %v2688, %v2684
    %v2829 = vpack.c.b16 %v2689, %v2685
    %v2830 = vpack.c.b16 %v2694, %v2690
    %v2831 = vpack.c.b16 %v2695, %v2691
    %v2832 = vpack.c.b16 %v2696, %v2692
    %v2833 = vpack.c.b16 %v2697, %v2693
    %v2834 = vpack.c.b16 %v2702, %v2698
    %v2835 = vpack.c.b16 %v2703, %v2699
    %v2836 = vpack.c.b16 %v2704, %v2700
    %v2837 = vpack.c.b16 %v2705, %v2701
    %v2838 = vpack.c.b16 %v2710, %v2706
    %v2839 = vpack.c.b16 %v2711, %v2707
    %v2840 = vpack.c.b16 %v2712, %v2708
    %v2841 = vpack.c.b16 %v2713, %v2709
    %2970 = vmatprep.subr.bf16.mxu0 %v2743
    %2971 = vmatpush1.bf16.msra.mxu0 %v2742
    %2972 = vmatprep.subr.bf16.mxu0 %v2739
    %2973 = vmatpush1.bf16.msra.mxu0 %v2738
    %2974 = vmatprep.subr.bf16.mxu0 %v2735
    %2975 = vmatpush1.bf16.msra.mxu0 %v2734
    %2976 = vmatprep.subr.bf16.mxu0 %v2731
    %2977 = vmatpush1.bf16.msra.mxu0 %v2730
    %2978 = vmatprep.subr.bf16.mxu0 %v2727
    %2979 = vmatpush1.bf16.msra.mxu0 %v2726
    %2980 = vmatprep.subr.bf16.mxu0 %v2723
    %2981 = vmatpush1.bf16.msra.mxu0 %v2722
    %2982 = vmatprep.subr.bf16.mxu0 %v2719
    %2983 = vmatpush1.bf16.msra.mxu0 %v2718
    %2984 = vmatprep.subr.bf16.mxu0 %v2715
    %2985 = vmatpush1.bf16.msra.mxu0 %v2714
    %2986 = vmatprep.subr.bf16.mxu0 %v2775
    %2987 = vmatpush2.bf16.msra.mxu0 %v2774
    %2988 = vmatprep.subr.bf16.mxu0 %v2771
    %2989 = vmatpush2.bf16.msra.mxu0 %v2770
    %2990 = vmatprep.subr.bf16.mxu0 %v2767
    %2991 = vmatpush2.bf16.msra.mxu0 %v2766
    %2992 = vmatprep.subr.bf16.mxu0 %v2763
    %2993 = vmatpush2.bf16.msra.mxu0 %v2762
    %2994 = vmatprep.subr.bf16.mxu0 %v2759
    %2995 = vmatpush2.bf16.msra.mxu0 %v2758
    %2996 = vmatprep.subr.bf16.mxu0 %v2755
    %2997 = vmatpush2.bf16.msra.mxu0 %v2754
    %2998 = vmatprep.subr.bf16.mxu0 %v2751
    %2999 = vmatpush2.bf16.msra.mxu0 %v2750
    %3000 = vmatprep.subr.bf16.mxu0 %v2747
    %3001 = vmatpush2.bf16.msra.mxu0 %v2746
    %3002 = vmatprep.mubr.bf16.mxu0 %v1304
    %3003 = vmatmul.mubr.bf16.gmra.mxu0 %v1303
    %v3004 = vpop.f32.mrf.mxu0
    %v3005 = vadd.f32 %v2283, %v3004
    %v3006 = vpop.f32.mrf.mxu0
    %v3007 = vadd.f32 %v2285, %v3006
    %v3008 = vpop.f32.mrf.mxu0
    %v3009 = vpop.f32.mrf.mxu0
    %3010 = vdwg.mxu0
    %3011 = vmatprep.subr.bf16.mxu0 %v2807
    %3012 = vmatpush1.bf16.msra.mxu0 %v2806
    %3013 = vmatprep.subr.bf16.mxu0 %v2803
    %3014 = vmatpush1.bf16.msra.mxu0 %v2802
    %3015 = vmatprep.subr.bf16.mxu0 %v2799
    %3016 = vmatpush1.bf16.msra.mxu0 %v2798
    %3017 = vmatprep.subr.bf16.mxu0 %v2795
    %3018 = vmatpush1.bf16.msra.mxu0 %v2794
    %3019 = vmatprep.subr.bf16.mxu0 %v2791
    %3020 = vmatpush1.bf16.msra.mxu0 %v2790
    %3021 = vmatprep.subr.bf16.mxu0 %v2787
    %3022 = vmatpush1.bf16.msra.mxu0 %v2786
    %3023 = vmatprep.subr.bf16.mxu0 %v2783
    %3024 = vmatpush1.bf16.msra.mxu0 %v2782
    %3025 = vmatprep.subr.bf16.mxu0 %v2779
    %3026 = vmatpush1.bf16.msra.mxu0 %v2778
    %3027 = vmatprep.subr.bf16.mxu0 %v2839
    %3028 = vmatpush2.bf16.msra.mxu0 %v2838
    %3029 = vmatprep.subr.bf16.mxu0 %v2835
    %3030 = vmatpush2.bf16.msra.mxu0 %v2834
    %3031 = vmatprep.subr.bf16.mxu0 %v2831
    %3032 = vmatpush2.bf16.msra.mxu0 %v2830
    %3033 = vmatprep.subr.bf16.mxu0 %v2827
    %3034 = vmatpush2.bf16.msra.mxu0 %v2826
    %3035 = vmatprep.subr.bf16.mxu0 %v2823
    %3036 = vmatpush2.bf16.msra.mxu0 %v2822
    %3037 = vmatprep.subr.bf16.mxu0 %v2819
    %3038 = vmatpush2.bf16.msra.mxu0 %v2818
    %3039 = vmatprep.subr.bf16.mxu0 %v2815
    %3040 = vmatpush2.bf16.msra.mxu0 %v2814
    %3041 = vmatprep.subr.bf16.mxu0 %v2811
    %3042 = vmatpush2.bf16.msra.mxu0 %v2810
    %3043 = vmatprep.mubr.bf16.mxu0 %v1306
    %3044 = vmatmul.mubr.bf16.gmra.mxu0 %v1305
    %v3045 = vpop.f32.mrf.mxu0
    %v3046 = vadd.f32 %v3005, %v3045
    %v3047 = vpop.f32.mrf.mxu0
    %v3048 = vadd.f32 %v3007, %v3047
    %v3049 = vpop.f32.mrf.mxu0
    %v3050 = vpop.f32.mrf.mxu0
    %3051 = vdwg.mxu0
    %3052 = vmatprep.subr.bf16.mxu0 %v2745
    %3053 = vmatpush1.bf16.msra.mxu0 %v2744
    %3054 = vmatprep.subr.bf16.mxu0 %v2741
    %3055 = vmatpush1.bf16.msra.mxu0 %v2740
    %3056 = vmatprep.subr.bf16.mxu0 %v2737
    %3057 = vmatpush1.bf16.msra.mxu0 %v2736
    %3058 = vmatprep.subr.bf16.mxu0 %v2733
    %3059 = vmatpush1.bf16.msra.mxu0 %v2732
    %3060 = vmatprep.subr.bf16.mxu0 %v2729
    %3061 = vmatpush1.bf16.msra.mxu0 %v2728
    %3062 = vmatprep.subr.bf16.mxu0 %v2725
    %3063 = vmatpush1.bf16.msra.mxu0 %v2724
    %3064 = vmatprep.subr.bf16.mxu0 %v2721
    %3065 = vmatpush1.bf16.msra.mxu0 %v2720
    %3066 = vmatprep.subr.bf16.mxu0 %v2717
    %3067 = vmatpush1.bf16.msra.mxu0 %v2716
    %3068 = vmatprep.subr.bf16.mxu0 %v2777
    %3069 = vmatpush2.bf16.msra.mxu0 %v2776
    %3070 = vmatprep.subr.bf16.mxu0 %v2773
    %3071 = vmatpush2.bf16.msra.mxu0 %v2772
    %3072 = vmatprep.subr.bf16.mxu0 %v2769
    %3073 = vmatpush2.bf16.msra.mxu0 %v2768
    %3074 = vmatprep.subr.bf16.mxu0 %v2765
    %3075 = vmatpush2.bf16.msra.mxu0 %v2764
    %3076 = vmatprep.subr.bf16.mxu0 %v2761
    %3077 = vmatpush2.bf16.msra.mxu0 %v2760
    %3078 = vmatprep.subr.bf16.mxu0 %v2757
    %3079 = vmatpush2.bf16.msra.mxu0 %v2756
    %3080 = vmatprep.subr.bf16.mxu0 %v2753
    %3081 = vmatpush2.bf16.msra.mxu0 %v2752
    %3082 = vmatprep.subr.bf16.mxu0 %v2749
    %3083 = vmatpush2.bf16.msra.mxu0 %v2748
    %3084 = vmatprep.mubr.bf16.mxu0 %v1304
    %3085 = vmatmul.mubr.bf16.gmra.mxu0 %v1303
    %v3086 = vpop.f32.mrf.mxu0
    %v3087 = vadd.f32 %v2324, %v3086
    %v3088 = vpop.f32.mrf.mxu0
    %v3089 = vadd.f32 %v2326, %v3088
    %v3090 = vpop.f32.mrf.mxu0
    %v3091 = vpop.f32.mrf.mxu0
    %3092 = vdwg.mxu0
    %3093 = vmatprep.subr.bf16.mxu0 %v2809
    %3094 = vmatpush1.bf16.msra.mxu0 %v2808
    %3095 = vmatprep.subr.bf16.mxu0 %v2805
    %3096 = vmatpush1.bf16.msra.mxu0 %v2804
    %3097 = vmatprep.subr.bf16.mxu0 %v2801
    %3098 = vmatpush1.bf16.msra.mxu0 %v2800
    %3099 = vmatprep.subr.bf16.mxu0 %v2797
    %3100 = vmatpush1.bf16.msra.mxu0 %v2796
    %3101 = vmatprep.subr.bf16.mxu0 %v2793
    %3102 = vmatpush1.bf16.msra.mxu0 %v2792
    %3103 = vmatprep.subr.bf16.mxu0 %v2789
    %3104 = vmatpush1.bf16.msra.mxu0 %v2788
    %3105 = vmatprep.subr.bf16.mxu0 %v2785
    %3106 = vmatpush1.bf16.msra.mxu0 %v2784
    %3107 = vmatprep.subr.bf16.mxu0 %v2781
    %3108 = vmatpush1.bf16.msra.mxu0 %v2780
    %3109 = vmatprep.subr.bf16.mxu0 %v2841
    %3110 = vmatpush2.bf16.msra.mxu0 %v2840
    %3111 = vmatprep.subr.bf16.mxu0 %v2837
    %3112 = vmatpush2.bf16.msra.mxu0 %v2836
    %3113 = vmatprep.subr.bf16.mxu0 %v2833
    %3114 = vmatpush2.bf16.msra.mxu0 %v2832
    %3115 = vmatprep.subr.bf16.mxu0 %v2829
    %3116 = vmatpush2.bf16.msra.mxu0 %v2828
    %3117 = vmatprep.subr.bf16.mxu0 %v2825
    %3118 = vmatpush2.bf16.msra.mxu0 %v2824
    %3119 = vmatprep.subr.bf16.mxu0 %v2821
    %3120 = vmatpush2.bf16.msra.mxu0 %v2820
    %3121 = vmatprep.subr.bf16.mxu0 %v2817
    %3122 = vmatpush2.bf16.msra.mxu0 %v2816
    %3123 = vmatprep.subr.bf16.mxu0 %v2813
    %3124 = vmatpush2.bf16.msra.mxu0 %v2812
    %3125 = vmatprep.mubr.bf16.mxu0 %v1306
    %3126 = vmatmul.mubr.bf16.gmra.mxu0 %v1305
    %v3127 = vpop.f32.mrf.mxu0
    %v3128 = vadd.f32 %v3087, %v3127
    %v3129 = vpop.f32.mrf.mxu0
    %v3130 = vadd.f32 %v3089, %v3129
    %v3131 = vpop.f32.mrf.mxu0
    %v3132 = vpop.f32.mrf.mxu0
    %3133 = vdwg.mxu0
    %3135 = vset.pattern.permute.xlu0 0
    %3136 = vperm.xlu0 %3135, %v1831
    %v3137 = vpop.permute.xlu0 %3136
    %v3139 = vmul.f32 %v3137, %v3046
    %v3140 = vmul.f32 %v3137, %v3048
    %v3141 = vmul.f32 %v3137, %v3128
    %v3142 = vmul.f32 %v3137, %v3130
    %v3143 = vrot.slane %v3139, 4
    %v3144 = vadd.f32 %v3139, %v3143
    %v3145 = vrot.slane %v3144, 2
    %v3146 = vadd.f32 %v3144, %v3145
    %v3147 = vrot.slane %v3146, 1
    %v3148 = vadd.f32 %v3146, %v3147
    %v3149 = vrot.slane %v3140, 4
    %v3150 = vadd.f32 %v3140, %v3149
    %v3151 = vrot.slane %v3150, 2
    %v3152 = vadd.f32 %v3150, %v3151
    %v3153 = vrot.slane %v3152, 1
    %v3154 = vadd.f32 %v3152, %v3153
    %v3155 = vrot.slane %v3141, 4
    %v3156 = vadd.f32 %v3141, %v3155
    %v3157 = vrot.slane %v3156, 2
    %v3158 = vadd.f32 %v3156, %v3157
    %v3159 = vrot.slane %v3158, 1
    %v3160 = vadd.f32 %v3158, %v3159
    %v3161 = vrot.slane %v3142, 4
    %v3162 = vadd.f32 %v3142, %v3161
    %v3163 = vrot.slane %v3162, 2
    %v3164 = vadd.f32 %v3162, %v3163
    %v3165 = vrot.slane %v3164, 1
    %v3166 = vadd.f32 %v3164, %v3165
    %v3167 = vmul.f32 %v3137, %v1299
    %v3168 = vmul.f32 %v3137, %v1300
    %v3169 = vmul.f32 %v3137, %v1301
    %v3170 = vmul.f32 %v3137, %v1302
    %v3171 = vrot.slane %v3167, 4
    %v3172 = vadd.f32 %v3167, %v3171
    %v3173 = vrot.slane %v3172, 2
    %v3174 = vadd.f32 %v3172, %v3173
    %v3175 = vrot.slane %v3174, 1
    %v3176 = vadd.f32 %v3174, %v3175
    %v3177 = vrot.slane %v3168, 4
    %v3178 = vadd.f32 %v3168, %v3177
    %v3179 = vrot.slane %v3178, 2
    %v3180 = vadd.f32 %v3178, %v3179
    %v3181 = vrot.slane %v3180, 1
    %v3182 = vadd.f32 %v3180, %v3181
    %v3183 = vrot.slane %v3169, 4
    %v3184 = vadd.f32 %v3169, %v3183
    %v3185 = vrot.slane %v3184, 2
    %v3186 = vadd.f32 %v3184, %v3185
    %v3187 = vrot.slane %v3186, 1
    %v3188 = vadd.f32 %v3186, %v3187
    %v3189 = vrot.slane %v3170, 4
    %v3190 = vadd.f32 %v3170, %v3189
    %v3191 = vrot.slane %v3190, 2
    %v3192 = vadd.f32 %v3190, %v3191
    %v3193 = vrot.slane %v3192, 1
    %v3194 = vadd.f32 %v3192, %v3193
    %v3195 = vmul.f32 %v3137, %v734
    %v3196 = vmul.f32 %v3137, %v735
    %v3197 = vrot.slane %v3195, 4
    %v3198 = vadd.f32 %v3195, %v3197
    %v3199 = vrot.slane %v3198, 2
    %v3200 = vadd.f32 %v3198, %v3199
    %v3201 = vrot.slane %v3200, 1
    %v3202 = vadd.f32 %v3200, %v3201
    %v3203 = vsel %vm624, %v3196, 0.0
    %v3204 = vrot.slane %v3203, 4
    %v3205 = vadd.f32 %v3203, %v3204
    %v3206 = vrot.slane %v3205, 2
    %v3207 = vadd.f32 %v3205, %v3206
    %v3208 = vrot.slane %v3207, 1
    %v3209 = vadd.f32 %v3207, %v3208
    %v3210 = vmul.f32 %v3167, %v1299
    %v3211 = vmul.f32 %v3168, %v1300
    %v3212 = vmul.f32 %v3169, %v1301
    %v3213 = vmul.f32 %v3170, %v1302
    %v3214 = vrot.slane %v3210, 4
    %v3215 = vadd.f32 %v3210, %v3214
    %v3216 = vrot.slane %v3215, 2
    %v3217 = vadd.f32 %v3215, %v3216
    %v3218 = vrot.slane %v3217, 1
    %v3219 = vadd.f32 %v3217, %v3218
    %v3220 = vrot.slane %v3211, 4
    %v3221 = vadd.f32 %v3211, %v3220
    %v3222 = vrot.slane %v3221, 2
    %v3223 = vadd.f32 %v3221, %v3222
    %v3224 = vrot.slane %v3223, 1
    %v3225 = vadd.f32 %v3223, %v3224
    %v3226 = vrot.slane %v3212, 4
    %v3227 = vadd.f32 %v3212, %v3226
    %v3228 = vrot.slane %v3227, 2
    %v3229 = vadd.f32 %v3227, %v3228
    %v3230 = vrot.slane %v3229, 1
    %v3231 = vadd.f32 %v3229, %v3230
    %v3232 = vrot.slane %v3213, 4
    %v3233 = vadd.f32 %v3213, %v3232
    %v3234 = vrot.slane %v3233, 2
    %v3235 = vadd.f32 %v3233, %v3234
    %v3236 = vrot.slane %v3235, 1
    %v3237 = vadd.f32 %v3235, %v3236
    %v3238 = vmul.f32 %v3176, %v3176
    %v3239 = vmul.f32 %v3182, %v3182
    %v3240 = vmul.f32 %v3188, %v3188
    %v3241 = vmul.f32 %v3194, %v3194
    %v3242 = vsub.f32 %v3219, %v3238
    %v3243 = vsub.f32 %v3225, %v3239
    %v3244 = vsub.f32 %v3231, %v3240
    %v3245 = vsub.f32 %v3237, %v3241
    %v3246 = vmul.f32 %v3195, %v734
    %v3247 = vmul.f32 %v3196, %v735
    %v3248 = vrot.slane %v3246, 4
    %v3249 = vadd.f32 %v3246, %v3248
    %v3250 = vrot.slane %v3249, 2
    %v3251 = vadd.f32 %v3249, %v3250
    %v3252 = vrot.slane %v3251, 1
    %v3253 = vadd.f32 %v3251, %v3252
    %v3254 = vsel %vm624, %v3247, 0.0
    %v3255 = vrot.slane %v3254, 4
    %v3256 = vadd.f32 %v3254, %v3255
    %v3257 = vrot.slane %v3256, 2
    %v3258 = vadd.f32 %v3256, %v3257
    %v3259 = vrot.slane %v3258, 1
    %v3260 = vadd.f32 %v3258, %v3259
    %v3261 = vmul.f32 %v3202, %v3202
    %v3262 = vmul.f32 %v3209, %v3209
    %v3263 = vsub.f32 %v3253, %v3261
    %v3264 = vsub.f32 %v3260, %v3262
    %v3265 = vmax.f32 %v3242, 1e-06
    %v3266 = vmax.f32 %v3243, 1e-06
    %v3267 = vmax.f32 %v3244, 1e-06
    %v3268 = vmax.f32 %v3245, 1e-06
    %v3269 = vrsqrt.pop %v3265
    %v3270 = vmul.f32 %v3265, %v3269
    %vm3271 = vcmp.eq.f32.partialorder %v3265, inf
    %v3272 = vsel %vm3271, %v3265, %v3270
    %vm3273 = vcmp.eq.f32.partialorder %v3265, 0.0
    %v3274 = vand.u32 %v3265, 2147483648
    %v3275 = vsel %vm3273, %v3274, %v3272
    %v3276 = vrsqrt.pop %v3266
    %v3277 = vmul.f32 %v3266, %v3276
    %vm3278 = vcmp.eq.f32.partialorder %v3266, inf
    %v3279 = vsel %vm3278, %v3266, %v3277
    %vm3280 = vcmp.eq.f32.partialorder %v3266, 0.0
    %v3281 = vand.u32 %v3266, 2147483648
    %v3282 = vsel %vm3280, %v3281, %v3279
    %v3283 = vrsqrt.pop %v3267
    %v3284 = vmul.f32 %v3267, %v3283
    %vm3285 = vcmp.eq.f32.partialorder %v3267, inf
    %v3286 = vsel %vm3285, %v3267, %v3284
    %vm3287 = vcmp.eq.f32.partialorder %v3267, 0.0
    %v3288 = vand.u32 %v3267, 2147483648
    %v3289 = vsel %vm3287, %v3288, %v3286
    %v3290 = vrsqrt.pop %v3268
    %v3291 = vmul.f32 %v3268, %v3290
    %vm3292 = vcmp.eq.f32.partialorder %v3268, inf
    %v3293 = vsel %vm3292, %v3268, %v3291
    %vm3294 = vcmp.eq.f32.partialorder %v3268, 0.0
    %v3295 = vand.u32 %v3268, 2147483648
    %v3296 = vsel %vm3294, %v3295, %v3293
    %v3297 = vmax.f32 %v3263, 1e-06
    %v3298 = vmax.f32 %v3264, 1e-06
    %v3299 = vrsqrt.pop %v3297
    %v3300 = vmul.f32 %v3297, %v3299
    %vm3301 = vcmp.eq.f32.partialorder %v3297, inf
    %v3302 = vsel %vm3301, %v3297, %v3300
    %vm3303 = vcmp.eq.f32.partialorder %v3297, 0.0
    %v3304 = vand.u32 %v3297, 2147483648
    %v3305 = vsel %vm3303, %v3304, %v3302
    %v3306 = vrsqrt.pop %v3298
    %v3307 = vmul.f32 %v3298, %v3306
    %vm3308 = vcmp.eq.f32.partialorder %v3298, inf
    %v3309 = vsel %vm3308, %v3298, %v3307
    %vm3310 = vcmp.eq.f32.partialorder %v3298, 0.0
    %v3311 = vand.u32 %v3298, 2147483648
    %v3312 = vsel %vm3310, %v3311, %v3309
    %v3313 = vpack.c.bf16 %v3275, %v3275
    %v3314 = vpack.c.bf16 %v3282, %v3282
    %v3315 = vpack.c.bf16 %v3289, %v3289
    %v3316 = vpack.c.bf16 %v3296, %v3296
    %v3317 = vld [vmem:[#allocation9] sm:$0xff]
    %v3318 = vld [vmem:[#allocation9 + $0x8] sm:$0xff]
    %v3319 = vld [vmem:[#allocation9 + $0x10] sm:$0xff]
    %v3320 = vld [vmem:[#allocation9 + $0x18] sm:$0xff]
    %v3321 = vld [vmem:[#allocation9 + $0x20] sm:$0xff]
    %v3322 = vld [vmem:[#allocation9 + $0x28] sm:$0xff]
    %v3323 = vld [vmem:[#allocation9 + $0x30] sm:$0xff]
    %v3324 = vld [vmem:[#allocation9 + $0x38] sm:$0xff]
    %v3325 = vld [vmem:[#allocation9 + $0x40] sm:$0xff]
    %v3326 = vld [vmem:[#allocation9 + $0x48] sm:$0xff]
    %v3327 = vld [vmem:[#allocation9 + $0x50] sm:$0xff]
    %v3328 = vld [vmem:[#allocation9 + $0x58] sm:$0xff]
    %v3329 = vld [vmem:[#allocation9 + $0x60] sm:$0xff]
    %v3330 = vld [vmem:[#allocation9 + $0x68] sm:$0xff]
    %v3331 = vld [vmem:[#allocation9 + $0x70] sm:$0xff]
    %v3332 = vld [vmem:[#allocation9 + $0x78] sm:$0xff]
    %v3333 = vld [vmem:[#allocation9 + $0x80] sm:$0xff]
    %v3334 = vld [vmem:[#allocation9 + $0x88] sm:$0xff]
    %v3335 = vld [vmem:[#allocation9 + $0x90] sm:$0xff]
    %v3336 = vld [vmem:[#allocation9 + $0x98] sm:$0xff]
    %v3337 = vld [vmem:[#allocation9 + $0xa0] sm:$0xff]
    %v3338 = vld [vmem:[#allocation9 + $0xa8] sm:$0xff]
    %v3339 = vld [vmem:[#allocation9 + $0xb0] sm:$0xff]
    %v3340 = vld [vmem:[#allocation9 + $0xb8] sm:$0xff]
    %v3341 = vld [vmem:[#allocation9 + $0xc0] sm:$0xff]
    %v3342 = vld [vmem:[#allocation9 + $0xc8] sm:$0xff]
    %v3343 = vld [vmem:[#allocation9 + $0xd0] sm:$0xff]
    %v3344 = vld [vmem:[#allocation9 + $0xd8] sm:$0xff]
    %v3345 = vld [vmem:[#allocation9 + $0xe0] sm:$0xff]
    %v3346 = vld [vmem:[#allocation9 + $0xe8] sm:$0xff]
    %v3347 = vld [vmem:[#allocation9 + $0xf0] sm:$0xff]
    %v3348 = vld [vmem:[#allocation9 + $0xf8] sm:$0xff]
    %v3349 = vld [vmem:[#allocation9 + $0x100] sm:$0xff]
    %v3350 = vld [vmem:[#allocation9 + $0x108] sm:$0xff]
    %v3351 = vld [vmem:[#allocation9 + $0x110] sm:$0xff]
    %v3352 = vld [vmem:[#allocation9 + $0x118] sm:$0xff]
    %v3353 = vld [vmem:[#allocation9 + $0x120] sm:$0xff]
    %v3354 = vld [vmem:[#allocation9 + $0x128] sm:$0xff]
    %v3355 = vld [vmem:[#allocation9 + $0x130] sm:$0xff]
    %v3356 = vld [vmem:[#allocation9 + $0x138] sm:$0xff]
    %v3357 = vld [vmem:[#allocation9 + $0x140] sm:$0xff]
    %v3358 = vld [vmem:[#allocation9 + $0x148] sm:$0xff]
    %v3359 = vld [vmem:[#allocation9 + $0x150] sm:$0xff]
    %v3360 = vld [vmem:[#allocation9 + $0x158] sm:$0xff]
    %v3361 = vld [vmem:[#allocation9 + $0x160] sm:$0xff]
    %v3362 = vld [vmem:[#allocation9 + $0x168] sm:$0xff]
    %v3363 = vld [vmem:[#allocation9 + $0x170] sm:$0xff]
    %v3364 = vld [vmem:[#allocation9 + $0x178] sm:$0xff]
    %v3365 = vld [vmem:[#allocation9 + $0x180] sm:$0xff]
    %v3366 = vld [vmem:[#allocation9 + $0x188] sm:$0xff]
    %v3367 = vld [vmem:[#allocation9 + $0x190] sm:$0xff]
    %v3368 = vld [vmem:[#allocation9 + $0x198] sm:$0xff]
    %v3369 = vld [vmem:[#allocation9 + $0x1a0] sm:$0xff]
    %v3370 = vld [vmem:[#allocation9 + $0x1a8] sm:$0xff]
    %v3371 = vld [vmem:[#allocation9 + $0x1b0] sm:$0xff]
    %v3372 = vld [vmem:[#allocation9 + $0x1b8] sm:$0xff]
    %v3373 = vld [vmem:[#allocation9 + $0x1c0] sm:$0xff]
    %v3374 = vld [vmem:[#allocation9 + $0x1c8] sm:$0xff]
    %v3375 = vld [vmem:[#allocation9 + $0x1d0] sm:$0xff]
    %v3376 = vld [vmem:[#allocation9 + $0x1d8] sm:$0xff]
    %v3377 = vld [vmem:[#allocation9 + $0x1e0] sm:$0xff]
    %v3378 = vld [vmem:[#allocation9 + $0x1e8] sm:$0xff]
    %v3379 = vld [vmem:[#allocation9 + $0x1f0] sm:$0xff]
    %v3380 = vld [vmem:[#allocation9 + $0x1f8] sm:$0xff]
    %v3381 = vld [vmem:[#allocation9 + $0x200] sm:$0xff]
    %v3382 = vld [vmem:[#allocation9 + $0x208] sm:$0xff]
    %v3383 = vld [vmem:[#allocation9 + $0x210] sm:$0xff]
    %v3384 = vld [vmem:[#allocation9 + $0x218] sm:$0xff]
    %v3385 = vld [vmem:[#allocation9 + $0x220] sm:$0xff]
    %v3386 = vld [vmem:[#allocation9 + $0x228] sm:$0xff]
    %v3387 = vld [vmem:[#allocation9 + $0x230] sm:$0xff]
    %v3388 = vld [vmem:[#allocation9 + $0x238] sm:$0xff]
    %v3389 = vld [vmem:[#allocation9 + $0x240] sm:$0xff]
    %v3390 = vld [vmem:[#allocation9 + $0x248] sm:$0xff]
    %v3391 = vld [vmem:[#allocation9 + $0x250] sm:$0xff]
    %v3392 = vld [vmem:[#allocation9 + $0x258] sm:$0xff]
    %v3393 = vld [vmem:[#allocation9 + $0x260] sm:$0xff]
    %v3394 = vld [vmem:[#allocation9 + $0x268] sm:$0xff]
    %v3395 = vld [vmem:[#allocation9 + $0x270] sm:$0xff]
    %v3396 = vld [vmem:[#allocation9 + $0x278] sm:$0xff]
    %v3397 = vld [vmem:[#allocation9 + $0x280] sm:$0xff]
    %v3398 = vld [vmem:[#allocation9 + $0x288] sm:$0xff]
    %v3399 = vld [vmem:[#allocation9 + $0x290] sm:$0xff]
    %v3400 = vld [vmem:[#allocation9 + $0x298] sm:$0xff]
    %v3401 = vld [vmem:[#allocation9 + $0x2a0] sm:$0xff]
    %v3402 = vld [vmem:[#allocation9 + $0x2a8] sm:$0xff]
    %v3403 = vld [vmem:[#allocation9 + $0x2b0] sm:$0xff]
    %v3404 = vld [vmem:[#allocation9 + $0x2b8] sm:$0xff]
    %v3405 = vld [vmem:[#allocation9 + $0x2c0] sm:$0xff]
    %v3406 = vld [vmem:[#allocation9 + $0x2c8] sm:$0xff]
    %v3407 = vld [vmem:[#allocation9 + $0x2d0] sm:$0xff]
    %v3408 = vld [vmem:[#allocation9 + $0x2d8] sm:$0xff]
    %v3409 = vld [vmem:[#allocation9 + $0x2e0] sm:$0xff]
    %v3410 = vld [vmem:[#allocation9 + $0x2e8] sm:$0xff]
    %v3411 = vld [vmem:[#allocation9 + $0x2f0] sm:$0xff]
    %v3412 = vld [vmem:[#allocation9 + $0x2f8] sm:$0xff]
    %v3413 = vld [vmem:[#allocation9 + $0x300] sm:$0xff]
    %v3414 = vld [vmem:[#allocation9 + $0x308] sm:$0xff]
    %v3415 = vld [vmem:[#allocation9 + $0x310] sm:$0xff]
    %v3416 = vld [vmem:[#allocation9 + $0x318] sm:$0xff]
    %v3417 = vld [vmem:[#allocation9 + $0x320] sm:$0xff]
    %v3418 = vld [vmem:[#allocation9 + $0x328] sm:$0xff]
    %v3419 = vld [vmem:[#allocation9 + $0x330] sm:$0xff]
    %v3420 = vld [vmem:[#allocation9 + $0x338] sm:$0xff]
    %v3421 = vld [vmem:[#allocation9 + $0x340] sm:$0xff]
    %v3422 = vld [vmem:[#allocation9 + $0x348] sm:$0xff]
    %v3423 = vld [vmem:[#allocation9 + $0x350] sm:$0xff]
    %v3424 = vld [vmem:[#allocation9 + $0x358] sm:$0xff]
    %v3425 = vld [vmem:[#allocation9 + $0x360] sm:$0xff]
    %v3426 = vld [vmem:[#allocation9 + $0x368] sm:$0xff]
    %v3427 = vld [vmem:[#allocation9 + $0x370] sm:$0xff]
    %v3428 = vld [vmem:[#allocation9 + $0x378] sm:$0xff]
    %v3429 = vld [vmem:[#allocation9 + $0x380] sm:$0xff]
    %v3430 = vld [vmem:[#allocation9 + $0x388] sm:$0xff]
    %v3431 = vld [vmem:[#allocation9 + $0x390] sm:$0xff]
    %v3432 = vld [vmem:[#allocation9 + $0x398] sm:$0xff]
    %v3433 = vld [vmem:[#allocation9 + $0x3a0] sm:$0xff]
    %v3434 = vld [vmem:[#allocation9 + $0x3a8] sm:$0xff]
    %v3435 = vld [vmem:[#allocation9 + $0x3b0] sm:$0xff]
    %v3436 = vld [vmem:[#allocation9 + $0x3b8] sm:$0xff]
    %v3437 = vld [vmem:[#allocation9 + $0x3c0] sm:$0xff]
    %v3438 = vld [vmem:[#allocation9 + $0x3c8] sm:$0xff]
    %v3439 = vld [vmem:[#allocation9 + $0x3d0] sm:$0xff]
    %v3440 = vld [vmem:[#allocation9 + $0x3d8] sm:$0xff]
    %v3441 = vld [vmem:[#allocation9 + $0x3e0] sm:$0xff]
    %v3442 = vld [vmem:[#allocation9 + $0x3e8] sm:$0xff]
    %v3443 = vld [vmem:[#allocation9 + $0x3f0] sm:$0xff]
    %v3444 = vld [vmem:[#allocation9 + $0x3f8] sm:$0xff]
    %v3573 = vunpack.c.l.b16 %v3317
    %v3574 = vunpack.c.h.b16 %v3317
    %v3575 = vunpack.c.l.b16 %v3318
    %v3576 = vunpack.c.h.b16 %v3318
    %v3577 = vunpack.c.l.b16 %v3319
    %v3578 = vunpack.c.h.b16 %v3319
    %v3579 = vunpack.c.l.b16 %v3320
    %v3580 = vunpack.c.h.b16 %v3320
    %v3581 = vunpack.c.l.b16 %v3321
    %v3582 = vunpack.c.h.b16 %v3321
    %v3583 = vunpack.c.l.b16 %v3322
    %v3584 = vunpack.c.h.b16 %v3322
    %v3585 = vunpack.c.l.b16 %v3323
    %v3586 = vunpack.c.h.b16 %v3323
    %v3587 = vunpack.c.l.b16 %v3324
    %v3588 = vunpack.c.h.b16 %v3324
    %v3589 = vunpack.c.l.b16 %v3325
    %v3590 = vunpack.c.h.b16 %v3325
    %v3591 = vunpack.c.l.b16 %v3326
    %v3592 = vunpack.c.h.b16 %v3326
    %v3593 = vunpack.c.l.b16 %v3327
    %v3594 = vunpack.c.h.b16 %v3327
    %v3595 = vunpack.c.l.b16 %v3328
    %v3596 = vunpack.c.h.b16 %v3328
    %v3597 = vunpack.c.l.b16 %v3329
    %v3598 = vunpack.c.h.b16 %v3329
    %v3599 = vunpack.c.l.b16 %v3330
    %v3600 = vunpack.c.h.b16 %v3330
    %v3601 = vunpack.c.l.b16 %v3331
    %v3602 = vunpack.c.h.b16 %v3331
    %v3603 = vunpack.c.l.b16 %v3332
    %v3604 = vunpack.c.h.b16 %v3332
    %v3605 = vunpack.c.l.b16 %v3333
    %v3606 = vunpack.c.h.b16 %v3333
    %v3607 = vunpack.c.l.b16 %v3334
    %v3608 = vunpack.c.h.b16 %v3334
    %v3609 = vunpack.c.l.b16 %v3335
    %v3610 = vunpack.c.h.b16 %v3335
    %v3611 = vunpack.c.l.b16 %v3336
    %v3612 = vunpack.c.h.b16 %v3336
    %v3613 = vunpack.c.l.b16 %v3337
    %v3614 = vunpack.c.h.b16 %v3337
    %v3615 = vunpack.c.l.b16 %v3338
    %v3616 = vunpack.c.h.b16 %v3338
    %v3617 = vunpack.c.l.b16 %v3339
    %v3618 = vunpack.c.h.b16 %v3339
    %v3619 = vunpack.c.l.b16 %v3340
    %v3620 = vunpack.c.h.b16 %v3340
    %v3621 = vunpack.c.l.b16 %v3341
    %v3622 = vunpack.c.h.b16 %v3341
    %v3623 = vunpack.c.l.b16 %v3342
    %v3624 = vunpack.c.h.b16 %v3342
    %v3625 = vunpack.c.l.b16 %v3343
    %v3626 = vunpack.c.h.b16 %v3343
    %v3627 = vunpack.c.l.b16 %v3344
    %v3628 = vunpack.c.h.b16 %v3344
    %v3629 = vunpack.c.l.b16 %v3345
    %v3630 = vunpack.c.h.b16 %v3345
    %v3631 = vunpack.c.l.b16 %v3346
    %v3632 = vunpack.c.h.b16 %v3346
    %v3633 = vunpack.c.l.b16 %v3347
    %v3634 = vunpack.c.h.b16 %v3347
    %v3635 = vunpack.c.l.b16 %v3348
    %v3636 = vunpack.c.h.b16 %v3348
    %v3637 = vunpack.c.l.b16 %v3349
    %v3638 = vunpack.c.h.b16 %v3349
    %v3639 = vunpack.c.l.b16 %v3350
    %v3640 = vunpack.c.h.b16 %v3350
    %v3641 = vunpack.c.l.b16 %v3351
    %v3642 = vunpack.c.h.b16 %v3351
    %v3643 = vunpack.c.l.b16 %v3352
    %v3644 = vunpack.c.h.b16 %v3352
    %v3645 = vunpack.c.l.b16 %v3353
    %v3646 = vunpack.c.h.b16 %v3353
    %v3647 = vunpack.c.l.b16 %v3354
    %v3648 = vunpack.c.h.b16 %v3354
    %v3649 = vunpack.c.l.b16 %v3355
    %v3650 = vunpack.c.h.b16 %v3355
    %v3651 = vunpack.c.l.b16 %v3356
    %v3652 = vunpack.c.h.b16 %v3356
    %v3653 = vunpack.c.l.b16 %v3357
    %v3654 = vunpack.c.h.b16 %v3357
    %v3655 = vunpack.c.l.b16 %v3358
    %v3656 = vunpack.c.h.b16 %v3358
    %v3657 = vunpack.c.l.b16 %v3359
    %v3658 = vunpack.c.h.b16 %v3359
    %v3659 = vunpack.c.l.b16 %v3360
    %v3660 = vunpack.c.h.b16 %v3360
    %v3661 = vunpack.c.l.b16 %v3361
    %v3662 = vunpack.c.h.b16 %v3361
    %v3663 = vunpack.c.l.b16 %v3362
    %v3664 = vunpack.c.h.b16 %v3362
    %v3665 = vunpack.c.l.b16 %v3363
    %v3666 = vunpack.c.h.b16 %v3363
    %v3667 = vunpack.c.l.b16 %v3364
    %v3668 = vunpack.c.h.b16 %v3364
    %v3669 = vunpack.c.l.b16 %v3365
    %v3670 = vunpack.c.h.b16 %v3365
    %v3671 = vunpack.c.l.b16 %v3366
    %v3672 = vunpack.c.h.b16 %v3366
    %v3673 = vunpack.c.l.b16 %v3367
    %v3674 = vunpack.c.h.b16 %v3367
    %v3675 = vunpack.c.l.b16 %v3368
    %v3676 = vunpack.c.h.b16 %v3368
    %v3677 = vunpack.c.l.b16 %v3369
    %v3678 = vunpack.c.h.b16 %v3369
    %v3679 = vunpack.c.l.b16 %v3370
    %v3680 = vunpack.c.h.b16 %v3370
    %v3681 = vunpack.c.l.b16 %v3371
    %v3682 = vunpack.c.h.b16 %v3371
    %v3683 = vunpack.c.l.b16 %v3372
    %v3684 = vunpack.c.h.b16 %v3372
    %v3685 = vunpack.c.l.b16 %v3373
    %v3686 = vunpack.c.h.b16 %v3373
    %v3687 = vunpack.c.l.b16 %v3374
    %v3688 = vunpack.c.h.b16 %v3374
    %v3689 = vunpack.c.l.b16 %v3375
    %v3690 = vunpack.c.h.b16 %v3375
    %v3691 = vunpack.c.l.b16 %v3376
    %v3692 = vunpack.c.h.b16 %v3376
    %v3693 = vunpack.c.l.b16 %v3377
    %v3694 = vunpack.c.h.b16 %v3377
    %v3695 = vunpack.c.l.b16 %v3378
    %v3696 = vunpack.c.h.b16 %v3378
    %v3697 = vunpack.c.l.b16 %v3379
    %v3698 = vunpack.c.h.b16 %v3379
    %v3699 = vunpack.c.l.b16 %v3380
    %v3700 = vunpack.c.h.b16 %v3380
    %v3701 = vunpack.c.l.b16 %v3381
    %v3702 = vunpack.c.h.b16 %v3381
    %v3703 = vunpack.c.l.b16 %v3382
    %v3704 = vunpack.c.h.b16 %v3382
    %v3705 = vunpack.c.l.b16 %v3383
    %v3706 = vunpack.c.h.b16 %v3383
    %v3707 = vunpack.c.l.b16 %v3384
    %v3708 = vunpack.c.h.b16 %v3384
    %v3709 = vunpack.c.l.b16 %v3385
    %v3710 = vunpack.c.h.b16 %v3385
    %v3711 = vunpack.c.l.b16 %v3386
    %v3712 = vunpack.c.h.b16 %v3386
    %v3713 = vunpack.c.l.b16 %v3387
    %v3714 = vunpack.c.h.b16 %v3387
    %v3715 = vunpack.c.l.b16 %v3388
    %v3716 = vunpack.c.h.b16 %v3388
    %v3717 = vunpack.c.l.b16 %v3389
    %v3718 = vunpack.c.h.b16 %v3389
    %v3719 = vunpack.c.l.b16 %v3390
    %v3720 = vunpack.c.h.b16 %v3390
    %v3721 = vunpack.c.l.b16 %v3391
    %v3722 = vunpack.c.h.b16 %v3391
    %v3723 = vunpack.c.l.b16 %v3392
    %v3724 = vunpack.c.h.b16 %v3392
    %v3725 = vunpack.c.l.b16 %v3393
    %v3726 = vunpack.c.h.b16 %v3393
    %v3727 = vunpack.c.l.b16 %v3394
    %v3728 = vunpack.c.h.b16 %v3394
    %v3729 = vunpack.c.l.b16 %v3395
    %v3730 = vunpack.c.h.b16 %v3395
    %v3731 = vunpack.c.l.b16 %v3396
    %v3732 = vunpack.c.h.b16 %v3396
    %v3733 = vunpack.c.l.b16 %v3397
    %v3734 = vunpack.c.h.b16 %v3397
    %v3735 = vunpack.c.l.b16 %v3398
    %v3736 = vunpack.c.h.b16 %v3398
    %v3737 = vunpack.c.l.b16 %v3399
    %v3738 = vunpack.c.h.b16 %v3399
    %v3739 = vunpack.c.l.b16 %v3400
    %v3740 = vunpack.c.h.b16 %v3400
    %v3741 = vunpack.c.l.b16 %v3401
    %v3742 = vunpack.c.h.b16 %v3401
    %v3743 = vunpack.c.l.b16 %v3402
    %v3744 = vunpack.c.h.b16 %v3402
    %v3745 = vunpack.c.l.b16 %v3403
    %v3746 = vunpack.c.h.b16 %v3403
    %v3747 = vunpack.c.l.b16 %v3404
    %v3748 = vunpack.c.h.b16 %v3404
    %v3749 = vunpack.c.l.b16 %v3405
    %v3750 = vunpack.c.h.b16 %v3405
    %v3751 = vunpack.c.l.b16 %v3406
    %v3752 = vunpack.c.h.b16 %v3406
    %v3753 = vunpack.c.l.b16 %v3407
    %v3754 = vunpack.c.h.b16 %v3407
    %v3755 = vunpack.c.l.b16 %v3408
    %v3756 = vunpack.c.h.b16 %v3408
    %v3757 = vunpack.c.l.b16 %v3409
    %v3758 = vunpack.c.h.b16 %v3409
    %v3759 = vunpack.c.l.b16 %v3410
    %v3760 = vunpack.c.h.b16 %v3410
    %v3761 = vunpack.c.l.b16 %v3411
    %v3762 = vunpack.c.h.b16 %v3411
    %v3763 = vunpack.c.l.b16 %v3412
    %v3764 = vunpack.c.h.b16 %v3412
    %v3765 = vunpack.c.l.b16 %v3413
    %v3766 = vunpack.c.h.b16 %v3413
    %v3767 = vunpack.c.l.b16 %v3414
    %v3768 = vunpack.c.h.b16 %v3414
    %v3769 = vunpack.c.l.b16 %v3415
    %v3770 = vunpack.c.h.b16 %v3415
    %v3771 = vunpack.c.l.b16 %v3416
    %v3772 = vunpack.c.h.b16 %v3416
    %v3773 = vunpack.c.l.b16 %v3417
    %v3774 = vunpack.c.h.b16 %v3417
    %v3775 = vunpack.c.l.b16 %v3418
    %v3776 = vunpack.c.h.b16 %v3418
    %v3777 = vunpack.c.l.b16 %v3419
    %v3778 = vunpack.c.h.b16 %v3419
    %v3779 = vunpack.c.l.b16 %v3420
    %v3780 = vunpack.c.h.b16 %v3420
    %v3781 = vunpack.c.l.b16 %v3421
    %v3782 = vunpack.c.h.b16 %v3421
    %v3783 = vunpack.c.l.b16 %v3422
    %v3784 = vunpack.c.h.b16 %v3422
    %v3785 = vunpack.c.l.b16 %v3423
    %v3786 = vunpack.c.h.b16 %v3423
    %v3787 = vunpack.c.l.b16 %v3424
    %v3788 = vunpack.c.h.b16 %v3424
    %v3789 = vunpack.c.l.b16 %v3425
    %v3790 = vunpack.c.h.b16 %v3425
    %v3791 = vunpack.c.l.b16 %v3426
    %v3792 = vunpack.c.h.b16 %v3426
    %v3793 = vunpack.c.l.b16 %v3427
    %v3794 = vunpack.c.h.b16 %v3427
    %v3795 = vunpack.c.l.b16 %v3428
    %v3796 = vunpack.c.h.b16 %v3428
    %v3797 = vunpack.c.l.b16 %v3429
    %v3798 = vunpack.c.h.b16 %v3429
    %v3799 = vunpack.c.l.b16 %v3430
    %v3800 = vunpack.c.h.b16 %v3430
    %v3801 = vunpack.c.l.b16 %v3431
    %v3802 = vunpack.c.h.b16 %v3431
    %v3803 = vunpack.c.l.b16 %v3432
    %v3804 = vunpack.c.h.b16 %v3432
    %v3805 = vunpack.c.l.b16 %v3433
    %v3806 = vunpack.c.h.b16 %v3433
    %v3807 = vunpack.c.l.b16 %v3434
    %v3808 = vunpack.c.h.b16 %v3434
    %v3809 = vunpack.c.l.b16 %v3435
    %v3810 = vunpack.c.h.b16 %v3435
    %v3811 = vunpack.c.l.b16 %v3436
    %v3812 = vunpack.c.h.b16 %v3436
    %v3813 = vunpack.c.l.b16 %v3437
    %v3814 = vunpack.c.h.b16 %v3437
    %v3815 = vunpack.c.l.b16 %v3438
    %v3816 = vunpack.c.h.b16 %v3438
    %v3817 = vunpack.c.l.b16 %v3439
    %v3818 = vunpack.c.h.b16 %v3439
    %v3819 = vunpack.c.l.b16 %v3440
    %v3820 = vunpack.c.h.b16 %v3440
    %v3821 = vunpack.c.l.b16 %v3441
    %v3822 = vunpack.c.h.b16 %v3441
    %v3823 = vunpack.c.l.b16 %v3442
    %v3824 = vunpack.c.h.b16 %v3442
    %v3825 = vunpack.c.l.b16 %v3443
    %v3826 = vunpack.c.h.b16 %v3443
    %v3827 = vunpack.c.l.b16 %v3444
    %v3828 = vunpack.c.h.b16 %v3444
    %v3829 = vpack.c.b16 %v3577, %v3573
    %v3830 = vpack.c.b16 %v3578, %v3574
    %v3831 = vpack.c.b16 %v3579, %v3575
    %v3832 = vpack.c.b16 %v3580, %v3576
    %v3833 = vpack.c.b16 %v3585, %v3581
    %v3834 = vpack.c.b16 %v3586, %v3582
    %v3835 = vpack.c.b16 %v3587, %v3583
    %v3836 = vpack.c.b16 %v3588, %v3584
    %v3837 = vpack.c.b16 %v3593, %v3589
    %v3838 = vpack.c.b16 %v3594, %v3590
    %v3839 = vpack.c.b16 %v3595, %v3591
    %v3840 = vpack.c.b16 %v3596, %v3592
    %v3841 = vpack.c.b16 %v3601, %v3597
    %v3842 = vpack.c.b16 %v3602, %v3598
    %v3843 = vpack.c.b16 %v3603, %v3599
    %v3844 = vpack.c.b16 %v3604, %v3600
    %v3845 = vpack.c.b16 %v3609, %v3605
    %v3846 = vpack.c.b16 %v3610, %v3606
    %v3847 = vpack.c.b16 %v3611, %v3607
    %v3848 = vpack.c.b16 %v3612, %v3608
    %v3849 = vpack.c.b16 %v3617, %v3613
    %v3850 = vpack.c.b16 %v3618, %v3614
    %v3851 = vpack.c.b16 %v3619, %v3615
    %v3852 = vpack.c.b16 %v3620, %v3616
    %v3853 = vpack.c.b16 %v3625, %v3621
    %v3854 = vpack.c.b16 %v3626, %v3622
    %v3855 = vpack.c.b16 %v3627, %v3623
    %v3856 = vpack.c.b16 %v3628, %v3624
    %v3857 = vpack.c.b16 %v3633, %v3629
    %v3858 = vpack.c.b16 %v3634, %v3630
    %v3859 = vpack.c.b16 %v3635, %v3631
    %v3860 = vpack.c.b16 %v3636, %v3632
    %v3861 = vpack.c.b16 %v3641, %v3637
    %v3862 = vpack.c.b16 %v3642, %v3638
    %v3863 = vpack.c.b16 %v3643, %v3639
    %v3864 = vpack.c.b16 %v3644, %v3640
    %v3865 = vpack.c.b16 %v3649, %v3645
    %v3866 = vpack.c.b16 %v3650, %v3646
    %v3867 = vpack.c.b16 %v3651, %v3647
    %v3868 = vpack.c.b16 %v3652, %v3648
    %v3869 = vpack.c.b16 %v3657, %v3653
    %v3870 = vpack.c.b16 %v3658, %v3654
    %v3871 = vpack.c.b16 %v3659, %v3655
    %v3872 = vpack.c.b16 %v3660, %v3656
    %v3873 = vpack.c.b16 %v3665, %v3661
    %v3874 = vpack.c.b16 %v3666, %v3662
    %v3875 = vpack.c.b16 %v3667, %v3663
    %v3876 = vpack.c.b16 %v3668, %v3664
    %v3877 = vpack.c.b16 %v3673, %v3669
    %v3878 = vpack.c.b16 %v3674, %v3670
    %v3879 = vpack.c.b16 %v3675, %v3671
    %v3880 = vpack.c.b16 %v3676, %v3672
    %v3881 = vpack.c.b16 %v3681, %v3677
    %v3882 = vpack.c.b16 %v3682, %v3678
    %v3883 = vpack.c.b16 %v3683, %v3679
    %v3884 = vpack.c.b16 %v3684, %v3680
    %v3885 = vpack.c.b16 %v3689, %v3685
    %v3886 = vpack.c.b16 %v3690, %v3686
    %v3887 = vpack.c.b16 %v3691, %v3687
    %v3888 = vpack.c.b16 %v3692, %v3688
    %v3889 = vpack.c.b16 %v3697, %v3693
    %v3890 = vpack.c.b16 %v3698, %v3694
    %v3891 = vpack.c.b16 %v3699, %v3695
    %v3892 = vpack.c.b16 %v3700, %v3696
    %v3893 = vpack.c.b16 %v3705, %v3701
    %v3894 = vpack.c.b16 %v3706, %v3702
    %v3895 = vpack.c.b16 %v3707, %v3703
    %v3896 = vpack.c.b16 %v3708, %v3704
    %v3897 = vpack.c.b16 %v3713, %v3709
    %v3898 = vpack.c.b16 %v3714, %v3710
    %v3899 = vpack.c.b16 %v3715, %v3711
    %v3900 = vpack.c.b16 %v3716, %v3712
    %v3901 = vpack.c.b16 %v3721, %v3717
    %v3902 = vpack.c.b16 %v3722, %v3718
    %v3903 = vpack.c.b16 %v3723, %v3719
    %v3904 = vpack.c.b16 %v3724, %v3720
    %v3905 = vpack.c.b16 %v3729, %v3725
    %v3906 = vpack.c.b16 %v3730, %v3726
    %v3907 = vpack.c.b16 %v3731, %v3727
    %v3908 = vpack.c.b16 %v3732, %v3728
    %v3909 = vpack.c.b16 %v3737, %v3733
    %v3910 = vpack.c.b16 %v3738, %v3734
    %v3911 = vpack.c.b16 %v3739, %v3735
    %v3912 = vpack.c.b16 %v3740, %v3736
    %v3913 = vpack.c.b16 %v3745, %v3741
    %v3914 = vpack.c.b16 %v3746, %v3742
    %v3915 = vpack.c.b16 %v3747, %v3743
    %v3916 = vpack.c.b16 %v3748, %v3744
    %v3917 = vpack.c.b16 %v3753, %v3749
    %v3918 = vpack.c.b16 %v3754, %v3750
    %v3919 = vpack.c.b16 %v3755, %v3751
    %v3920 = vpack.c.b16 %v3756, %v3752
    %v3921 = vpack.c.b16 %v3761, %v3757
    %v3922 = vpack.c.b16 %v3762, %v3758
    %v3923 = vpack.c.b16 %v3763, %v3759
    %v3924 = vpack.c.b16 %v3764, %v3760
    %v3925 = vpack.c.b16 %v3769, %v3765
    %v3926 = vpack.c.b16 %v3770, %v3766
    %v3927 = vpack.c.b16 %v3771, %v3767
    %v3928 = vpack.c.b16 %v3772, %v3768
    %v3929 = vpack.c.b16 %v3777, %v3773
    %v3930 = vpack.c.b16 %v3778, %v3774
    %v3931 = vpack.c.b16 %v3779, %v3775
    %v3932 = vpack.c.b16 %v3780, %v3776
    %v3933 = vpack.c.b16 %v3785, %v3781
    %v3934 = vpack.c.b16 %v3786, %v3782
    %v3935 = vpack.c.b16 %v3787, %v3783
    %v3936 = vpack.c.b16 %v3788, %v3784
    %v3937 = vpack.c.b16 %v3793, %v3789
    %v3938 = vpack.c.b16 %v3794, %v3790
    %v3939 = vpack.c.b16 %v3795, %v3791
    %v3940 = vpack.c.b16 %v3796, %v3792
    %v3941 = vpack.c.b16 %v3801, %v3797
    %v3942 = vpack.c.b16 %v3802, %v3798
    %v3943 = vpack.c.b16 %v3803, %v3799
    %v3944 = vpack.c.b16 %v3804, %v3800
    %v3945 = vpack.c.b16 %v3809, %v3805
    %v3946 = vpack.c.b16 %v3810, %v3806
    %v3947 = vpack.c.b16 %v3811, %v3807
    %v3948 = vpack.c.b16 %v3812, %v3808
    %v3949 = vpack.c.b16 %v3817, %v3813
    %v3950 = vpack.c.b16 %v3818, %v3814
    %v3951 = vpack.c.b16 %v3819, %v3815
    %v3952 = vpack.c.b16 %v3820, %v3816
    %v3953 = vpack.c.b16 %v3825, %v3821
    %v3954 = vpack.c.b16 %v3826, %v3822
    %v3955 = vpack.c.b16 %v3827, %v3823
    %v3956 = vpack.c.b16 %v3828, %v3824
    %4085 = vmatprep.subr.bf16.mxu0 %v3858
    %4086 = vmatpush1.bf16.msra.mxu0 %v3857
    %4087 = vmatprep.subr.bf16.mxu0 %v3854
    %4088 = vmatpush1.bf16.msra.mxu0 %v3853
    %4089 = vmatprep.subr.bf16.mxu0 %v3850
    %4090 = vmatpush1.bf16.msra.mxu0 %v3849
    %4091 = vmatprep.subr.bf16.mxu0 %v3846
    %4092 = vmatpush1.bf16.msra.mxu0 %v3845
    %4093 = vmatprep.subr.bf16.mxu0 %v3842
    %4094 = vmatpush1.bf16.msra.mxu0 %v3841
    %4095 = vmatprep.subr.bf16.mxu0 %v3838
    %4096 = vmatpush1.bf16.msra.mxu0 %v3837
    %4097 = vmatprep.subr.bf16.mxu0 %v3834
    %4098 = vmatpush1.bf16.msra.mxu0 %v3833
    %4099 = vmatprep.subr.bf16.mxu0 %v3830
    %4100 = vmatpush1.bf16.msra.mxu0 %v3829
    %4101 = vmatprep.subr.bf16.mxu0 %v3890
    %4102 = vmatpush2.bf16.msra.mxu0 %v3889
    %4103 = vmatprep.subr.bf16.mxu0 %v3886
    %4104 = vmatpush2.bf16.msra.mxu0 %v3885
    %4105 = vmatprep.subr.bf16.mxu0 %v3882
    %4106 = vmatpush2.bf16.msra.mxu0 %v3881
    %4107 = vmatprep.subr.bf16.mxu0 %v3878
    %4108 = vmatpush2.bf16.msra.mxu0 %v3877
    %4109 = vmatprep.subr.bf16.mxu0 %v3874
    %4110 = vmatpush2.bf16.msra.mxu0 %v3873
    %4111 = vmatprep.subr.bf16.mxu0 %v3870
    %4112 = vmatpush2.bf16.msra.mxu0 %v3869
    %4113 = vmatprep.subr.bf16.mxu0 %v3866
    %4114 = vmatpush2.bf16.msra.mxu0 %v3865
    %4115 = vmatprep.subr.bf16.mxu0 %v3862
    %4116 = vmatpush2.bf16.msra.mxu0 %v3861
    %4117 = vmatprep.mubr.bf16.mxu0 %v3314
    %4118 = vmatmul.mubr.bf16.gmra.mxu0 %v3313
    %v4119 = vpop.f32.mrf.mxu0
    %v4120 = vadd.f32 0.0, %v4119
    %v4121 = vpop.f32.mrf.mxu0
    %v4122 = vadd.f32 0.0, %v4121
    %v4123 = vpop.f32.mrf.mxu0
    %v4124 = vpop.f32.mrf.mxu0
    %4125 = vdwg.mxu0
    %4126 = vmatprep.subr.bf16.mxu0 %v3922
    %4127 = vmatpush1.bf16.msra.mxu0 %v3921
    %4128 = vmatprep.subr.bf16.mxu0 %v3918
    %4129 = vmatpush1.bf16.msra.mxu0 %v3917
    %4130 = vmatprep.subr.bf16.mxu0 %v3914
    %4131 = vmatpush1.bf16.msra.mxu0 %v3913
    %4132 = vmatprep.subr.bf16.mxu0 %v3910
    %4133 = vmatpush1.bf16.msra.mxu0 %v3909
    %4134 = vmatprep.subr.bf16.mxu0 %v3906
    %4135 = vmatpush1.bf16.msra.mxu0 %v3905
    %4136 = vmatprep.subr.bf16.mxu0 %v3902
    %4137 = vmatpush1.bf16.msra.mxu0 %v3901
    %4138 = vmatprep.subr.bf16.mxu0 %v3898
    %4139 = vmatpush1.bf16.msra.mxu0 %v3897
    %4140 = vmatprep.subr.bf16.mxu0 %v3894
    %4141 = vmatpush1.bf16.msra.mxu0 %v3893
    %4142 = vmatprep.subr.bf16.mxu0 %v3954
    %4143 = vmatpush2.bf16.msra.mxu0 %v3953
    %4144 = vmatprep.subr.bf16.mxu0 %v3950
    %4145 = vmatpush2.bf16.msra.mxu0 %v3949
    %4146 = vmatprep.subr.bf16.mxu0 %v3946
    %4147 = vmatpush2.bf16.msra.mxu0 %v3945
    %4148 = vmatprep.subr.bf16.mxu0 %v3942
    %4149 = vmatpush2.bf16.msra.mxu0 %v3941
    %4150 = vmatprep.subr.bf16.mxu0 %v3938
    %4151 = vmatpush2.bf16.msra.mxu0 %v3937
    %4152 = vmatprep.subr.bf16.mxu0 %v3934
    %4153 = vmatpush2.bf16.msra.mxu0 %v3933
    %4154 = vmatprep.subr.bf16.mxu0 %v3930
    %4155 = vmatpush2.bf16.msra.mxu0 %v3929
    %4156 = vmatprep.subr.bf16.mxu0 %v3926
    %4157 = vmatpush2.bf16.msra.mxu0 %v3925
    %4158 = vmatprep.mubr.bf16.mxu0 %v3316
    %4159 = vmatmul.mubr.bf16.gmra.mxu0 %v3315
    %v4160 = vpop.f32.mrf.mxu0
    %v4161 = vadd.f32 %v4120, %v4160
    %v4162 = vpop.f32.mrf.mxu0
    %v4163 = vadd.f32 %v4122, %v4162
    %v4164 = vpop.f32.mrf.mxu0
    %v4165 = vpop.f32.mrf.mxu0
    %4166 = vdwg.mxu0
    %4167 = vmatprep.subr.bf16.mxu0 %v3860
    %4168 = vmatpush1.bf16.msra.mxu0 %v3859
    %4169 = vmatprep.subr.bf16.mxu0 %v3856
    %4170 = vmatpush1.bf16.msra.mxu0 %v3855
    %4171 = vmatprep.subr.bf16.mxu0 %v3852
    %4172 = vmatpush1.bf16.msra.mxu0 %v3851
    %4173 = vmatprep.subr.bf16.mxu0 %v3848
    %4174 = vmatpush1.bf16.msra.mxu0 %v3847
    %4175 = vmatprep.subr.bf16.mxu0 %v3844
    %4176 = vmatpush1.bf16.msra.mxu0 %v3843
    %4177 = vmatprep.subr.bf16.mxu0 %v3840
    %4178 = vmatpush1.bf16.msra.mxu0 %v3839
    %4179 = vmatprep.subr.bf16.mxu0 %v3836
    %4180 = vmatpush1.bf16.msra.mxu0 %v3835
    %4181 = vmatprep.subr.bf16.mxu0 %v3832
    %4182 = vmatpush1.bf16.msra.mxu0 %v3831
    %4183 = vmatprep.subr.bf16.mxu0 %v3892
    %4184 = vmatpush2.bf16.msra.mxu0 %v3891
    %4185 = vmatprep.subr.bf16.mxu0 %v3888
    %4186 = vmatpush2.bf16.msra.mxu0 %v3887
    %4187 = vmatprep.subr.bf16.mxu0 %v3884
    %4188 = vmatpush2.bf16.msra.mxu0 %v3883
    %4189 = vmatprep.subr.bf16.mxu0 %v3880
    %4190 = vmatpush2.bf16.msra.mxu0 %v3879
    %4191 = vmatprep.subr.bf16.mxu0 %v3876
    %4192 = vmatpush2.bf16.msra.mxu0 %v3875
    %4193 = vmatprep.subr.bf16.mxu0 %v3872
    %4194 = vmatpush2.bf16.msra.mxu0 %v3871
    %4195 = vmatprep.subr.bf16.mxu0 %v3868
    %4196 = vmatpush2.bf16.msra.mxu0 %v3867
    %4197 = vmatprep.subr.bf16.mxu0 %v3864
    %4198 = vmatpush2.bf16.msra.mxu0 %v3863
    %4199 = vmatprep.mubr.bf16.mxu0 %v3314
    %4200 = vmatmul.mubr.bf16.gmra.mxu0 %v3313
    %v4201 = vpop.f32.mrf.mxu0
    %v4202 = vadd.f32 0.0, %v4201
    %v4203 = vpop.f32.mrf.mxu0
    %v4204 = vadd.f32 0.0, %v4203
    %v4205 = vpop.f32.mrf.mxu0
    %v4206 = vpop.f32.mrf.mxu0
    %4207 = vdwg.mxu0
    %4208 = vmatprep.subr.bf16.mxu0 %v3924
    %4209 = vmatpush1.bf16.msra.mxu0 %v3923
    %4210 = vmatprep.subr.bf16.mxu0 %v3920
    %4211 = vmatpush1.bf16.msra.mxu0 %v3919
    %4212 = vmatprep.subr.bf16.mxu0 %v3916
    %4213 = vmatpush1.bf16.msra.mxu0 %v3915
    %4214 = vmatprep.subr.bf16.mxu0 %v3912
    %4215 = vmatpush1.bf16.msra.mxu0 %v3911
    %4216 = vmatprep.subr.bf16.mxu0 %v3908
    %4217 = vmatpush1.bf16.msra.mxu0 %v3907
    %4218 = vmatprep.subr.bf16.mxu0 %v3904
    %4219 = vmatpush1.bf16.msra.mxu0 %v3903
    %4220 = vmatprep.subr.bf16.mxu0 %v3900
    %4221 = vmatpush1.bf16.msra.mxu0 %v3899
    %4222 = vmatprep.subr.bf16.mxu0 %v3896
    %4223 = vmatpush1.bf16.msra.mxu0 %v3895
    %4224 = vmatprep.subr.bf16.mxu0 %v3956
    %4225 = vmatpush2.bf16.msra.mxu0 %v3955
    %4226 = vmatprep.subr.bf16.mxu0 %v3952
    %4227 = vmatpush2.bf16.msra.mxu0 %v3951
    %4228 = vmatprep.subr.bf16.mxu0 %v3948
    %4229 = vmatpush2.bf16.msra.mxu0 %v3947
    %4230 = vmatprep.subr.bf16.mxu0 %v3944
    %4231 = vmatpush2.bf16.msra.mxu0 %v3943
    %4232 = vmatprep.subr.bf16.mxu0 %v3940
    %4233 = vmatpush2.bf16.msra.mxu0 %v3939
    %4234 = vmatprep.subr.bf16.mxu0 %v3936
    %4235 = vmatpush2.bf16.msra.mxu0 %v3935
    %4236 = vmatprep.subr.bf16.mxu0 %v3932
    %4237 = vmatpush2.bf16.msra.mxu0 %v3931
    %4238 = vmatprep.subr.bf16.mxu0 %v3928
    %4239 = vmatpush2.bf16.msra.mxu0 %v3927
    %4240 = vmatprep.mubr.bf16.mxu0 %v3316
    %4241 = vmatmul.mubr.bf16.gmra.mxu0 %v3315
    %v4242 = vpop.f32.mrf.mxu0
    %v4243 = vadd.f32 %v4202, %v4242
    %v4244 = vpop.f32.mrf.mxu0
    %v4245 = vadd.f32 %v4204, %v4244
    %v4246 = vpop.f32.mrf.mxu0
    %v4247 = vpop.f32.mrf.mxu0
    %4248 = vdwg.mxu0
    %v4249 = vadd.f32 %v3148, %v4161
    %v4250 = vadd.f32 %v3154, %v4163
    %v4251 = vadd.f32 %v3160, %v4243
    %v4252 = vadd.f32 %v3166, %v4245
    %v4253 = vpack.c.bf16 %v3305, %v3305
    %v4254 = vpack.c.bf16 %v3312, %v3312
    %v4255 = vld [vmem:[#allocation11] sm:$0xff]
    %v4256 = vld [vmem:[#allocation11 + $0x8] sm:$0xff]
    %v4257 = vld [vmem:[#allocation11 + $0x10] sm:$0xff]
    %v4258 = vld [vmem:[#allocation11 + $0x18] sm:$0xff]
    %v4259 = vld [vmem:[#allocation11 + $0x20] sm:$0xff]
    %v4260 = vld [vmem:[#allocation11 + $0x28] sm:$0xff]
    %v4261 = vld [vmem:[#allocation11 + $0x30] sm:$0xff]
    %v4262 = vld [vmem:[#allocation11 + $0x38] sm:$0xff]
    %v4263 = vld [vmem:[#allocation11 + $0x40] sm:$0xff]
    %v4264 = vld [vmem:[#allocation11 + $0x48] sm:$0xff]
    %v4265 = vld [vmem:[#allocation11 + $0x50] sm:$0xff]
    %v4266 = vld [vmem:[#allocation11 + $0x58] sm:$0xff]
    %v4267 = vld [vmem:[#allocation11 + $0x60] sm:$0xff]
    %v4268 = vld [vmem:[#allocation11 + $0x68] sm:$0xff]
    %v4269 = vld [vmem:[#allocation11 + $0x70] sm:$0xff]
    %v4270 = vld [vmem:[#allocation11 + $0x78] sm:$0xff]
    %v4271 = vld [vmem:[#allocation11 + $0x80] sm:$0xff]
    %v4272 = vld [vmem:[#allocation11 + $0x88] sm:$0xff]
    %v4273 = vld [vmem:[#allocation11 + $0x90] sm:$0xff]
    %v4274 = vld [vmem:[#allocation11 + $0x98] sm:$0xff]
    %v4275 = vld [vmem:[#allocation11 + $0xa0] sm:$0xff]
    %v4276 = vld [vmem:[#allocation11 + $0xa8] sm:$0xff]
    %v4277 = vld [vmem:[#allocation11 + $0xb0] sm:$0xff]
    %v4278 = vld [vmem:[#allocation11 + $0xb8] sm:$0xff]
    %v4279 = vld [vmem:[#allocation11 + $0xc0] sm:$0xff]
    %v4280 = vld [vmem:[#allocation11 + $0xc8] sm:$0xff]
    %v4281 = vld [vmem:[#allocation11 + $0xd0] sm:$0xff]
    %v4282 = vld [vmem:[#allocation11 + $0xd8] sm:$0xff]
    %v4283 = vld [vmem:[#allocation11 + $0xe0] sm:$0xff]
    %v4284 = vld [vmem:[#allocation11 + $0xe8] sm:$0xff]
    %v4285 = vld [vmem:[#allocation11 + $0xf0] sm:$0xff]
    %v4286 = vld [vmem:[#allocation11 + $0xf8] sm:$0xff]
    %v4287 = vld [vmem:[#allocation11 + $0x100] sm:$0xff]
    %v4288 = vld [vmem:[#allocation11 + $0x108] sm:$0xff]
    %v4289 = vld [vmem:[#allocation11 + $0x110] sm:$0xff]
    %v4290 = vld [vmem:[#allocation11 + $0x118] sm:$0xff]
    %v4291 = vld [vmem:[#allocation11 + $0x120] sm:$0xff]
    %v4292 = vld [vmem:[#allocation11 + $0x128] sm:$0xff]
    %v4293 = vld [vmem:[#allocation11 + $0x130] sm:$0xff]
    %v4294 = vld [vmem:[#allocation11 + $0x138] sm:$0xff]
    %v4295 = vld [vmem:[#allocation11 + $0x140] sm:$0xff]
    %v4296 = vld [vmem:[#allocation11 + $0x148] sm:$0xff]
    %v4297 = vld [vmem:[#allocation11 + $0x150] sm:$0xff]
    %v4298 = vld [vmem:[#allocation11 + $0x158] sm:$0xff]
    %v4299 = vld [vmem:[#allocation11 + $0x160] sm:$0xff]
    %v4300 = vld [vmem:[#allocation11 + $0x168] sm:$0xff]
    %v4301 = vld [vmem:[#allocation11 + $0x170] sm:$0xff]
    %v4302 = vld [vmem:[#allocation11 + $0x178] sm:$0xff]
    %v4351 = vunpack.c.l.b16 %v4255
    %v4352 = vunpack.c.h.b16 %v4255
    %v4353 = vunpack.c.l.b16 %v4256
    %v4354 = vunpack.c.h.b16 %v4256
    %v4355 = vunpack.c.l.b16 %v4257
    %v4356 = vunpack.c.h.b16 %v4257
    %v4357 = vunpack.c.l.b16 %v4258
    %v4358 = vunpack.c.h.b16 %v4258
    %v4359 = vunpack.c.l.b16 %v4259
    %v4360 = vunpack.c.h.b16 %v4259
    %v4361 = vunpack.c.l.b16 %v4260
    %v4362 = vunpack.c.h.b16 %v4260
    %v4363 = vunpack.c.l.b16 %v4261
    %v4364 = vunpack.c.h.b16 %v4261
    %v4365 = vunpack.c.l.b16 %v4262
    %v4366 = vunpack.c.h.b16 %v4262
    %v4367 = vunpack.c.l.b16 %v4263
    %v4368 = vunpack.c.h.b16 %v4263
    %v4369 = vunpack.c.l.b16 %v4264
    %v4370 = vunpack.c.h.b16 %v4264
    %v4371 = vunpack.c.l.b16 %v4265
    %v4372 = vunpack.c.h.b16 %v4265
    %v4373 = vunpack.c.l.b16 %v4266
    %v4374 = vunpack.c.h.b16 %v4266
    %v4375 = vunpack.c.l.b16 %v4267
    %v4376 = vunpack.c.h.b16 %v4267
    %v4377 = vunpack.c.l.b16 %v4268
    %v4378 = vunpack.c.h.b16 %v4268
    %v4379 = vunpack.c.l.b16 %v4269
    %v4380 = vunpack.c.h.b16 %v4269
    %v4381 = vunpack.c.l.b16 %v4270
    %v4382 = vunpack.c.h.b16 %v4270
    %v4383 = vunpack.c.l.b16 %v4271
    %v4384 = vunpack.c.h.b16 %v4271
    %v4385 = vunpack.c.l.b16 %v4272
    %v4386 = vunpack.c.h.b16 %v4272
    %v4387 = vunpack.c.l.b16 %v4273
    %v4388 = vunpack.c.h.b16 %v4273
    %v4389 = vunpack.c.l.b16 %v4274
    %v4390 = vunpack.c.h.b16 %v4274
    %v4391 = vunpack.c.l.b16 %v4275
    %v4392 = vunpack.c.h.b16 %v4275
    %v4393 = vunpack.c.l.b16 %v4276
    %v4394 = vunpack.c.h.b16 %v4276
    %v4395 = vunpack.c.l.b16 %v4277
    %v4396 = vunpack.c.h.b16 %v4277
    %v4397 = vunpack.c.l.b16 %v4278
    %v4398 = vunpack.c.h.b16 %v4278
    %v4399 = vunpack.c.l.b16 %v4279
    %v4400 = vunpack.c.h.b16 %v4279
    %v4401 = vunpack.c.l.b16 %v4280
    %v4402 = vunpack.c.h.b16 %v4280
    %v4403 = vunpack.c.l.b16 %v4281
    %v4404 = vunpack.c.h.b16 %v4281
    %v4405 = vunpack.c.l.b16 %v4282
    %v4406 = vunpack.c.h.b16 %v4282
    %v4407 = vunpack.c.l.b16 %v4283
    %v4408 = vunpack.c.h.b16 %v4283
    %v4409 = vunpack.c.l.b16 %v4284
    %v4410 = vunpack.c.h.b16 %v4284
    %v4411 = vunpack.c.l.b16 %v4285
    %v4412 = vunpack.c.h.b16 %v4285
    %v4413 = vunpack.c.l.b16 %v4286
    %v4414 = vunpack.c.h.b16 %v4286
    %v4415 = vunpack.c.l.b16 %v4287
    %v4416 = vunpack.c.h.b16 %v4287
    %v4417 = vunpack.c.l.b16 %v4288
    %v4418 = vunpack.c.h.b16 %v4288
    %v4419 = vunpack.c.l.b16 %v4289
    %v4420 = vunpack.c.h.b16 %v4289
    %v4421 = vunpack.c.l.b16 %v4290
    %v4422 = vunpack.c.h.b16 %v4290
    %v4423 = vunpack.c.l.b16 %v4291
    %v4424 = vunpack.c.h.b16 %v4291
    %v4425 = vunpack.c.l.b16 %v4292
    %v4426 = vunpack.c.h.b16 %v4292
    %v4427 = vunpack.c.l.b16 %v4293
    %v4428 = vunpack.c.h.b16 %v4293
    %v4429 = vunpack.c.l.b16 %v4294
    %v4430 = vunpack.c.h.b16 %v4294
    %v4431 = vunpack.c.l.b16 %v4295
    %v4432 = vunpack.c.h.b16 %v4295
    %v4433 = vunpack.c.l.b16 %v4296
    %v4434 = vunpack.c.h.b16 %v4296
    %v4435 = vunpack.c.l.b16 %v4297
    %v4436 = vunpack.c.h.b16 %v4297
    %v4437 = vunpack.c.l.b16 %v4298
    %v4438 = vunpack.c.h.b16 %v4298
    %v4439 = vunpack.c.l.b16 %v4299
    %v4440 = vunpack.c.h.b16 %v4299
    %v4441 = vunpack.c.l.b16 %v4300
    %v4442 = vunpack.c.h.b16 %v4300
    %v4443 = vunpack.c.l.b16 %v4301
    %v4444 = vunpack.c.h.b16 %v4301
    %v4445 = vunpack.c.l.b16 %v4302
    %v4446 = vunpack.c.h.b16 %v4302
    %v4447 = vpack.c.b16 %v4355, %v4351
    %v4448 = vpack.c.b16 %v4356, %v4352
    %v4449 = vpack.c.b16 %v4357, %v4353
    %v4450 = vpack.c.b16 %v4358, %v4354
    %v4451 = vpack.c.b16 %v4363, %v4359
    %v4452 = vpack.c.b16 %v4364, %v4360
    %v4453 = vpack.c.b16 %v4365, %v4361
    %v4454 = vpack.c.b16 %v4366, %v4362
    %v4455 = vpack.c.b16 %v4371, %v4367
    %v4456 = vpack.c.b16 %v4372, %v4368
    %v4457 = vpack.c.b16 %v4373, %v4369
    %v4458 = vpack.c.b16 %v4374, %v4370
    %v4459 = vpack.c.b16 %v4379, %v4375
    %v4460 = vpack.c.b16 %v4380, %v4376
    %v4461 = vpack.c.b16 %v4381, %v4377
    %v4462 = vpack.c.b16 %v4382, %v4378
    %v4463 = vpack.c.b16 %v4387, %v4383
    %v4464 = vpack.c.b16 %v4388, %v4384
    %v4465 = vpack.c.b16 %v4389, %v4385
    %v4466 = vpack.c.b16 %v4390, %v4386
    %v4467 = vpack.c.b16 %v4395, %v4391
    %v4468 = vpack.c.b16 %v4396, %v4392
    %v4469 = vpack.c.b16 %v4397, %v4393
    %v4470 = vpack.c.b16 %v4398, %v4394
    %v4471 = vpack.c.b16 %v4403, %v4399
    %v4472 = vpack.c.b16 %v4404, %v4400
    %v4473 = vpack.c.b16 %v4405, %v4401
    %v4474 = vpack.c.b16 %v4406, %v4402
    %v4475 = vpack.c.b16 %v4411, %v4407
    %v4476 = vpack.c.b16 %v4412, %v4408
    %v4477 = vpack.c.b16 %v4413, %v4409
    %v4478 = vpack.c.b16 %v4414, %v4410
    %v4479 = vpack.c.b16 %v4419, %v4415
    %v4480 = vpack.c.b16 %v4420, %v4416
    %v4481 = vpack.c.b16 %v4421, %v4417
    %v4482 = vpack.c.b16 %v4422, %v4418
    %v4483 = vpack.c.b16 %v4427, %v4423
    %v4484 = vpack.c.b16 %v4428, %v4424
    %v4485 = vpack.c.b16 %v4429, %v4425
    %v4486 = vpack.c.b16 %v4430, %v4426
    %v4487 = vpack.c.b16 %v4435, %v4431
    %v4488 = vpack.c.b16 %v4436, %v4432
    %v4489 = vpack.c.b16 %v4437, %v4433
    %v4490 = vpack.c.b16 %v4438, %v4434
    %v4491 = vpack.c.b16 %v4443, %v4439
    %v4492 = vpack.c.b16 %v4444, %v4440
    %v4493 = vpack.c.b16 %v4445, %v4441
    %v4494 = vpack.c.b16 %v4446, %v4442
    %v4544 = vsel %vm624, %v4254, 0
    %4546 = vmatprep.subr.bf16.mxu0 %v4476
    %4547 = vmatpush1.bf16.msra.mxu0 %v4475
    %4548 = vmatprep.subr.bf16.mxu0 %v4472
    %4549 = vmatpush1.bf16.msra.mxu0 %v4471
    %4550 = vmatprep.subr.bf16.mxu0 %v4468
    %4551 = vmatpush1.bf16.msra.mxu0 %v4467
    %4552 = vmatprep.subr.bf16.mxu0 %v4464
    %4553 = vmatpush1.bf16.msra.mxu0 %v4463
    %4554 = vmatprep.subr.bf16.mxu0 %v4460
    %4555 = vmatpush1.bf16.msra.mxu0 %v4459
    %4556 = vmatprep.subr.bf16.mxu0 %v4456
    %4557 = vmatpush1.bf16.msra.mxu0 %v4455
    %4558 = vmatprep.subr.bf16.mxu0 %v4452
    %4559 = vmatpush1.bf16.msra.mxu0 %v4451
    %4560 = vmatprep.subr.bf16.mxu0 %v4448
    %4561 = vmatpush1.bf16.msra.mxu0 %v4447
    %4562 = vmatprep.subr.bf16.mxu0 0
    %4563 = vmatpush2.bf16.msra.mxu0 0
    %4564 = vmatprep.subr.bf16.mxu0 0
    %4565 = vmatpush2.bf16.msra.mxu0 0
    %4566 = vmatprep.subr.bf16.mxu0 0
    %4567 = vmatpush2.bf16.msra.mxu0 0
    %4568 = vmatprep.subr.bf16.mxu0 0
    %4569 = vmatpush2.bf16.msra.mxu0 0
    %4570 = vmatprep.subr.bf16.mxu0 %v4492
    %4571 = vmatpush2.bf16.msra.mxu0 %v4491
    %4572 = vmatprep.subr.bf16.mxu0 %v4488
    %4573 = vmatpush2.bf16.msra.mxu0 %v4487
    %4574 = vmatprep.subr.bf16.mxu0 %v4484
    %4575 = vmatpush2.bf16.msra.mxu0 %v4483
    %4576 = vmatprep.subr.bf16.mxu0 %v4480
    %4577 = vmatpush2.bf16.msra.mxu0 %v4479
    %4578 = vmatprep.mubr.bf16.mxu0 %v4544
    %4579 = vmatmul.mubr.bf16.gmra.mxu0 %v4253
    %v4580 = vpop.f32.mrf.mxu0
    %v4581 = vadd.f32 0.0, %v4580
    %v4582 = vpop.f32.mrf.mxu0
    %v4583 = vadd.f32 0.0, %v4582
    %v4584 = vpop.f32.mrf.mxu0
    %v4585 = vpop.f32.mrf.mxu0
    %4586 = vdwg.mxu0
    %4587 = vmatprep.subr.bf16.mxu0 %v4478
    %4588 = vmatpush1.bf16.msra.mxu0 %v4477
    %4589 = vmatprep.subr.bf16.mxu0 %v4474
    %4590 = vmatpush1.bf16.msra.mxu0 %v4473
    %4591 = vmatprep.subr.bf16.mxu0 %v4470
    %4592 = vmatpush1.bf16.msra.mxu0 %v4469
    %4593 = vmatprep.subr.bf16.mxu0 %v4466
    %4594 = vmatpush1.bf16.msra.mxu0 %v4465
    %4595 = vmatprep.subr.bf16.mxu0 %v4462
    %4596 = vmatpush1.bf16.msra.mxu0 %v4461
    %4597 = vmatprep.subr.bf16.mxu0 %v4458
    %4598 = vmatpush1.bf16.msra.mxu0 %v4457
    %4599 = vmatprep.subr.bf16.mxu0 %v4454
    %4600 = vmatpush1.bf16.msra.mxu0 %v4453
    %4601 = vmatprep.subr.bf16.mxu0 %v4450
    %4602 = vmatpush1.bf16.msra.mxu0 %v4449
    %4603 = vmatprep.subr.bf16.mxu0 0
    %4604 = vmatpush2.bf16.msra.mxu0 0
    %4605 = vmatprep.subr.bf16.mxu0 0
    %4606 = vmatpush2.bf16.msra.mxu0 0
    %4607 = vmatprep.subr.bf16.mxu0 0
    %4608 = vmatpush2.bf16.msra.mxu0 0
    %4609 = vmatprep.subr.bf16.mxu0 0
    %4610 = vmatpush2.bf16.msra.mxu0 0
    %4611 = vmatprep.subr.bf16.mxu0 %v4494
    %4612 = vmatpush2.bf16.msra.mxu0 %v4493
    %4613 = vmatprep.subr.bf16.mxu0 %v4490
    %4614 = vmatpush2.bf16.msra.mxu0 %v4489
    %4615 = vmatprep.subr.bf16.mxu0 %v4486
    %4616 = vmatpush2.bf16.msra.mxu0 %v4485
    %4617 = vmatprep.subr.bf16.mxu0 %v4482
    %4618 = vmatpush2.bf16.msra.mxu0 %v4481
    %4619 = vmatprep.mubr.bf16.mxu0 %v4544
    %4620 = vmatmul.mubr.bf16.gmra.mxu0 %v4253
    %v4621 = vpop.f32.mrf.mxu0
    %v4622 = vadd.f32 0.0, %v4621
    %v4623 = vpop.f32.mrf.mxu0
    %v4624 = vadd.f32 0.0, %v4623
    %v4625 = vpop.f32.mrf.mxu0
    %v4626 = vpop.f32.mrf.mxu0
    %4627 = vdwg.mxu0
    %v4628 = vadd.f32 %v4249, %v4581
    %v4629 = vadd.f32 %v4250, %v4583
    %v4630 = vadd.f32 %v4251, %v4622
    %v4631 = vadd.f32 %v4252, %v4624
    %v4632 = vld [vmem:[#allocation12] sm:$0xf]
    %v4634 = vlaneseq
    %v4635 = vshrl.u32 %v4634, 7
    %v4636 = vsub.s32 0, %v4635
    %v4637 = vrot.slane %v4632, %v4636
    %v4638 = vlaneseq
    %v4639 = vshrl.u32 %v4638, 7
    %v4640 = vsub.s32 1, %v4639
    %v4641 = vrot.slane %v4632, %v4640
    %v4642 = vlaneseq
    %v4643 = vshrl.u32 %v4642, 7
    %v4644 = vsub.s32 2, %v4643
    %v4645 = vrot.slane %v4632, %v4644
    %v4646 = vlaneseq
    %v4647 = vshrl.u32 %v4646, 7
    %v4648 = vsub.s32 3, %v4647
    %v4649 = vrot.slane %v4632, %v4648
    %v4654 = vadd.f32 %v4628, %v4637
    %v4655 = vadd.f32 %v4629, %v4641
    %v4656 = vadd.f32 %v4630, %v4645
    %v4657 = vadd.f32 %v4631, %v4649
    %v4662 = vcombine.low %v4654, %v4655
    %v4663 = vcombine.low %v4656, %v4657
    %v4665 = vunpack.c.l.s4 1966171168
    %v4666 = vunpack.c.0.s8 %v4665
    %v4667 = vlaneseq
    %v4668 = vshrl.u32 %v4667, 7
    %v4669 = vsub.s32 %v4666, %v4668
    %v4670 = vrot.slane %v4662, %v4669
    %v4672 = vunpack.c.l.s4 1966171168
    %v4673 = vunpack.c.0.s8 %v4672
    %v4674 = vlaneseq
    %v4675 = vshrl.u32 %v4674, 7
    %v4676 = vsub.s32 %v4673, %v4675
    %v4677 = vrot.slane %v4663, %v4676
    %v4678 = vcombine.low %v4670, %v4677
    %v4680 = vunpack.c.l.s4 1966171168
    %v4681 = vunpack.c.0.s8 %v4680
    %v4682 = vlaneseq
    %v4683 = vshrl.u32 %v4682, 7
    %v4684 = vsub.s32 %v4681, %v4683
    %v4685 = vrot.slane %v4678, %v4684
    %v4687 = vlaneseq
    %vm4688 = vcmp.ge.s32.totalorder %v4687, 0
    %vm4689 = vcmp.lt.s32.totalorder %v4687, 512
    %vm4690 = vmand %vm4688, %vm4689
    %4691 = vst.msk [vmem:[#allocation14] ss:$2 sm:$0xf] %vm4690, %v4685
    %s4692 = scalar_lea.vmem %s0, 16
    %v4693 = vld [vmem:[%s4692] sm:$0xff]
    %v4694 = vld [vmem:[%s4692 + $0x8] sm:$0xff]
    %s4695 = scalar_lea.vmem %s1, 8
    %v4696 = vld [vmem:[%s4695] sm:$0xff]
    %v4697 = vunpack.c.l.bf16 %v4693
    %v4698 = vunpack.c.h.bf16 %v4693
    %v4699 = vunpack.c.l.bf16 %v4694
    %v4700 = vunpack.c.h.bf16 %v4694
    %v4701 = vunpack.c.l.bf16 %v4696
    %v4702 = vunpack.c.h.bf16 %v4696
    %v4703 = vld [vmem:[%s2] sm:$0xff]
    %v4704 = vld [vmem:[%s2 + $0x8] sm:$0xff]
    %v4705 = vld [vmem:[%s2 + $0x10] sm:$0xff]
    %v4706 = vld [vmem:[%s2 + $0x18] sm:$0xff]
    %v4707 = vld [vmem:[%s2 + $0x20] sm:$0xff]
    %v4708 = vld [vmem:[%s2 + $0x28] sm:$0xff]
    %v4709 = vld [vmem:[%s2 + $0x30] sm:$0xff]
    %v4710 = vld [vmem:[%s2 + $0x38] sm:$0xff]
    %v4711 = vld [vmem:[%s2 + $0x40] sm:$0xff]
    %v4712 = vld [vmem:[%s2 + $0x48] sm:$0xff]
    %v4713 = vld [vmem:[%s2 + $0x50] sm:$0xff]
    %v4714 = vld [vmem:[%s2 + $0x58] sm:$0xff]
    %v4715 = vld [vmem:[%s2 + $0x60] sm:$0xff]
    %v4716 = vld [vmem:[%s2 + $0x68] sm:$0xff]
    %v4717 = vld [vmem:[%s2 + $0x70] sm:$0xff]
    %v4718 = vld [vmem:[%s2 + $0x78] sm:$0xff]
    %v4719 = vld [vmem:[%s2 + $0x80] sm:$0xff]
    %v4720 = vld [vmem:[%s2 + $0x88] sm:$0xff]
    %v4721 = vld [vmem:[%s2 + $0x90] sm:$0xff]
    %v4722 = vld [vmem:[%s2 + $0x98] sm:$0xff]
    %v4723 = vld [vmem:[%s2 + $0xa0] sm:$0xff]
    %v4724 = vld [vmem:[%s2 + $0xa8] sm:$0xff]
    %v4725 = vld [vmem:[%s2 + $0xb0] sm:$0xff]
    %v4726 = vld [vmem:[%s2 + $0xb8] sm:$0xff]
    %v4727 = vld [vmem:[%s2 + $0xc0] sm:$0xff]
    %v4728 = vld [vmem:[%s2 + $0xc8] sm:$0xff]
    %v4729 = vld [vmem:[%s2 + $0xd0] sm:$0xff]
    %v4730 = vld [vmem:[%s2 + $0xd8] sm:$0xff]
    %v4731 = vld [vmem:[%s2 + $0xe0] sm:$0xff]
    %v4732 = vld [vmem:[%s2 + $0xe8] sm:$0xff]
    %v4733 = vld [vmem:[%s2 + $0xf0] sm:$0xff]
    %v4734 = vld [vmem:[%s2 + $0xf8] sm:$0xff]
    %v4735 = vld [vmem:[%s2 + $0x100] sm:$0xff]
    %v4736 = vld [vmem:[%s2 + $0x108] sm:$0xff]
    %v4737 = vld [vmem:[%s2 + $0x110] sm:$0xff]
    %v4738 = vld [vmem:[%s2 + $0x118] sm:$0xff]
    %v4739 = vld [vmem:[%s2 + $0x120] sm:$0xff]
    %v4740 = vld [vmem:[%s2 + $0x128] sm:$0xff]
    %v4741 = vld [vmem:[%s2 + $0x130] sm:$0xff]
    %v4742 = vld [vmem:[%s2 + $0x138] sm:$0xff]
    %v4743 = vld [vmem:[%s2 + $0x140] sm:$0xff]
    %v4744 = vld [vmem:[%s2 + $0x148] sm:$0xff]
    %v4745 = vld [vmem:[%s2 + $0x150] sm:$0xff]
    %v4746 = vld [vmem:[%s2 + $0x158] sm:$0xff]
    %v4747 = vld [vmem:[%s2 + $0x160] sm:$0xff]
    %v4748 = vld [vmem:[%s2 + $0x168] sm:$0xff]
    %v4749 = vld [vmem:[%s2 + $0x170] sm:$0xff]
    %v4750 = vld [vmem:[%s2 + $0x178] sm:$0xff]
    %v4751 = vld [vmem:[%s2 + $0x180] sm:$0xff]
    %v4752 = vld [vmem:[%s2 + $0x188] sm:$0xff]
    %v4753 = vld [vmem:[%s2 + $0x190] sm:$0xff]
    %v4754 = vld [vmem:[%s2 + $0x198] sm:$0xff]
    %v4755 = vld [vmem:[%s2 + $0x1a0] sm:$0xff]
    %v4756 = vld [vmem:[%s2 + $0x1a8] sm:$0xff]
    %v4757 = vld [vmem:[%s2 + $0x1b0] sm:$0xff]
    %v4758 = vld [vmem:[%s2 + $0x1b8] sm:$0xff]
    %v4759 = vld [vmem:[%s2 + $0x1c0] sm:$0xff]
    %v4760 = vld [vmem:[%s2 + $0x1c8] sm:$0xff]
    %v4761 = vld [vmem:[%s2 + $0x1d0] sm:$0xff]
    %v4762 = vld [vmem:[%s2 + $0x1d8] sm:$0xff]
    %v4763 = vld [vmem:[%s2 + $0x1e0] sm:$0xff]
    %v4764 = vld [vmem:[%s2 + $0x1e8] sm:$0xff]
    %v4765 = vld [vmem:[%s2 + $0x1f0] sm:$0xff]
    %v4766 = vld [vmem:[%s2 + $0x1f8] sm:$0xff]
    %v4769 = vunpack.c.l.b16 %v4693
    %v4770 = vunpack.c.h.b16 %v4693
    %v4771 = vunpack.c.l.b16 %v4694
    %v4772 = vunpack.c.h.b16 %v4694
    %v4773 = vpack.c.b16 %v4769, %v4769
    %v4774 = vpack.c.b16 %v4770, %v4770
    %v4775 = vpack.c.b16 %v4771, %v4771
    %v4776 = vpack.c.b16 %v4772, %v4772
    %v4845 = vunpack.c.l.b16 %v4703
    %v4846 = vunpack.c.h.b16 %v4703
    %v4847 = vunpack.c.l.b16 %v4704
    %v4848 = vunpack.c.h.b16 %v4704
    %v4849 = vunpack.c.l.b16 %v4705
    %v4850 = vunpack.c.h.b16 %v4705
    %v4851 = vunpack.c.l.b16 %v4706
    %v4852 = vunpack.c.h.b16 %v4706
    %v4853 = vunpack.c.l.b16 %v4707
    %v4854 = vunpack.c.h.b16 %v4707
    %v4855 = vunpack.c.l.b16 %v4708
    %v4856 = vunpack.c.h.b16 %v4708
    %v4857 = vunpack.c.l.b16 %v4709
    %v4858 = vunpack.c.h.b16 %v4709
    %v4859 = vunpack.c.l.b16 %v4710
    %v4860 = vunpack.c.h.b16 %v4710
    %v4861 = vunpack.c.l.b16 %v4711
    %v4862 = vunpack.c.h.b16 %v4711
    %v4863 = vunpack.c.l.b16 %v4712
    %v4864 = vunpack.c.h.b16 %v4712
    %v4865 = vunpack.c.l.b16 %v4713
    %v4866 = vunpack.c.h.b16 %v4713
    %v4867 = vunpack.c.l.b16 %v4714
    %v4868 = vunpack.c.h.b16 %v4714
    %v4869 = vunpack.c.l.b16 %v4715
    %v4870 = vunpack.c.h.b16 %v4715
    %v4871 = vunpack.c.l.b16 %v4716
    %v4872 = vunpack.c.h.b16 %v4716
    %v4873 = vunpack.c.l.b16 %v4717
    %v4874 = vunpack.c.h.b16 %v4717
    %v4875 = vunpack.c.l.b16 %v4718
    %v4876 = vunpack.c.h.b16 %v4718
    %v4877 = vunpack.c.l.b16 %v4719
    %v4878 = vunpack.c.h.b16 %v4719
    %v4879 = vunpack.c.l.b16 %v4720
    %v4880 = vunpack.c.h.b16 %v4720
    %v4881 = vunpack.c.l.b16 %v4721
    %v4882 = vunpack.c.h.b16 %v4721
    %v4883 = vunpack.c.l.b16 %v4722
    %v4884 = vunpack.c.h.b16 %v4722
    %v4885 = vunpack.c.l.b16 %v4723
    %v4886 = vunpack.c.h.b16 %v4723
    %v4887 = vunpack.c.l.b16 %v4724
    %v4888 = vunpack.c.h.b16 %v4724
    %v4889 = vunpack.c.l.b16 %v4725
    %v4890 = vunpack.c.h.b16 %v4725
    %v4891 = vunpack.c.l.b16 %v4726
    %v4892 = vunpack.c.h.b16 %v4726
    %v4893 = vunpack.c.l.b16 %v4727
    %v4894 = vunpack.c.h.b16 %v4727
    %v4895 = vunpack.c.l.b16 %v4728
    %v4896 = vunpack.c.h.b16 %v4728
    %v4897 = vunpack.c.l.b16 %v4729
    %v4898 = vunpack.c.h.b16 %v4729
    %v4899 = vunpack.c.l.b16 %v4730
    %v4900 = vunpack.c.h.b16 %v4730
    %v4901 = vunpack.c.l.b16 %v4731
    %v4902 = vunpack.c.h.b16 %v4731
    %v4903 = vunpack.c.l.b16 %v4732
    %v4904 = vunpack.c.h.b16 %v4732
    %v4905 = vunpack.c.l.b16 %v4733
    %v4906 = vunpack.c.h.b16 %v4733
    %v4907 = vunpack.c.l.b16 %v4734
    %v4908 = vunpack.c.h.b16 %v4734
    %v4909 = vunpack.c.l.b16 %v4735
    %v4910 = vunpack.c.h.b16 %v4735
    %v4911 = vunpack.c.l.b16 %v4736
    %v4912 = vunpack.c.h.b16 %v4736
    %v4913 = vunpack.c.l.b16 %v4737
    %v4914 = vunpack.c.h.b16 %v4737
    %v4915 = vunpack.c.l.b16 %v4738
    %v4916 = vunpack.c.h.b16 %v4738
    %v4917 = vunpack.c.l.b16 %v4739
    %v4918 = vunpack.c.h.b16 %v4739
    %v4919 = vunpack.c.l.b16 %v4740
    %v4920 = vunpack.c.h.b16 %v4740
    %v4921 = vunpack.c.l.b16 %v4741
    %v4922 = vunpack.c.h.b16 %v4741
    %v4923 = vunpack.c.l.b16 %v4742
    %v4924 = vunpack.c.h.b16 %v4742
    %v4925 = vunpack.c.l.b16 %v4743
    %v4926 = vunpack.c.h.b16 %v4743
    %v4927 = vunpack.c.l.b16 %v4744
    %v4928 = vunpack.c.h.b16 %v4744
    %v4929 = vunpack.c.l.b16 %v4745
    %v4930 = vunpack.c.h.b16 %v4745
    %v4931 = vunpack.c.l.b16 %v4746
    %v4932 = vunpack.c.h.b16 %v4746
    %v4933 = vunpack.c.l.b16 %v4747
    %v4934 = vunpack.c.h.b16 %v4747
    %v4935 = vunpack.c.l.b16 %v4748
    %v4936 = vunpack.c.h.b16 %v4748
    %v4937 = vunpack.c.l.b16 %v4749
    %v4938 = vunpack.c.h.b16 %v4749
    %v4939 = vunpack.c.l.b16 %v4750
    %v4940 = vunpack.c.h.b16 %v4750
    %v4941 = vunpack.c.l.b16 %v4751
    %v4942 = vunpack.c.h.b16 %v4751
    %v4943 = vunpack.c.l.b16 %v4752
    %v4944 = vunpack.c.h.b16 %v4752
    %v4945 = vunpack.c.l.b16 %v4753
    %v4946 = vunpack.c.h.b16 %v4753
    %v4947 = vunpack.c.l.b16 %v4754
    %v4948 = vunpack.c.h.b16 %v4754
    %v4949 = vunpack.c.l.b16 %v4755
    %v4950 = vunpack.c.h.b16 %v4755
    %v4951 = vunpack.c.l.b16 %v4756
    %v4952 = vunpack.c.h.b16 %v4756
    %v4953 = vunpack.c.l.b16 %v4757
    %v4954 = vunpack.c.h.b16 %v4757
    %v4955 = vunpack.c.l.b16 %v4758
    %v4956 = vunpack.c.h.b16 %v4758
    %v4957 = vunpack.c.l.b16 %v4759
    %v4958 = vunpack.c.h.b16 %v4759
    %v4959 = vunpack.c.l.b16 %v4760
    %v4960 = vunpack.c.h.b16 %v4760
    %v4961 = vunpack.c.l.b16 %v4761
    %v4962 = vunpack.c.h.b16 %v4761
    %v4963 = vunpack.c.l.b16 %v4762
    %v4964 = vunpack.c.h.b16 %v4762
    %v4965 = vunpack.c.l.b16 %v4763
    %v4966 = vunpack.c.h.b16 %v4763
    %v4967 = vunpack.c.l.b16 %v4764
    %v4968 = vunpack.c.h.b16 %v4764
    %v4969 = vunpack.c.l.b16 %v4765
    %v4970 = vunpack.c.h.b16 %v4765
    %v4971 = vunpack.c.l.b16 %v4766
    %v4972 = vunpack.c.h.b16 %v4766
    %v4973 = vpack.c.b16 %v4847, %v4845
    %v4974 = vpack.c.b16 %v4848, %v4846
    %v4975 = vpack.c.b16 %v4851, %v4849
    %v4976 = vpack.c.b16 %v4852, %v4850
    %v4977 = vpack.c.b16 %v4855, %v4853
    %v4978 = vpack.c.b16 %v4856, %v4854
    %v4979 = vpack.c.b16 %v4859, %v4857
    %v4980 = vpack.c.b16 %v4860, %v4858
    %v4981 = vpack.c.b16 %v4863, %v4861
    %v4982 = vpack.c.b16 %v4864, %v4862
    %v4983 = vpack.c.b16 %v4867, %v4865
    %v4984 = vpack.c.b16 %v4868, %v4866
    %v4985 = vpack.c.b16 %v4871, %v4869
    %v4986 = vpack.c.b16 %v4872, %v4870
    %v4987 = vpack.c.b16 %v4875, %v4873
    %v4988 = vpack.c.b16 %v4876, %v4874
    %v4989 = vpack.c.b16 %v4879, %v4877
    %v4990 = vpack.c.b16 %v4880, %v4878
    %v4991 = vpack.c.b16 %v4883, %v4881
    %v4992 = vpack.c.b16 %v4884, %v4882
    %v4993 = vpack.c.b16 %v4887, %v4885
    %v4994 = vpack.c.b16 %v4888, %v4886
    %v4995 = vpack.c.b16 %v4891, %v4889
    %v4996 = vpack.c.b16 %v4892, %v4890
    %v4997 = vpack.c.b16 %v4895, %v4893
    %v4998 = vpack.c.b16 %v4896, %v4894
    %v4999 = vpack.c.b16 %v4899, %v4897
    %v5000 = vpack.c.b16 %v4900, %v4898
    %v5001 = vpack.c.b16 %v4903, %v4901
    %v5002 = vpack.c.b16 %v4904, %v4902
    %v5003 = vpack.c.b16 %v4907, %v4905
    %v5004 = vpack.c.b16 %v4908, %v4906
    %v5005 = vpack.c.b16 %v4911, %v4909
    %v5006 = vpack.c.b16 %v4912, %v4910
    %v5007 = vpack.c.b16 %v4915, %v4913
    %v5008 = vpack.c.b16 %v4916, %v4914
    %v5009 = vpack.c.b16 %v4919, %v4917
    %v5010 = vpack.c.b16 %v4920, %v4918
    %v5011 = vpack.c.b16 %v4923, %v4921
    %v5012 = vpack.c.b16 %v4924, %v4922
    %v5013 = vpack.c.b16 %v4927, %v4925
    %v5014 = vpack.c.b16 %v4928, %v4926
    %v5015 = vpack.c.b16 %v4931, %v4929
    %v5016 = vpack.c.b16 %v4932, %v4930
    %v5017 = vpack.c.b16 %v4935, %v4933
    %v5018 = vpack.c.b16 %v4936, %v4934
    %v5019 = vpack.c.b16 %v4939, %v4937
    %v5020 = vpack.c.b16 %v4940, %v4938
    %v5021 = vpack.c.b16 %v4943, %v4941
    %v5022 = vpack.c.b16 %v4944, %v4942
    %v5023 = vpack.c.b16 %v4947, %v4945
    %v5024 = vpack.c.b16 %v4948, %v4946
    %v5025 = vpack.c.b16 %v4951, %v4949
    %v5026 = vpack.c.b16 %v4952, %v4950
    %v5027 = vpack.c.b16 %v4955, %v4953
    %v5028 = vpack.c.b16 %v4956, %v4954
    %v5029 = vpack.c.b16 %v4959, %v4957
    %v5030 = vpack.c.b16 %v4960, %v4958
    %v5031 = vpack.c.b16 %v4963, %v4961
    %v5032 = vpack.c.b16 %v4964, %v4962
    %v5033 = vpack.c.b16 %v4967, %v4965
    %v5034 = vpack.c.b16 %v4968, %v4966
    %v5035 = vpack.c.b16 %v4971, %v4969
    %v5036 = vpack.c.b16 %v4972, %v4970
    %5101 = vmatprep.subr.bf16.mxu0 %v4988
    %5102 = vmatpush1.bf16.msra.mxu0 %v4987
    %5103 = vmatprep.subr.bf16.mxu0 %v4986
    %5104 = vmatpush1.bf16.msra.mxu0 %v4985
    %5105 = vmatprep.subr.bf16.mxu0 %v4984
    %5106 = vmatpush1.bf16.msra.mxu0 %v4983
    %5107 = vmatprep.subr.bf16.mxu0 %v4982
    %5108 = vmatpush1.bf16.msra.mxu0 %v4981
    %5109 = vmatprep.subr.bf16.mxu0 %v4980
    %5110 = vmatpush1.bf16.msra.mxu0 %v4979
    %5111 = vmatprep.subr.bf16.mxu0 %v4978
    %5112 = vmatpush1.bf16.msra.mxu0 %v4977
    %5113 = vmatprep.subr.bf16.mxu0 %v4976
    %5114 = vmatpush1.bf16.msra.mxu0 %v4975
    %5115 = vmatprep.subr.bf16.mxu0 %v4974
    %5116 = vmatpush1.bf16.msra.mxu0 %v4973
    %5117 = vmatprep.subr.bf16.mxu0 %v5004
    %5118 = vmatpush2.bf16.msra.mxu0 %v5003
    %5119 = vmatprep.subr.bf16.mxu0 %v5002
    %5120 = vmatpush2.bf16.msra.mxu0 %v5001
    %5121 = vmatprep.subr.bf16.mxu0 %v5000
    %5122 = vmatpush2.bf16.msra.mxu0 %v4999
    %5123 = vmatprep.subr.bf16.mxu0 %v4998
    %5124 = vmatpush2.bf16.msra.mxu0 %v4997
    %5125 = vmatprep.subr.bf16.mxu0 %v4996
    %5126 = vmatpush2.bf16.msra.mxu0 %v4995
    %5127 = vmatprep.subr.bf16.mxu0 %v4994
    %5128 = vmatpush2.bf16.msra.mxu0 %v4993
    %5129 = vmatprep.subr.bf16.mxu0 %v4992
    %5130 = vmatpush2.bf16.msra.mxu0 %v4991
    %5131 = vmatprep.subr.bf16.mxu0 %v4990
    %5132 = vmatpush2.bf16.msra.mxu0 %v4989
    %5133 = vmatprep.mubr.bf16.mxu0 %v4774
    %5134 = vmatmul.mubr.bf16.gmra.mxu0 %v4773
    %v5135 = vpop.f32.mrf.mxu0
    %v5136 = vadd.f32 0.0, %v5135
    %v5137 = vpop.f32.mrf.mxu0
    %v5138 = vadd.f32 0.0, %v5137
    %v5139 = vpop.f32.mrf.mxu0
    %v5140 = vpop.f32.mrf.mxu0
    %5141 = vdwg.mxu0
    %5142 = vmatprep.subr.bf16.mxu0 %v5020
    %5143 = vmatpush1.bf16.msra.mxu0 %v5019
    %5144 = vmatprep.subr.bf16.mxu0 %v5018
    %5145 = vmatpush1.bf16.msra.mxu0 %v5017
    %5146 = vmatprep.subr.bf16.mxu0 %v5016
    %5147 = vmatpush1.bf16.msra.mxu0 %v5015
    %5148 = vmatprep.subr.bf16.mxu0 %v5014
    %5149 = vmatpush1.bf16.msra.mxu0 %v5013
    %5150 = vmatprep.subr.bf16.mxu0 %v5012
    %5151 = vmatpush1.bf16.msra.mxu0 %v5011
    %5152 = vmatprep.subr.bf16.mxu0 %v5010
    %5153 = vmatpush1.bf16.msra.mxu0 %v5009
    %5154 = vmatprep.subr.bf16.mxu0 %v5008
    %5155 = vmatpush1.bf16.msra.mxu0 %v5007
    %5156 = vmatprep.subr.bf16.mxu0 %v5006
    %5157 = vmatpush1.bf16.msra.mxu0 %v5005
    %5158 = vmatprep.subr.bf16.mxu0 %v5036
    %5159 = vmatpush2.bf16.msra.mxu0 %v5035
    %5160 = vmatprep.subr.bf16.mxu0 %v5034
    %5161 = vmatpush2.bf16.msra.mxu0 %v5033
    %5162 = vmatprep.subr.bf16.mxu0 %v5032
    %5163 = vmatpush2.bf16.msra.mxu0 %v5031
    %5164 = vmatprep.subr.bf16.mxu0 %v5030
    %5165 = vmatpush2.bf16.msra.mxu0 %v5029
    %5166 = vmatprep.subr.bf16.mxu0 %v5028
    %5167 = vmatpush2.bf16.msra.mxu0 %v5027
    %5168 = vmatprep.subr.bf16.mxu0 %v5026
    %5169 = vmatpush2.bf16.msra.mxu0 %v5025
    %5170 = vmatprep.subr.bf16.mxu0 %v5024
    %5171 = vmatpush2.bf16.msra.mxu0 %v5023
    %5172 = vmatprep.subr.bf16.mxu0 %v5022
    %5173 = vmatpush2.bf16.msra.mxu0 %v5021
    %5174 = vmatprep.mubr.bf16.mxu0 %v4776
    %5175 = vmatmul.mubr.bf16.gmra.mxu0 %v4775
    %v5176 = vpop.f32.mrf.mxu0
    %v5177 = vadd.f32 %v5136, %v5176
    %v5178 = vpop.f32.mrf.mxu0
    %v5179 = vadd.f32 %v5138, %v5178
    %v5180 = vpop.f32.mrf.mxu0
    %v5181 = vpop.f32.mrf.mxu0
    %5182 = vdwg.mxu0
    %v5183 = vpack.c.bf16 %v5177, %v5177
    %v5184 = vpack.c.bf16 %v5179, %v5179
    %v5186 = vunpack.c.l.b16 %v4696
    %v5187 = vunpack.c.h.b16 %v4696
    %v5188 = vpack.c.b16 %v5186, %v5186
    %v5189 = vpack.c.b16 %v5187, %v5187
    %v5192 = vsel %vm624, %v5184, 0
    %v5195 = vsel %vm624, %v5189, 0
    %5197 = vmatprep.subr.bf16.mxu0 0
    %5198 = vmatpush1.bf16.xpose.msra.mxu0 0
    %5199 = vmatprep.subr.bf16.mxu0 0
    %5200 = vmatpush1.bf16.xpose.msra.mxu0 0
    %5201 = vmatprep.subr.bf16.mxu0 0
    %5202 = vmatpush1.bf16.xpose.msra.mxu0 0
    %5203 = vmatprep.subr.bf16.mxu0 0
    %5204 = vmatpush1.bf16.xpose.msra.mxu0 0
    %5205 = vmatprep.subr.bf16.mxu0 0
    %5206 = vmatpush1.bf16.xpose.msra.mxu0 0
    %5207 = vmatprep.subr.bf16.mxu0 0
    %5208 = vmatpush1.bf16.xpose.msra.mxu0 0
    %5209 = vmatprep.subr.bf16.mxu0 0
    %5210 = vmatpush1.bf16.xpose.msra.mxu0 0
    %5211 = vmatprep.subr.bf16.mxu0 %v5195
    %5212 = vmatpush1.bf16.xpose.msra.mxu0 %v5188
    %5213 = vmatprep.subr.bf16.mxu0 0
    %5214 = vmatpush2.bf16.xpose.msra.mxu0 0
    %5215 = vmatprep.subr.bf16.mxu0 0
    %5216 = vmatpush2.bf16.xpose.msra.mxu0 0
    %5217 = vmatprep.subr.bf16.mxu0 0
    %5218 = vmatpush2.bf16.xpose.msra.mxu0 0
    %5219 = vmatprep.subr.bf16.mxu0 0
    %5220 = vmatpush2.bf16.xpose.msra.mxu0 0
    %5221 = vmatprep.subr.bf16.mxu0 0
    %5222 = vmatpush2.bf16.xpose.msra.mxu0 0
    %5223 = vmatprep.subr.bf16.mxu0 0
    %5224 = vmatpush2.bf16.xpose.msra.mxu0 0
    %5225 = vmatprep.subr.bf16.mxu0 0
    %5226 = vmatpush2.bf16.xpose.msra.mxu0 0
    %5227 = vmatprep.subr.bf16.mxu0 0
    %5228 = vmatpush2.bf16.xpose.msra.mxu0 0
    %5229 = vmatprep.mubr.bf16.mxu0 %v5192
    %5230 = vmatmul.mubr.bf16.gmra.mxu0 %v5183
    %v5231 = vpop.f32.mrf.mxu0
    %v5232 = vadd.f32 0.0, %v5231
    %v5233 = vpop.f32.mrf.mxu0
    %v5234 = vpop.f32.mrf.mxu0
    %v5235 = vpop.f32.mrf.mxu0
    %5236 = vdwg.mxu0
    %v5237 = vsel %vm671, %v5232, -inf
    %5238 = vmax.xlane.f32.xlu0 %v5237
    %v5239 = vpop.xlane.xlu0 %5238
    %v5240 = vsub.f32 %v5232, %v5239
    %v5241 = vmul.f32 %v5240, 1.442695
    %v5242 = vpow.pop %v5241
    %v5243 = vsel %vm671, %v5242, 0.0
    %5244 = vadd.xlane.f32.xlu0 %v5243
    %v5245 = vpop.xlane.xlu0 %5244
    %v5246 = vrcp.pop %v5245
    %v5247 = vmul.f32 %v5242, %v5246
    %v5248 = vpack.c.bf16 %v5247, %v5247
    %v5250 = vsel %vm671, %v5248, 0
    %v5253 = vsel %vm687, %v5188, 0
    %v5255 = vsel %vm687, %v5189, 0
    %5257 = vmatprep.subr.bf16.mxu0 0
    %5258 = vmatpush1.bf16.msra.mxu0 0
    %5259 = vmatprep.subr.bf16.mxu0 0
    %5260 = vmatpush1.bf16.msra.mxu0 0
    %5261 = vmatprep.subr.bf16.mxu0 0
    %5262 = vmatpush1.bf16.msra.mxu0 0
    %5263 = vmatprep.subr.bf16.mxu0 0
    %5264 = vmatpush1.bf16.msra.mxu0 0
    %5265 = vmatprep.subr.bf16.mxu0 0
    %5266 = vmatpush1.bf16.msra.mxu0 0
    %5267 = vmatprep.subr.bf16.mxu0 0
    %5268 = vmatpush1.bf16.msra.mxu0 0
    %5269 = vmatprep.subr.bf16.mxu0 0
    %5270 = vmatpush1.bf16.msra.mxu0 0
    %5271 = vmatprep.subr.bf16.mxu0 %v5255
    %5272 = vmatpush1.bf16.msra.mxu0 %v5253
    %5273 = vmatprep.subr.bf16.mxu0 0
    %5274 = vmatpush2.bf16.msra.mxu0 0
    %5275 = vmatprep.subr.bf16.mxu0 0
    %5276 = vmatpush2.bf16.msra.mxu0 0
    %5277 = vmatprep.subr.bf16.mxu0 0
    %5278 = vmatpush2.bf16.msra.mxu0 0
    %5279 = vmatprep.subr.bf16.mxu0 0
    %5280 = vmatpush2.bf16.msra.mxu0 0
    %5281 = vmatprep.subr.bf16.mxu0 0
    %5282 = vmatpush2.bf16.msra.mxu0 0
    %5283 = vmatprep.subr.bf16.mxu0 0
    %5284 = vmatpush2.bf16.msra.mxu0 0
    %5285 = vmatprep.subr.bf16.mxu0 0
    %5286 = vmatpush2.bf16.msra.mxu0 0
    %5287 = vmatprep.subr.bf16.mxu0 0
    %5288 = vmatpush2.bf16.msra.mxu0 0
    %5289 = vmatprep.mubr.bf16.mxu0 0
    %5290 = vmatmul.mubr.bf16.gmra.mxu0 %v5250
    %v5291 = vpop.f32.mrf.mxu0
    %v5292 = vadd.f32 0.0, %v5291
    %v5293 = vpop.f32.mrf.mxu0
    %v5294 = vadd.f32 0.0, %v5293
    %v5295 = vpop.f32.mrf.mxu0
    %v5296 = vpop.f32.mrf.mxu0
    %5297 = vdwg.mxu0
    %v5298 = vadd.f32 %v4701, %v5292
    %v5299 = vadd.f32 %v4702, %v5294
    %v5300 = vld [vmem:[%s3] sm:$0xff]
    %v5301 = vld [vmem:[%s3 + $0x8] sm:$0xff]
    %v5302 = vld [vmem:[%s3 + $0x10] sm:$0xff]
    %v5303 = vld [vmem:[%s3 + $0x18] sm:$0xff]
    %v5304 = vld [vmem:[%s3 + $0x20] sm:$0xff]
    %v5305 = vld [vmem:[%s3 + $0x28] sm:$0xff]
    %v5306 = vld [vmem:[%s3 + $0x30] sm:$0xff]
    %v5307 = vld [vmem:[%s3 + $0x38] sm:$0xff]
    %v5308 = vld [vmem:[%s3 + $0x40] sm:$0xff]
    %v5309 = vld [vmem:[%s3 + $0x48] sm:$0xff]
    %v5310 = vld [vmem:[%s3 + $0x50] sm:$0xff]
    %v5311 = vld [vmem:[%s3 + $0x58] sm:$0xff]
    %v5312 = vld [vmem:[%s3 + $0x60] sm:$0xff]
    %v5313 = vld [vmem:[%s3 + $0x68] sm:$0xff]
    %v5314 = vld [vmem:[%s3 + $0x70] sm:$0xff]
    %v5315 = vld [vmem:[%s3 + $0x78] sm:$0xff]
    %v5316 = vld [vmem:[%s3 + $0x80] sm:$0xff]
    %v5317 = vld [vmem:[%s3 + $0x88] sm:$0xff]
    %v5318 = vld [vmem:[%s3 + $0x90] sm:$0xff]
    %v5319 = vld [vmem:[%s3 + $0x98] sm:$0xff]
    %v5320 = vld [vmem:[%s3 + $0xa0] sm:$0xff]
    %v5321 = vld [vmem:[%s3 + $0xa8] sm:$0xff]
    %v5322 = vld [vmem:[%s3 + $0xb0] sm:$0xff]
    %v5323 = vld [vmem:[%s3 + $0xb8] sm:$0xff]
    %v5324 = vld [vmem:[%s3 + $0xc0] sm:$0xff]
    %v5325 = vld [vmem:[%s3 + $0xc8] sm:$0xff]
    %v5326 = vld [vmem:[%s3 + $0xd0] sm:$0xff]
    %v5327 = vld [vmem:[%s3 + $0xd8] sm:$0xff]
    %v5328 = vld [vmem:[%s3 + $0xe0] sm:$0xff]
    %v5329 = vld [vmem:[%s3 + $0xe8] sm:$0xff]
    %v5330 = vld [vmem:[%s3 + $0xf0] sm:$0xff]
    %v5331 = vld [vmem:[%s3 + $0xf8] sm:$0xff]
    %v5332 = vld [vmem:[%s3 + $0x100] sm:$0xff]
    %v5333 = vld [vmem:[%s3 + $0x108] sm:$0xff]
    %v5334 = vld [vmem:[%s3 + $0x110] sm:$0xff]
    %v5335 = vld [vmem:[%s3 + $0x118] sm:$0xff]
    %v5336 = vld [vmem:[%s3 + $0x120] sm:$0xff]
    %v5337 = vld [vmem:[%s3 + $0x128] sm:$0xff]
    %v5338 = vld [vmem:[%s3 + $0x130] sm:$0xff]
    %v5339 = vld [vmem:[%s3 + $0x138] sm:$0xff]
    %v5340 = vld [vmem:[%s3 + $0x140] sm:$0xff]
    %v5341 = vld [vmem:[%s3 + $0x148] sm:$0xff]
    %v5342 = vld [vmem:[%s3 + $0x150] sm:$0xff]
    %v5343 = vld [vmem:[%s3 + $0x158] sm:$0xff]
    %v5344 = vld [vmem:[%s3 + $0x160] sm:$0xff]
    %v5345 = vld [vmem:[%s3 + $0x168] sm:$0xff]
    %v5346 = vld [vmem:[%s3 + $0x170] sm:$0xff]
    %v5347 = vld [vmem:[%s3 + $0x178] sm:$0xff]
    %v5396 = vunpack.c.l.b16 %v5300
    %v5397 = vunpack.c.h.b16 %v5300
    %v5398 = vunpack.c.l.b16 %v5301
    %v5399 = vunpack.c.h.b16 %v5301
    %v5400 = vunpack.c.l.b16 %v5302
    %v5401 = vunpack.c.h.b16 %v5302
    %v5402 = vunpack.c.l.b16 %v5303
    %v5403 = vunpack.c.h.b16 %v5303
    %v5404 = vunpack.c.l.b16 %v5304
    %v5405 = vunpack.c.h.b16 %v5304
    %v5406 = vunpack.c.l.b16 %v5305
    %v5407 = vunpack.c.h.b16 %v5305
    %v5408 = vunpack.c.l.b16 %v5306
    %v5409 = vunpack.c.h.b16 %v5306
    %v5410 = vunpack.c.l.b16 %v5307
    %v5411 = vunpack.c.h.b16 %v5307
    %v5412 = vunpack.c.l.b16 %v5308
    %v5413 = vunpack.c.h.b16 %v5308
    %v5414 = vunpack.c.l.b16 %v5309
    %v5415 = vunpack.c.h.b16 %v5309
    %v5416 = vunpack.c.l.b16 %v5310
    %v5417 = vunpack.c.h.b16 %v5310
    %v5418 = vunpack.c.l.b16 %v5311
    %v5419 = vunpack.c.h.b16 %v5311
    %v5420 = vunpack.c.l.b16 %v5312
    %v5421 = vunpack.c.h.b16 %v5312
    %v5422 = vunpack.c.l.b16 %v5313
    %v5423 = vunpack.c.h.b16 %v5313
    %v5424 = vunpack.c.l.b16 %v5314
    %v5425 = vunpack.c.h.b16 %v5314
    %v5426 = vunpack.c.l.b16 %v5315
    %v5427 = vunpack.c.h.b16 %v5315
    %v5428 = vunpack.c.l.b16 %v5316
    %v5429 = vunpack.c.h.b16 %v5316
    %v5430 = vunpack.c.l.b16 %v5317
    %v5431 = vunpack.c.h.b16 %v5317
    %v5432 = vunpack.c.l.b16 %v5318
    %v5433 = vunpack.c.h.b16 %v5318
    %v5434 = vunpack.c.l.b16 %v5319
    %v5435 = vunpack.c.h.b16 %v5319
    %v5436 = vunpack.c.l.b16 %v5320
    %v5437 = vunpack.c.h.b16 %v5320
    %v5438 = vunpack.c.l.b16 %v5321
    %v5439 = vunpack.c.h.b16 %v5321
    %v5440 = vunpack.c.l.b16 %v5322
    %v5441 = vunpack.c.h.b16 %v5322
    %v5442 = vunpack.c.l.b16 %v5323
    %v5443 = vunpack.c.h.b16 %v5323
    %v5444 = vunpack.c.l.b16 %v5324
    %v5445 = vunpack.c.h.b16 %v5324
    %v5446 = vunpack.c.l.b16 %v5325
    %v5447 = vunpack.c.h.b16 %v5325
    %v5448 = vunpack.c.l.b16 %v5326
    %v5449 = vunpack.c.h.b16 %v5326
    %v5450 = vunpack.c.l.b16 %v5327
    %v5451 = vunpack.c.h.b16 %v5327
    %v5452 = vunpack.c.l.b16 %v5328
    %v5453 = vunpack.c.h.b16 %v5328
    %v5454 = vunpack.c.l.b16 %v5329
    %v5455 = vunpack.c.h.b16 %v5329
    %v5456 = vunpack.c.l.b16 %v5330
    %v5457 = vunpack.c.h.b16 %v5330
    %v5458 = vunpack.c.l.b16 %v5331
    %v5459 = vunpack.c.h.b16 %v5331
    %v5460 = vunpack.c.l.b16 %v5332
    %v5461 = vunpack.c.h.b16 %v5332
    %v5462 = vunpack.c.l.b16 %v5333
    %v5463 = vunpack.c.h.b16 %v5333
    %v5464 = vunpack.c.l.b16 %v5334
    %v5465 = vunpack.c.h.b16 %v5334
    %v5466 = vunpack.c.l.b16 %v5335
    %v5467 = vunpack.c.h.b16 %v5335
    %v5468 = vunpack.c.l.b16 %v5336
    %v5469 = vunpack.c.h.b16 %v5336
    %v5470 = vunpack.c.l.b16 %v5337
    %v5471 = vunpack.c.h.b16 %v5337
    %v5472 = vunpack.c.l.b16 %v5338
    %v5473 = vunpack.c.h.b16 %v5338
    %v5474 = vunpack.c.l.b16 %v5339
    %v5475 = vunpack.c.h.b16 %v5339
    %v5476 = vunpack.c.l.b16 %v5340
    %v5477 = vunpack.c.h.b16 %v5340
    %v5478 = vunpack.c.l.b16 %v5341
    %v5479 = vunpack.c.h.b16 %v5341
    %v5480 = vunpack.c.l.b16 %v5342
    %v5481 = vunpack.c.h.b16 %v5342
    %v5482 = vunpack.c.l.b16 %v5343
    %v5483 = vunpack.c.h.b16 %v5343
    %v5484 = vunpack.c.l.b16 %v5344
    %v5485 = vunpack.c.h.b16 %v5344
    %v5486 = vunpack.c.l.b16 %v5345
    %v5487 = vunpack.c.h.b16 %v5345
    %v5488 = vunpack.c.l.b16 %v5346
    %v5489 = vunpack.c.h.b16 %v5346
    %v5490 = vunpack.c.l.b16 %v5347
    %v5491 = vunpack.c.h.b16 %v5347
    %v5492 = vpack.c.b16 %v5400, %v5396
    %v5493 = vpack.c.b16 %v5401, %v5397
    %v5494 = vpack.c.b16 %v5402, %v5398
    %v5495 = vpack.c.b16 %v5403, %v5399
    %v5496 = vpack.c.b16 %v5408, %v5404
    %v5497 = vpack.c.b16 %v5409, %v5405
    %v5498 = vpack.c.b16 %v5410, %v5406
    %v5499 = vpack.c.b16 %v5411, %v5407
    %v5500 = vpack.c.b16 %v5416, %v5412
    %v5501 = vpack.c.b16 %v5417, %v5413
    %v5502 = vpack.c.b16 %v5418, %v5414
    %v5503 = vpack.c.b16 %v5419, %v5415
    %v5504 = vpack.c.b16 %v5424, %v5420
    %v5505 = vpack.c.b16 %v5425, %v5421
    %v5506 = vpack.c.b16 %v5426, %v5422
    %v5507 = vpack.c.b16 %v5427, %v5423
    %v5508 = vpack.c.b16 %v5432, %v5428
    %v5509 = vpack.c.b16 %v5433, %v5429
    %v5510 = vpack.c.b16 %v5434, %v5430
    %v5511 = vpack.c.b16 %v5435, %v5431
    %v5512 = vpack.c.b16 %v5440, %v5436
    %v5513 = vpack.c.b16 %v5441, %v5437
    %v5514 = vpack.c.b16 %v5442, %v5438
    %v5515 = vpack.c.b16 %v5443, %v5439
    %v5516 = vpack.c.b16 %v5448, %v5444
    %v5517 = vpack.c.b16 %v5449, %v5445
    %v5518 = vpack.c.b16 %v5450, %v5446
    %v5519 = vpack.c.b16 %v5451, %v5447
    %v5520 = vpack.c.b16 %v5456, %v5452
    %v5521 = vpack.c.b16 %v5457, %v5453
    %v5522 = vpack.c.b16 %v5458, %v5454
    %v5523 = vpack.c.b16 %v5459, %v5455
    %v5524 = vpack.c.b16 %v5464, %v5460
    %v5525 = vpack.c.b16 %v5465, %v5461
    %v5526 = vpack.c.b16 %v5466, %v5462
    %v5527 = vpack.c.b16 %v5467, %v5463
    %v5528 = vpack.c.b16 %v5472, %v5468
    %v5529 = vpack.c.b16 %v5473, %v5469
    %v5530 = vpack.c.b16 %v5474, %v5470
    %v5531 = vpack.c.b16 %v5475, %v5471
    %v5532 = vpack.c.b16 %v5480, %v5476
    %v5533 = vpack.c.b16 %v5481, %v5477
    %v5534 = vpack.c.b16 %v5482, %v5478
    %v5535 = vpack.c.b16 %v5483, %v5479
    %v5536 = vpack.c.b16 %v5488, %v5484
    %v5537 = vpack.c.b16 %v5489, %v5485
    %v5538 = vpack.c.b16 %v5490, %v5486
    %v5539 = vpack.c.b16 %v5491, %v5487
    %5588 = vmatprep.subr.bf16.mxu0 %v5521
    %5589 = vmatpush1.bf16.msra.mxu0 %v5520
    %5590 = vmatprep.subr.bf16.mxu0 %v5517
    %5591 = vmatpush1.bf16.msra.mxu0 %v5516
    %5592 = vmatprep.subr.bf16.mxu0 %v5513
    %5593 = vmatpush1.bf16.msra.mxu0 %v5512
    %5594 = vmatprep.subr.bf16.mxu0 %v5509
    %5595 = vmatpush1.bf16.msra.mxu0 %v5508
    %5596 = vmatprep.subr.bf16.mxu0 %v5505
    %5597 = vmatpush1.bf16.msra.mxu0 %v5504
    %5598 = vmatprep.subr.bf16.mxu0 %v5501
    %5599 = vmatpush1.bf16.msra.mxu0 %v5500
    %5600 = vmatprep.subr.bf16.mxu0 %v5497
    %5601 = vmatpush1.bf16.msra.mxu0 %v5496
    %5602 = vmatprep.subr.bf16.mxu0 %v5493
    %5603 = vmatpush1.bf16.msra.mxu0 %v5492
    %5604 = vmatprep.subr.bf16.mxu0 0
    %5605 = vmatpush2.bf16.msra.mxu0 0
    %5606 = vmatprep.subr.bf16.mxu0 0
    %5607 = vmatpush2.bf16.msra.mxu0 0
    %5608 = vmatprep.subr.bf16.mxu0 0
    %5609 = vmatpush2.bf16.msra.mxu0 0
    %5610 = vmatprep.subr.bf16.mxu0 0
    %5611 = vmatpush2.bf16.msra.mxu0 0
    %5612 = vmatprep.subr.bf16.mxu0 %v5537
    %5613 = vmatpush2.bf16.msra.mxu0 %v5536
    %5614 = vmatprep.subr.bf16.mxu0 %v5533
    %5615 = vmatpush2.bf16.msra.mxu0 %v5532
    %5616 = vmatprep.subr.bf16.mxu0 %v5529
    %5617 = vmatpush2.bf16.msra.mxu0 %v5528
    %5618 = vmatprep.subr.bf16.mxu0 %v5525
    %5619 = vmatpush2.bf16.msra.mxu0 %v5524
    %5620 = vmatprep.mubr.bf16.mxu0 %v5195
    %5621 = vmatmul.mubr.bf16.gmra.mxu0 %v5188
    %v5622 = vpop.f32.mrf.mxu0
    %v5623 = vadd.f32 0.0, %v5622
    %v5624 = vpop.f32.mrf.mxu0
    %v5625 = vadd.f32 0.0, %v5624
    %v5626 = vpop.f32.mrf.mxu0
    %v5627 = vpop.f32.mrf.mxu0
    %5628 = vdwg.mxu0
    %5629 = vmatprep.subr.bf16.mxu0 %v5523
    %5630 = vmatpush1.bf16.msra.mxu0 %v5522
    %5631 = vmatprep.subr.bf16.mxu0 %v5519
    %5632 = vmatpush1.bf16.msra.mxu0 %v5518
    %5633 = vmatprep.subr.bf16.mxu0 %v5515
    %5634 = vmatpush1.bf16.msra.mxu0 %v5514
    %5635 = vmatprep.subr.bf16.mxu0 %v5511
    %5636 = vmatpush1.bf16.msra.mxu0 %v5510
    %5637 = vmatprep.subr.bf16.mxu0 %v5507
    %5638 = vmatpush1.bf16.msra.mxu0 %v5506
    %5639 = vmatprep.subr.bf16.mxu0 %v5503
    %5640 = vmatpush1.bf16.msra.mxu0 %v5502
    %5641 = vmatprep.subr.bf16.mxu0 %v5499
    %5642 = vmatpush1.bf16.msra.mxu0 %v5498
    %5643 = vmatprep.subr.bf16.mxu0 %v5495
    %5644 = vmatpush1.bf16.msra.mxu0 %v5494
    %5645 = vmatprep.subr.bf16.mxu0 0
    %5646 = vmatpush2.bf16.msra.mxu0 0
    %5647 = vmatprep.subr.bf16.mxu0 0
    %5648 = vmatpush2.bf16.msra.mxu0 0
    %5649 = vmatprep.subr.bf16.mxu0 0
    %5650 = vmatpush2.bf16.msra.mxu0 0
    %5651 = vmatprep.subr.bf16.mxu0 0
    %5652 = vmatpush2.bf16.msra.mxu0 0
    %5653 = vmatprep.subr.bf16.mxu0 %v5539
    %5654 = vmatpush2.bf16.msra.mxu0 %v5538
    %5655 = vmatprep.subr.bf16.mxu0 %v5535
    %5656 = vmatpush2.bf16.msra.mxu0 %v5534
    %5657 = vmatprep.subr.bf16.mxu0 %v5531
    %5658 = vmatpush2.bf16.msra.mxu0 %v5530
    %5659 = vmatprep.subr.bf16.mxu0 %v5527
    %5660 = vmatpush2.bf16.msra.mxu0 %v5526
    %5661 = vmatprep.mubr.bf16.mxu0 %v5195
    %5662 = vmatmul.mubr.bf16.gmra.mxu0 %v5188
    %v5663 = vpop.f32.mrf.mxu0
    %v5664 = vadd.f32 0.0, %v5663
    %v5665 = vpop.f32.mrf.mxu0
    %v5666 = vadd.f32 0.0, %v5665
    %v5667 = vpop.f32.mrf.mxu0
    %v5668 = vpop.f32.mrf.mxu0
    %5669 = vdwg.mxu0
    %v5670 = vpack.c.bf16 %v5623, %v5623
    %v5671 = vpack.c.bf16 %v5625, %v5625
    %v5672 = vpack.c.bf16 %v5664, %v5664
    %v5673 = vpack.c.bf16 %v5666, %v5666
    %5674 = vmatprep.subr.bf16.mxu0 0
    %5675 = vmatpush1.bf16.xpose.msra.mxu0 0
    %5676 = vmatprep.subr.bf16.mxu0 0
    %5677 = vmatpush1.bf16.xpose.msra.mxu0 0
    %5678 = vmatprep.subr.bf16.mxu0 0
    %5679 = vmatpush1.bf16.xpose.msra.mxu0 0
    %5680 = vmatprep.subr.bf16.mxu0 0
    %5681 = vmatpush1.bf16.xpose.msra.mxu0 0
    %5682 = vmatprep.subr.bf16.mxu0 0
    %5683 = vmatpush1.bf16.xpose.msra.mxu0 0
    %5684 = vmatprep.subr.bf16.mxu0 0
    %5685 = vmatpush1.bf16.xpose.msra.mxu0 0
    %5686 = vmatprep.subr.bf16.mxu0 0
    %5687 = vmatpush1.bf16.xpose.msra.mxu0 0
    %5688 = vmatprep.subr.bf16.mxu0 %v4774
    %5689 = vmatpush1.bf16.xpose.msra.mxu0 %v4773
    %5690 = vmatprep.subr.bf16.mxu0 0
    %5691 = vmatpush2.bf16.xpose.msra.mxu0 0
    %5692 = vmatprep.subr.bf16.mxu0 0
    %5693 = vmatpush2.bf16.xpose.msra.mxu0 0
    %5694 = vmatprep.subr.bf16.mxu0 0
    %5695 = vmatpush2.bf16.xpose.msra.mxu0 0
    %5696 = vmatprep.subr.bf16.mxu0 0
    %5697 = vmatpush2.bf16.xpose.msra.mxu0 0
    %5698 = vmatprep.subr.bf16.mxu0 0
    %5699 = vmatpush2.bf16.xpose.msra.mxu0 0
    %5700 = vmatprep.subr.bf16.mxu0 0
    %5701 = vmatpush2.bf16.xpose.msra.mxu0 0
    %5702 = vmatprep.subr.bf16.mxu0 0
    %5703 = vmatpush2.bf16.xpose.msra.mxu0 0
    %5704 = vmatprep.subr.bf16.mxu0 0
    %5705 = vmatpush2.bf16.xpose.msra.mxu0 0
    %5706 = vmatprep.mubr.bf16.mxu0 %v5671
    %5707 = vmatmul.mubr.bf16.gmra.mxu0 %v5670
    %v5708 = vpop.f32.mrf.mxu0
    %v5709 = vadd.f32 0.0, %v5708
    %v5710 = vpop.f32.mrf.mxu0
    %v5711 = vpop.f32.mrf.mxu0
    %v5712 = vpop.f32.mrf.mxu0
    %5713 = vdwg.mxu0
    %5714 = vmatprep.subr.bf16.mxu0 0
    %5715 = vmatpush1.bf16.xpose.msra.mxu0 0
    %5716 = vmatprep.subr.bf16.mxu0 0
    %5717 = vmatpush1.bf16.xpose.msra.mxu0 0
    %5718 = vmatprep.subr.bf16.mxu0 0
    %5719 = vmatpush1.bf16.xpose.msra.mxu0 0
    %5720 = vmatprep.subr.bf16.mxu0 0
    %5721 = vmatpush1.bf16.xpose.msra.mxu0 0
    %5722 = vmatprep.subr.bf16.mxu0 0
    %5723 = vmatpush1.bf16.xpose.msra.mxu0 0
    %5724 = vmatprep.subr.bf16.mxu0 0
    %5725 = vmatpush1.bf16.xpose.msra.mxu0 0
    %5726 = vmatprep.subr.bf16.mxu0 0
    %5727 = vmatpush1.bf16.xpose.msra.mxu0 0
    %5728 = vmatprep.subr.bf16.mxu0 %v4776
    %5729 = vmatpush1.bf16.xpose.msra.mxu0 %v4775
    %5730 = vmatprep.subr.bf16.mxu0 0
    %5731 = vmatpush2.bf16.xpose.msra.mxu0 0
    %5732 = vmatprep.subr.bf16.mxu0 0
    %5733 = vmatpush2.bf16.xpose.msra.mxu0 0
    %5734 = vmatprep.subr.bf16.mxu0 0
    %5735 = vmatpush2.bf16.xpose.msra.mxu0 0
    %5736 = vmatprep.subr.bf16.mxu0 0
    %5737 = vmatpush2.bf16.xpose.msra.mxu0 0
    %5738 = vmatprep.subr.bf16.mxu0 0
    %5739 = vmatpush2.bf16.xpose.msra.mxu0 0
    %5740 = vmatprep.subr.bf16.mxu0 0
    %5741 = vmatpush2.bf16.xpose.msra.mxu0 0
    %5742 = vmatprep.subr.bf16.mxu0 0
    %5743 = vmatpush2.bf16.xpose.msra.mxu0 0
    %5744 = vmatprep.subr.bf16.mxu0 0
    %5745 = vmatpush2.bf16.xpose.msra.mxu0 0
    %5746 = vmatprep.mubr.bf16.mxu0 %v5673
    %5747 = vmatmul.mubr.bf16.gmra.mxu0 %v5672
    %v5748 = vpop.f32.mrf.mxu0
    %v5749 = vadd.f32 %v5709, %v5748
    %v5750 = vpop.f32.mrf.mxu0
    %v5751 = vpop.f32.mrf.mxu0
    %v5752 = vpop.f32.mrf.mxu0
    %5753 = vdwg.mxu0
    %v5754 = vsel %vm671, %v5749, -inf
    %5755 = vmax.xlane.f32.xlu0 %v5754
    %v5756 = vpop.xlane.xlu0 %5755
    %v5757 = vsub.f32 %v5749, %v5756
    %v5758 = vmul.f32 %v5757, 1.442695
    %v5759 = vpow.pop %v5758
    %v5760 = vsel %vm671, %v5759, 0.0
    %5761 = vadd.xlane.f32.xlu0 %v5760
    %v5762 = vpop.xlane.xlu0 %5761
    %v5763 = vrcp.pop %v5762
    %v5764 = vmul.f32 %v5759, %v5763
    %v5765 = vpack.c.bf16 %v5764, %v5764
    %v5767 = vsel %vm671, %v5765, 0
    %v5770 = vsel %vm687, %v4773, 0
    %v5773 = vsel %vm687, %v4774, 0
    %v5776 = vsel %vm687, %v4775, 0
    %v5779 = vsel %vm687, %v4776, 0
    %5781 = vmatprep.subr.bf16.mxu0 0
    %5782 = vmatpush1.bf16.msra.mxu0 0
    %5783 = vmatprep.subr.bf16.mxu0 0
    %5784 = vmatpush1.bf16.msra.mxu0 0
    %5785 = vmatprep.subr.bf16.mxu0 0
    %5786 = vmatpush1.bf16.msra.mxu0 0
    %5787 = vmatprep.subr.bf16.mxu0 0
    %5788 = vmatpush1.bf16.msra.mxu0 0
    %5789 = vmatprep.subr.bf16.mxu0 0
    %5790 = vmatpush1.bf16.msra.mxu0 0
    %5791 = vmatprep.subr.bf16.mxu0 0
    %5792 = vmatpush1.bf16.msra.mxu0 0
    %5793 = vmatprep.subr.bf16.mxu0 0
    %5794 = vmatpush1.bf16.msra.mxu0 0
    %5795 = vmatprep.subr.bf16.mxu0 %v5773
    %5796 = vmatpush1.bf16.msra.mxu0 %v5770
    %5797 = vmatprep.subr.bf16.mxu0 0
    %5798 = vmatpush2.bf16.msra.mxu0 0
    %5799 = vmatprep.subr.bf16.mxu0 0
    %5800 = vmatpush2.bf16.msra.mxu0 0
    %5801 = vmatprep.subr.bf16.mxu0 0
    %5802 = vmatpush2.bf16.msra.mxu0 0
    %5803 = vmatprep.subr.bf16.mxu0 0
    %5804 = vmatpush2.bf16.msra.mxu0 0
    %5805 = vmatprep.subr.bf16.mxu0 0
    %5806 = vmatpush2.bf16.msra.mxu0 0
    %5807 = vmatprep.subr.bf16.mxu0 0
    %5808 = vmatpush2.bf16.msra.mxu0 0
    %5809 = vmatprep.subr.bf16.mxu0 0
    %5810 = vmatpush2.bf16.msra.mxu0 0
    %5811 = vmatprep.subr.bf16.mxu0 0
    %5812 = vmatpush2.bf16.msra.mxu0 0
    %5813 = vmatprep.mubr.bf16.mxu0 0
    %5814 = vmatmul.mubr.bf16.gmra.mxu0 %v5767
    %v5815 = vpop.f32.mrf.mxu0
    %v5816 = vadd.f32 0.0, %v5815
    %v5817 = vpop.f32.mrf.mxu0
    %v5818 = vadd.f32 0.0, %v5817
    %v5819 = vpop.f32.mrf.mxu0
    %v5820 = vpop.f32.mrf.mxu0
    %5821 = vdwg.mxu0
    %5822 = vmatprep.subr.bf16.mxu0 0
    %5823 = vmatpush1.bf16.msra.mxu0 0
    %5824 = vmatprep.subr.bf16.mxu0 0
    %5825 = vmatpush1.bf16.msra.mxu0 0
    %5826 = vmatprep.subr.bf16.mxu0 0
    %5827 = vmatpush1.bf16.msra.mxu0 0
    %5828 = vmatprep.subr.bf16.mxu0 0
    %5829 = vmatpush1.bf16.msra.mxu0 0
    %5830 = vmatprep.subr.bf16.mxu0 0
    %5831 = vmatpush1.bf16.msra.mxu0 0
    %5832 = vmatprep.subr.bf16.mxu0 0
    %5833 = vmatpush1.bf16.msra.mxu0 0
    %5834 = vmatprep.subr.bf16.mxu0 0
    %5835 = vmatpush1.bf16.msra.mxu0 0
    %5836 = vmatprep.subr.bf16.mxu0 %v5779
    %5837 = vmatpush1.bf16.msra.mxu0 %v5776
    %5838 = vmatprep.subr.bf16.mxu0 0
    %5839 = vmatpush2.bf16.msra.mxu0 0
    %5840 = vmatprep.subr.bf16.mxu0 0
    %5841 = vmatpush2.bf16.msra.mxu0 0
    %5842 = vmatprep.subr.bf16.mxu0 0
    %5843 = vmatpush2.bf16.msra.mxu0 0
    %5844 = vmatprep.subr.bf16.mxu0 0
    %5845 = vmatpush2.bf16.msra.mxu0 0
    %5846 = vmatprep.subr.bf16.mxu0 0
    %5847 = vmatpush2.bf16.msra.mxu0 0
    %5848 = vmatprep.subr.bf16.mxu0 0
    %5849 = vmatpush2.bf16.msra.mxu0 0
    %5850 = vmatprep.subr.bf16.mxu0 0
    %5851 = vmatpush2.bf16.msra.mxu0 0
    %5852 = vmatprep.subr.bf16.mxu0 0
    %5853 = vmatpush2.bf16.msra.mxu0 0
    %5854 = vmatprep.mubr.bf16.mxu0 0
    %5855 = vmatmul.mubr.bf16.gmra.mxu0 %v5767
    %v5856 = vpop.f32.mrf.mxu0
    %v5857 = vadd.f32 0.0, %v5856
    %v5858 = vpop.f32.mrf.mxu0
    %v5859 = vadd.f32 0.0, %v5858
    %v5860 = vpop.f32.mrf.mxu0
    %v5861 = vpop.f32.mrf.mxu0
    %5862 = vdwg.mxu0
    %v5863 = vadd.f32 %v4697, %v5816
    %v5864 = vadd.f32 %v4698, %v5818
    %v5865 = vadd.f32 %v4699, %v5857
    %v5866 = vadd.f32 %v4700, %v5859
    %v5867 = vpack.c.bf16 %v5863, %v5863
    %v5868 = vpack.c.bf16 %v5864, %v5864
    %v5869 = vpack.c.bf16 %v5865, %v5865
    %v5870 = vpack.c.bf16 %v5866, %v5866
    %v5871 = vpack.c.bf16 %v5298, %v5298
    %v5872 = vpack.c.bf16 %v5299, %v5299
    %v5873 = vld [vmem:[%s4] sm:$0xf]
    %v5874 = vld [vmem:[%s4 + $0x4] sm:$0xf]
    %v5875 = vld [vmem:[%s4 + $0x8] sm:$0xf]
    %v5876 = vld [vmem:[%s4 + $0xc] sm:$0xf]
    %v5877 = vld [vmem:[%s4 + $0x10] sm:$0xf]
    %v5878 = vld [vmem:[%s4 + $0x14] sm:$0xf]
    %v5879 = vld [vmem:[%s4 + $0x18] sm:$0xf]
    %v5880 = vld [vmem:[%s4 + $0x1c] sm:$0xf]
    %v5881 = vld [vmem:[%s4 + $0x20] sm:$0xf]
    %v5882 = vld [vmem:[%s4 + $0x24] sm:$0xf]
    %v5883 = vld [vmem:[%s4 + $0x28] sm:$0xf]
    %v5884 = vld [vmem:[%s4 + $0x2c] sm:$0xf]
    %v5885 = vld [vmem:[%s4 + $0x30] sm:$0xf]
    %v5886 = vld [vmem:[%s4 + $0x34] sm:$0xf]
    %v5887 = vld [vmem:[%s4 + $0x38] sm:$0xf]
    %v5888 = vld [vmem:[%s4 + $0x3c] sm:$0xf]
    %v5889 = vld [vmem:[%s4 + $0x40] sm:$0xf]
    %v5890 = vld [vmem:[%s4 + $0x44] sm:$0xf]
    %v5891 = vld [vmem:[%s4 + $0x48] sm:$0xf]
    %v5892 = vld [vmem:[%s4 + $0x4c] sm:$0xf]
    %v5893 = vld [vmem:[%s4 + $0x50] sm:$0xf]
    %v5894 = vld [vmem:[%s4 + $0x54] sm:$0xf]
    %v5895 = vld [vmem:[%s4 + $0x58] sm:$0xf]
    %v5896 = vld [vmem:[%s4 + $0x5c] sm:$0xf]
    %v5897 = vld [vmem:[%s4 + $0x60] sm:$0xf]
    %v5898 = vld [vmem:[%s4 + $0x64] sm:$0xf]
    %v5899 = vld [vmem:[%s4 + $0x68] sm:$0xf]
    %v5900 = vld [vmem:[%s4 + $0x6c] sm:$0xf]
    %v5901 = vld [vmem:[%s4 + $0x70] sm:$0xf]
    %v5902 = vld [vmem:[%s4 + $0x74] sm:$0xf]
    %v5903 = vld [vmem:[%s4 + $0x78] sm:$0xf]
    %v5904 = vld [vmem:[%s4 + $0x7c] sm:$0xf]
    %v5905 = vld [vmem:[%s4 + $0x80] sm:$0xf]
    %v5906 = vld [vmem:[%s4 + $0x84] sm:$0xf]
    %v5907 = vld [vmem:[%s4 + $0x88] sm:$0xf]
    %v5908 = vld [vmem:[%s4 + $0x8c] sm:$0xf]
    %v5909 = vld [vmem:[%s4 + $0x90] sm:$0xf]
    %v5910 = vld [vmem:[%s4 + $0x94] sm:$0xf]
    %v5911 = vld [vmem:[%s4 + $0x98] sm:$0xf]
    %v5912 = vld [vmem:[%s4 + $0x9c] sm:$0xf]
    %v5913 = vld [vmem:[%s4 + $0xa0] sm:$0xf]
    %v5914 = vld [vmem:[%s4 + $0xa4] sm:$0xf]
    %v5915 = vld [vmem:[%s4 + $0xa8] sm:$0xf]
    %v5916 = vld [vmem:[%s4 + $0xac] sm:$0xf]
    %v5917 = vld [vmem:[%s4 + $0xb0] sm:$0xf]
    %v5918 = vld [vmem:[%s4 + $0xb4] sm:$0xf]
    %v5919 = vld [vmem:[%s4 + $0xb8] sm:$0xf]
    %v5920 = vld [vmem:[%s4 + $0xbc] sm:$0xf]
    %v5921 = vld [vmem:[%s4 + $0xc0] sm:$0xf]
    %v5922 = vld [vmem:[%s4 + $0xc4] sm:$0xf]
    %v5923 = vld [vmem:[%s4 + $0xc8] sm:$0xf]
    %v5924 = vld [vmem:[%s4 + $0xcc] sm:$0xf]
    %v5925 = vld [vmem:[%s4 + $0xd0] sm:$0xf]
    %v5926 = vld [vmem:[%s4 + $0xd4] sm:$0xf]
    %v5927 = vld [vmem:[%s4 + $0xd8] sm:$0xf]
    %v5928 = vld [vmem:[%s4 + $0xdc] sm:$0xf]
    %v5929 = vld [vmem:[%s4 + $0xe0] sm:$0xf]
    %v5930 = vld [vmem:[%s4 + $0xe4] sm:$0xf]
    %v5931 = vld [vmem:[%s4 + $0xe8] sm:$0xf]
    %v5932 = vld [vmem:[%s4 + $0xec] sm:$0xf]
    %v5933 = vld [vmem:[%s4 + $0xf0] sm:$0xf]
    %v5934 = vld [vmem:[%s4 + $0xf4] sm:$0xf]
    %v5935 = vld [vmem:[%s4 + $0xf8] sm:$0xf]
    %v5936 = vld [vmem:[%s4 + $0xfc] sm:$0xf]
    %v5937 = vld [vmem:[%s5] sm:$0xf]
    %v5938 = vld [vmem:[%s5 + $0x4] sm:$0xf]
    %v5939 = vld [vmem:[%s5 + $0x8] sm:$0xf]
    %v5940 = vld [vmem:[%s5 + $0xc] sm:$0xf]
    %v5941 = vld [vmem:[%s5 + $0x10] sm:$0xf]
    %v5942 = vld [vmem:[%s5 + $0x14] sm:$0xf]
    %v5943 = vld [vmem:[%s5 + $0x18] sm:$0xf]
    %v5944 = vld [vmem:[%s5 + $0x1c] sm:$0xf]
    %v5945 = vld [vmem:[%s5 + $0x20] sm:$0xf]
    %v5946 = vld [vmem:[%s5 + $0x24] sm:$0xf]
    %v5947 = vld [vmem:[%s5 + $0x28] sm:$0xf]
    %v5948 = vld [vmem:[%s5 + $0x2c] sm:$0xf]
    %v5949 = vld [vmem:[%s5 + $0x30] sm:$0xf]
    %v5950 = vld [vmem:[%s5 + $0x34] sm:$0xf]
    %v5951 = vld [vmem:[%s5 + $0x38] sm:$0xf]
    %v5952 = vld [vmem:[%s5 + $0x3c] sm:$0xf]
    %v5953 = vld [vmem:[%s5 + $0x40] sm:$0xf]
    %v5954 = vld [vmem:[%s5 + $0x44] sm:$0xf]
    %v5955 = vld [vmem:[%s5 + $0x48] sm:$0xf]
    %v5956 = vld [vmem:[%s5 + $0x4c] sm:$0xf]
    %v5957 = vld [vmem:[%s5 + $0x50] sm:$0xf]
    %v5958 = vld [vmem:[%s5 + $0x54] sm:$0xf]
    %v5959 = vld [vmem:[%s5 + $0x58] sm:$0xf]
    %v5960 = vld [vmem:[%s5 + $0x5c] sm:$0xf]
    %v5985 = vunpack.c.l.b16 %v5937
    %v5986 = vunpack.c.l.b16 %v5938
    %v5987 = vunpack.c.l.b16 %v5939
    %v5988 = vunpack.c.l.b16 %v5940
    %v5989 = vunpack.c.l.b16 %v5941
    %v5990 = vunpack.c.l.b16 %v5942
    %v5991 = vunpack.c.l.b16 %v5943
    %v5992 = vunpack.c.l.b16 %v5944
    %v5993 = vunpack.c.l.b16 %v5945
    %v5994 = vunpack.c.l.b16 %v5946
    %v5995 = vunpack.c.l.b16 %v5947
    %v5996 = vunpack.c.l.b16 %v5948
    %v5997 = vunpack.c.l.b16 %v5949
    %v5998 = vunpack.c.l.b16 %v5950
    %v5999 = vunpack.c.l.b16 %v5951
    %v6000 = vunpack.c.l.b16 %v5952
    %v6001 = vunpack.c.l.b16 %v5953
    %v6002 = vunpack.c.l.b16 %v5954
    %v6003 = vunpack.c.l.b16 %v5955
    %v6004 = vunpack.c.l.b16 %v5956
    %v6005 = vunpack.c.l.b16 %v5957
    %v6006 = vunpack.c.l.b16 %v5958
    %v6007 = vunpack.c.l.b16 %v5959
    %v6008 = vunpack.c.l.b16 %v5960
    %v6009 = vpack.c.b16 %v5986, %v5985
    %v6010 = vpack.c.b16 %v5988, %v5987
    %v6011 = vpack.c.b16 %v5990, %v5989
    %v6012 = vpack.c.b16 %v5992, %v5991
    %v6013 = vpack.c.b16 %v5994, %v5993
    %v6014 = vpack.c.b16 %v5996, %v5995
    %v6015 = vpack.c.b16 %v5998, %v5997
    %v6016 = vpack.c.b16 %v6000, %v5999
    %v6017 = vpack.c.b16 %v6002, %v6001
    %v6018 = vpack.c.b16 %v6004, %v6003
    %v6019 = vpack.c.b16 %v6006, %v6005
    %v6020 = vpack.c.b16 %v6008, %v6007
    %v6034 = vsel %vm624, %v5872, 0
    %6036 = vmatprep.subr.bf16.mxu0 0
    %6037 = vmatpush1.bf16.msra.mxu0 %v6016
    %6038 = vmatprep.subr.bf16.mxu0 0
    %6039 = vmatpush1.bf16.msra.mxu0 %v6015
    %6040 = vmatprep.subr.bf16.mxu0 0
    %6041 = vmatpush1.bf16.msra.mxu0 %v6014
    %6042 = vmatprep.subr.bf16.mxu0 0
    %6043 = vmatpush1.bf16.msra.mxu0 %v6013
    %6044 = vmatprep.subr.bf16.mxu0 0
    %6045 = vmatpush1.bf16.msra.mxu0 %v6012
    %6046 = vmatprep.subr.bf16.mxu0 0
    %6047 = vmatpush1.bf16.msra.mxu0 %v6011
    %6048 = vmatprep.subr.bf16.mxu0 0
    %6049 = vmatpush1.bf16.msra.mxu0 %v6010
    %6050 = vmatprep.subr.bf16.mxu0 0
    %6051 = vmatpush1.bf16.msra.mxu0 %v6009
    %6052 = vmatprep.subr.bf16.mxu0 0
    %6053 = vmatpush2.bf16.msra.mxu0 0
    %6054 = vmatprep.subr.bf16.mxu0 0
    %6055 = vmatpush2.bf16.msra.mxu0 0
    %6056 = vmatprep.subr.bf16.mxu0 0
    %6057 = vmatpush2.bf16.msra.mxu0 0
    %6058 = vmatprep.subr.bf16.mxu0 0
    %6059 = vmatpush2.bf16.msra.mxu0 0
    %6060 = vmatprep.subr.bf16.mxu0 0
    %6061 = vmatpush2.bf16.msra.mxu0 %v6020
    %6062 = vmatprep.subr.bf16.mxu0 0
    %6063 = vmatpush2.bf16.msra.mxu0 %v6019
    %6064 = vmatprep.subr.bf16.mxu0 0
    %6065 = vmatpush2.bf16.msra.mxu0 %v6018
    %6066 = vmatprep.subr.bf16.mxu0 0
    %6067 = vmatpush2.bf16.msra.mxu0 %v6017
    %6068 = vmatprep.mubr.bf16.mxu0 %v6034
    %6069 = vmatmul.mubr.bf16.gmra.mxu0 %v5871
    %v6070 = vpop.f32.mrf.mxu0
    %v6071 = vadd.f32 0.0, %v6070
    %v6072 = vpop.f32.mrf.mxu0
    %v6073 = vpop.f32.mrf.mxu0
    %v6074 = vpop.f32.mrf.mxu0
    %6075 = vdwg.mxu0
    %v6140 = vunpack.c.l.b16 %v5873
    %v6141 = vunpack.c.l.b16 %v5874
    %v6142 = vunpack.c.l.b16 %v5875
    %v6143 = vunpack.c.l.b16 %v5876
    %v6144 = vunpack.c.l.b16 %v5877
    %v6145 = vunpack.c.l.b16 %v5878
    %v6146 = vunpack.c.l.b16 %v5879
    %v6147 = vunpack.c.l.b16 %v5880
    %v6148 = vunpack.c.l.b16 %v5881
    %v6149 = vunpack.c.l.b16 %v5882
    %v6150 = vunpack.c.l.b16 %v5883
    %v6151 = vunpack.c.l.b16 %v5884
    %v6152 = vunpack.c.l.b16 %v5885
    %v6153 = vunpack.c.l.b16 %v5886
    %v6154 = vunpack.c.l.b16 %v5887
    %v6155 = vunpack.c.l.b16 %v5888
    %v6156 = vunpack.c.l.b16 %v5889
    %v6157 = vunpack.c.l.b16 %v5890
    %v6158 = vunpack.c.l.b16 %v5891
    %v6159 = vunpack.c.l.b16 %v5892
    %v6160 = vunpack.c.l.b16 %v5893
    %v6161 = vunpack.c.l.b16 %v5894
    %v6162 = vunpack.c.l.b16 %v5895
    %v6163 = vunpack.c.l.b16 %v5896
    %v6164 = vunpack.c.l.b16 %v5897
    %v6165 = vunpack.c.l.b16 %v5898
    %v6166 = vunpack.c.l.b16 %v5899
    %v6167 = vunpack.c.l.b16 %v5900
    %v6168 = vunpack.c.l.b16 %v5901
    %v6169 = vunpack.c.l.b16 %v5902
    %v6170 = vunpack.c.l.b16 %v5903
    %v6171 = vunpack.c.l.b16 %v5904
    %v6172 = vunpack.c.l.b16 %v5905
    %v6173 = vunpack.c.l.b16 %v5906
    %v6174 = vunpack.c.l.b16 %v5907
    %v6175 = vunpack.c.l.b16 %v5908
    %v6176 = vunpack.c.l.b16 %v5909
    %v6177 = vunpack.c.l.b16 %v5910
    %v6178 = vunpack.c.l.b16 %v5911
    %v6179 = vunpack.c.l.b16 %v5912
    %v6180 = vunpack.c.l.b16 %v5913
    %v6181 = vunpack.c.l.b16 %v5914
    %v6182 = vunpack.c.l.b16 %v5915
    %v6183 = vunpack.c.l.b16 %v5916
    %v6184 = vunpack.c.l.b16 %v5917
    %v6185 = vunpack.c.l.b16 %v5918
    %v6186 = vunpack.c.l.b16 %v5919
    %v6187 = vunpack.c.l.b16 %v5920
    %v6188 = vunpack.c.l.b16 %v5921
    %v6189 = vunpack.c.l.b16 %v5922
    %v6190 = vunpack.c.l.b16 %v5923
    %v6191 = vunpack.c.l.b16 %v5924
    %v6192 = vunpack.c.l.b16 %v5925
    %v6193 = vunpack.c.l.b16 %v5926
    %v6194 = vunpack.c.l.b16 %v5927
    %v6195 = vunpack.c.l.b16 %v5928
    %v6196 = vunpack.c.l.b16 %v5929
    %v6197 = vunpack.c.l.b16 %v5930
    %v6198 = vunpack.c.l.b16 %v5931
    %v6199 = vunpack.c.l.b16 %v5932
    %v6200 = vunpack.c.l.b16 %v5933
    %v6201 = vunpack.c.l.b16 %v5934
    %v6202 = vunpack.c.l.b16 %v5935
    %v6203 = vunpack.c.l.b16 %v5936
    %v6204 = vpack.c.b16 %v6141, %v6140
    %v6205 = vpack.c.b16 %v6143, %v6142
    %v6206 = vpack.c.b16 %v6145, %v6144
    %v6207 = vpack.c.b16 %v6147, %v6146
    %v6208 = vpack.c.b16 %v6149, %v6148
    %v6209 = vpack.c.b16 %v6151, %v6150
    %v6210 = vpack.c.b16 %v6153, %v6152
    %v6211 = vpack.c.b16 %v6155, %v6154
    %v6212 = vpack.c.b16 %v6157, %v6156
    %v6213 = vpack.c.b16 %v6159, %v6158
    %v6214 = vpack.c.b16 %v6161, %v6160
    %v6215 = vpack.c.b16 %v6163, %v6162
    %v6216 = vpack.c.b16 %v6165, %v6164
    %v6217 = vpack.c.b16 %v6167, %v6166
    %v6218 = vpack.c.b16 %v6169, %v6168
    %v6219 = vpack.c.b16 %v6171, %v6170
    %v6220 = vpack.c.b16 %v6173, %v6172
    %v6221 = vpack.c.b16 %v6175, %v6174
    %v6222 = vpack.c.b16 %v6177, %v6176
    %v6223 = vpack.c.b16 %v6179, %v6178
    %v6224 = vpack.c.b16 %v6181, %v6180
    %v6225 = vpack.c.b16 %v6183, %v6182
    %v6226 = vpack.c.b16 %v6185, %v6184
    %v6227 = vpack.c.b16 %v6187, %v6186
    %v6228 = vpack.c.b16 %v6189, %v6188
    %v6229 = vpack.c.b16 %v6191, %v6190
    %v6230 = vpack.c.b16 %v6193, %v6192
    %v6231 = vpack.c.b16 %v6195, %v6194
    %v6232 = vpack.c.b16 %v6197, %v6196
    %v6233 = vpack.c.b16 %v6199, %v6198
    %v6234 = vpack.c.b16 %v6201, %v6200
    %v6235 = vpack.c.b16 %v6203, %v6202
    %6268 = vmatprep.subr.bf16.mxu0 0
    %6269 = vmatpush1.bf16.msra.mxu0 %v6211
    %6270 = vmatprep.subr.bf16.mxu0 0
    %6271 = vmatpush1.bf16.msra.mxu0 %v6210
    %6272 = vmatprep.subr.bf16.mxu0 0
    %6273 = vmatpush1.bf16.msra.mxu0 %v6209
    %6274 = vmatprep.subr.bf16.mxu0 0
    %6275 = vmatpush1.bf16.msra.mxu0 %v6208
    %6276 = vmatprep.subr.bf16.mxu0 0
    %6277 = vmatpush1.bf16.msra.mxu0 %v6207
    %6278 = vmatprep.subr.bf16.mxu0 0
    %6279 = vmatpush1.bf16.msra.mxu0 %v6206
    %6280 = vmatprep.subr.bf16.mxu0 0
    %6281 = vmatpush1.bf16.msra.mxu0 %v6205
    %6282 = vmatprep.subr.bf16.mxu0 0
    %6283 = vmatpush1.bf16.msra.mxu0 %v6204
    %6284 = vmatprep.subr.bf16.mxu0 0
    %6285 = vmatpush2.bf16.msra.mxu0 %v6219
    %6286 = vmatprep.subr.bf16.mxu0 0
    %6287 = vmatpush2.bf16.msra.mxu0 %v6218
    %6288 = vmatprep.subr.bf16.mxu0 0
    %6289 = vmatpush2.bf16.msra.mxu0 %v6217
    %6290 = vmatprep.subr.bf16.mxu0 0
    %6291 = vmatpush2.bf16.msra.mxu0 %v6216
    %6292 = vmatprep.subr.bf16.mxu0 0
    %6293 = vmatpush2.bf16.msra.mxu0 %v6215
    %6294 = vmatprep.subr.bf16.mxu0 0
    %6295 = vmatpush2.bf16.msra.mxu0 %v6214
    %6296 = vmatprep.subr.bf16.mxu0 0
    %6297 = vmatpush2.bf16.msra.mxu0 %v6213
    %6298 = vmatprep.subr.bf16.mxu0 0
    %6299 = vmatpush2.bf16.msra.mxu0 %v6212
    %6300 = vmatprep.mubr.bf16.mxu0 %v5868
    %6301 = vmatmul.mubr.bf16.gmra.mxu0 %v5867
    %v6302 = vpop.f32.mrf.mxu0
    %v6303 = vadd.f32 %v6071, %v6302
    %v6304 = vpop.f32.mrf.mxu0
    %v6305 = vpop.f32.mrf.mxu0
    %v6306 = vpop.f32.mrf.mxu0
    %6307 = vdwg.mxu0
    %6308 = vmatprep.subr.bf16.mxu0 0
    %6309 = vmatpush1.bf16.msra.mxu0 %v6227
    %6310 = vmatprep.subr.bf16.mxu0 0
    %6311 = vmatpush1.bf16.msra.mxu0 %v6226
    %6312 = vmatprep.subr.bf16.mxu0 0
    %6313 = vmatpush1.bf16.msra.mxu0 %v6225
    %6314 = vmatprep.subr.bf16.mxu0 0
    %6315 = vmatpush1.bf16.msra.mxu0 %v6224
    %6316 = vmatprep.subr.bf16.mxu0 0
    %6317 = vmatpush1.bf16.msra.mxu0 %v6223
    %6318 = vmatprep.subr.bf16.mxu0 0
    %6319 = vmatpush1.bf16.msra.mxu0 %v6222
    %6320 = vmatprep.subr.bf16.mxu0 0
    %6321 = vmatpush1.bf16.msra.mxu0 %v6221
    %6322 = vmatprep.subr.bf16.mxu0 0
    %6323 = vmatpush1.bf16.msra.mxu0 %v6220
    %6324 = vmatprep.subr.bf16.mxu0 0
    %6325 = vmatpush2.bf16.msra.mxu0 %v6235
    %6326 = vmatprep.subr.bf16.mxu0 0
    %6327 = vmatpush2.bf16.msra.mxu0 %v6234
    %6328 = vmatprep.subr.bf16.mxu0 0
    %6329 = vmatpush2.bf16.msra.mxu0 %v6233
    %6330 = vmatprep.subr.bf16.mxu0 0
    %6331 = vmatpush2.bf16.msra.mxu0 %v6232
    %6332 = vmatprep.subr.bf16.mxu0 0
    %6333 = vmatpush2.bf16.msra.mxu0 %v6231
    %6334 = vmatprep.subr.bf16.mxu0 0
    %6335 = vmatpush2.bf16.msra.mxu0 %v6230
    %6336 = vmatprep.subr.bf16.mxu0 0
    %6337 = vmatpush2.bf16.msra.mxu0 %v6229
    %6338 = vmatprep.subr.bf16.mxu0 0
    %6339 = vmatpush2.bf16.msra.mxu0 %v6228
    %6340 = vmatprep.mubr.bf16.mxu0 %v5870
    %6341 = vmatmul.mubr.bf16.gmra.mxu0 %v5869
    %v6342 = vpop.f32.mrf.mxu0
    %v6343 = vadd.f32 %v6303, %v6342
    %v6344 = vpop.f32.mrf.mxu0
    %v6345 = vpop.f32.mrf.mxu0
    %v6346 = vpop.f32.mrf.mxu0
    %6347 = vdwg.mxu0
    %v6348 = vld [vmem:[#allocation3] sm:$0x1]
    %v6350 = vlaneseq
    %v6351 = vshrl.u32 %v6350, 7
    %v6352 = vsub.s32 0, %v6351
    %v6353 = vrot.slane %v6348, %v6352
    %v6355 = vadd.f32 %v6343, %v6353
    %v6356 = vtanh.pop %v6355
    %v6357 = vld [vmem:[#allocation6] sm:$0x1]
    %v6359 = vlaneseq
    %v6360 = vshrl.u32 %v6359, 7
    %v6361 = vsub.s32 0, %v6360
    %v6362 = vrot.slane %v6357, %v6361
    %v6364 = vmul.f32 %v6356, %v6362
    %v6365 = vsel %vm624, %v6364, 0.0
    %6366 = vadd.xlane.f32.xlu0 %v6365
    %v6367 = vpop.xlane.xlu0 %6366
    %v6368 = vld [vmem:[#allocation2] sm:$0x1]
    %v6370 = vlaneseq
    %v6371 = vshrl.u32 %v6370, 7
    %v6372 = vsub.s32 0, %v6371
    %v6373 = vrot.slane %v6368, %v6372
    %v6375 = vadd.f32 %v6367, %v6373
    %v6376 = vsel %vm1812, %v6375, -inf
    %v6377 = vrot.slane %v6376, 4
    %v6378 = vmax.f32 %v6376, %v6377
    %v6379 = vrot.slane %v6378, 2
    %v6380 = vmax.f32 %v6378, %v6379
    %v6381 = vrot.slane %v6380, 1
    %v6382 = vmax.f32 %v6380, %v6381
    %v6383 = vsub.f32 %v6375, %v6382
    %v6384 = vmul.f32 %v6383, 1.442695
    %v6385 = vpow.pop %v6384
    %v6386 = vsel %vm1812, %v6385, 0.0
    %v6387 = vrot.slane %v6386, 4
    %v6388 = vadd.f32 %v6386, %v6387
    %v6389 = vrot.slane %v6388, 2
    %v6390 = vadd.f32 %v6388, %v6389
    %v6391 = vrot.slane %v6390, 1
    %v6392 = vadd.f32 %v6390, %v6391
    %v6393 = vrcp.pop %v6392
    %v6394 = vmul.f32 %v6385, %v6393
    %v6395 = vld [vmem:[%s9] sm:$0xff]
    %v6396 = vld [vmem:[%s9 + $0x8] sm:$0xff]
    %v6397 = vld [vmem:[%s9 + $0x10] sm:$0xff]
    %v6398 = vld [vmem:[%s9 + $0x18] sm:$0xff]
    %v6399 = vld [vmem:[%s9 + $0x20] sm:$0xff]
    %v6400 = vld [vmem:[%s9 + $0x28] sm:$0xff]
    %v6401 = vld [vmem:[%s9 + $0x30] sm:$0xff]
    %v6402 = vld [vmem:[%s9 + $0x38] sm:$0xff]
    %v6403 = vld [vmem:[%s9 + $0x40] sm:$0xff]
    %v6404 = vld [vmem:[%s9 + $0x48] sm:$0xff]
    %v6405 = vld [vmem:[%s9 + $0x50] sm:$0xff]
    %v6406 = vld [vmem:[%s9 + $0x58] sm:$0xff]
    %v6407 = vld [vmem:[%s9 + $0x60] sm:$0xff]
    %v6408 = vld [vmem:[%s9 + $0x68] sm:$0xff]
    %v6409 = vld [vmem:[%s9 + $0x70] sm:$0xff]
    %v6410 = vld [vmem:[%s9 + $0x78] sm:$0xff]
    %v6411 = vld [vmem:[%s9 + $0x80] sm:$0xff]
    %v6412 = vld [vmem:[%s9 + $0x88] sm:$0xff]
    %v6413 = vld [vmem:[%s9 + $0x90] sm:$0xff]
    %v6414 = vld [vmem:[%s9 + $0x98] sm:$0xff]
    %v6415 = vld [vmem:[%s9 + $0xa0] sm:$0xff]
    %v6416 = vld [vmem:[%s9 + $0xa8] sm:$0xff]
    %v6417 = vld [vmem:[%s9 + $0xb0] sm:$0xff]
    %v6418 = vld [vmem:[%s9 + $0xb8] sm:$0xff]
    %v6419 = vld [vmem:[%s9 + $0xc0] sm:$0xff]
    %v6420 = vld [vmem:[%s9 + $0xc8] sm:$0xff]
    %v6421 = vld [vmem:[%s9 + $0xd0] sm:$0xff]
    %v6422 = vld [vmem:[%s9 + $0xd8] sm:$0xff]
    %v6423 = vld [vmem:[%s9 + $0xe0] sm:$0xff]
    %v6424 = vld [vmem:[%s9 + $0xe8] sm:$0xff]
    %v6425 = vld [vmem:[%s9 + $0xf0] sm:$0xff]
    %v6426 = vld [vmem:[%s9 + $0xf8] sm:$0xff]
    %v6427 = vld [vmem:[%s9 + $0x100] sm:$0xff]
    %v6428 = vld [vmem:[%s9 + $0x108] sm:$0xff]
    %v6429 = vld [vmem:[%s9 + $0x110] sm:$0xff]
    %v6430 = vld [vmem:[%s9 + $0x118] sm:$0xff]
    %v6431 = vld [vmem:[%s9 + $0x120] sm:$0xff]
    %v6432 = vld [vmem:[%s9 + $0x128] sm:$0xff]
    %v6433 = vld [vmem:[%s9 + $0x130] sm:$0xff]
    %v6434 = vld [vmem:[%s9 + $0x138] sm:$0xff]
    %v6435 = vld [vmem:[%s9 + $0x140] sm:$0xff]
    %v6436 = vld [vmem:[%s9 + $0x148] sm:$0xff]
    %v6437 = vld [vmem:[%s9 + $0x150] sm:$0xff]
    %v6438 = vld [vmem:[%s9 + $0x158] sm:$0xff]
    %v6439 = vld [vmem:[%s9 + $0x160] sm:$0xff]
    %v6440 = vld [vmem:[%s9 + $0x168] sm:$0xff]
    %v6441 = vld [vmem:[%s9 + $0x170] sm:$0xff]
    %v6442 = vld [vmem:[%s9 + $0x178] sm:$0xff]
    %v6443 = vld [vmem:[%s9 + $0x180] sm:$0xff]
    %v6444 = vld [vmem:[%s9 + $0x188] sm:$0xff]
    %v6445 = vld [vmem:[%s9 + $0x190] sm:$0xff]
    %v6446 = vld [vmem:[%s9 + $0x198] sm:$0xff]
    %v6447 = vld [vmem:[%s9 + $0x1a0] sm:$0xff]
    %v6448 = vld [vmem:[%s9 + $0x1a8] sm:$0xff]
    %v6449 = vld [vmem:[%s9 + $0x1b0] sm:$0xff]
    %v6450 = vld [vmem:[%s9 + $0x1b8] sm:$0xff]
    %v6451 = vld [vmem:[%s9 + $0x1c0] sm:$0xff]
    %v6452 = vld [vmem:[%s9 + $0x1c8] sm:$0xff]
    %v6453 = vld [vmem:[%s9 + $0x1d0] sm:$0xff]
    %v6454 = vld [vmem:[%s9 + $0x1d8] sm:$0xff]
    %v6455 = vld [vmem:[%s9 + $0x1e0] sm:$0xff]
    %v6456 = vld [vmem:[%s9 + $0x1e8] sm:$0xff]
    %v6457 = vld [vmem:[%s9 + $0x1f0] sm:$0xff]
    %v6458 = vld [vmem:[%s9 + $0x1f8] sm:$0xff]
    %v6459 = vld [vmem:[%s9 + $0x200] sm:$0xff]
    %v6460 = vld [vmem:[%s9 + $0x208] sm:$0xff]
    %v6461 = vld [vmem:[%s9 + $0x210] sm:$0xff]
    %v6462 = vld [vmem:[%s9 + $0x218] sm:$0xff]
    %v6463 = vld [vmem:[%s9 + $0x220] sm:$0xff]
    %v6464 = vld [vmem:[%s9 + $0x228] sm:$0xff]
    %v6465 = vld [vmem:[%s9 + $0x230] sm:$0xff]
    %v6466 = vld [vmem:[%s9 + $0x238] sm:$0xff]
    %v6467 = vld [vmem:[%s9 + $0x240] sm:$0xff]
    %v6468 = vld [vmem:[%s9 + $0x248] sm:$0xff]
    %v6469 = vld [vmem:[%s9 + $0x250] sm:$0xff]
    %v6470 = vld [vmem:[%s9 + $0x258] sm:$0xff]
    %v6471 = vld [vmem:[%s9 + $0x260] sm:$0xff]
    %v6472 = vld [vmem:[%s9 + $0x268] sm:$0xff]
    %v6473 = vld [vmem:[%s9 + $0x270] sm:$0xff]
    %v6474 = vld [vmem:[%s9 + $0x278] sm:$0xff]
    %v6475 = vld [vmem:[%s9 + $0x280] sm:$0xff]
    %v6476 = vld [vmem:[%s9 + $0x288] sm:$0xff]
    %v6477 = vld [vmem:[%s9 + $0x290] sm:$0xff]
    %v6478 = vld [vmem:[%s9 + $0x298] sm:$0xff]
    %v6479 = vld [vmem:[%s9 + $0x2a0] sm:$0xff]
    %v6480 = vld [vmem:[%s9 + $0x2a8] sm:$0xff]
    %v6481 = vld [vmem:[%s9 + $0x2b0] sm:$0xff]
    %v6482 = vld [vmem:[%s9 + $0x2b8] sm:$0xff]
    %v6483 = vld [vmem:[%s9 + $0x2c0] sm:$0xff]
    %v6484 = vld [vmem:[%s9 + $0x2c8] sm:$0xff]
    %v6485 = vld [vmem:[%s9 + $0x2d0] sm:$0xff]
    %v6486 = vld [vmem:[%s9 + $0x2d8] sm:$0xff]
    %v6487 = vld [vmem:[%s9 + $0x2e0] sm:$0xff]
    %v6488 = vld [vmem:[%s9 + $0x2e8] sm:$0xff]
    %v6489 = vld [vmem:[%s9 + $0x2f0] sm:$0xff]
    %v6490 = vld [vmem:[%s9 + $0x2f8] sm:$0xff]
    %v6491 = vld [vmem:[%s9 + $0x300] sm:$0xff]
    %v6492 = vld [vmem:[%s9 + $0x308] sm:$0xff]
    %v6493 = vld [vmem:[%s9 + $0x310] sm:$0xff]
    %v6494 = vld [vmem:[%s9 + $0x318] sm:$0xff]
    %v6495 = vld [vmem:[%s9 + $0x320] sm:$0xff]
    %v6496 = vld [vmem:[%s9 + $0x328] sm:$0xff]
    %v6497 = vld [vmem:[%s9 + $0x330] sm:$0xff]
    %v6498 = vld [vmem:[%s9 + $0x338] sm:$0xff]
    %v6499 = vld [vmem:[%s9 + $0x340] sm:$0xff]
    %v6500 = vld [vmem:[%s9 + $0x348] sm:$0xff]
    %v6501 = vld [vmem:[%s9 + $0x350] sm:$0xff]
    %v6502 = vld [vmem:[%s9 + $0x358] sm:$0xff]
    %v6503 = vld [vmem:[%s9 + $0x360] sm:$0xff]
    %v6504 = vld [vmem:[%s9 + $0x368] sm:$0xff]
    %v6505 = vld [vmem:[%s9 + $0x370] sm:$0xff]
    %v6506 = vld [vmem:[%s9 + $0x378] sm:$0xff]
    %v6507 = vld [vmem:[%s9 + $0x380] sm:$0xff]
    %v6508 = vld [vmem:[%s9 + $0x388] sm:$0xff]
    %v6509 = vld [vmem:[%s9 + $0x390] sm:$0xff]
    %v6510 = vld [vmem:[%s9 + $0x398] sm:$0xff]
    %v6511 = vld [vmem:[%s9 + $0x3a0] sm:$0xff]
    %v6512 = vld [vmem:[%s9 + $0x3a8] sm:$0xff]
    %v6513 = vld [vmem:[%s9 + $0x3b0] sm:$0xff]
    %v6514 = vld [vmem:[%s9 + $0x3b8] sm:$0xff]
    %v6515 = vld [vmem:[%s9 + $0x3c0] sm:$0xff]
    %v6516 = vld [vmem:[%s9 + $0x3c8] sm:$0xff]
    %v6517 = vld [vmem:[%s9 + $0x3d0] sm:$0xff]
    %v6518 = vld [vmem:[%s9 + $0x3d8] sm:$0xff]
    %v6519 = vld [vmem:[%s9 + $0x3e0] sm:$0xff]
    %v6520 = vld [vmem:[%s9 + $0x3e8] sm:$0xff]
    %v6521 = vld [vmem:[%s9 + $0x3f0] sm:$0xff]
    %v6522 = vld [vmem:[%s9 + $0x3f8] sm:$0xff]
    %v6523 = vld [vmem:[#allocation8] sm:$0xff]
    %v6524 = vld [vmem:[#allocation8 + $0x8] sm:$0xff]
    %v6525 = vld [vmem:[#allocation8 + $0x10] sm:$0xff]
    %v6526 = vld [vmem:[#allocation8 + $0x18] sm:$0xff]
    %v6527 = vld [vmem:[#allocation8 + $0x20] sm:$0xff]
    %v6528 = vld [vmem:[#allocation8 + $0x28] sm:$0xff]
    %v6529 = vld [vmem:[#allocation8 + $0x30] sm:$0xff]
    %v6530 = vld [vmem:[#allocation8 + $0x38] sm:$0xff]
    %v6531 = vld [vmem:[#allocation8 + $0x40] sm:$0xff]
    %v6532 = vld [vmem:[#allocation8 + $0x48] sm:$0xff]
    %v6533 = vld [vmem:[#allocation8 + $0x50] sm:$0xff]
    %v6534 = vld [vmem:[#allocation8 + $0x58] sm:$0xff]
    %v6535 = vld [vmem:[#allocation8 + $0x60] sm:$0xff]
    %v6536 = vld [vmem:[#allocation8 + $0x68] sm:$0xff]
    %v6537 = vld [vmem:[#allocation8 + $0x70] sm:$0xff]
    %v6538 = vld [vmem:[#allocation8 + $0x78] sm:$0xff]
    %v6539 = vld [vmem:[#allocation8 + $0x80] sm:$0xff]
    %v6540 = vld [vmem:[#allocation8 + $0x88] sm:$0xff]
    %v6541 = vld [vmem:[#allocation8 + $0x90] sm:$0xff]
    %v6542 = vld [vmem:[#allocation8 + $0x98] sm:$0xff]
    %v6543 = vld [vmem:[#allocation8 + $0xa0] sm:$0xff]
    %v6544 = vld [vmem:[#allocation8 + $0xa8] sm:$0xff]
    %v6545 = vld [vmem:[#allocation8 + $0xb0] sm:$0xff]
    %v6546 = vld [vmem:[#allocation8 + $0xb8] sm:$0xff]
    %v6547 = vld [vmem:[#allocation8 + $0xc0] sm:$0xff]
    %v6548 = vld [vmem:[#allocation8 + $0xc8] sm:$0xff]
    %v6549 = vld [vmem:[#allocation8 + $0xd0] sm:$0xff]
    %v6550 = vld [vmem:[#allocation8 + $0xd8] sm:$0xff]
    %v6551 = vld [vmem:[#allocation8 + $0xe0] sm:$0xff]
    %v6552 = vld [vmem:[#allocation8 + $0xe8] sm:$0xff]
    %v6553 = vld [vmem:[#allocation8 + $0xf0] sm:$0xff]
    %v6554 = vld [vmem:[#allocation8 + $0xf8] sm:$0xff]
    %v6555 = vld [vmem:[#allocation8 + $0x100] sm:$0xff]
    %v6556 = vld [vmem:[#allocation8 + $0x108] sm:$0xff]
    %v6557 = vld [vmem:[#allocation8 + $0x110] sm:$0xff]
    %v6558 = vld [vmem:[#allocation8 + $0x118] sm:$0xff]
    %v6559 = vld [vmem:[#allocation8 + $0x120] sm:$0xff]
    %v6560 = vld [vmem:[#allocation8 + $0x128] sm:$0xff]
    %v6561 = vld [vmem:[#allocation8 + $0x130] sm:$0xff]
    %v6562 = vld [vmem:[#allocation8 + $0x138] sm:$0xff]
    %v6563 = vld [vmem:[#allocation8 + $0x140] sm:$0xff]
    %v6564 = vld [vmem:[#allocation8 + $0x148] sm:$0xff]
    %v6565 = vld [vmem:[#allocation8 + $0x150] sm:$0xff]
    %v6566 = vld [vmem:[#allocation8 + $0x158] sm:$0xff]
    %v6567 = vld [vmem:[#allocation8 + $0x160] sm:$0xff]
    %v6568 = vld [vmem:[#allocation8 + $0x168] sm:$0xff]
    %v6569 = vld [vmem:[#allocation8 + $0x170] sm:$0xff]
    %v6570 = vld [vmem:[#allocation8 + $0x178] sm:$0xff]
    %v6619 = vunpack.c.l.b16 %v6523
    %v6620 = vunpack.c.h.b16 %v6523
    %v6621 = vunpack.c.l.b16 %v6524
    %v6622 = vunpack.c.h.b16 %v6524
    %v6623 = vunpack.c.l.b16 %v6525
    %v6624 = vunpack.c.h.b16 %v6525
    %v6625 = vunpack.c.l.b16 %v6526
    %v6626 = vunpack.c.h.b16 %v6526
    %v6627 = vunpack.c.l.b16 %v6527
    %v6628 = vunpack.c.h.b16 %v6527
    %v6629 = vunpack.c.l.b16 %v6528
    %v6630 = vunpack.c.h.b16 %v6528
    %v6631 = vunpack.c.l.b16 %v6529
    %v6632 = vunpack.c.h.b16 %v6529
    %v6633 = vunpack.c.l.b16 %v6530
    %v6634 = vunpack.c.h.b16 %v6530
    %v6635 = vunpack.c.l.b16 %v6531
    %v6636 = vunpack.c.h.b16 %v6531
    %v6637 = vunpack.c.l.b16 %v6532
    %v6638 = vunpack.c.h.b16 %v6532
    %v6639 = vunpack.c.l.b16 %v6533
    %v6640 = vunpack.c.h.b16 %v6533
    %v6641 = vunpack.c.l.b16 %v6534
    %v6642 = vunpack.c.h.b16 %v6534
    %v6643 = vunpack.c.l.b16 %v6535
    %v6644 = vunpack.c.h.b16 %v6535
    %v6645 = vunpack.c.l.b16 %v6536
    %v6646 = vunpack.c.h.b16 %v6536
    %v6647 = vunpack.c.l.b16 %v6537
    %v6648 = vunpack.c.h.b16 %v6537
    %v6649 = vunpack.c.l.b16 %v6538
    %v6650 = vunpack.c.h.b16 %v6538
    %v6651 = vunpack.c.l.b16 %v6539
    %v6652 = vunpack.c.h.b16 %v6539
    %v6653 = vunpack.c.l.b16 %v6540
    %v6654 = vunpack.c.h.b16 %v6540
    %v6655 = vunpack.c.l.b16 %v6541
    %v6656 = vunpack.c.h.b16 %v6541
    %v6657 = vunpack.c.l.b16 %v6542
    %v6658 = vunpack.c.h.b16 %v6542
    %v6659 = vunpack.c.l.b16 %v6543
    %v6660 = vunpack.c.h.b16 %v6543
    %v6661 = vunpack.c.l.b16 %v6544
    %v6662 = vunpack.c.h.b16 %v6544
    %v6663 = vunpack.c.l.b16 %v6545
    %v6664 = vunpack.c.h.b16 %v6545
    %v6665 = vunpack.c.l.b16 %v6546
    %v6666 = vunpack.c.h.b16 %v6546
    %v6667 = vunpack.c.l.b16 %v6547
    %v6668 = vunpack.c.h.b16 %v6547
    %v6669 = vunpack.c.l.b16 %v6548
    %v6670 = vunpack.c.h.b16 %v6548
    %v6671 = vunpack.c.l.b16 %v6549
    %v6672 = vunpack.c.h.b16 %v6549
    %v6673 = vunpack.c.l.b16 %v6550
    %v6674 = vunpack.c.h.b16 %v6550
    %v6675 = vunpack.c.l.b16 %v6551
    %v6676 = vunpack.c.h.b16 %v6551
    %v6677 = vunpack.c.l.b16 %v6552
    %v6678 = vunpack.c.h.b16 %v6552
    %v6679 = vunpack.c.l.b16 %v6553
    %v6680 = vunpack.c.h.b16 %v6553
    %v6681 = vunpack.c.l.b16 %v6554
    %v6682 = vunpack.c.h.b16 %v6554
    %v6683 = vunpack.c.l.b16 %v6555
    %v6684 = vunpack.c.h.b16 %v6555
    %v6685 = vunpack.c.l.b16 %v6556
    %v6686 = vunpack.c.h.b16 %v6556
    %v6687 = vunpack.c.l.b16 %v6557
    %v6688 = vunpack.c.h.b16 %v6557
    %v6689 = vunpack.c.l.b16 %v6558
    %v6690 = vunpack.c.h.b16 %v6558
    %v6691 = vunpack.c.l.b16 %v6559
    %v6692 = vunpack.c.h.b16 %v6559
    %v6693 = vunpack.c.l.b16 %v6560
    %v6694 = vunpack.c.h.b16 %v6560
    %v6695 = vunpack.c.l.b16 %v6561
    %v6696 = vunpack.c.h.b16 %v6561
    %v6697 = vunpack.c.l.b16 %v6562
    %v6698 = vunpack.c.h.b16 %v6562
    %v6699 = vunpack.c.l.b16 %v6563
    %v6700 = vunpack.c.h.b16 %v6563
    %v6701 = vunpack.c.l.b16 %v6564
    %v6702 = vunpack.c.h.b16 %v6564
    %v6703 = vunpack.c.l.b16 %v6565
    %v6704 = vunpack.c.h.b16 %v6565
    %v6705 = vunpack.c.l.b16 %v6566
    %v6706 = vunpack.c.h.b16 %v6566
    %v6707 = vunpack.c.l.b16 %v6567
    %v6708 = vunpack.c.h.b16 %v6567
    %v6709 = vunpack.c.l.b16 %v6568
    %v6710 = vunpack.c.h.b16 %v6568
    %v6711 = vunpack.c.l.b16 %v6569
    %v6712 = vunpack.c.h.b16 %v6569
    %v6713 = vunpack.c.l.b16 %v6570
    %v6714 = vunpack.c.h.b16 %v6570
    %v6715 = vpack.c.b16 %v6623, %v6619
    %v6716 = vpack.c.b16 %v6624, %v6620
    %v6717 = vpack.c.b16 %v6625, %v6621
    %v6718 = vpack.c.b16 %v6626, %v6622
    %v6719 = vpack.c.b16 %v6631, %v6627
    %v6720 = vpack.c.b16 %v6632, %v6628
    %v6721 = vpack.c.b16 %v6633, %v6629
    %v6722 = vpack.c.b16 %v6634, %v6630
    %v6723 = vpack.c.b16 %v6639, %v6635
    %v6724 = vpack.c.b16 %v6640, %v6636
    %v6725 = vpack.c.b16 %v6641, %v6637
    %v6726 = vpack.c.b16 %v6642, %v6638
    %v6727 = vpack.c.b16 %v6647, %v6643
    %v6728 = vpack.c.b16 %v6648, %v6644
    %v6729 = vpack.c.b16 %v6649, %v6645
    %v6730 = vpack.c.b16 %v6650, %v6646
    %v6731 = vpack.c.b16 %v6655, %v6651
    %v6732 = vpack.c.b16 %v6656, %v6652
    %v6733 = vpack.c.b16 %v6657, %v6653
    %v6734 = vpack.c.b16 %v6658, %v6654
    %v6735 = vpack.c.b16 %v6663, %v6659
    %v6736 = vpack.c.b16 %v6664, %v6660
    %v6737 = vpack.c.b16 %v6665, %v6661
    %v6738 = vpack.c.b16 %v6666, %v6662
    %v6739 = vpack.c.b16 %v6671, %v6667
    %v6740 = vpack.c.b16 %v6672, %v6668
    %v6741 = vpack.c.b16 %v6673, %v6669
    %v6742 = vpack.c.b16 %v6674, %v6670
    %v6743 = vpack.c.b16 %v6679, %v6675
    %v6744 = vpack.c.b16 %v6680, %v6676
    %v6745 = vpack.c.b16 %v6681, %v6677
    %v6746 = vpack.c.b16 %v6682, %v6678
    %v6747 = vpack.c.b16 %v6687, %v6683
    %v6748 = vpack.c.b16 %v6688, %v6684
    %v6749 = vpack.c.b16 %v6689, %v6685
    %v6750 = vpack.c.b16 %v6690, %v6686
    %v6751 = vpack.c.b16 %v6695, %v6691
    %v6752 = vpack.c.b16 %v6696, %v6692
    %v6753 = vpack.c.b16 %v6697, %v6693
    %v6754 = vpack.c.b16 %v6698, %v6694
    %v6755 = vpack.c.b16 %v6703, %v6699
    %v6756 = vpack.c.b16 %v6704, %v6700
    %v6757 = vpack.c.b16 %v6705, %v6701
    %v6758 = vpack.c.b16 %v6706, %v6702
    %v6759 = vpack.c.b16 %v6711, %v6707
    %v6760 = vpack.c.b16 %v6712, %v6708
    %v6761 = vpack.c.b16 %v6713, %v6709
    %v6762 = vpack.c.b16 %v6714, %v6710
    %6811 = vmatprep.subr.bf16.mxu0 %v6744
    %6812 = vmatpush1.bf16.msra.mxu0 %v6743
    %6813 = vmatprep.subr.bf16.mxu0 %v6740
    %6814 = vmatpush1.bf16.msra.mxu0 %v6739
    %6815 = vmatprep.subr.bf16.mxu0 %v6736
    %6816 = vmatpush1.bf16.msra.mxu0 %v6735
    %6817 = vmatprep.subr.bf16.mxu0 %v6732
    %6818 = vmatpush1.bf16.msra.mxu0 %v6731
    %6819 = vmatprep.subr.bf16.mxu0 %v6728
    %6820 = vmatpush1.bf16.msra.mxu0 %v6727
    %6821 = vmatprep.subr.bf16.mxu0 %v6724
    %6822 = vmatpush1.bf16.msra.mxu0 %v6723
    %6823 = vmatprep.subr.bf16.mxu0 %v6720
    %6824 = vmatpush1.bf16.msra.mxu0 %v6719
    %6825 = vmatprep.subr.bf16.mxu0 %v6716
    %6826 = vmatpush1.bf16.msra.mxu0 %v6715
    %6827 = vmatprep.subr.bf16.mxu0 0
    %6828 = vmatpush2.bf16.msra.mxu0 0
    %6829 = vmatprep.subr.bf16.mxu0 0
    %6830 = vmatpush2.bf16.msra.mxu0 0
    %6831 = vmatprep.subr.bf16.mxu0 0
    %6832 = vmatpush2.bf16.msra.mxu0 0
    %6833 = vmatprep.subr.bf16.mxu0 0
    %6834 = vmatpush2.bf16.msra.mxu0 0
    %6835 = vmatprep.subr.bf16.mxu0 %v6760
    %6836 = vmatpush2.bf16.msra.mxu0 %v6759
    %6837 = vmatprep.subr.bf16.mxu0 %v6756
    %6838 = vmatpush2.bf16.msra.mxu0 %v6755
    %6839 = vmatprep.subr.bf16.mxu0 %v6752
    %6840 = vmatpush2.bf16.msra.mxu0 %v6751
    %6841 = vmatprep.subr.bf16.mxu0 %v6748
    %6842 = vmatpush2.bf16.msra.mxu0 %v6747
    %6843 = vmatprep.mubr.bf16.mxu0 %v6034
    %6844 = vmatmul.mubr.bf16.gmra.mxu0 %v5871
    %v6845 = vpop.f32.mrf.mxu0
    %v6846 = vadd.f32 0.0, %v6845
    %v6847 = vpop.f32.mrf.mxu0
    %v6848 = vadd.f32 0.0, %v6847
    %v6849 = vpop.f32.mrf.mxu0
    %v6850 = vpop.f32.mrf.mxu0
    %6851 = vdwg.mxu0
    %6852 = vmatprep.subr.bf16.mxu0 %v6746
    %6853 = vmatpush1.bf16.msra.mxu0 %v6745
    %6854 = vmatprep.subr.bf16.mxu0 %v6742
    %6855 = vmatpush1.bf16.msra.mxu0 %v6741
    %6856 = vmatprep.subr.bf16.mxu0 %v6738
    %6857 = vmatpush1.bf16.msra.mxu0 %v6737
    %6858 = vmatprep.subr.bf16.mxu0 %v6734
    %6859 = vmatpush1.bf16.msra.mxu0 %v6733
    %6860 = vmatprep.subr.bf16.mxu0 %v6730
    %6861 = vmatpush1.bf16.msra.mxu0 %v6729
    %6862 = vmatprep.subr.bf16.mxu0 %v6726
    %6863 = vmatpush1.bf16.msra.mxu0 %v6725
    %6864 = vmatprep.subr.bf16.mxu0 %v6722
    %6865 = vmatpush1.bf16.msra.mxu0 %v6721
    %6866 = vmatprep.subr.bf16.mxu0 %v6718
    %6867 = vmatpush1.bf16.msra.mxu0 %v6717
    %6868 = vmatprep.subr.bf16.mxu0 0
    %6869 = vmatpush2.bf16.msra.mxu0 0
    %6870 = vmatprep.subr.bf16.mxu0 0
    %6871 = vmatpush2.bf16.msra.mxu0 0
    %6872 = vmatprep.subr.bf16.mxu0 0
    %6873 = vmatpush2.bf16.msra.mxu0 0
    %6874 = vmatprep.subr.bf16.mxu0 0
    %6875 = vmatpush2.bf16.msra.mxu0 0
    %6876 = vmatprep.subr.bf16.mxu0 %v6762
    %6877 = vmatpush2.bf16.msra.mxu0 %v6761
    %6878 = vmatprep.subr.bf16.mxu0 %v6758
    %6879 = vmatpush2.bf16.msra.mxu0 %v6757
    %6880 = vmatprep.subr.bf16.mxu0 %v6754
    %6881 = vmatpush2.bf16.msra.mxu0 %v6753
    %6882 = vmatprep.subr.bf16.mxu0 %v6750
    %6883 = vmatpush2.bf16.msra.mxu0 %v6749
    %6884 = vmatprep.mubr.bf16.mxu0 %v6034
    %6885 = vmatmul.mubr.bf16.gmra.mxu0 %v5871
    %v6886 = vpop.f32.mrf.mxu0
    %v6887 = vadd.f32 0.0, %v6886
    %v6888 = vpop.f32.mrf.mxu0
    %v6889 = vadd.f32 0.0, %v6888
    %v6890 = vpop.f32.mrf.mxu0
    %v6891 = vpop.f32.mrf.mxu0
    %6892 = vdwg.mxu0
    %v7021 = vunpack.c.l.b16 %v6395
    %v7022 = vunpack.c.h.b16 %v6395
    %v7023 = vunpack.c.l.b16 %v6396
    %v7024 = vunpack.c.h.b16 %v6396
    %v7025 = vunpack.c.l.b16 %v6397
    %v7026 = vunpack.c.h.b16 %v6397
    %v7027 = vunpack.c.l.b16 %v6398
    %v7028 = vunpack.c.h.b16 %v6398
    %v7029 = vunpack.c.l.b16 %v6399
    %v7030 = vunpack.c.h.b16 %v6399
    %v7031 = vunpack.c.l.b16 %v6400
    %v7032 = vunpack.c.h.b16 %v6400
    %v7033 = vunpack.c.l.b16 %v6401
    %v7034 = vunpack.c.h.b16 %v6401
    %v7035 = vunpack.c.l.b16 %v6402
    %v7036 = vunpack.c.h.b16 %v6402
    %v7037 = vunpack.c.l.b16 %v6403
    %v7038 = vunpack.c.h.b16 %v6403
    %v7039 = vunpack.c.l.b16 %v6404
    %v7040 = vunpack.c.h.b16 %v6404
    %v7041 = vunpack.c.l.b16 %v6405
    %v7042 = vunpack.c.h.b16 %v6405
    %v7043 = vunpack.c.l.b16 %v6406
    %v7044 = vunpack.c.h.b16 %v6406
    %v7045 = vunpack.c.l.b16 %v6407
    %v7046 = vunpack.c.h.b16 %v6407
    %v7047 = vunpack.c.l.b16 %v6408
    %v7048 = vunpack.c.h.b16 %v6408
    %v7049 = vunpack.c.l.b16 %v6409
    %v7050 = vunpack.c.h.b16 %v6409
    %v7051 = vunpack.c.l.b16 %v6410
    %v7052 = vunpack.c.h.b16 %v6410
    %v7053 = vunpack.c.l.b16 %v6411
    %v7054 = vunpack.c.h.b16 %v6411
    %v7055 = vunpack.c.l.b16 %v6412
    %v7056 = vunpack.c.h.b16 %v6412
    %v7057 = vunpack.c.l.b16 %v6413
    %v7058 = vunpack.c.h.b16 %v6413
    %v7059 = vunpack.c.l.b16 %v6414
    %v7060 = vunpack.c.h.b16 %v6414
    %v7061 = vunpack.c.l.b16 %v6415
    %v7062 = vunpack.c.h.b16 %v6415
    %v7063 = vunpack.c.l.b16 %v6416
    %v7064 = vunpack.c.h.b16 %v6416
    %v7065 = vunpack.c.l.b16 %v6417
    %v7066 = vunpack.c.h.b16 %v6417
    %v7067 = vunpack.c.l.b16 %v6418
    %v7068 = vunpack.c.h.b16 %v6418
    %v7069 = vunpack.c.l.b16 %v6419
    %v7070 = vunpack.c.h.b16 %v6419
    %v7071 = vunpack.c.l.b16 %v6420
    %v7072 = vunpack.c.h.b16 %v6420
    %v7073 = vunpack.c.l.b16 %v6421
    %v7074 = vunpack.c.h.b16 %v6421
    %v7075 = vunpack.c.l.b16 %v6422
    %v7076 = vunpack.c.h.b16 %v6422
    %v7077 = vunpack.c.l.b16 %v6423
    %v7078 = vunpack.c.h.b16 %v6423
    %v7079 = vunpack.c.l.b16 %v6424
    %v7080 = vunpack.c.h.b16 %v6424
    %v7081 = vunpack.c.l.b16 %v6425
    %v7082 = vunpack.c.h.b16 %v6425
    %v7083 = vunpack.c.l.b16 %v6426
    %v7084 = vunpack.c.h.b16 %v6426
    %v7085 = vunpack.c.l.b16 %v6427
    %v7086 = vunpack.c.h.b16 %v6427
    %v7087 = vunpack.c.l.b16 %v6428
    %v7088 = vunpack.c.h.b16 %v6428
    %v7089 = vunpack.c.l.b16 %v6429
    %v7090 = vunpack.c.h.b16 %v6429
    %v7091 = vunpack.c.l.b16 %v6430
    %v7092 = vunpack.c.h.b16 %v6430
    %v7093 = vunpack.c.l.b16 %v6431
    %v7094 = vunpack.c.h.b16 %v6431
    %v7095 = vunpack.c.l.b16 %v6432
    %v7096 = vunpack.c.h.b16 %v6432
    %v7097 = vunpack.c.l.b16 %v6433
    %v7098 = vunpack.c.h.b16 %v6433
    %v7099 = vunpack.c.l.b16 %v6434
    %v7100 = vunpack.c.h.b16 %v6434
    %v7101 = vunpack.c.l.b16 %v6435
    %v7102 = vunpack.c.h.b16 %v6435
    %v7103 = vunpack.c.l.b16 %v6436
    %v7104 = vunpack.c.h.b16 %v6436
    %v7105 = vunpack.c.l.b16 %v6437
    %v7106 = vunpack.c.h.b16 %v6437
    %v7107 = vunpack.c.l.b16 %v6438
    %v7108 = vunpack.c.h.b16 %v6438
    %v7109 = vunpack.c.l.b16 %v6439
    %v7110 = vunpack.c.h.b16 %v6439
    %v7111 = vunpack.c.l.b16 %v6440
    %v7112 = vunpack.c.h.b16 %v6440
    %v7113 = vunpack.c.l.b16 %v6441
    %v7114 = vunpack.c.h.b16 %v6441
    %v7115 = vunpack.c.l.b16 %v6442
    %v7116 = vunpack.c.h.b16 %v6442
    %v7117 = vunpack.c.l.b16 %v6443
    %v7118 = vunpack.c.h.b16 %v6443
    %v7119 = vunpack.c.l.b16 %v6444
    %v7120 = vunpack.c.h.b16 %v6444
    %v7121 = vunpack.c.l.b16 %v6445
    %v7122 = vunpack.c.h.b16 %v6445
    %v7123 = vunpack.c.l.b16 %v6446
    %v7124 = vunpack.c.h.b16 %v6446
    %v7125 = vunpack.c.l.b16 %v6447
    %v7126 = vunpack.c.h.b16 %v6447
    %v7127 = vunpack.c.l.b16 %v6448
    %v7128 = vunpack.c.h.b16 %v6448
    %v7129 = vunpack.c.l.b16 %v6449
    %v7130 = vunpack.c.h.b16 %v6449
    %v7131 = vunpack.c.l.b16 %v6450
    %v7132 = vunpack.c.h.b16 %v6450
    %v7133 = vunpack.c.l.b16 %v6451
    %v7134 = vunpack.c.h.b16 %v6451
    %v7135 = vunpack.c.l.b16 %v6452
    %v7136 = vunpack.c.h.b16 %v6452
    %v7137 = vunpack.c.l.b16 %v6453
    %v7138 = vunpack.c.h.b16 %v6453
    %v7139 = vunpack.c.l.b16 %v6454
    %v7140 = vunpack.c.h.b16 %v6454
    %v7141 = vunpack.c.l.b16 %v6455
    %v7142 = vunpack.c.h.b16 %v6455
    %v7143 = vunpack.c.l.b16 %v6456
    %v7144 = vunpack.c.h.b16 %v6456
    %v7145 = vunpack.c.l.b16 %v6457
    %v7146 = vunpack.c.h.b16 %v6457
    %v7147 = vunpack.c.l.b16 %v6458
    %v7148 = vunpack.c.h.b16 %v6458
    %v7149 = vunpack.c.l.b16 %v6459
    %v7150 = vunpack.c.h.b16 %v6459
    %v7151 = vunpack.c.l.b16 %v6460
    %v7152 = vunpack.c.h.b16 %v6460
    %v7153 = vunpack.c.l.b16 %v6461
    %v7154 = vunpack.c.h.b16 %v6461
    %v7155 = vunpack.c.l.b16 %v6462
    %v7156 = vunpack.c.h.b16 %v6462
    %v7157 = vunpack.c.l.b16 %v6463
    %v7158 = vunpack.c.h.b16 %v6463
    %v7159 = vunpack.c.l.b16 %v6464
    %v7160 = vunpack.c.h.b16 %v6464
    %v7161 = vunpack.c.l.b16 %v6465
    %v7162 = vunpack.c.h.b16 %v6465
    %v7163 = vunpack.c.l.b16 %v6466
    %v7164 = vunpack.c.h.b16 %v6466
    %v7165 = vunpack.c.l.b16 %v6467
    %v7166 = vunpack.c.h.b16 %v6467
    %v7167 = vunpack.c.l.b16 %v6468
    %v7168 = vunpack.c.h.b16 %v6468
    %v7169 = vunpack.c.l.b16 %v6469
    %v7170 = vunpack.c.h.b16 %v6469
    %v7171 = vunpack.c.l.b16 %v6470
    %v7172 = vunpack.c.h.b16 %v6470
    %v7173 = vunpack.c.l.b16 %v6471
    %v7174 = vunpack.c.h.b16 %v6471
    %v7175 = vunpack.c.l.b16 %v6472
    %v7176 = vunpack.c.h.b16 %v6472
    %v7177 = vunpack.c.l.b16 %v6473
    %v7178 = vunpack.c.h.b16 %v6473
    %v7179 = vunpack.c.l.b16 %v6474
    %v7180 = vunpack.c.h.b16 %v6474
    %v7181 = vunpack.c.l.b16 %v6475
    %v7182 = vunpack.c.h.b16 %v6475
    %v7183 = vunpack.c.l.b16 %v6476
    %v7184 = vunpack.c.h.b16 %v6476
    %v7185 = vunpack.c.l.b16 %v6477
    %v7186 = vunpack.c.h.b16 %v6477
    %v7187 = vunpack.c.l.b16 %v6478
    %v7188 = vunpack.c.h.b16 %v6478
    %v7189 = vunpack.c.l.b16 %v6479
    %v7190 = vunpack.c.h.b16 %v6479
    %v7191 = vunpack.c.l.b16 %v6480
    %v7192 = vunpack.c.h.b16 %v6480
    %v7193 = vunpack.c.l.b16 %v6481
    %v7194 = vunpack.c.h.b16 %v6481
    %v7195 = vunpack.c.l.b16 %v6482
    %v7196 = vunpack.c.h.b16 %v6482
    %v7197 = vunpack.c.l.b16 %v6483
    %v7198 = vunpack.c.h.b16 %v6483
    %v7199 = vunpack.c.l.b16 %v6484
    %v7200 = vunpack.c.h.b16 %v6484
    %v7201 = vunpack.c.l.b16 %v6485
    %v7202 = vunpack.c.h.b16 %v6485
    %v7203 = vunpack.c.l.b16 %v6486
    %v7204 = vunpack.c.h.b16 %v6486
    %v7205 = vunpack.c.l.b16 %v6487
    %v7206 = vunpack.c.h.b16 %v6487
    %v7207 = vunpack.c.l.b16 %v6488
    %v7208 = vunpack.c.h.b16 %v6488
    %v7209 = vunpack.c.l.b16 %v6489
    %v7210 = vunpack.c.h.b16 %v6489
    %v7211 = vunpack.c.l.b16 %v6490
    %v7212 = vunpack.c.h.b16 %v6490
    %v7213 = vunpack.c.l.b16 %v6491
    %v7214 = vunpack.c.h.b16 %v6491
    %v7215 = vunpack.c.l.b16 %v6492
    %v7216 = vunpack.c.h.b16 %v6492
    %v7217 = vunpack.c.l.b16 %v6493
    %v7218 = vunpack.c.h.b16 %v6493
    %v7219 = vunpack.c.l.b16 %v6494
    %v7220 = vunpack.c.h.b16 %v6494
    %v7221 = vunpack.c.l.b16 %v6495
    %v7222 = vunpack.c.h.b16 %v6495
    %v7223 = vunpack.c.l.b16 %v6496
    %v7224 = vunpack.c.h.b16 %v6496
    %v7225 = vunpack.c.l.b16 %v6497
    %v7226 = vunpack.c.h.b16 %v6497
    %v7227 = vunpack.c.l.b16 %v6498
    %v7228 = vunpack.c.h.b16 %v6498
    %v7229 = vunpack.c.l.b16 %v6499
    %v7230 = vunpack.c.h.b16 %v6499
    %v7231 = vunpack.c.l.b16 %v6500
    %v7232 = vunpack.c.h.b16 %v6500
    %v7233 = vunpack.c.l.b16 %v6501
    %v7234 = vunpack.c.h.b16 %v6501
    %v7235 = vunpack.c.l.b16 %v6502
    %v7236 = vunpack.c.h.b16 %v6502
    %v7237 = vunpack.c.l.b16 %v6503
    %v7238 = vunpack.c.h.b16 %v6503
    %v7239 = vunpack.c.l.b16 %v6504
    %v7240 = vunpack.c.h.b16 %v6504
    %v7241 = vunpack.c.l.b16 %v6505
    %v7242 = vunpack.c.h.b16 %v6505
    %v7243 = vunpack.c.l.b16 %v6506
    %v7244 = vunpack.c.h.b16 %v6506
    %v7245 = vunpack.c.l.b16 %v6507
    %v7246 = vunpack.c.h.b16 %v6507
    %v7247 = vunpack.c.l.b16 %v6508
    %v7248 = vunpack.c.h.b16 %v6508
    %v7249 = vunpack.c.l.b16 %v6509
    %v7250 = vunpack.c.h.b16 %v6509
    %v7251 = vunpack.c.l.b16 %v6510
    %v7252 = vunpack.c.h.b16 %v6510
    %v7253 = vunpack.c.l.b16 %v6511
    %v7254 = vunpack.c.h.b16 %v6511
    %v7255 = vunpack.c.l.b16 %v6512
    %v7256 = vunpack.c.h.b16 %v6512
    %v7257 = vunpack.c.l.b16 %v6513
    %v7258 = vunpack.c.h.b16 %v6513
    %v7259 = vunpack.c.l.b16 %v6514
    %v7260 = vunpack.c.h.b16 %v6514
    %v7261 = vunpack.c.l.b16 %v6515
    %v7262 = vunpack.c.h.b16 %v6515
    %v7263 = vunpack.c.l.b16 %v6516
    %v7264 = vunpack.c.h.b16 %v6516
    %v7265 = vunpack.c.l.b16 %v6517
    %v7266 = vunpack.c.h.b16 %v6517
    %v7267 = vunpack.c.l.b16 %v6518
    %v7268 = vunpack.c.h.b16 %v6518
    %v7269 = vunpack.c.l.b16 %v6519
    %v7270 = vunpack.c.h.b16 %v6519
    %v7271 = vunpack.c.l.b16 %v6520
    %v7272 = vunpack.c.h.b16 %v6520
    %v7273 = vunpack.c.l.b16 %v6521
    %v7274 = vunpack.c.h.b16 %v6521
    %v7275 = vunpack.c.l.b16 %v6522
    %v7276 = vunpack.c.h.b16 %v6522
    %v7277 = vpack.c.b16 %v7025, %v7021
    %v7278 = vpack.c.b16 %v7026, %v7022
    %v7279 = vpack.c.b16 %v7027, %v7023
    %v7280 = vpack.c.b16 %v7028, %v7024
    %v7281 = vpack.c.b16 %v7033, %v7029
    %v7282 = vpack.c.b16 %v7034, %v7030
    %v7283 = vpack.c.b16 %v7035, %v7031
    %v7284 = vpack.c.b16 %v7036, %v7032
    %v7285 = vpack.c.b16 %v7041, %v7037
    %v7286 = vpack.c.b16 %v7042, %v7038
    %v7287 = vpack.c.b16 %v7043, %v7039
    %v7288 = vpack.c.b16 %v7044, %v7040
    %v7289 = vpack.c.b16 %v7049, %v7045
    %v7290 = vpack.c.b16 %v7050, %v7046
    %v7291 = vpack.c.b16 %v7051, %v7047
    %v7292 = vpack.c.b16 %v7052, %v7048
    %v7293 = vpack.c.b16 %v7057, %v7053
    %v7294 = vpack.c.b16 %v7058, %v7054
    %v7295 = vpack.c.b16 %v7059, %v7055
    %v7296 = vpack.c.b16 %v7060, %v7056
    %v7297 = vpack.c.b16 %v7065, %v7061
    %v7298 = vpack.c.b16 %v7066, %v7062
    %v7299 = vpack.c.b16 %v7067, %v7063
    %v7300 = vpack.c.b16 %v7068, %v7064
    %v7301 = vpack.c.b16 %v7073, %v7069
    %v7302 = vpack.c.b16 %v7074, %v7070
    %v7303 = vpack.c.b16 %v7075, %v7071
    %v7304 = vpack.c.b16 %v7076, %v7072
    %v7305 = vpack.c.b16 %v7081, %v7077
    %v7306 = vpack.c.b16 %v7082, %v7078
    %v7307 = vpack.c.b16 %v7083, %v7079
    %v7308 = vpack.c.b16 %v7084, %v7080
    %v7309 = vpack.c.b16 %v7089, %v7085
    %v7310 = vpack.c.b16 %v7090, %v7086
    %v7311 = vpack.c.b16 %v7091, %v7087
    %v7312 = vpack.c.b16 %v7092, %v7088
    %v7313 = vpack.c.b16 %v7097, %v7093
    %v7314 = vpack.c.b16 %v7098, %v7094
    %v7315 = vpack.c.b16 %v7099, %v7095
    %v7316 = vpack.c.b16 %v7100, %v7096
    %v7317 = vpack.c.b16 %v7105, %v7101
    %v7318 = vpack.c.b16 %v7106, %v7102
    %v7319 = vpack.c.b16 %v7107, %v7103
    %v7320 = vpack.c.b16 %v7108, %v7104
    %v7321 = vpack.c.b16 %v7113, %v7109
    %v7322 = vpack.c.b16 %v7114, %v7110
    %v7323 = vpack.c.b16 %v7115, %v7111
    %v7324 = vpack.c.b16 %v7116, %v7112
    %v7325 = vpack.c.b16 %v7121, %v7117
    %v7326 = vpack.c.b16 %v7122, %v7118
    %v7327 = vpack.c.b16 %v7123, %v7119
    %v7328 = vpack.c.b16 %v7124, %v7120
    %v7329 = vpack.c.b16 %v7129, %v7125
    %v7330 = vpack.c.b16 %v7130, %v7126
    %v7331 = vpack.c.b16 %v7131, %v7127
    %v7332 = vpack.c.b16 %v7132, %v7128
    %v7333 = vpack.c.b16 %v7137, %v7133
    %v7334 = vpack.c.b16 %v7138, %v7134
    %v7335 = vpack.c.b16 %v7139, %v7135
    %v7336 = vpack.c.b16 %v7140, %v7136
    %v7337 = vpack.c.b16 %v7145, %v7141
    %v7338 = vpack.c.b16 %v7146, %v7142
    %v7339 = vpack.c.b16 %v7147, %v7143
    %v7340 = vpack.c.b16 %v7148, %v7144
    %v7341 = vpack.c.b16 %v7153, %v7149
    %v7342 = vpack.c.b16 %v7154, %v7150
    %v7343 = vpack.c.b16 %v7155, %v7151
    %v7344 = vpack.c.b16 %v7156, %v7152
    %v7345 = vpack.c.b16 %v7161, %v7157
    %v7346 = vpack.c.b16 %v7162, %v7158
    %v7347 = vpack.c.b16 %v7163, %v7159
    %v7348 = vpack.c.b16 %v7164, %v7160
    %v7349 = vpack.c.b16 %v7169, %v7165
    %v7350 = vpack.c.b16 %v7170, %v7166
    %v7351 = vpack.c.b16 %v7171, %v7167
    %v7352 = vpack.c.b16 %v7172, %v7168
    %v7353 = vpack.c.b16 %v7177, %v7173
    %v7354 = vpack.c.b16 %v7178, %v7174
    %v7355 = vpack.c.b16 %v7179, %v7175
    %v7356 = vpack.c.b16 %v7180, %v7176
    %v7357 = vpack.c.b16 %v7185, %v7181
    %v7358 = vpack.c.b16 %v7186, %v7182
    %v7359 = vpack.c.b16 %v7187, %v7183
    %v7360 = vpack.c.b16 %v7188, %v7184
    %v7361 = vpack.c.b16 %v7193, %v7189
    %v7362 = vpack.c.b16 %v7194, %v7190
    %v7363 = vpack.c.b16 %v7195, %v7191
    %v7364 = vpack.c.b16 %v7196, %v7192
    %v7365 = vpack.c.b16 %v7201, %v7197
    %v7366 = vpack.c.b16 %v7202, %v7198
    %v7367 = vpack.c.b16 %v7203, %v7199
    %v7368 = vpack.c.b16 %v7204, %v7200
    %v7369 = vpack.c.b16 %v7209, %v7205
    %v7370 = vpack.c.b16 %v7210, %v7206
    %v7371 = vpack.c.b16 %v7211, %v7207
    %v7372 = vpack.c.b16 %v7212, %v7208
    %v7373 = vpack.c.b16 %v7217, %v7213
    %v7374 = vpack.c.b16 %v7218, %v7214
    %v7375 = vpack.c.b16 %v7219, %v7215
    %v7376 = vpack.c.b16 %v7220, %v7216
    %v7377 = vpack.c.b16 %v7225, %v7221
    %v7378 = vpack.c.b16 %v7226, %v7222
    %v7379 = vpack.c.b16 %v7227, %v7223
    %v7380 = vpack.c.b16 %v7228, %v7224
    %v7381 = vpack.c.b16 %v7233, %v7229
    %v7382 = vpack.c.b16 %v7234, %v7230
    %v7383 = vpack.c.b16 %v7235, %v7231
    %v7384 = vpack.c.b16 %v7236, %v7232
    %v7385 = vpack.c.b16 %v7241, %v7237
    %v7386 = vpack.c.b16 %v7242, %v7238
    %v7387 = vpack.c.b16 %v7243, %v7239
    %v7388 = vpack.c.b16 %v7244, %v7240
    %v7389 = vpack.c.b16 %v7249, %v7245
    %v7390 = vpack.c.b16 %v7250, %v7246
    %v7391 = vpack.c.b16 %v7251, %v7247
    %v7392 = vpack.c.b16 %v7252, %v7248
    %v7393 = vpack.c.b16 %v7257, %v7253
    %v7394 = vpack.c.b16 %v7258, %v7254
    %v7395 = vpack.c.b16 %v7259, %v7255
    %v7396 = vpack.c.b16 %v7260, %v7256
    %v7397 = vpack.c.b16 %v7265, %v7261
    %v7398 = vpack.c.b16 %v7266, %v7262
    %v7399 = vpack.c.b16 %v7267, %v7263
    %v7400 = vpack.c.b16 %v7268, %v7264
    %v7401 = vpack.c.b16 %v7273, %v7269
    %v7402 = vpack.c.b16 %v7274, %v7270
    %v7403 = vpack.c.b16 %v7275, %v7271
    %v7404 = vpack.c.b16 %v7276, %v7272
    %7533 = vmatprep.subr.bf16.mxu0 %v7306
    %7534 = vmatpush1.bf16.msra.mxu0 %v7305
    %7535 = vmatprep.subr.bf16.mxu0 %v7302
    %7536 = vmatpush1.bf16.msra.mxu0 %v7301
    %7537 = vmatprep.subr.bf16.mxu0 %v7298
    %7538 = vmatpush1.bf16.msra.mxu0 %v7297
    %7539 = vmatprep.subr.bf16.mxu0 %v7294
    %7540 = vmatpush1.bf16.msra.mxu0 %v7293
    %7541 = vmatprep.subr.bf16.mxu0 %v7290
    %7542 = vmatpush1.bf16.msra.mxu0 %v7289
    %7543 = vmatprep.subr.bf16.mxu0 %v7286
    %7544 = vmatpush1.bf16.msra.mxu0 %v7285
    %7545 = vmatprep.subr.bf16.mxu0 %v7282
    %7546 = vmatpush1.bf16.msra.mxu0 %v7281
    %7547 = vmatprep.subr.bf16.mxu0 %v7278
    %7548 = vmatpush1.bf16.msra.mxu0 %v7277
    %7549 = vmatprep.subr.bf16.mxu0 %v7338
    %7550 = vmatpush2.bf16.msra.mxu0 %v7337
    %7551 = vmatprep.subr.bf16.mxu0 %v7334
    %7552 = vmatpush2.bf16.msra.mxu0 %v7333
    %7553 = vmatprep.subr.bf16.mxu0 %v7330
    %7554 = vmatpush2.bf16.msra.mxu0 %v7329
    %7555 = vmatprep.subr.bf16.mxu0 %v7326
    %7556 = vmatpush2.bf16.msra.mxu0 %v7325
    %7557 = vmatprep.subr.bf16.mxu0 %v7322
    %7558 = vmatpush2.bf16.msra.mxu0 %v7321
    %7559 = vmatprep.subr.bf16.mxu0 %v7318
    %7560 = vmatpush2.bf16.msra.mxu0 %v7317
    %7561 = vmatprep.subr.bf16.mxu0 %v7314
    %7562 = vmatpush2.bf16.msra.mxu0 %v7313
    %7563 = vmatprep.subr.bf16.mxu0 %v7310
    %7564 = vmatpush2.bf16.msra.mxu0 %v7309
    %7565 = vmatprep.mubr.bf16.mxu0 %v5868
    %7566 = vmatmul.mubr.bf16.gmra.mxu0 %v5867
    %v7567 = vpop.f32.mrf.mxu0
    %v7568 = vadd.f32 %v6846, %v7567
    %v7569 = vpop.f32.mrf.mxu0
    %v7570 = vadd.f32 %v6848, %v7569
    %v7571 = vpop.f32.mrf.mxu0
    %v7572 = vpop.f32.mrf.mxu0
    %7573 = vdwg.mxu0
    %7574 = vmatprep.subr.bf16.mxu0 %v7370
    %7575 = vmatpush1.bf16.msra.mxu0 %v7369
    %7576 = vmatprep.subr.bf16.mxu0 %v7366
    %7577 = vmatpush1.bf16.msra.mxu0 %v7365
    %7578 = vmatprep.subr.bf16.mxu0 %v7362
    %7579 = vmatpush1.bf16.msra.mxu0 %v7361
    %7580 = vmatprep.subr.bf16.mxu0 %v7358
    %7581 = vmatpush1.bf16.msra.mxu0 %v7357
    %7582 = vmatprep.subr.bf16.mxu0 %v7354
    %7583 = vmatpush1.bf16.msra.mxu0 %v7353
    %7584 = vmatprep.subr.bf16.mxu0 %v7350
    %7585 = vmatpush1.bf16.msra.mxu0 %v7349
    %7586 = vmatprep.subr.bf16.mxu0 %v7346
    %7587 = vmatpush1.bf16.msra.mxu0 %v7345
    %7588 = vmatprep.subr.bf16.mxu0 %v7342
    %7589 = vmatpush1.bf16.msra.mxu0 %v7341
    %7590 = vmatprep.subr.bf16.mxu0 %v7402
    %7591 = vmatpush2.bf16.msra.mxu0 %v7401
    %7592 = vmatprep.subr.bf16.mxu0 %v7398
    %7593 = vmatpush2.bf16.msra.mxu0 %v7397
    %7594 = vmatprep.subr.bf16.mxu0 %v7394
    %7595 = vmatpush2.bf16.msra.mxu0 %v7393
    %7596 = vmatprep.subr.bf16.mxu0 %v7390
    %7597 = vmatpush2.bf16.msra.mxu0 %v7389
    %7598 = vmatprep.subr.bf16.mxu0 %v7386
    %7599 = vmatpush2.bf16.msra.mxu0 %v7385
    %7600 = vmatprep.subr.bf16.mxu0 %v7382
    %7601 = vmatpush2.bf16.msra.mxu0 %v7381
    %7602 = vmatprep.subr.bf16.mxu0 %v7378
    %7603 = vmatpush2.bf16.msra.mxu0 %v7377
    %7604 = vmatprep.subr.bf16.mxu0 %v7374
    %7605 = vmatpush2.bf16.msra.mxu0 %v7373
    %7606 = vmatprep.mubr.bf16.mxu0 %v5870
    %7607 = vmatmul.mubr.bf16.gmra.mxu0 %v5869
    %v7608 = vpop.f32.mrf.mxu0
    %v7609 = vadd.f32 %v7568, %v7608
    %v7610 = vpop.f32.mrf.mxu0
    %v7611 = vadd.f32 %v7570, %v7610
    %v7612 = vpop.f32.mrf.mxu0
    %v7613 = vpop.f32.mrf.mxu0
    %7614 = vdwg.mxu0
    %7615 = vmatprep.subr.bf16.mxu0 %v7308
    %7616 = vmatpush1.bf16.msra.mxu0 %v7307
    %7617 = vmatprep.subr.bf16.mxu0 %v7304
    %7618 = vmatpush1.bf16.msra.mxu0 %v7303
    %7619 = vmatprep.subr.bf16.mxu0 %v7300
    %7620 = vmatpush1.bf16.msra.mxu0 %v7299
    %7621 = vmatprep.subr.bf16.mxu0 %v7296
    %7622 = vmatpush1.bf16.msra.mxu0 %v7295
    %7623 = vmatprep.subr.bf16.mxu0 %v7292
    %7624 = vmatpush1.bf16.msra.mxu0 %v7291
    %7625 = vmatprep.subr.bf16.mxu0 %v7288
    %7626 = vmatpush1.bf16.msra.mxu0 %v7287
    %7627 = vmatprep.subr.bf16.mxu0 %v7284
    %7628 = vmatpush1.bf16.msra.mxu0 %v7283
    %7629 = vmatprep.subr.bf16.mxu0 %v7280
    %7630 = vmatpush1.bf16.msra.mxu0 %v7279
    %7631 = vmatprep.subr.bf16.mxu0 %v7340
    %7632 = vmatpush2.bf16.msra.mxu0 %v7339
    %7633 = vmatprep.subr.bf16.mxu0 %v7336
    %7634 = vmatpush2.bf16.msra.mxu0 %v7335
    %7635 = vmatprep.subr.bf16.mxu0 %v7332
    %7636 = vmatpush2.bf16.msra.mxu0 %v7331
    %7637 = vmatprep.subr.bf16.mxu0 %v7328
    %7638 = vmatpush2.bf16.msra.mxu0 %v7327
    %7639 = vmatprep.subr.bf16.mxu0 %v7324
    %7640 = vmatpush2.bf16.msra.mxu0 %v7323
    %7641 = vmatprep.subr.bf16.mxu0 %v7320
    %7642 = vmatpush2.bf16.msra.mxu0 %v7319
    %7643 = vmatprep.subr.bf16.mxu0 %v7316
    %7644 = vmatpush2.bf16.msra.mxu0 %v7315
    %7645 = vmatprep.subr.bf16.mxu0 %v7312
    %7646 = vmatpush2.bf16.msra.mxu0 %v7311
    %7647 = vmatprep.mubr.bf16.mxu0 %v5868
    %7648 = vmatmul.mubr.bf16.gmra.mxu0 %v5867
    %v7649 = vpop.f32.mrf.mxu0
    %v7650 = vadd.f32 %v6887, %v7649
    %v7651 = vpop.f32.mrf.mxu0
    %v7652 = vadd.f32 %v6889, %v7651
    %v7653 = vpop.f32.mrf.mxu0
    %v7654 = vpop.f32.mrf.mxu0
    %7655 = vdwg.mxu0
    %7656 = vmatprep.subr.bf16.mxu0 %v7372
    %7657 = vmatpush1.bf16.msra.mxu0 %v7371
    %7658 = vmatprep.subr.bf16.mxu0 %v7368
    %7659 = vmatpush1.bf16.msra.mxu0 %v7367
    %7660 = vmatprep.subr.bf16.mxu0 %v7364
    %7661 = vmatpush1.bf16.msra.mxu0 %v7363
    %7662 = vmatprep.subr.bf16.mxu0 %v7360
    %7663 = vmatpush1.bf16.msra.mxu0 %v7359
    %7664 = vmatprep.subr.bf16.mxu0 %v7356
    %7665 = vmatpush1.bf16.msra.mxu0 %v7355
    %7666 = vmatprep.subr.bf16.mxu0 %v7352
    %7667 = vmatpush1.bf16.msra.mxu0 %v7351
    %7668 = vmatprep.subr.bf16.mxu0 %v7348
    %7669 = vmatpush1.bf16.msra.mxu0 %v7347
    %7670 = vmatprep.subr.bf16.mxu0 %v7344
    %7671 = vmatpush1.bf16.msra.mxu0 %v7343
    %7672 = vmatprep.subr.bf16.mxu0 %v7404
    %7673 = vmatpush2.bf16.msra.mxu0 %v7403
    %7674 = vmatprep.subr.bf16.mxu0 %v7400
    %7675 = vmatpush2.bf16.msra.mxu0 %v7399
    %7676 = vmatprep.subr.bf16.mxu0 %v7396
    %7677 = vmatpush2.bf16.msra.mxu0 %v7395
    %7678 = vmatprep.subr.bf16.mxu0 %v7392
    %7679 = vmatpush2.bf16.msra.mxu0 %v7391
    %7680 = vmatprep.subr.bf16.mxu0 %v7388
    %7681 = vmatpush2.bf16.msra.mxu0 %v7387
    %7682 = vmatprep.subr.bf16.mxu0 %v7384
    %7683 = vmatpush2.bf16.msra.mxu0 %v7383
    %7684 = vmatprep.subr.bf16.mxu0 %v7380
    %7685 = vmatpush2.bf16.msra.mxu0 %v7379
    %7686 = vmatprep.subr.bf16.mxu0 %v7376
    %7687 = vmatpush2.bf16.msra.mxu0 %v7375
    %7688 = vmatprep.mubr.bf16.mxu0 %v5870
    %7689 = vmatmul.mubr.bf16.gmra.mxu0 %v5869
    %v7690 = vpop.f32.mrf.mxu0
    %v7691 = vadd.f32 %v7650, %v7690
    %v7692 = vpop.f32.mrf.mxu0
    %v7693 = vadd.f32 %v7652, %v7692
    %v7694 = vpop.f32.mrf.mxu0
    %v7695 = vpop.f32.mrf.mxu0
    %7696 = vdwg.mxu0
    %7698 = vset.pattern.permute.xlu0 0
    %7699 = vperm.xlu0 %7698, %v6394
    %v7700 = vpop.permute.xlu0 %7699
    %v7702 = vmul.f32 %v7700, %v7609
    %v7703 = vmul.f32 %v7700, %v7611
    %v7704 = vmul.f32 %v7700, %v7691
    %v7705 = vmul.f32 %v7700, %v7693
    %v7706 = vrot.slane %v7702, 4
    %v7707 = vadd.f32 %v7702, %v7706
    %v7708 = vrot.slane %v7707, 2
    %v7709 = vadd.f32 %v7707, %v7708
    %v7710 = vrot.slane %v7709, 1
    %v7711 = vadd.f32 %v7709, %v7710
    %v7712 = vrot.slane %v7703, 4
    %v7713 = vadd.f32 %v7703, %v7712
    %v7714 = vrot.slane %v7713, 2
    %v7715 = vadd.f32 %v7713, %v7714
    %v7716 = vrot.slane %v7715, 1
    %v7717 = vadd.f32 %v7715, %v7716
    %v7718 = vrot.slane %v7704, 4
    %v7719 = vadd.f32 %v7704, %v7718
    %v7720 = vrot.slane %v7719, 2
    %v7721 = vadd.f32 %v7719, %v7720
    %v7722 = vrot.slane %v7721, 1
    %v7723 = vadd.f32 %v7721, %v7722
    %v7724 = vrot.slane %v7705, 4
    %v7725 = vadd.f32 %v7705, %v7724
    %v7726 = vrot.slane %v7725, 2
    %v7727 = vadd.f32 %v7725, %v7726
    %v7728 = vrot.slane %v7727, 1
    %v7729 = vadd.f32 %v7727, %v7728
    %v7730 = vmul.f32 %v7700, %v5863
    %v7731 = vmul.f32 %v7700, %v5864
    %v7732 = vmul.f32 %v7700, %v5865
    %v7733 = vmul.f32 %v7700, %v5866
    %v7734 = vrot.slane %v7730, 4
    %v7735 = vadd.f32 %v7730, %v7734
    %v7736 = vrot.slane %v7735, 2
    %v7737 = vadd.f32 %v7735, %v7736
    %v7738 = vrot.slane %v7737, 1
    %v7739 = vadd.f32 %v7737, %v7738
    %v7740 = vrot.slane %v7731, 4
    %v7741 = vadd.f32 %v7731, %v7740
    %v7742 = vrot.slane %v7741, 2
    %v7743 = vadd.f32 %v7741, %v7742
    %v7744 = vrot.slane %v7743, 1
    %v7745 = vadd.f32 %v7743, %v7744
    %v7746 = vrot.slane %v7732, 4
    %v7747 = vadd.f32 %v7732, %v7746
    %v7748 = vrot.slane %v7747, 2
    %v7749 = vadd.f32 %v7747, %v7748
    %v7750 = vrot.slane %v7749, 1
    %v7751 = vadd.f32 %v7749, %v7750
    %v7752 = vrot.slane %v7733, 4
    %v7753 = vadd.f32 %v7733, %v7752
    %v7754 = vrot.slane %v7753, 2
    %v7755 = vadd.f32 %v7753, %v7754
    %v7756 = vrot.slane %v7755, 1
    %v7757 = vadd.f32 %v7755, %v7756
    %v7758 = vmul.f32 %v7700, %v5298
    %v7759 = vmul.f32 %v7700, %v5299
    %v7760 = vrot.slane %v7758, 4
    %v7761 = vadd.f32 %v7758, %v7760
    %v7762 = vrot.slane %v7761, 2
    %v7763 = vadd.f32 %v7761, %v7762
    %v7764 = vrot.slane %v7763, 1
    %v7765 = vadd.f32 %v7763, %v7764
    %v7766 = vsel %vm624, %v7759, 0.0
    %v7767 = vrot.slane %v7766, 4
    %v7768 = vadd.f32 %v7766, %v7767
    %v7769 = vrot.slane %v7768, 2
    %v7770 = vadd.f32 %v7768, %v7769
    %v7771 = vrot.slane %v7770, 1
    %v7772 = vadd.f32 %v7770, %v7771
    %v7773 = vmul.f32 %v7730, %v5863
    %v7774 = vmul.f32 %v7731, %v5864
    %v7775 = vmul.f32 %v7732, %v5865
    %v7776 = vmul.f32 %v7733, %v5866
    %v7777 = vrot.slane %v7773, 4
    %v7778 = vadd.f32 %v7773, %v7777
    %v7779 = vrot.slane %v7778, 2
    %v7780 = vadd.f32 %v7778, %v7779
    %v7781 = vrot.slane %v7780, 1
    %v7782 = vadd.f32 %v7780, %v7781
    %v7783 = vrot.slane %v7774, 4
    %v7784 = vadd.f32 %v7774, %v7783
    %v7785 = vrot.slane %v7784, 2
    %v7786 = vadd.f32 %v7784, %v7785
    %v7787 = vrot.slane %v7786, 1
    %v7788 = vadd.f32 %v7786, %v7787
    %v7789 = vrot.slane %v7775, 4
    %v7790 = vadd.f32 %v7775, %v7789
    %v7791 = vrot.slane %v7790, 2
    %v7792 = vadd.f32 %v7790, %v7791
    %v7793 = vrot.slane %v7792, 1
    %v7794 = vadd.f32 %v7792, %v7793
    %v7795 = vrot.slane %v7776, 4
    %v7796 = vadd.f32 %v7776, %v7795
    %v7797 = vrot.slane %v7796, 2
    %v7798 = vadd.f32 %v7796, %v7797
    %v7799 = vrot.slane %v7798, 1
    %v7800 = vadd.f32 %v7798, %v7799
    %v7801 = vmul.f32 %v7739, %v7739
    %v7802 = vmul.f32 %v7745, %v7745
    %v7803 = vmul.f32 %v7751, %v7751
    %v7804 = vmul.f32 %v7757, %v7757
    %v7805 = vsub.f32 %v7782, %v7801
    %v7806 = vsub.f32 %v7788, %v7802
    %v7807 = vsub.f32 %v7794, %v7803
    %v7808 = vsub.f32 %v7800, %v7804
    %v7809 = vmul.f32 %v7758, %v5298
    %v7810 = vmul.f32 %v7759, %v5299
    %v7811 = vrot.slane %v7809, 4
    %v7812 = vadd.f32 %v7809, %v7811
    %v7813 = vrot.slane %v7812, 2
    %v7814 = vadd.f32 %v7812, %v7813
    %v7815 = vrot.slane %v7814, 1
    %v7816 = vadd.f32 %v7814, %v7815
    %v7817 = vsel %vm624, %v7810, 0.0
    %v7818 = vrot.slane %v7817, 4
    %v7819 = vadd.f32 %v7817, %v7818
    %v7820 = vrot.slane %v7819, 2
    %v7821 = vadd.f32 %v7819, %v7820
    %v7822 = vrot.slane %v7821, 1
    %v7823 = vadd.f32 %v7821, %v7822
    %v7824 = vmul.f32 %v7765, %v7765
    %v7825 = vmul.f32 %v7772, %v7772
    %v7826 = vsub.f32 %v7816, %v7824
    %v7827 = vsub.f32 %v7823, %v7825
    %v7828 = vmax.f32 %v7805, 1e-06
    %v7829 = vmax.f32 %v7806, 1e-06
    %v7830 = vmax.f32 %v7807, 1e-06
    %v7831 = vmax.f32 %v7808, 1e-06
    %v7832 = vrsqrt.pop %v7828
    %v7833 = vmul.f32 %v7828, %v7832
    %vm7834 = vcmp.eq.f32.partialorder %v7828, inf
    %v7835 = vsel %vm7834, %v7828, %v7833
    %vm7836 = vcmp.eq.f32.partialorder %v7828, 0.0
    %v7837 = vand.u32 %v7828, 2147483648
    %v7838 = vsel %vm7836, %v7837, %v7835
    %v7839 = vrsqrt.pop %v7829
    %v7840 = vmul.f32 %v7829, %v7839
    %vm7841 = vcmp.eq.f32.partialorder %v7829, inf
    %v7842 = vsel %vm7841, %v7829, %v7840
    %vm7843 = vcmp.eq.f32.partialorder %v7829, 0.0
    %v7844 = vand.u32 %v7829, 2147483648
    %v7845 = vsel %vm7843, %v7844, %v7842
    %v7846 = vrsqrt.pop %v7830
    %v7847 = vmul.f32 %v7830, %v7846
    %vm7848 = vcmp.eq.f32.partialorder %v7830, inf
    %v7849 = vsel %vm7848, %v7830, %v7847
    %vm7850 = vcmp.eq.f32.partialorder %v7830, 0.0
    %v7851 = vand.u32 %v7830, 2147483648
    %v7852 = vsel %vm7850, %v7851, %v7849
    %v7853 = vrsqrt.pop %v7831
    %v7854 = vmul.f32 %v7831, %v7853
    %vm7855 = vcmp.eq.f32.partialorder %v7831, inf
    %v7856 = vsel %vm7855, %v7831, %v7854
    %vm7857 = vcmp.eq.f32.partialorder %v7831, 0.0
    %v7858 = vand.u32 %v7831, 2147483648
    %v7859 = vsel %vm7857, %v7858, %v7856
    %v7860 = vmax.f32 %v7826, 1e-06
    %v7861 = vmax.f32 %v7827, 1e-06
    %v7862 = vrsqrt.pop %v7860
    %v7863 = vmul.f32 %v7860, %v7862
    %vm7864 = vcmp.eq.f32.partialorder %v7860, inf
    %v7865 = vsel %vm7864, %v7860, %v7863
    %vm7866 = vcmp.eq.f32.partialorder %v7860, 0.0
    %v7867 = vand.u32 %v7860, 2147483648
    %v7868 = vsel %vm7866, %v7867, %v7865
    %v7869 = vrsqrt.pop %v7861
    %v7870 = vmul.f32 %v7861, %v7869
    %vm7871 = vcmp.eq.f32.partialorder %v7861, inf
    %v7872 = vsel %vm7871, %v7861, %v7870
    %vm7873 = vcmp.eq.f32.partialorder %v7861, 0.0
    %v7874 = vand.u32 %v7861, 2147483648
    %v7875 = vsel %vm7873, %v7874, %v7872
    %v7876 = vpack.c.bf16 %v7838, %v7838
    %v7877 = vpack.c.bf16 %v7845, %v7845
    %v7878 = vpack.c.bf16 %v7852, %v7852
    %v7879 = vpack.c.bf16 %v7859, %v7859
    %v7880 = vld [vmem:[#allocation9] sm:$0xff]
    %v7881 = vld [vmem:[#allocation9 + $0x8] sm:$0xff]
    %v7882 = vld [vmem:[#allocation9 + $0x10] sm:$0xff]
    %v7883 = vld [vmem:[#allocation9 + $0x18] sm:$0xff]
    %v7884 = vld [vmem:[#allocation9 + $0x20] sm:$0xff]
    %v7885 = vld [vmem:[#allocation9 + $0x28] sm:$0xff]
    %v7886 = vld [vmem:[#allocation9 + $0x30] sm:$0xff]
    %v7887 = vld [vmem:[#allocation9 + $0x38] sm:$0xff]
    %v7888 = vld [vmem:[#allocation9 + $0x40] sm:$0xff]
    %v7889 = vld [vmem:[#allocation9 + $0x48] sm:$0xff]
    %v7890 = vld [vmem:[#allocation9 + $0x50] sm:$0xff]
    %v7891 = vld [vmem:[#allocation9 + $0x58] sm:$0xff]
    %v7892 = vld [vmem:[#allocation9 + $0x60] sm:$0xff]
    %v7893 = vld [vmem:[#allocation9 + $0x68] sm:$0xff]
    %v7894 = vld [vmem:[#allocation9 + $0x70] sm:$0xff]
    %v7895 = vld [vmem:[#allocation9 + $0x78] sm:$0xff]
    %v7896 = vld [vmem:[#allocation9 + $0x80] sm:$0xff]
    %v7897 = vld [vmem:[#allocation9 + $0x88] sm:$0xff]
    %v7898 = vld [vmem:[#allocation9 + $0x90] sm:$0xff]
    %v7899 = vld [vmem:[#allocation9 + $0x98] sm:$0xff]
    %v7900 = vld [vmem:[#allocation9 + $0xa0] sm:$0xff]
    %v7901 = vld [vmem:[#allocation9 + $0xa8] sm:$0xff]
    %v7902 = vld [vmem:[#allocation9 + $0xb0] sm:$0xff]
    %v7903 = vld [vmem:[#allocation9 + $0xb8] sm:$0xff]
    %v7904 = vld [vmem:[#allocation9 + $0xc0] sm:$0xff]
    %v7905 = vld [vmem:[#allocation9 + $0xc8] sm:$0xff]
    %v7906 = vld [vmem:[#allocation9 + $0xd0] sm:$0xff]
    %v7907 = vld [vmem:[#allocation9 + $0xd8] sm:$0xff]
    %v7908 = vld [vmem:[#allocation9 + $0xe0] sm:$0xff]
    %v7909 = vld [vmem:[#allocation9 + $0xe8] sm:$0xff]
    %v7910 = vld [vmem:[#allocation9 + $0xf0] sm:$0xff]
    %v7911 = vld [vmem:[#allocation9 + $0xf8] sm:$0xff]
    %v7912 = vld [vmem:[#allocation9 + $0x100] sm:$0xff]
    %v7913 = vld [vmem:[#allocation9 + $0x108] sm:$0xff]
    %v7914 = vld [vmem:[#allocation9 + $0x110] sm:$0xff]
    %v7915 = vld [vmem:[#allocation9 + $0x118] sm:$0xff]
    %v7916 = vld [vmem:[#allocation9 + $0x120] sm:$0xff]
    %v7917 = vld [vmem:[#allocation9 + $0x128] sm:$0xff]
    %v7918 = vld [vmem:[#allocation9 + $0x130] sm:$0xff]
    %v7919 = vld [vmem:[#allocation9 + $0x138] sm:$0xff]
    %v7920 = vld [vmem:[#allocation9 + $0x140] sm:$0xff]
    %v7921 = vld [vmem:[#allocation9 + $0x148] sm:$0xff]
    %v7922 = vld [vmem:[#allocation9 + $0x150] sm:$0xff]
    %v7923 = vld [vmem:[#allocation9 + $0x158] sm:$0xff]
    %v7924 = vld [vmem:[#allocation9 + $0x160] sm:$0xff]
    %v7925 = vld [vmem:[#allocation9 + $0x168] sm:$0xff]
    %v7926 = vld [vmem:[#allocation9 + $0x170] sm:$0xff]
    %v7927 = vld [vmem:[#allocation9 + $0x178] sm:$0xff]
    %v7928 = vld [vmem:[#allocation9 + $0x180] sm:$0xff]
    %v7929 = vld [vmem:[#allocation9 + $0x188] sm:$0xff]
    %v7930 = vld [vmem:[#allocation9 + $0x190] sm:$0xff]
    %v7931 = vld [vmem:[#allocation9 + $0x198] sm:$0xff]
    %v7932 = vld [vmem:[#allocation9 + $0x1a0] sm:$0xff]
    %v7933 = vld [vmem:[#allocation9 + $0x1a8] sm:$0xff]
    %v7934 = vld [vmem:[#allocation9 + $0x1b0] sm:$0xff]
    %v7935 = vld [vmem:[#allocation9 + $0x1b8] sm:$0xff]
    %v7936 = vld [vmem:[#allocation9 + $0x1c0] sm:$0xff]
    %v7937 = vld [vmem:[#allocation9 + $0x1c8] sm:$0xff]
    %v7938 = vld [vmem:[#allocation9 + $0x1d0] sm:$0xff]
    %v7939 = vld [vmem:[#allocation9 + $0x1d8] sm:$0xff]
    %v7940 = vld [vmem:[#allocation9 + $0x1e0] sm:$0xff]
    %v7941 = vld [vmem:[#allocation9 + $0x1e8] sm:$0xff]
    %v7942 = vld [vmem:[#allocation9 + $0x1f0] sm:$0xff]
    %v7943 = vld [vmem:[#allocation9 + $0x1f8] sm:$0xff]
    %v7944 = vld [vmem:[#allocation9 + $0x200] sm:$0xff]
    %v7945 = vld [vmem:[#allocation9 + $0x208] sm:$0xff]
    %v7946 = vld [vmem:[#allocation9 + $0x210] sm:$0xff]
    %v7947 = vld [vmem:[#allocation9 + $0x218] sm:$0xff]
    %v7948 = vld [vmem:[#allocation9 + $0x220] sm:$0xff]
    %v7949 = vld [vmem:[#allocation9 + $0x228] sm:$0xff]
    %v7950 = vld [vmem:[#allocation9 + $0x230] sm:$0xff]
    %v7951 = vld [vmem:[#allocation9 + $0x238] sm:$0xff]
    %v7952 = vld [vmem:[#allocation9 + $0x240] sm:$0xff]
    %v7953 = vld [vmem:[#allocation9 + $0x248] sm:$0xff]
    %v7954 = vld [vmem:[#allocation9 + $0x250] sm:$0xff]
    %v7955 = vld [vmem:[#allocation9 + $0x258] sm:$0xff]
    %v7956 = vld [vmem:[#allocation9 + $0x260] sm:$0xff]
    %v7957 = vld [vmem:[#allocation9 + $0x268] sm:$0xff]
    %v7958 = vld [vmem:[#allocation9 + $0x270] sm:$0xff]
    %v7959 = vld [vmem:[#allocation9 + $0x278] sm:$0xff]
    %v7960 = vld [vmem:[#allocation9 + $0x280] sm:$0xff]
    %v7961 = vld [vmem:[#allocation9 + $0x288] sm:$0xff]
    %v7962 = vld [vmem:[#allocation9 + $0x290] sm:$0xff]
    %v7963 = vld [vmem:[#allocation9 + $0x298] sm:$0xff]
    %v7964 = vld [vmem:[#allocation9 + $0x2a0] sm:$0xff]
    %v7965 = vld [vmem:[#allocation9 + $0x2a8] sm:$0xff]
    %v7966 = vld [vmem:[#allocation9 + $0x2b0] sm:$0xff]
    %v7967 = vld [vmem:[#allocation9 + $0x2b8] sm:$0xff]
    %v7968 = vld [vmem:[#allocation9 + $0x2c0] sm:$0xff]
    %v7969 = vld [vmem:[#allocation9 + $0x2c8] sm:$0xff]
    %v7970 = vld [vmem:[#allocation9 + $0x2d0] sm:$0xff]
    %v7971 = vld [vmem:[#allocation9 + $0x2d8] sm:$0xff]
    %v7972 = vld [vmem:[#allocation9 + $0x2e0] sm:$0xff]
    %v7973 = vld [vmem:[#allocation9 + $0x2e8] sm:$0xff]
    %v7974 = vld [vmem:[#allocation9 + $0x2f0] sm:$0xff]
    %v7975 = vld [vmem:[#allocation9 + $0x2f8] sm:$0xff]
    %v7976 = vld [vmem:[#allocation9 + $0x300] sm:$0xff]
    %v7977 = vld [vmem:[#allocation9 + $0x308] sm:$0xff]
    %v7978 = vld [vmem:[#allocation9 + $0x310] sm:$0xff]
    %v7979 = vld [vmem:[#allocation9 + $0x318] sm:$0xff]
    %v7980 = vld [vmem:[#allocation9 + $0x320] sm:$0xff]
    %v7981 = vld [vmem:[#allocation9 + $0x328] sm:$0xff]
    %v7982 = vld [vmem:[#allocation9 + $0x330] sm:$0xff]
    %v7983 = vld [vmem:[#allocation9 + $0x338] sm:$0xff]
    %v7984 = vld [vmem:[#allocation9 + $0x340] sm:$0xff]
    %v7985 = vld [vmem:[#allocation9 + $0x348] sm:$0xff]
    %v7986 = vld [vmem:[#allocation9 + $0x350] sm:$0xff]
    %v7987 = vld [vmem:[#allocation9 + $0x358] sm:$0xff]
    %v7988 = vld [vmem:[#allocation9 + $0x360] sm:$0xff]
    %v7989 = vld [vmem:[#allocation9 + $0x368] sm:$0xff]
    %v7990 = vld [vmem:[#allocation9 + $0x370] sm:$0xff]
    %v7991 = vld [vmem:[#allocation9 + $0x378] sm:$0xff]
    %v7992 = vld [vmem:[#allocation9 + $0x380] sm:$0xff]
    %v7993 = vld [vmem:[#allocation9 + $0x388] sm:$0xff]
    %v7994 = vld [vmem:[#allocation9 + $0x390] sm:$0xff]
    %v7995 = vld [vmem:[#allocation9 + $0x398] sm:$0xff]
    %v7996 = vld [vmem:[#allocation9 + $0x3a0] sm:$0xff]
    %v7997 = vld [vmem:[#allocation9 + $0x3a8] sm:$0xff]
    %v7998 = vld [vmem:[#allocation9 + $0x3b0] sm:$0xff]
    %v7999 = vld [vmem:[#allocation9 + $0x3b8] sm:$0xff]
    %v8000 = vld [vmem:[#allocation9 + $0x3c0] sm:$0xff]
    %v8001 = vld [vmem:[#allocation9 + $0x3c8] sm:$0xff]
    %v8002 = vld [vmem:[#allocation9 + $0x3d0] sm:$0xff]
    %v8003 = vld [vmem:[#allocation9 + $0x3d8] sm:$0xff]
    %v8004 = vld [vmem:[#allocation9 + $0x3e0] sm:$0xff]
    %v8005 = vld [vmem:[#allocation9 + $0x3e8] sm:$0xff]
    %v8006 = vld [vmem:[#allocation9 + $0x3f0] sm:$0xff]
    %v8007 = vld [vmem:[#allocation9 + $0x3f8] sm:$0xff]
    %v8136 = vunpack.c.l.b16 %v7880
    %v8137 = vunpack.c.h.b16 %v7880
    %v8138 = vunpack.c.l.b16 %v7881
    %v8139 = vunpack.c.h.b16 %v7881
    %v8140 = vunpack.c.l.b16 %v7882
    %v8141 = vunpack.c.h.b16 %v7882
    %v8142 = vunpack.c.l.b16 %v7883
    %v8143 = vunpack.c.h.b16 %v7883
    %v8144 = vunpack.c.l.b16 %v7884
    %v8145 = vunpack.c.h.b16 %v7884
    %v8146 = vunpack.c.l.b16 %v7885
    %v8147 = vunpack.c.h.b16 %v7885
    %v8148 = vunpack.c.l.b16 %v7886
    %v8149 = vunpack.c.h.b16 %v7886
    %v8150 = vunpack.c.l.b16 %v7887
    %v8151 = vunpack.c.h.b16 %v7887
    %v8152 = vunpack.c.l.b16 %v7888
    %v8153 = vunpack.c.h.b16 %v7888
    %v8154 = vunpack.c.l.b16 %v7889
    %v8155 = vunpack.c.h.b16 %v7889
    %v8156 = vunpack.c.l.b16 %v7890
    %v8157 = vunpack.c.h.b16 %v7890
    %v8158 = vunpack.c.l.b16 %v7891
    %v8159 = vunpack.c.h.b16 %v7891
    %v8160 = vunpack.c.l.b16 %v7892
    %v8161 = vunpack.c.h.b16 %v7892
    %v8162 = vunpack.c.l.b16 %v7893
    %v8163 = vunpack.c.h.b16 %v7893
    %v8164 = vunpack.c.l.b16 %v7894
    %v8165 = vunpack.c.h.b16 %v7894
    %v8166 = vunpack.c.l.b16 %v7895
    %v8167 = vunpack.c.h.b16 %v7895
    %v8168 = vunpack.c.l.b16 %v7896
    %v8169 = vunpack.c.h.b16 %v7896
    %v8170 = vunpack.c.l.b16 %v7897
    %v8171 = vunpack.c.h.b16 %v7897
    %v8172 = vunpack.c.l.b16 %v7898
    %v8173 = vunpack.c.h.b16 %v7898
    %v8174 = vunpack.c.l.b16 %v7899
    %v8175 = vunpack.c.h.b16 %v7899
    %v8176 = vunpack.c.l.b16 %v7900
    %v8177 = vunpack.c.h.b16 %v7900
    %v8178 = vunpack.c.l.b16 %v7901
    %v8179 = vunpack.c.h.b16 %v7901
    %v8180 = vunpack.c.l.b16 %v7902
    %v8181 = vunpack.c.h.b16 %v7902
    %v8182 = vunpack.c.l.b16 %v7903
    %v8183 = vunpack.c.h.b16 %v7903
    %v8184 = vunpack.c.l.b16 %v7904
    %v8185 = vunpack.c.h.b16 %v7904
    %v8186 = vunpack.c.l.b16 %v7905
    %v8187 = vunpack.c.h.b16 %v7905
    %v8188 = vunpack.c.l.b16 %v7906
    %v8189 = vunpack.c.h.b16 %v7906
    %v8190 = vunpack.c.l.b16 %v7907
    %v8191 = vunpack.c.h.b16 %v7907
    %v8192 = vunpack.c.l.b16 %v7908
    %v8193 = vunpack.c.h.b16 %v7908
    %v8194 = vunpack.c.l.b16 %v7909
    %v8195 = vunpack.c.h.b16 %v7909
    %v8196 = vunpack.c.l.b16 %v7910
    %v8197 = vunpack.c.h.b16 %v7910
    %v8198 = vunpack.c.l.b16 %v7911
    %v8199 = vunpack.c.h.b16 %v7911
    %v8200 = vunpack.c.l.b16 %v7912
    %v8201 = vunpack.c.h.b16 %v7912
    %v8202 = vunpack.c.l.b16 %v7913
    %v8203 = vunpack.c.h.b16 %v7913
    %v8204 = vunpack.c.l.b16 %v7914
    %v8205 = vunpack.c.h.b16 %v7914
    %v8206 = vunpack.c.l.b16 %v7915
    %v8207 = vunpack.c.h.b16 %v7915
    %v8208 = vunpack.c.l.b16 %v7916
    %v8209 = vunpack.c.h.b16 %v7916
    %v8210 = vunpack.c.l.b16 %v7917
    %v8211 = vunpack.c.h.b16 %v7917
    %v8212 = vunpack.c.l.b16 %v7918
    %v8213 = vunpack.c.h.b16 %v7918
    %v8214 = vunpack.c.l.b16 %v7919
    %v8215 = vunpack.c.h.b16 %v7919
    %v8216 = vunpack.c.l.b16 %v7920
    %v8217 = vunpack.c.h.b16 %v7920
    %v8218 = vunpack.c.l.b16 %v7921
    %v8219 = vunpack.c.h.b16 %v7921
    %v8220 = vunpack.c.l.b16 %v7922
    %v8221 = vunpack.c.h.b16 %v7922
    %v8222 = vunpack.c.l.b16 %v7923
    %v8223 = vunpack.c.h.b16 %v7923
    %v8224 = vunpack.c.l.b16 %v7924
    %v8225 = vunpack.c.h.b16 %v7924
    %v8226 = vunpack.c.l.b16 %v7925
    %v8227 = vunpack.c.h.b16 %v7925
    %v8228 = vunpack.c.l.b16 %v7926
    %v8229 = vunpack.c.h.b16 %v7926
    %v8230 = vunpack.c.l.b16 %v7927
    %v8231 = vunpack.c.h.b16 %v7927
    %v8232 = vunpack.c.l.b16 %v7928
    %v8233 = vunpack.c.h.b16 %v7928
    %v8234 = vunpack.c.l.b16 %v7929
    %v8235 = vunpack.c.h.b16 %v7929
    %v8236 = vunpack.c.l.b16 %v7930
    %v8237 = vunpack.c.h.b16 %v7930
    %v8238 = vunpack.c.l.b16 %v7931
    %v8239 = vunpack.c.h.b16 %v7931
    %v8240 = vunpack.c.l.b16 %v7932
    %v8241 = vunpack.c.h.b16 %v7932
    %v8242 = vunpack.c.l.b16 %v7933
    %v8243 = vunpack.c.h.b16 %v7933
    %v8244 = vunpack.c.l.b16 %v7934
    %v8245 = vunpack.c.h.b16 %v7934
    %v8246 = vunpack.c.l.b16 %v7935
    %v8247 = vunpack.c.h.b16 %v7935
    %v8248 = vunpack.c.l.b16 %v7936
    %v8249 = vunpack.c.h.b16 %v7936
    %v8250 = vunpack.c.l.b16 %v7937
    %v8251 = vunpack.c.h.b16 %v7937
    %v8252 = vunpack.c.l.b16 %v7938
    %v8253 = vunpack.c.h.b16 %v7938
    %v8254 = vunpack.c.l.b16 %v7939
    %v8255 = vunpack.c.h.b16 %v7939
    %v8256 = vunpack.c.l.b16 %v7940
    %v8257 = vunpack.c.h.b16 %v7940
    %v8258 = vunpack.c.l.b16 %v7941
    %v8259 = vunpack.c.h.b16 %v7941
    %v8260 = vunpack.c.l.b16 %v7942
    %v8261 = vunpack.c.h.b16 %v7942
    %v8262 = vunpack.c.l.b16 %v7943
    %v8263 = vunpack.c.h.b16 %v7943
    %v8264 = vunpack.c.l.b16 %v7944
    %v8265 = vunpack.c.h.b16 %v7944
    %v8266 = vunpack.c.l.b16 %v7945
    %v8267 = vunpack.c.h.b16 %v7945
    %v8268 = vunpack.c.l.b16 %v7946
    %v8269 = vunpack.c.h.b16 %v7946
    %v8270 = vunpack.c.l.b16 %v7947
    %v8271 = vunpack.c.h.b16 %v7947
    %v8272 = vunpack.c.l.b16 %v7948
    %v8273 = vunpack.c.h.b16 %v7948
    %v8274 = vunpack.c.l.b16 %v7949
    %v8275 = vunpack.c.h.b16 %v7949
    %v8276 = vunpack.c.l.b16 %v7950
    %v8277 = vunpack.c.h.b16 %v7950
    %v8278 = vunpack.c.l.b16 %v7951
    %v8279 = vunpack.c.h.b16 %v7951
    %v8280 = vunpack.c.l.b16 %v7952
    %v8281 = vunpack.c.h.b16 %v7952
    %v8282 = vunpack.c.l.b16 %v7953
    %v8283 = vunpack.c.h.b16 %v7953
    %v8284 = vunpack.c.l.b16 %v7954
    %v8285 = vunpack.c.h.b16 %v7954
    %v8286 = vunpack.c.l.b16 %v7955
    %v8287 = vunpack.c.h.b16 %v7955
    %v8288 = vunpack.c.l.b16 %v7956
    %v8289 = vunpack.c.h.b16 %v7956
    %v8290 = vunpack.c.l.b16 %v7957
    %v8291 = vunpack.c.h.b16 %v7957
    %v8292 = vunpack.c.l.b16 %v7958
    %v8293 = vunpack.c.h.b16 %v7958
    %v8294 = vunpack.c.l.b16 %v7959
    %v8295 = vunpack.c.h.b16 %v7959
    %v8296 = vunpack.c.l.b16 %v7960
    %v8297 = vunpack.c.h.b16 %v7960
    %v8298 = vunpack.c.l.b16 %v7961
    %v8299 = vunpack.c.h.b16 %v7961
    %v8300 = vunpack.c.l.b16 %v7962
    %v8301 = vunpack.c.h.b16 %v7962
    %v8302 = vunpack.c.l.b16 %v7963
    %v8303 = vunpack.c.h.b16 %v7963
    %v8304 = vunpack.c.l.b16 %v7964
    %v8305 = vunpack.c.h.b16 %v7964
    %v8306 = vunpack.c.l.b16 %v7965
    %v8307 = vunpack.c.h.b16 %v7965
    %v8308 = vunpack.c.l.b16 %v7966
    %v8309 = vunpack.c.h.b16 %v7966
    %v8310 = vunpack.c.l.b16 %v7967
    %v8311 = vunpack.c.h.b16 %v7967
    %v8312 = vunpack.c.l.b16 %v7968
    %v8313 = vunpack.c.h.b16 %v7968
    %v8314 = vunpack.c.l.b16 %v7969
    %v8315 = vunpack.c.h.b16 %v7969
    %v8316 = vunpack.c.l.b16 %v7970
    %v8317 = vunpack.c.h.b16 %v7970
    %v8318 = vunpack.c.l.b16 %v7971
    %v8319 = vunpack.c.h.b16 %v7971
    %v8320 = vunpack.c.l.b16 %v7972
    %v8321 = vunpack.c.h.b16 %v7972
    %v8322 = vunpack.c.l.b16 %v7973
    %v8323 = vunpack.c.h.b16 %v7973
    %v8324 = vunpack.c.l.b16 %v7974
    %v8325 = vunpack.c.h.b16 %v7974
    %v8326 = vunpack.c.l.b16 %v7975
    %v8327 = vunpack.c.h.b16 %v7975
    %v8328 = vunpack.c.l.b16 %v7976
    %v8329 = vunpack.c.h.b16 %v7976
    %v8330 = vunpack.c.l.b16 %v7977
    %v8331 = vunpack.c.h.b16 %v7977
    %v8332 = vunpack.c.l.b16 %v7978
    %v8333 = vunpack.c.h.b16 %v7978
    %v8334 = vunpack.c.l.b16 %v7979
    %v8335 = vunpack.c.h.b16 %v7979
    %v8336 = vunpack.c.l.b16 %v7980
    %v8337 = vunpack.c.h.b16 %v7980
    %v8338 = vunpack.c.l.b16 %v7981
    %v8339 = vunpack.c.h.b16 %v7981
    %v8340 = vunpack.c.l.b16 %v7982
    %v8341 = vunpack.c.h.b16 %v7982
    %v8342 = vunpack.c.l.b16 %v7983
    %v8343 = vunpack.c.h.b16 %v7983
    %v8344 = vunpack.c.l.b16 %v7984
    %v8345 = vunpack.c.h.b16 %v7984
    %v8346 = vunpack.c.l.b16 %v7985
    %v8347 = vunpack.c.h.b16 %v7985
    %v8348 = vunpack.c.l.b16 %v7986
    %v8349 = vunpack.c.h.b16 %v7986
    %v8350 = vunpack.c.l.b16 %v7987
    %v8351 = vunpack.c.h.b16 %v7987
    %v8352 = vunpack.c.l.b16 %v7988
    %v8353 = vunpack.c.h.b16 %v7988
    %v8354 = vunpack.c.l.b16 %v7989
    %v8355 = vunpack.c.h.b16 %v7989
    %v8356 = vunpack.c.l.b16 %v7990
    %v8357 = vunpack.c.h.b16 %v7990
    %v8358 = vunpack.c.l.b16 %v7991
    %v8359 = vunpack.c.h.b16 %v7991
    %v8360 = vunpack.c.l.b16 %v7992
    %v8361 = vunpack.c.h.b16 %v7992
    %v8362 = vunpack.c.l.b16 %v7993
    %v8363 = vunpack.c.h.b16 %v7993
    %v8364 = vunpack.c.l.b16 %v7994
    %v8365 = vunpack.c.h.b16 %v7994
    %v8366 = vunpack.c.l.b16 %v7995
    %v8367 = vunpack.c.h.b16 %v7995
    %v8368 = vunpack.c.l.b16 %v7996
    %v8369 = vunpack.c.h.b16 %v7996
    %v8370 = vunpack.c.l.b16 %v7997
    %v8371 = vunpack.c.h.b16 %v7997
    %v8372 = vunpack.c.l.b16 %v7998
    %v8373 = vunpack.c.h.b16 %v7998
    %v8374 = vunpack.c.l.b16 %v7999
    %v8375 = vunpack.c.h.b16 %v7999
    %v8376 = vunpack.c.l.b16 %v8000
    %v8377 = vunpack.c.h.b16 %v8000
    %v8378 = vunpack.c.l.b16 %v8001
    %v8379 = vunpack.c.h.b16 %v8001
    %v8380 = vunpack.c.l.b16 %v8002
    %v8381 = vunpack.c.h.b16 %v8002
    %v8382 = vunpack.c.l.b16 %v8003
    %v8383 = vunpack.c.h.b16 %v8003
    %v8384 = vunpack.c.l.b16 %v8004
    %v8385 = vunpack.c.h.b16 %v8004
    %v8386 = vunpack.c.l.b16 %v8005
    %v8387 = vunpack.c.h.b16 %v8005
    %v8388 = vunpack.c.l.b16 %v8006
    %v8389 = vunpack.c.h.b16 %v8006
    %v8390 = vunpack.c.l.b16 %v8007
    %v8391 = vunpack.c.h.b16 %v8007
    %v8392 = vpack.c.b16 %v8140, %v8136
    %v8393 = vpack.c.b16 %v8141, %v8137
    %v8394 = vpack.c.b16 %v8142, %v8138
    %v8395 = vpack.c.b16 %v8143, %v8139
    %v8396 = vpack.c.b16 %v8148, %v8144
    %v8397 = vpack.c.b16 %v8149, %v8145
    %v8398 = vpack.c.b16 %v8150, %v8146
    %v8399 = vpack.c.b16 %v8151, %v8147
    %v8400 = vpack.c.b16 %v8156, %v8152
    %v8401 = vpack.c.b16 %v8157, %v8153
    %v8402 = vpack.c.b16 %v8158, %v8154
    %v8403 = vpack.c.b16 %v8159, %v8155
    %v8404 = vpack.c.b16 %v8164, %v8160
    %v8405 = vpack.c.b16 %v8165, %v8161
    %v8406 = vpack.c.b16 %v8166, %v8162
    %v8407 = vpack.c.b16 %v8167, %v8163
    %v8408 = vpack.c.b16 %v8172, %v8168
    %v8409 = vpack.c.b16 %v8173, %v8169
    %v8410 = vpack.c.b16 %v8174, %v8170
    %v8411 = vpack.c.b16 %v8175, %v8171
    %v8412 = vpack.c.b16 %v8180, %v8176
    %v8413 = vpack.c.b16 %v8181, %v8177
    %v8414 = vpack.c.b16 %v8182, %v8178
    %v8415 = vpack.c.b16 %v8183, %v8179
    %v8416 = vpack.c.b16 %v8188, %v8184
    %v8417 = vpack.c.b16 %v8189, %v8185
    %v8418 = vpack.c.b16 %v8190, %v8186
    %v8419 = vpack.c.b16 %v8191, %v8187
    %v8420 = vpack.c.b16 %v8196, %v8192
    %v8421 = vpack.c.b16 %v8197, %v8193
    %v8422 = vpack.c.b16 %v8198, %v8194
    %v8423 = vpack.c.b16 %v8199, %v8195
    %v8424 = vpack.c.b16 %v8204, %v8200
    %v8425 = vpack.c.b16 %v8205, %v8201
    %v8426 = vpack.c.b16 %v8206, %v8202
    %v8427 = vpack.c.b16 %v8207, %v8203
    %v8428 = vpack.c.b16 %v8212, %v8208
    %v8429 = vpack.c.b16 %v8213, %v8209
    %v8430 = vpack.c.b16 %v8214, %v8210
    %v8431 = vpack.c.b16 %v8215, %v8211
    %v8432 = vpack.c.b16 %v8220, %v8216
    %v8433 = vpack.c.b16 %v8221, %v8217
    %v8434 = vpack.c.b16 %v8222, %v8218
    %v8435 = vpack.c.b16 %v8223, %v8219
    %v8436 = vpack.c.b16 %v8228, %v8224
    %v8437 = vpack.c.b16 %v8229, %v8225
    %v8438 = vpack.c.b16 %v8230, %v8226
    %v8439 = vpack.c.b16 %v8231, %v8227
    %v8440 = vpack.c.b16 %v8236, %v8232
    %v8441 = vpack.c.b16 %v8237, %v8233
    %v8442 = vpack.c.b16 %v8238, %v8234
    %v8443 = vpack.c.b16 %v8239, %v8235
    %v8444 = vpack.c.b16 %v8244, %v8240
    %v8445 = vpack.c.b16 %v8245, %v8241
    %v8446 = vpack.c.b16 %v8246, %v8242
    %v8447 = vpack.c.b16 %v8247, %v8243
    %v8448 = vpack.c.b16 %v8252, %v8248
    %v8449 = vpack.c.b16 %v8253, %v8249
    %v8450 = vpack.c.b16 %v8254, %v8250
    %v8451 = vpack.c.b16 %v8255, %v8251
    %v8452 = vpack.c.b16 %v8260, %v8256
    %v8453 = vpack.c.b16 %v8261, %v8257
    %v8454 = vpack.c.b16 %v8262, %v8258
    %v8455 = vpack.c.b16 %v8263, %v8259
    %v8456 = vpack.c.b16 %v8268, %v8264
    %v8457 = vpack.c.b16 %v8269, %v8265
    %v8458 = vpack.c.b16 %v8270, %v8266
    %v8459 = vpack.c.b16 %v8271, %v8267
    %v8460 = vpack.c.b16 %v8276, %v8272
    %v8461 = vpack.c.b16 %v8277, %v8273
    %v8462 = vpack.c.b16 %v8278, %v8274
    %v8463 = vpack.c.b16 %v8279, %v8275
    %v8464 = vpack.c.b16 %v8284, %v8280
    %v8465 = vpack.c.b16 %v8285, %v8281
    %v8466 = vpack.c.b16 %v8286, %v8282
    %v8467 = vpack.c.b16 %v8287, %v8283
    %v8468 = vpack.c.b16 %v8292, %v8288
    %v8469 = vpack.c.b16 %v8293, %v8289
    %v8470 = vpack.c.b16 %v8294, %v8290
    %v8471 = vpack.c.b16 %v8295, %v8291
    %v8472 = vpack.c.b16 %v8300, %v8296
    %v8473 = vpack.c.b16 %v8301, %v8297
    %v8474 = vpack.c.b16 %v8302, %v8298
    %v8475 = vpack.c.b16 %v8303, %v8299
    %v8476 = vpack.c.b16 %v8308, %v8304
    %v8477 = vpack.c.b16 %v8309, %v8305
    %v8478 = vpack.c.b16 %v8310, %v8306
    %v8479 = vpack.c.b16 %v8311, %v8307
    %v8480 = vpack.c.b16 %v8316, %v8312
    %v8481 = vpack.c.b16 %v8317, %v8313
    %v8482 = vpack.c.b16 %v8318, %v8314
    %v8483 = vpack.c.b16 %v8319, %v8315
    %v8484 = vpack.c.b16 %v8324, %v8320
    %v8485 = vpack.c.b16 %v8325, %v8321
    %v8486 = vpack.c.b16 %v8326, %v8322
    %v8487 = vpack.c.b16 %v8327, %v8323
    %v8488 = vpack.c.b16 %v8332, %v8328
    %v8489 = vpack.c.b16 %v8333, %v8329
    %v8490 = vpack.c.b16 %v8334, %v8330
    %v8491 = vpack.c.b16 %v8335, %v8331
    %v8492 = vpack.c.b16 %v8340, %v8336
    %v8493 = vpack.c.b16 %v8341, %v8337
    %v8494 = vpack.c.b16 %v8342, %v8338
    %v8495 = vpack.c.b16 %v8343, %v8339
    %v8496 = vpack.c.b16 %v8348, %v8344
    %v8497 = vpack.c.b16 %v8349, %v8345
    %v8498 = vpack.c.b16 %v8350, %v8346
    %v8499 = vpack.c.b16 %v8351, %v8347
    %v8500 = vpack.c.b16 %v8356, %v8352
    %v8501 = vpack.c.b16 %v8357, %v8353
    %v8502 = vpack.c.b16 %v8358, %v8354
    %v8503 = vpack.c.b16 %v8359, %v8355
    %v8504 = vpack.c.b16 %v8364, %v8360
    %v8505 = vpack.c.b16 %v8365, %v8361
    %v8506 = vpack.c.b16 %v8366, %v8362
    %v8507 = vpack.c.b16 %v8367, %v8363
    %v8508 = vpack.c.b16 %v8372, %v8368
    %v8509 = vpack.c.b16 %v8373, %v8369
    %v8510 = vpack.c.b16 %v8374, %v8370
    %v8511 = vpack.c.b16 %v8375, %v8371
    %v8512 = vpack.c.b16 %v8380, %v8376
    %v8513 = vpack.c.b16 %v8381, %v8377
    %v8514 = vpack.c.b16 %v8382, %v8378
    %v8515 = vpack.c.b16 %v8383, %v8379
    %v8516 = vpack.c.b16 %v8388, %v8384
    %v8517 = vpack.c.b16 %v8389, %v8385
    %v8518 = vpack.c.b16 %v8390, %v8386
    %v8519 = vpack.c.b16 %v8391, %v8387
    %8648 = vmatprep.subr.bf16.mxu0 %v8421
    %8649 = vmatpush1.bf16.msra.mxu0 %v8420
    %8650 = vmatprep.subr.bf16.mxu0 %v8417
    %8651 = vmatpush1.bf16.msra.mxu0 %v8416
    %8652 = vmatprep.subr.bf16.mxu0 %v8413
    %8653 = vmatpush1.bf16.msra.mxu0 %v8412
    %8654 = vmatprep.subr.bf16.mxu0 %v8409
    %8655 = vmatpush1.bf16.msra.mxu0 %v8408
    %8656 = vmatprep.subr.bf16.mxu0 %v8405
    %8657 = vmatpush1.bf16.msra.mxu0 %v8404
    %8658 = vmatprep.subr.bf16.mxu0 %v8401
    %8659 = vmatpush1.bf16.msra.mxu0 %v8400
    %8660 = vmatprep.subr.bf16.mxu0 %v8397
    %8661 = vmatpush1.bf16.msra.mxu0 %v8396
    %8662 = vmatprep.subr.bf16.mxu0 %v8393
    %8663 = vmatpush1.bf16.msra.mxu0 %v8392
    %8664 = vmatprep.subr.bf16.mxu0 %v8453
    %8665 = vmatpush2.bf16.msra.mxu0 %v8452
    %8666 = vmatprep.subr.bf16.mxu0 %v8449
    %8667 = vmatpush2.bf16.msra.mxu0 %v8448
    %8668 = vmatprep.subr.bf16.mxu0 %v8445
    %8669 = vmatpush2.bf16.msra.mxu0 %v8444
    %8670 = vmatprep.subr.bf16.mxu0 %v8441
    %8671 = vmatpush2.bf16.msra.mxu0 %v8440
    %8672 = vmatprep.subr.bf16.mxu0 %v8437
    %8673 = vmatpush2.bf16.msra.mxu0 %v8436
    %8674 = vmatprep.subr.bf16.mxu0 %v8433
    %8675 = vmatpush2.bf16.msra.mxu0 %v8432
    %8676 = vmatprep.subr.bf16.mxu0 %v8429
    %8677 = vmatpush2.bf16.msra.mxu0 %v8428
    %8678 = vmatprep.subr.bf16.mxu0 %v8425
    %8679 = vmatpush2.bf16.msra.mxu0 %v8424
    %8680 = vmatprep.mubr.bf16.mxu0 %v7877
    %8681 = vmatmul.mubr.bf16.gmra.mxu0 %v7876
    %v8682 = vpop.f32.mrf.mxu0
    %v8683 = vadd.f32 0.0, %v8682
    %v8684 = vpop.f32.mrf.mxu0
    %v8685 = vadd.f32 0.0, %v8684
    %v8686 = vpop.f32.mrf.mxu0
    %v8687 = vpop.f32.mrf.mxu0
    %8688 = vdwg.mxu0
    %8689 = vmatprep.subr.bf16.mxu0 %v8485
    %8690 = vmatpush1.bf16.msra.mxu0 %v8484
    %8691 = vmatprep.subr.bf16.mxu0 %v8481
    %8692 = vmatpush1.bf16.msra.mxu0 %v8480
    %8693 = vmatprep.subr.bf16.mxu0 %v8477
    %8694 = vmatpush1.bf16.msra.mxu0 %v8476
    %8695 = vmatprep.subr.bf16.mxu0 %v8473
    %8696 = vmatpush1.bf16.msra.mxu0 %v8472
    %8697 = vmatprep.subr.bf16.mxu0 %v8469
    %8698 = vmatpush1.bf16.msra.mxu0 %v8468
    %8699 = vmatprep.subr.bf16.mxu0 %v8465
    %8700 = vmatpush1.bf16.msra.mxu0 %v8464
    %8701 = vmatprep.subr.bf16.mxu0 %v8461
    %8702 = vmatpush1.bf16.msra.mxu0 %v8460
    %8703 = vmatprep.subr.bf16.mxu0 %v8457
    %8704 = vmatpush1.bf16.msra.mxu0 %v8456
    %8705 = vmatprep.subr.bf16.mxu0 %v8517
    %8706 = vmatpush2.bf16.msra.mxu0 %v8516
    %8707 = vmatprep.subr.bf16.mxu0 %v8513
    %8708 = vmatpush2.bf16.msra.mxu0 %v8512
    %8709 = vmatprep.subr.bf16.mxu0 %v8509
    %8710 = vmatpush2.bf16.msra.mxu0 %v8508
    %8711 = vmatprep.subr.bf16.mxu0 %v8505
    %8712 = vmatpush2.bf16.msra.mxu0 %v8504
    %8713 = vmatprep.subr.bf16.mxu0 %v8501
    %8714 = vmatpush2.bf16.msra.mxu0 %v8500
    %8715 = vmatprep.subr.bf16.mxu0 %v8497
    %8716 = vmatpush2.bf16.msra.mxu0 %v8496
    %8717 = vmatprep.subr.bf16.mxu0 %v8493
    %8718 = vmatpush2.bf16.msra.mxu0 %v8492
    %8719 = vmatprep.subr.bf16.mxu0 %v8489
    %8720 = vmatpush2.bf16.msra.mxu0 %v8488
    %8721 = vmatprep.mubr.bf16.mxu0 %v7879
    %8722 = vmatmul.mubr.bf16.gmra.mxu0 %v7878
    %v8723 = vpop.f32.mrf.mxu0
    %v8724 = vadd.f32 %v8683, %v8723
    %v8725 = vpop.f32.mrf.mxu0
    %v8726 = vadd.f32 %v8685, %v8725
    %v8727 = vpop.f32.mrf.mxu0
    %v8728 = vpop.f32.mrf.mxu0
    %8729 = vdwg.mxu0
    %8730 = vmatprep.subr.bf16.mxu0 %v8423
    %8731 = vmatpush1.bf16.msra.mxu0 %v8422
    %8732 = vmatprep.subr.bf16.mxu0 %v8419
    %8733 = vmatpush1.bf16.msra.mxu0 %v8418
    %8734 = vmatprep.subr.bf16.mxu0 %v8415
    %8735 = vmatpush1.bf16.msra.mxu0 %v8414
    %8736 = vmatprep.subr.bf16.mxu0 %v8411
    %8737 = vmatpush1.bf16.msra.mxu0 %v8410
    %8738 = vmatprep.subr.bf16.mxu0 %v8407
    %8739 = vmatpush1.bf16.msra.mxu0 %v8406
    %8740 = vmatprep.subr.bf16.mxu0 %v8403
    %8741 = vmatpush1.bf16.msra.mxu0 %v8402
    %8742 = vmatprep.subr.bf16.mxu0 %v8399
    %8743 = vmatpush1.bf16.msra.mxu0 %v8398
    %8744 = vmatprep.subr.bf16.mxu0 %v8395
    %8745 = vmatpush1.bf16.msra.mxu0 %v8394
    %8746 = vmatprep.subr.bf16.mxu0 %v8455
    %8747 = vmatpush2.bf16.msra.mxu0 %v8454
    %8748 = vmatprep.subr.bf16.mxu0 %v8451
    %8749 = vmatpush2.bf16.msra.mxu0 %v8450
    %8750 = vmatprep.subr.bf16.mxu0 %v8447
    %8751 = vmatpush2.bf16.msra.mxu0 %v8446
    %8752 = vmatprep.subr.bf16.mxu0 %v8443
    %8753 = vmatpush2.bf16.msra.mxu0 %v8442
    %8754 = vmatprep.subr.bf16.mxu0 %v8439
    %8755 = vmatpush2.bf16.msra.mxu0 %v8438
    %8756 = vmatprep.subr.bf16.mxu0 %v8435
    %8757 = vmatpush2.bf16.msra.mxu0 %v8434
    %8758 = vmatprep.subr.bf16.mxu0 %v8431
    %8759 = vmatpush2.bf16.msra.mxu0 %v8430
    %8760 = vmatprep.subr.bf16.mxu0 %v8427
    %8761 = vmatpush2.bf16.msra.mxu0 %v8426
    %8762 = vmatprep.mubr.bf16.mxu0 %v7877
    %8763 = vmatmul.mubr.bf16.gmra.mxu0 %v7876
    %v8764 = vpop.f32.mrf.mxu0
    %v8765 = vadd.f32 0.0, %v8764
    %v8766 = vpop.f32.mrf.mxu0
    %v8767 = vadd.f32 0.0, %v8766
    %v8768 = vpop.f32.mrf.mxu0
    %v8769 = vpop.f32.mrf.mxu0
    %8770 = vdwg.mxu0
    %8771 = vmatprep.subr.bf16.mxu0 %v8487
    %8772 = vmatpush1.bf16.msra.mxu0 %v8486
    %8773 = vmatprep.subr.bf16.mxu0 %v8483
    %8774 = vmatpush1.bf16.msra.mxu0 %v8482
    %8775 = vmatprep.subr.bf16.mxu0 %v8479
    %8776 = vmatpush1.bf16.msra.mxu0 %v8478
    %8777 = vmatprep.subr.bf16.mxu0 %v8475
    %8778 = vmatpush1.bf16.msra.mxu0 %v8474
    %8779 = vmatprep.subr.bf16.mxu0 %v8471
    %8780 = vmatpush1.bf16.msra.mxu0 %v8470
    %8781 = vmatprep.subr.bf16.mxu0 %v8467
    %8782 = vmatpush1.bf16.msra.mxu0 %v8466
    %8783 = vmatprep.subr.bf16.mxu0 %v8463
    %8784 = vmatpush1.bf16.msra.mxu0 %v8462
    %8785 = vmatprep.subr.bf16.mxu0 %v8459
    %8786 = vmatpush1.bf16.msra.mxu0 %v8458
    %8787 = vmatprep.subr.bf16.mxu0 %v8519
    %8788 = vmatpush2.bf16.msra.mxu0 %v8518
    %8789 = vmatprep.subr.bf16.mxu0 %v8515
    %8790 = vmatpush2.bf16.msra.mxu0 %v8514
    %8791 = vmatprep.subr.bf16.mxu0 %v8511
    %8792 = vmatpush2.bf16.msra.mxu0 %v8510
    %8793 = vmatprep.subr.bf16.mxu0 %v8507
    %8794 = vmatpush2.bf16.msra.mxu0 %v8506
    %8795 = vmatprep.subr.bf16.mxu0 %v8503
    %8796 = vmatpush2.bf16.msra.mxu0 %v8502
    %8797 = vmatprep.subr.bf16.mxu0 %v8499
    %8798 = vmatpush2.bf16.msra.mxu0 %v8498
    %8799 = vmatprep.subr.bf16.mxu0 %v8495
    %8800 = vmatpush2.bf16.msra.mxu0 %v8494
    %8801 = vmatprep.subr.bf16.mxu0 %v8491
    %8802 = vmatpush2.bf16.msra.mxu0 %v8490
    %8803 = vmatprep.mubr.bf16.mxu0 %v7879
    %8804 = vmatmul.mubr.bf16.gmra.mxu0 %v7878
    %v8805 = vpop.f32.mrf.mxu0
    %v8806 = vadd.f32 %v8765, %v8805
    %v8807 = vpop.f32.mrf.mxu0
    %v8808 = vadd.f32 %v8767, %v8807
    %v8809 = vpop.f32.mrf.mxu0
    %v8810 = vpop.f32.mrf.mxu0
    %8811 = vdwg.mxu0
    %v8812 = vadd.f32 %v7711, %v8724
    %v8813 = vadd.f32 %v7717, %v8726
    %v8814 = vadd.f32 %v7723, %v8806
    %v8815 = vadd.f32 %v7729, %v8808
    %v8816 = vpack.c.bf16 %v7868, %v7868
    %v8817 = vpack.c.bf16 %v7875, %v7875
    %v8818 = vld [vmem:[#allocation11] sm:$0xff]
    %v8819 = vld [vmem:[#allocation11 + $0x8] sm:$0xff]
    %v8820 = vld [vmem:[#allocation11 + $0x10] sm:$0xff]
    %v8821 = vld [vmem:[#allocation11 + $0x18] sm:$0xff]
    %v8822 = vld [vmem:[#allocation11 + $0x20] sm:$0xff]
    %v8823 = vld [vmem:[#allocation11 + $0x28] sm:$0xff]
    %v8824 = vld [vmem:[#allocation11 + $0x30] sm:$0xff]
    %v8825 = vld [vmem:[#allocation11 + $0x38] sm:$0xff]
    %v8826 = vld [vmem:[#allocation11 + $0x40] sm:$0xff]
    %v8827 = vld [vmem:[#allocation11 + $0x48] sm:$0xff]
    %v8828 = vld [vmem:[#allocation11 + $0x50] sm:$0xff]
    %v8829 = vld [vmem:[#allocation11 + $0x58] sm:$0xff]
    %v8830 = vld [vmem:[#allocation11 + $0x60] sm:$0xff]
    %v8831 = vld [vmem:[#allocation11 + $0x68] sm:$0xff]
    %v8832 = vld [vmem:[#allocation11 + $0x70] sm:$0xff]
    %v8833 = vld [vmem:[#allocation11 + $0x78] sm:$0xff]
    %v8834 = vld [vmem:[#allocation11 + $0x80] sm:$0xff]
    %v8835 = vld [vmem:[#allocation11 + $0x88] sm:$0xff]
    %v8836 = vld [vmem:[#allocation11 + $0x90] sm:$0xff]
    %v8837 = vld [vmem:[#allocation11 + $0x98] sm:$0xff]
    %v8838 = vld [vmem:[#allocation11 + $0xa0] sm:$0xff]
    %v8839 = vld [vmem:[#allocation11 + $0xa8] sm:$0xff]
    %v8840 = vld [vmem:[#allocation11 + $0xb0] sm:$0xff]
    %v8841 = vld [vmem:[#allocation11 + $0xb8] sm:$0xff]
    %v8842 = vld [vmem:[#allocation11 + $0xc0] sm:$0xff]
    %v8843 = vld [vmem:[#allocation11 + $0xc8] sm:$0xff]
    %v8844 = vld [vmem:[#allocation11 + $0xd0] sm:$0xff]
    %v8845 = vld [vmem:[#allocation11 + $0xd8] sm:$0xff]
    %v8846 = vld [vmem:[#allocation11 + $0xe0] sm:$0xff]
    %v8847 = vld [vmem:[#allocation11 + $0xe8] sm:$0xff]
    %v8848 = vld [vmem:[#allocation11 + $0xf0] sm:$0xff]
    %v8849 = vld [vmem:[#allocation11 + $0xf8] sm:$0xff]
    %v8850 = vld [vmem:[#allocation11 + $0x100] sm:$0xff]
    %v8851 = vld [vmem:[#allocation11 + $0x108] sm:$0xff]
    %v8852 = vld [vmem:[#allocation11 + $0x110] sm:$0xff]
    %v8853 = vld [vmem:[#allocation11 + $0x118] sm:$0xff]
    %v8854 = vld [vmem:[#allocation11 + $0x120] sm:$0xff]
    %v8855 = vld [vmem:[#allocation11 + $0x128] sm:$0xff]
    %v8856 = vld [vmem:[#allocation11 + $0x130] sm:$0xff]
    %v8857 = vld [vmem:[#allocation11 + $0x138] sm:$0xff]
    %v8858 = vld [vmem:[#allocation11 + $0x140] sm:$0xff]
    %v8859 = vld [vmem:[#allocation11 + $0x148] sm:$0xff]
    %v8860 = vld [vmem:[#allocation11 + $0x150] sm:$0xff]
    %v8861 = vld [vmem:[#allocation11 + $0x158] sm:$0xff]
    %v8862 = vld [vmem:[#allocation11 + $0x160] sm:$0xff]
    %v8863 = vld [vmem:[#allocation11 + $0x168] sm:$0xff]
    %v8864 = vld [vmem:[#allocation11 + $0x170] sm:$0xff]
    %v8865 = vld [vmem:[#allocation11 + $0x178] sm:$0xff]
    %v8914 = vunpack.c.l.b16 %v8818
    %v8915 = vunpack.c.h.b16 %v8818
    %v8916 = vunpack.c.l.b16 %v8819
    %v8917 = vunpack.c.h.b16 %v8819
    %v8918 = vunpack.c.l.b16 %v8820
    %v8919 = vunpack.c.h.b16 %v8820
    %v8920 = vunpack.c.l.b16 %v8821
    %v8921 = vunpack.c.h.b16 %v8821
    %v8922 = vunpack.c.l.b16 %v8822
    %v8923 = vunpack.c.h.b16 %v8822
    %v8924 = vunpack.c.l.b16 %v8823
    %v8925 = vunpack.c.h.b16 %v8823
    %v8926 = vunpack.c.l.b16 %v8824
    %v8927 = vunpack.c.h.b16 %v8824
    %v8928 = vunpack.c.l.b16 %v8825
    %v8929 = vunpack.c.h.b16 %v8825
    %v8930 = vunpack.c.l.b16 %v8826
    %v8931 = vunpack.c.h.b16 %v8826
    %v8932 = vunpack.c.l.b16 %v8827
    %v8933 = vunpack.c.h.b16 %v8827
    %v8934 = vunpack.c.l.b16 %v8828
    %v8935 = vunpack.c.h.b16 %v8828
    %v8936 = vunpack.c.l.b16 %v8829
    %v8937 = vunpack.c.h.b16 %v8829
    %v8938 = vunpack.c.l.b16 %v8830
    %v8939 = vunpack.c.h.b16 %v8830
    %v8940 = vunpack.c.l.b16 %v8831
    %v8941 = vunpack.c.h.b16 %v8831
    %v8942 = vunpack.c.l.b16 %v8832
    %v8943 = vunpack.c.h.b16 %v8832
    %v8944 = vunpack.c.l.b16 %v8833
    %v8945 = vunpack.c.h.b16 %v8833
    %v8946 = vunpack.c.l.b16 %v8834
    %v8947 = vunpack.c.h.b16 %v8834
    %v8948 = vunpack.c.l.b16 %v8835
    %v8949 = vunpack.c.h.b16 %v8835
    %v8950 = vunpack.c.l.b16 %v8836
    %v8951 = vunpack.c.h.b16 %v8836
    %v8952 = vunpack.c.l.b16 %v8837
    %v8953 = vunpack.c.h.b16 %v8837
    %v8954 = vunpack.c.l.b16 %v8838
    %v8955 = vunpack.c.h.b16 %v8838
    %v8956 = vunpack.c.l.b16 %v8839
    %v8957 = vunpack.c.h.b16 %v8839
    %v8958 = vunpack.c.l.b16 %v8840
    %v8959 = vunpack.c.h.b16 %v8840
    %v8960 = vunpack.c.l.b16 %v8841
    %v8961 = vunpack.c.h.b16 %v8841
    %v8962 = vunpack.c.l.b16 %v8842
    %v8963 = vunpack.c.h.b16 %v8842
    %v8964 = vunpack.c.l.b16 %v8843
    %v8965 = vunpack.c.h.b16 %v8843
    %v8966 = vunpack.c.l.b16 %v8844
    %v8967 = vunpack.c.h.b16 %v8844
    %v8968 = vunpack.c.l.b16 %v8845
    %v8969 = vunpack.c.h.b16 %v8845
    %v8970 = vunpack.c.l.b16 %v8846
    %v8971 = vunpack.c.h.b16 %v8846
    %v8972 = vunpack.c.l.b16 %v8847
    %v8973 = vunpack.c.h.b16 %v8847
    %v8974 = vunpack.c.l.b16 %v8848
    %v8975 = vunpack.c.h.b16 %v8848
    %v8976 = vunpack.c.l.b16 %v8849
    %v8977 = vunpack.c.h.b16 %v8849
    %v8978 = vunpack.c.l.b16 %v8850
    %v8979 = vunpack.c.h.b16 %v8850
    %v8980 = vunpack.c.l.b16 %v8851
    %v8981 = vunpack.c.h.b16 %v8851
    %v8982 = vunpack.c.l.b16 %v8852
    %v8983 = vunpack.c.h.b16 %v8852
    %v8984 = vunpack.c.l.b16 %v8853
    %v8985 = vunpack.c.h.b16 %v8853
    %v8986 = vunpack.c.l.b16 %v8854
    %v8987 = vunpack.c.h.b16 %v8854
    %v8988 = vunpack.c.l.b16 %v8855
    %v8989 = vunpack.c.h.b16 %v8855
    %v8990 = vunpack.c.l.b16 %v8856
    %v8991 = vunpack.c.h.b16 %v8856
    %v8992 = vunpack.c.l.b16 %v8857
    %v8993 = vunpack.c.h.b16 %v8857
    %v8994 = vunpack.c.l.b16 %v8858
    %v8995 = vunpack.c.h.b16 %v8858
    %v8996 = vunpack.c.l.b16 %v8859
    %v8997 = vunpack.c.h.b16 %v8859
    %v8998 = vunpack.c.l.b16 %v8860
    %v8999 = vunpack.c.h.b16 %v8860
    %v9000 = vunpack.c.l.b16 %v8861
    %v9001 = vunpack.c.h.b16 %v8861
    %v9002 = vunpack.c.l.b16 %v8862
    %v9003 = vunpack.c.h.b16 %v8862
    %v9004 = vunpack.c.l.b16 %v8863
    %v9005 = vunpack.c.h.b16 %v8863
    %v9006 = vunpack.c.l.b16 %v8864
    %v9007 = vunpack.c.h.b16 %v8864
    %v9008 = vunpack.c.l.b16 %v8865
    %v9009 = vunpack.c.h.b16 %v8865
    %v9010 = vpack.c.b16 %v8918, %v8914
    %v9011 = vpack.c.b16 %v8919, %v8915
    %v9012 = vpack.c.b16 %v8920, %v8916
    %v9013 = vpack.c.b16 %v8921, %v8917
    %v9014 = vpack.c.b16 %v8926, %v8922
    %v9015 = vpack.c.b16 %v8927, %v8923
    %v9016 = vpack.c.b16 %v8928, %v8924
    %v9017 = vpack.c.b16 %v8929, %v8925
    %v9018 = vpack.c.b16 %v8934, %v8930
    %v9019 = vpack.c.b16 %v8935, %v8931
    %v9020 = vpack.c.b16 %v8936, %v8932
    %v9021 = vpack.c.b16 %v8937, %v8933
    %v9022 = vpack.c.b16 %v8942, %v8938
    %v9023 = vpack.c.b16 %v8943, %v8939
    %v9024 = vpack.c.b16 %v8944, %v8940
    %v9025 = vpack.c.b16 %v8945, %v8941
    %v9026 = vpack.c.b16 %v8950, %v8946
    %v9027 = vpack.c.b16 %v8951, %v8947
    %v9028 = vpack.c.b16 %v8952, %v8948
    %v9029 = vpack.c.b16 %v8953, %v8949
    %v9030 = vpack.c.b16 %v8958, %v8954
    %v9031 = vpack.c.b16 %v8959, %v8955
    %v9032 = vpack.c.b16 %v8960, %v8956
    %v9033 = vpack.c.b16 %v8961, %v8957
    %v9034 = vpack.c.b16 %v8966, %v8962
    %v9035 = vpack.c.b16 %v8967, %v8963
    %v9036 = vpack.c.b16 %v8968, %v8964
    %v9037 = vpack.c.b16 %v8969, %v8965
    %v9038 = vpack.c.b16 %v8974, %v8970
    %v9039 = vpack.c.b16 %v8975, %v8971
    %v9040 = vpack.c.b16 %v8976, %v8972
    %v9041 = vpack.c.b16 %v8977, %v8973
    %v9042 = vpack.c.b16 %v8982, %v8978
    %v9043 = vpack.c.b16 %v8983, %v8979
    %v9044 = vpack.c.b16 %v8984, %v8980
    %v9045 = vpack.c.b16 %v8985, %v8981
    %v9046 = vpack.c.b16 %v8990, %v8986
    %v9047 = vpack.c.b16 %v8991, %v8987
    %v9048 = vpack.c.b16 %v8992, %v8988
    %v9049 = vpack.c.b16 %v8993, %v8989
    %v9050 = vpack.c.b16 %v8998, %v8994
    %v9051 = vpack.c.b16 %v8999, %v8995
    %v9052 = vpack.c.b16 %v9000, %v8996
    %v9053 = vpack.c.b16 %v9001, %v8997
    %v9054 = vpack.c.b16 %v9006, %v9002
    %v9055 = vpack.c.b16 %v9007, %v9003
    %v9056 = vpack.c.b16 %v9008, %v9004
    %v9057 = vpack.c.b16 %v9009, %v9005
    %v9107 = vsel %vm624, %v8817, 0
    %9109 = vmatprep.subr.bf16.mxu0 %v9039
    %9110 = vmatpush1.bf16.msra.mxu0 %v9038
    %9111 = vmatprep.subr.bf16.mxu0 %v9035
    %9112 = vmatpush1.bf16.msra.mxu0 %v9034
    %9113 = vmatprep.subr.bf16.mxu0 %v9031
    %9114 = vmatpush1.bf16.msra.mxu0 %v9030
    %9115 = vmatprep.subr.bf16.mxu0 %v9027
    %9116 = vmatpush1.bf16.msra.mxu0 %v9026
    %9117 = vmatprep.subr.bf16.mxu0 %v9023
    %9118 = vmatpush1.bf16.msra.mxu0 %v9022
    %9119 = vmatprep.subr.bf16.mxu0 %v9019
    %9120 = vmatpush1.bf16.msra.mxu0 %v9018
    %9121 = vmatprep.subr.bf16.mxu0 %v9015
    %9122 = vmatpush1.bf16.msra.mxu0 %v9014
    %9123 = vmatprep.subr.bf16.mxu0 %v9011
    %9124 = vmatpush1.bf16.msra.mxu0 %v9010
    %9125 = vmatprep.subr.bf16.mxu0 0
    %9126 = vmatpush2.bf16.msra.mxu0 0
    %9127 = vmatprep.subr.bf16.mxu0 0
    %9128 = vmatpush2.bf16.msra.mxu0 0
    %9129 = vmatprep.subr.bf16.mxu0 0
    %9130 = vmatpush2.bf16.msra.mxu0 0
    %9131 = vmatprep.subr.bf16.mxu0 0
    %9132 = vmatpush2.bf16.msra.mxu0 0
    %9133 = vmatprep.subr.bf16.mxu0 %v9055
    %9134 = vmatpush2.bf16.msra.mxu0 %v9054
    %9135 = vmatprep.subr.bf16.mxu0 %v9051
    %9136 = vmatpush2.bf16.msra.mxu0 %v9050
    %9137 = vmatprep.subr.bf16.mxu0 %v9047
    %9138 = vmatpush2.bf16.msra.mxu0 %v9046
    %9139 = vmatprep.subr.bf16.mxu0 %v9043
    %9140 = vmatpush2.bf16.msra.mxu0 %v9042
    %9141 = vmatprep.mubr.bf16.mxu0 %v9107
    %9142 = vmatmul.mubr.bf16.gmra.mxu0 %v8816
    %v9143 = vpop.f32.mrf.mxu0
    %v9144 = vadd.f32 0.0, %v9143
    %v9145 = vpop.f32.mrf.mxu0
    %v9146 = vadd.f32 0.0, %v9145
    %v9147 = vpop.f32.mrf.mxu0
    %v9148 = vpop.f32.mrf.mxu0
    %9149 = vdwg.mxu0
    %9150 = vmatprep.subr.bf16.mxu0 %v9041
    %9151 = vmatpush1.bf16.msra.mxu0 %v9040
    %9152 = vmatprep.subr.bf16.mxu0 %v9037
    %9153 = vmatpush1.bf16.msra.mxu0 %v9036
    %9154 = vmatprep.subr.bf16.mxu0 %v9033
    %9155 = vmatpush1.bf16.msra.mxu0 %v9032
    %9156 = vmatprep.subr.bf16.mxu0 %v9029
    %9157 = vmatpush1.bf16.msra.mxu0 %v9028
    %9158 = vmatprep.subr.bf16.mxu0 %v9025
    %9159 = vmatpush1.bf16.msra.mxu0 %v9024
    %9160 = vmatprep.subr.bf16.mxu0 %v9021
    %9161 = vmatpush1.bf16.msra.mxu0 %v9020
    %9162 = vmatprep.subr.bf16.mxu0 %v9017
    %9163 = vmatpush1.bf16.msra.mxu0 %v9016
    %9164 = vmatprep.subr.bf16.mxu0 %v9013
    %9165 = vmatpush1.bf16.msra.mxu0 %v9012
    %9166 = vmatprep.subr.bf16.mxu0 0
    %9167 = vmatpush2.bf16.msra.mxu0 0
    %9168 = vmatprep.subr.bf16.mxu0 0
    %9169 = vmatpush2.bf16.msra.mxu0 0
    %9170 = vmatprep.subr.bf16.mxu0 0
    %9171 = vmatpush2.bf16.msra.mxu0 0
    %9172 = vmatprep.subr.bf16.mxu0 0
    %9173 = vmatpush2.bf16.msra.mxu0 0
    %9174 = vmatprep.subr.bf16.mxu0 %v9057
    %9175 = vmatpush2.bf16.msra.mxu0 %v9056
    %9176 = vmatprep.subr.bf16.mxu0 %v9053
    %9177 = vmatpush2.bf16.msra.mxu0 %v9052
    %9178 = vmatprep.subr.bf16.mxu0 %v9049
    %9179 = vmatpush2.bf16.msra.mxu0 %v9048
    %9180 = vmatprep.subr.bf16.mxu0 %v9045
    %9181 = vmatpush2.bf16.msra.mxu0 %v9044
    %9182 = vmatprep.mubr.bf16.mxu0 %v9107
    %9183 = vmatmul.mubr.bf16.gmra.mxu0 %v8816
    %v9184 = vpop.f32.mrf.mxu0
    %v9185 = vadd.f32 0.0, %v9184
    %v9186 = vpop.f32.mrf.mxu0
    %v9187 = vadd.f32 0.0, %v9186
    %v9188 = vpop.f32.mrf.mxu0
    %v9189 = vpop.f32.mrf.mxu0
    %9190 = vdwg.mxu0
    %v9191 = vadd.f32 %v8812, %v9144
    %v9192 = vadd.f32 %v8813, %v9146
    %v9193 = vadd.f32 %v8814, %v9185
    %v9194 = vadd.f32 %v8815, %v9187
    %v9195 = vld [vmem:[#allocation12] sm:$0xf]
    %v9197 = vlaneseq
    %v9198 = vshrl.u32 %v9197, 7
    %v9199 = vsub.s32 0, %v9198
    %v9200 = vrot.slane %v9195, %v9199
    %v9201 = vlaneseq
    %v9202 = vshrl.u32 %v9201, 7
    %v9203 = vsub.s32 1, %v9202
    %v9204 = vrot.slane %v9195, %v9203
    %v9205 = vlaneseq
    %v9206 = vshrl.u32 %v9205, 7
    %v9207 = vsub.s32 2, %v9206
    %v9208 = vrot.slane %v9195, %v9207
    %v9209 = vlaneseq
    %v9210 = vshrl.u32 %v9209, 7
    %v9211 = vsub.s32 3, %v9210
    %v9212 = vrot.slane %v9195, %v9211
    %v9217 = vadd.f32 %v9191, %v9200
    %v9218 = vadd.f32 %v9192, %v9204
    %v9219 = vadd.f32 %v9193, %v9208
    %v9220 = vadd.f32 %v9194, %v9212
    %v9225 = vcombine.low %v9217, %v9218
    %v9226 = vcombine.low %v9219, %v9220
    %v9228 = vunpack.c.l.s4 1966171168
    %v9229 = vunpack.c.0.s8 %v9228
    %v9230 = vlaneseq
    %v9231 = vshrl.u32 %v9230, 7
    %v9232 = vsub.s32 %v9229, %v9231
    %v9233 = vrot.slane %v9225, %v9232
    %v9235 = vunpack.c.l.s4 1966171168
    %v9236 = vunpack.c.0.s8 %v9235
    %v9237 = vlaneseq
    %v9238 = vshrl.u32 %v9237, 7
    %v9239 = vsub.s32 %v9236, %v9238
    %v9240 = vrot.slane %v9226, %v9239
    %v9241 = vcombine.low %v9233, %v9240
    %v9243 = vunpack.c.l.s4 1966171168
    %v9244 = vunpack.c.0.s8 %v9243
    %v9245 = vlaneseq
    %v9246 = vshrl.u32 %v9245, 7
    %v9247 = vsub.s32 %v9244, %v9246
    %v9248 = vrot.slane %v9241, %v9247
    %s9250 = scalar_lea.vmem [#allocation14], 1
    %9251 = vst.msk [vmem:[%s9250] ss:$2 sm:$0xf] %vm4690, %v9248
    // Predicated region
    $region82: #{tpu_custom_call.1} parent=1 // pred_check
      _
    $region83: #{tpu_custom_call.1} parent=1 // pred_check_branch
      %9253 = sbr.rel (0) target = $region85
    $region84: #{tpu_custom_call.1} parent=1 // pred_region
      %s9255 = ssub.s32 128, 128
      %9256 = vsyncadd [#allocation5], %s9255
      %s9258 = sshll.u32 [#allocation14], 4
      %s9259 = int_to_ptr.vmem [resolvable:$true] %s9258
      %9261 = dma.vmem_to_hbm [thread:$0]  %s9259, 128, %s14, [#allocation5]
    $region85: #{tpu_custom_call.1} parent=1 // pred_fallthru
      _
    // Predicated region
    $region86: #{tpu_custom_call.1} parent=1 // pred_check
      _
    $region87: #{tpu_custom_call.1} parent=1 // pred_check_branch
      %9263 = sbr.rel (0) target = $region89
    $region88: #{tpu_custom_call.1} parent=1 // pred_region
      %9264 = dma.done [#allocation5], 128
    $region89: #{tpu_custom_call.1} parent=1 // pred_fallthru
      _
    %9265 = vsyncpa [#allocation4], 1
    %9266 = vsyncpa [#allocation7], 1
    %9267 = vsyncpa [#allocation10], 1
    %9268 = vsyncpa [#allocation13], 1
    %9269 = vsyncpa [#allocation5], 1

</llo_original>
